<compile_context>
chip_gen: v5e
topology: v5e:2x2
jax: 0.10.0
libtpu: 0.0.40
codegen_flags: <defaults>
</compile_context>

<pallas_src>
import functools

import jax
import jax.numpy as jnp
from jax import lax
from jax.experimental import pallas as pl
from jax.experimental.pallas import tpu as pltpu

EPS = 1e-5  # PyTorch InstanceNorm2d default (affine=False, track_running_stats=False)


# ----------------------------- in-kernel helpers -----------------------------


def _reflect_pad_1(x, H, W):
    """(H, W, C) -> (H+2, W+2, C) with ReflectionPad2d(1) semantics."""
    rows = jnp.concatenate([x[1:2], x, x[H - 2:H - 1]], axis=0)            # (H+2, W, C)
    return jnp.concatenate([rows[:, 1:2], rows, rows[:, W - 2:W - 1]], axis=1)


def _conv3x3_grouped(xpad, w_ref, H, W, C):
    """3x3 VALID conv on the padded (H+2, W+2, C) input via 3 grouped-K matmuls.

    w_ref holds bf16 weights of shape (3, 3*C, C) with
      w_ref[dx, dy*C + ci, co] == w_pt[co, ci, dy, dx].
    Returns the f32 conv output of shape (H, W, C).
    """
    Wp = W + 2
    # Group the three dy taps along the contraction (lane) axis: contiguous full-width
    # rows, no strided patch extraction.  C is a multiple of 128 -> aligned lane concat.
    lhs = jnp.concatenate([xpad[0:H], xpad[1:H + 1], xpad[2:H + 2]], axis=-1)
    lhs = lhs.reshape(H * Wp, 3 * C).astype(jnp.bfloat16)                  # bf16 MXU LHS
    acc = jnp.zeros((H, W, C), jnp.float32)
    for dx in range(3):
        y = jnp.dot(lhs, w_ref[dx], preferred_element_type=jnp.float32)
        y = y.reshape(H, Wp, C)
        acc = acc + y[:, dx:dx + W, :]        # discard the 2 out-of-window columns
    return acc


def _instance_norm(acc, H, W, C, relu):
    """Per-channel InstanceNorm over the spatial dims, single-pass statistics."""
    flat = acc.reshape(H * W, C)
    inv_n = 1.0 / float(H * W)
    s1 = jnp.sum(flat, axis=0, keepdims=True)
    s2 = jnp.sum(flat * flat, axis=0, keepdims=True)
    mean = s1 * inv_n
    var = jnp.maximum(s2 * inv_n - mean * mean, 0.0)   # biased variance (PyTorch default)
    y = (flat - mean) * lax.rsqrt(var + EPS)
    if relu:
        y = jnp.maximum(y, 0.0)
    return y.reshape(H, W, C)


def resnet_block_kernel(x_ref, w1_ref, w2_ref, out_ref, *, H, W, C):
    x = x_ref[0]                                           # (H, W, C) f32
    # sub-block 1: reflect-pad -> conv3x3 -> instance-norm -> ReLU
    xp = _reflect_pad_1(x, H, W)
    a1 = _conv3x3_grouped(xp, w1_ref, H, W, C)
    h = _instance_norm(a1, H, W, C, relu=True)
    # sub-block 2: reflect-pad -> conv3x3 -> instance-norm
    hp = _reflect_pad_1(h, H, W)
    a2 = _conv3x3_grouped(hp, w2_ref, H, W, C)
    y = _instance_norm(a2, H, W, C, relu=False)
    # residual
    out_ref[0] = (x + y).astype(out_ref.dtype)


# --------------------------------- wrapper -----------------------------------


def _round_up(n, m):
    return ((n + m - 1) // m) * m


def _pack_weight(w_pt, C, Cp):
    """PyTorch Conv2d weight (Cout, Cin, 3, 3) -> kernel layout (3, 3*Cp, Cp)."""
    w = jnp.transpose(w_pt, (3, 2, 1, 0))                  # (kW, kH, Cin, Cout)
    w = jnp.pad(w, ((0, 0), (0, 0), (0, Cp - C), (0, Cp - C)))
    return w.reshape(3, 3 * Cp, Cp)


@jax.jit
def resnet_block_forward(x_nchw, params):
    """x_nchw: (N, C, H, W) float32 -> (N, C, H, W)."""
    w1_pt, b1, w2_pt, b2 = params
    del b1, b2  # conv biases are exactly cancelled by InstanceNorm2d(affine=False)

    N, C, H, W = x_nchw.shape
    Cp = max(_round_up(C, 128), 128)                       # lane-dense channel count

    x = jnp.transpose(x_nchw, (0, 2, 3, 1))                # NHWC (channels on lanes)
    x = jnp.pad(x, ((0, 0), (0, 0), (0, 0), (0, Cp - C)))  # zero-pad channels to Cp
    w1 = _pack_weight(w1_pt, C, Cp).astype(jnp.bfloat16)   # cast once, outside the kernel
    w2 = _pack_weight(w2_pt, C, Cp).astype(jnp.bfloat16)

    kernel = functools.partial(resnet_block_kernel, H=H, W=W, C=Cp)
    out = pl.pallas_call(
        kernel,
        out_shape=jax.ShapeDtypeStruct((N, H, W, Cp), x.dtype),
        grid_spec=pltpu.PrefetchScalarGridSpec(
            num_scalar_prefetch=0,
            grid=(N,),
            in_specs=[
                pl.BlockSpec((1, H, W, Cp), lambda n: (n, 0, 0, 0)),
                pl.BlockSpec((3, 3 * Cp, Cp), lambda n: (0, 0, 0)),
                pl.BlockSpec((3, 3 * Cp, Cp), lambda n: (0, 0, 0)),
            ],
            out_specs=pl.BlockSpec((1, H, W, Cp), lambda n: (n, 0, 0, 0)),
        ),
        compiler_params=pltpu.CompilerParams(
            dimension_semantics=("parallel",),
        ),
    )(x, w1, w2)

    out = out[..., :C]                                     # drop channel padding
    return jnp.transpose(out, (0, 3, 1, 2))                # back to NCHW


# ----------------------- pure-JAX f32 reference (spec) -----------------------


def resnet_block_reference(x_nchw, params):
    """Exact f32 forward of the PyTorch module (bias included), for the self-check."""
    w1, b1, w2, b2 = params
    x = jnp.transpose(x_nchw, (0, 2, 3, 1))                # NHWC

    def conv3x3_reflect(z, w_pt, b):
        zp = jnp.pad(z, ((0, 0), (1, 1), (1, 1), (0, 0)), mode="reflect")
        w_hwio = jnp.transpose(w_pt, (2, 3, 1, 0))
        y = lax.conv_general_dilated(
            zp, w_hwio, window_strides=(1, 1), padding="VALID",
            dimension_numbers=("NHWC", "HWIO", "NHWC"))
        return y + b.reshape(1, 1, 1, -1)

    def instance_norm(z):
        m = jnp.mean(z, axis=(1, 2), keepdims=True)
        v = jnp.mean(jnp.square(z - m), axis=(1, 2), keepdims=True)
        return (z - m) * lax.rsqrt(v + EPS)

    h = jnp.maximum(instance_norm(conv3x3_reflect(x, w1, b1)), 0.0)
    y = instance_norm(conv3x3_reflect(h, w2, b2))
    return jnp.transpose(x + y, (0, 3, 1, 2))


def init_params(dim, key):
    """Synthetic parameters in the PyTorch layout: Conv2d weight (Cout, Cin, 3, 3) + bias."""
    k1, k2, k3, k4 = jax.random.split(key, 4)
    scale = 0.1
    w1 = scale * jax.random.normal(k1, (dim, dim, 3, 3), jnp.float32)
    w2 = scale * jax.random.normal(k2, (dim, dim, 3, 3), jnp.float32)
    b1 = scale * jax.random.normal(k3, (dim,), jnp.float32)
    b2 = scale * jax.random.normal(k4, (dim,), jnp.float32)
    return (w1, b1, w2, b2)


if __name__ == "__main__":
    key = jax.random.PRNGKey(0)
    kx, kp = jax.random.split(key)

    N, C, H, W = 2, 4, 16, 16
    x = jax.random.normal(kx, (N, C, H, W), jnp.float32)
    params = init_params(C, kp)

    out = resnet_block_forward(x, params)
    jax.block_until_ready(out)
    assert out.shape == (N, C, H, W)

    # Structural self-check against the exact f32 PyTorch-equivalent forward (with bias;
    # the kernel legitimately omits it).  The tolerance covers the deliberate bf16
    # rounding of the MXU operands; any structural bug (tap alignment, reflection
    # indices, normalization, residual) would show up at O(1) on IN-normalized outputs.
    ref = resnet_block_reference(x, params)
    max_err = float(jnp.max(jnp.abs(out - ref)))
    assert max_err < 1e-1, f"max abs error vs f32 reference: {max_err}"

    print("KERNEL_OK")
</pallas_src>

<mosaic_0001>
module attributes {stable_mosaic.version = 11 : i64} {
  func.func @resnet_block_kernel(%arg0: i32, %arg1: memref<1x16x16x128xf32, #tpu.memory_space<vmem>>, %arg2: memref<3x384x128xbf16, #tpu.memory_space<vmem>>, %arg3: memref<3x384x128xbf16, #tpu.memory_space<vmem>>, %arg4: memref<1x16x16x128xf32, #tpu.memory_space<vmem>>) attributes {dimension_semantics = [#tpu.dimension_semantics<parallel>], iteration_bounds = array<i64: 2>, scalar_prefetch = 0 : i64, scratch_operands = 0 : i64, tpu.core_type = #tpu.core_type<tc>, window_params = [{transform_indices = @transform_0, window_bounds = array<i64: 1, 16, 16, 128>}, {pipeline_mode = #tpu.pipeline_mode<synchronous>, transform_indices = @transform_1, window_bounds = array<i64: 3, 384, 128>}, {pipeline_mode = #tpu.pipeline_mode<synchronous>, transform_indices = @transform_2, window_bounds = array<i64: 3, 384, 128>}, {transform_indices = @transform_3, window_bounds = array<i64: 1, 16, 16, 128>}]} {
    %c0 = arith.constant 0 : index
    %c0_0 = arith.constant 0 : index
    %c0_1 = arith.constant 0 : index
    %c0_2 = arith.constant 0 : index
    %0 = vector.load %arg1[%c0, %c0_0, %c0_1, %c0_2] : memref<1x16x16x128xf32, #tpu.memory_space<vmem>>, vector<1x16x16x128xf32>
    %1 = vector.shape_cast %0 : vector<1x16x16x128xf32> to vector<16x16x128xf32>
    %2 = vector.extract_strided_slice %1 {offsets = [1, 0, 0], sizes = [1, 16, 128], strides = [1, 1, 1]} : vector<16x16x128xf32> to vector<1x16x128xf32>
    %3 = vector.extract_strided_slice %1 {offsets = [14, 0, 0], sizes = [1, 16, 128], strides = [1, 1, 1]} : vector<16x16x128xf32> to vector<1x16x128xf32>
    %4 = tpu.concatenate %2, %1, %3 in 0 : vector<1x16x128xf32>, vector<16x16x128xf32>, vector<1x16x128xf32> -> vector<18x16x128xf32>
    %5 = vector.extract_strided_slice %4 {offsets = [0, 1, 0], sizes = [18, 1, 128], strides = [1, 1, 1]} : vector<18x16x128xf32> to vector<18x1x128xf32>
    %6 = vector.extract_strided_slice %4 {offsets = [0, 14, 0], sizes = [18, 1, 128], strides = [1, 1, 1]} : vector<18x16x128xf32> to vector<18x1x128xf32>
    %7 = tpu.concatenate %5, %4, %6 in 1 : vector<18x1x128xf32>, vector<18x16x128xf32>, vector<18x1x128xf32> -> vector<18x18x128xf32>
    %8 = vector.extract_strided_slice %7 {offsets = [0, 0, 0], sizes = [16, 18, 128], strides = [1, 1, 1]} : vector<18x18x128xf32> to vector<16x18x128xf32>
    %9 = vector.extract_strided_slice %7 {offsets = [1, 0, 0], sizes = [16, 18, 128], strides = [1, 1, 1]} : vector<18x18x128xf32> to vector<16x18x128xf32>
    %10 = vector.extract_strided_slice %7 {offsets = [2, 0, 0], sizes = [16, 18, 128], strides = [1, 1, 1]} : vector<18x18x128xf32> to vector<16x18x128xf32>
    %11 = tpu.concatenate %8, %9, %10 in 2 : vector<16x18x128xf32>, vector<16x18x128xf32>, vector<16x18x128xf32> -> vector<16x18x384xf32>
    %12 = vector.shape_cast %11 : vector<16x18x384xf32> to vector<288x384xf32>
    %13 = arith.truncf %12 : vector<288x384xf32> to vector<288x384xbf16>
    %cst = arith.constant 0.000000e+00 : f32
    %14 = vector.broadcast %cst : f32 to vector<16x16x128xf32>
    %c0_3 = arith.constant 0 : index
    %c0_4 = arith.constant 0 : index
    %c0_5 = arith.constant 0 : index
    %15 = vector.load %arg2[%c0_3, %c0_4, %c0_5] : memref<3x384x128xbf16, #tpu.memory_space<vmem>>, vector<1x384x128xbf16>
    %16 = vector.shape_cast %15 : vector<1x384x128xbf16> to vector<384x128xbf16>
    %cst_6 = arith.constant dense<0.000000e+00> : vector<288x128xf32>
    %17 = tpu.matmul %13, %16, %cst_6 {dimension_numbers = #tpu.dot_dimension_numbers<[1], [0], [0], [1], [0, 0, 1, 1], [], []>} : vector<288x384xbf16>, vector<384x128xbf16>, vector<288x128xf32> -> vector<288x128xf32>
    %18 = vector.shape_cast %17 : vector<288x128xf32> to vector<16x18x128xf32>
    %19 = vector.extract_strided_slice %18 {offsets = [0, 0, 0], sizes = [16, 16, 128], strides = [1, 1, 1]} : vector<16x18x128xf32> to vector<16x16x128xf32>
    %20 = arith.addf %14, %19 : vector<16x16x128xf32>
    %c1 = arith.constant 1 : index
    %c0_7 = arith.constant 0 : index
    %c0_8 = arith.constant 0 : index
    %21 = vector.load %arg2[%c1, %c0_7, %c0_8] : memref<3x384x128xbf16, #tpu.memory_space<vmem>>, vector<1x384x128xbf16>
    %22 = vector.shape_cast %21 : vector<1x384x128xbf16> to vector<384x128xbf16>
    %cst_9 = arith.constant dense<0.000000e+00> : vector<288x128xf32>
    %23 = tpu.matmul %13, %22, %cst_9 {dimension_numbers = #tpu.dot_dimension_numbers<[1], [0], [0], [1], [0, 0, 1, 1], [], []>} : vector<288x384xbf16>, vector<384x128xbf16>, vector<288x128xf32> -> vector<288x128xf32>
    %24 = vector.shape_cast %23 : vector<288x128xf32> to vector<16x18x128xf32>
    %25 = vector.extract_strided_slice %24 {offsets = [0, 1, 0], sizes = [16, 16, 128], strides = [1, 1, 1]} : vector<16x18x128xf32> to vector<16x16x128xf32>
    %26 = arith.addf %20, %25 : vector<16x16x128xf32>
    %c2 = arith.constant 2 : index
    %c0_10 = arith.constant 0 : index
    %c0_11 = arith.constant 0 : index
    %27 = vector.load %arg2[%c2, %c0_10, %c0_11] : memref<3x384x128xbf16, #tpu.memory_space<vmem>>, vector<1x384x128xbf16>
    %28 = vector.shape_cast %27 : vector<1x384x128xbf16> to vector<384x128xbf16>
    %cst_12 = arith.constant dense<0.000000e+00> : vector<288x128xf32>
    %29 = tpu.matmul %13, %28, %cst_12 {dimension_numbers = #tpu.dot_dimension_numbers<[1], [0], [0], [1], [0, 0, 1, 1], [], []>} : vector<288x384xbf16>, vector<384x128xbf16>, vector<288x128xf32> -> vector<288x128xf32>
    %30 = vector.shape_cast %29 : vector<288x128xf32> to vector<16x18x128xf32>
    %31 = vector.extract_strided_slice %30 {offsets = [0, 2, 0], sizes = [16, 16, 128], strides = [1, 1, 1]} : vector<16x18x128xf32> to vector<16x16x128xf32>
    %32 = arith.addf %26, %31 : vector<16x16x128xf32>
    %33 = vector.shape_cast %32 : vector<16x16x128xf32> to vector<256x128xf32>
    %cst_13 = arith.constant dense<0.000000e+00> : vector<128xf32>
    %34 = vector.multi_reduction <add>, %33, %cst_13 [0] : vector<256x128xf32> to vector<128xf32>
    %35 = vector.shape_cast %34 : vector<128xf32> to vector<1x128xf32>
    %36 = arith.mulf %33, %33 : vector<256x128xf32>
    %cst_14 = arith.constant dense<0.000000e+00> : vector<128xf32>
    %37 = vector.multi_reduction <add>, %36, %cst_14 [0] : vector<256x128xf32> to vector<128xf32>
    %38 = vector.shape_cast %37 : vector<128xf32> to vector<1x128xf32>
    %cst_15 = arith.constant 3.906250e-03 : f32
    %39 = vector.broadcast %cst_15 : f32 to vector<1x128xf32>
    %40 = arith.mulf %35, %39 : vector<1x128xf32>
    %cst_16 = arith.constant 3.906250e-03 : f32
    %41 = vector.broadcast %cst_16 : f32 to vector<1x128xf32>
    %42 = arith.mulf %38, %41 : vector<1x128xf32>
    %43 = arith.mulf %40, %40 : vector<1x128xf32>
    %44 = arith.subf %42, %43 : vector<1x128xf32>
    %cst_17 = arith.constant 0.000000e+00 : f32
    %45 = vector.broadcast %cst_17 : f32 to vector<1x128xf32>
    %46 = arith.maximumf %44, %45 : vector<1x128xf32>
    %47 = vector.broadcast %40 : vector<1x128xf32> to vector<256x128xf32>
    %48 = arith.subf %33, %47 : vector<256x128xf32>
    %cst_18 = arith.constant 9.99999974E-6 : f32
    %49 = vector.broadcast %cst_18 : f32 to vector<1x128xf32>
    %50 = arith.addf %46, %49 : vector<1x128xf32>
    %51 = math.rsqrt %50 : vector<1x128xf32>
    %52 = vector.broadcast %51 : vector<1x128xf32> to vector<256x128xf32>
    %53 = arith.mulf %48, %52 : vector<256x128xf32>
    %cst_19 = arith.constant 0.000000e+00 : f32
    %54 = vector.broadcast %cst_19 : f32 to vector<256x128xf32>
    %55 = arith.maximumf %53, %54 : vector<256x128xf32>
    %56 = vector.shape_cast %55 : vector<256x128xf32> to vector<16x16x128xf32>
    %57 = vector.extract_strided_slice %56 {offsets = [1, 0, 0], sizes = [1, 16, 128], strides = [1, 1, 1]} : vector<16x16x128xf32> to vector<1x16x128xf32>
    %58 = vector.extract_strided_slice %56 {offsets = [14, 0, 0], sizes = [1, 16, 128], strides = [1, 1, 1]} : vector<16x16x128xf32> to vector<1x16x128xf32>
    %59 = tpu.concatenate %57, %56, %58 in 0 : vector<1x16x128xf32>, vector<16x16x128xf32>, vector<1x16x128xf32> -> vector<18x16x128xf32>
    %60 = vector.extract_strided_slice %59 {offsets = [0, 1, 0], sizes = [18, 1, 128], strides = [1, 1, 1]} : vector<18x16x128xf32> to vector<18x1x128xf32>
    %61 = vector.extract_strided_slice %59 {offsets = [0, 14, 0], sizes = [18, 1, 128], strides = [1, 1, 1]} : vector<18x16x128xf32> to vector<18x1x128xf32>
    %62 = tpu.concatenate %60, %59, %61 in 1 : vector<18x1x128xf32>, vector<18x16x128xf32>, vector<18x1x128xf32> -> vector<18x18x128xf32>
    %63 = vector.extract_strided_slice %62 {offsets = [0, 0, 0], sizes = [16, 18, 128], strides = [1, 1, 1]} : vector<18x18x128xf32> to vector<16x18x128xf32>
    %64 = vector.extract_strided_slice %62 {offsets = [1, 0, 0], sizes = [16, 18, 128], strides = [1, 1, 1]} : vector<18x18x128xf32> to vector<16x18x128xf32>
    %65 = vector.extract_strided_slice %62 {offsets = [2, 0, 0], sizes = [16, 18, 128], strides = [1, 1, 1]} : vector<18x18x128xf32> to vector<16x18x128xf32>
    %66 = tpu.concatenate %63, %64, %65 in 2 : vector<16x18x128xf32>, vector<16x18x128xf32>, vector<16x18x128xf32> -> vector<16x18x384xf32>
    %67 = vector.shape_cast %66 : vector<16x18x384xf32> to vector<288x384xf32>
    %68 = arith.truncf %67 : vector<288x384xf32> to vector<288x384xbf16>
    %cst_20 = arith.constant 0.000000e+00 : f32
    %69 = vector.broadcast %cst_20 : f32 to vector<16x16x128xf32>
    %c0_21 = arith.constant 0 : index
    %c0_22 = arith.constant 0 : index
    %c0_23 = arith.constant 0 : index
    %70 = vector.load %arg3[%c0_21, %c0_22, %c0_23] : memref<3x384x128xbf16, #tpu.memory_space<vmem>>, vector<1x384x128xbf16>
    %71 = vector.shape_cast %70 : vector<1x384x128xbf16> to vector<384x128xbf16>
    %cst_24 = arith.constant dense<0.000000e+00> : vector<288x128xf32>
    %72 = tpu.matmul %68, %71, %cst_24 {dimension_numbers = #tpu.dot_dimension_numbers<[1], [0], [0], [1], [0, 0, 1, 1], [], []>} : vector<288x384xbf16>, vector<384x128xbf16>, vector<288x128xf32> -> vector<288x128xf32>
    %73 = vector.shape_cast %72 : vector<288x128xf32> to vector<16x18x128xf32>
    %74 = vector.extract_strided_slice %73 {offsets = [0, 0, 0], sizes = [16, 16, 128], strides = [1, 1, 1]} : vector<16x18x128xf32> to vector<16x16x128xf32>
    %75 = arith.addf %69, %74 : vector<16x16x128xf32>
    %c1_25 = arith.constant 1 : index
    %c0_26 = arith.constant 0 : index
    %c0_27 = arith.constant 0 : index
    %76 = vector.load %arg3[%c1_25, %c0_26, %c0_27] : memref<3x384x128xbf16, #tpu.memory_space<vmem>>, vector<1x384x128xbf16>
    %77 = vector.shape_cast %76 : vector<1x384x128xbf16> to vector<384x128xbf16>
    %cst_28 = arith.constant dense<0.000000e+00> : vector<288x128xf32>
    %78 = tpu.matmul %68, %77, %cst_28 {dimension_numbers = #tpu.dot_dimension_numbers<[1], [0], [0], [1], [0, 0, 1, 1], [], []>} : vector<288x384xbf16>, vector<384x128xbf16>, vector<288x128xf32> -> vector<288x128xf32>
    %79 = vector.shape_cast %78 : vector<288x128xf32> to vector<16x18x128xf32>
    %80 = vector.extract_strided_slice %79 {offsets = [0, 1, 0], sizes = [16, 16, 128], strides = [1, 1, 1]} : vector<16x18x128xf32> to vector<16x16x128xf32>
    %81 = arith.addf %75, %80 : vector<16x16x128xf32>
    %c2_29 = arith.constant 2 : index
    %c0_30 = arith.constant 0 : index
    %c0_31 = arith.constant 0 : index
    %82 = vector.load %arg3[%c2_29, %c0_30, %c0_31] : memref<3x384x128xbf16, #tpu.memory_space<vmem>>, vector<1x384x128xbf16>
    %83 = vector.shape_cast %82 : vector<1x384x128xbf16> to vector<384x128xbf16>
    %cst_32 = arith.constant dense<0.000000e+00> : vector<288x128xf32>
    %84 = tpu.matmul %68, %83, %cst_32 {dimension_numbers = #tpu.dot_dimension_numbers<[1], [0], [0], [1], [0, 0, 1, 1], [], []>} : vector<288x384xbf16>, vector<384x128xbf16>, vector<288x128xf32> -> vector<288x128xf32>
    %85 = vector.shape_cast %84 : vector<288x128xf32> to vector<16x18x128xf32>
    %86 = vector.extract_strided_slice %85 {offsets = [0, 2, 0], sizes = [16, 16, 128], strides = [1, 1, 1]} : vector<16x18x128xf32> to vector<16x16x128xf32>
    %87 = arith.addf %81, %86 : vector<16x16x128xf32>
    %88 = vector.shape_cast %87 : vector<16x16x128xf32> to vector<256x128xf32>
    %cst_33 = arith.constant dense<0.000000e+00> : vector<128xf32>
    %89 = vector.multi_reduction <add>, %88, %cst_33 [0] : vector<256x128xf32> to vector<128xf32>
    %90 = vector.shape_cast %89 : vector<128xf32> to vector<1x128xf32>
    %91 = arith.mulf %88, %88 : vector<256x128xf32>
    %cst_34 = arith.constant dense<0.000000e+00> : vector<128xf32>
    %92 = vector.multi_reduction <add>, %91, %cst_34 [0] : vector<256x128xf32> to vector<128xf32>
    %93 = vector.shape_cast %92 : vector<128xf32> to vector<1x128xf32>
    %cst_35 = arith.constant 3.906250e-03 : f32
    %94 = vector.broadcast %cst_35 : f32 to vector<1x128xf32>
    %95 = arith.mulf %90, %94 : vector<1x128xf32>
    %cst_36 = arith.constant 3.906250e-03 : f32
    %96 = vector.broadcast %cst_36 : f32 to vector<1x128xf32>
    %97 = arith.mulf %93, %96 : vector<1x128xf32>
    %98 = arith.mulf %95, %95 : vector<1x128xf32>
    %99 = arith.subf %97, %98 : vector<1x128xf32>
    %cst_37 = arith.constant 0.000000e+00 : f32
    %100 = vector.broadcast %cst_37 : f32 to vector<1x128xf32>
    %101 = arith.maximumf %99, %100 : vector<1x128xf32>
    %102 = vector.broadcast %95 : vector<1x128xf32> to vector<256x128xf32>
    %103 = arith.subf %88, %102 : vector<256x128xf32>
    %cst_38 = arith.constant 9.99999974E-6 : f32
    %104 = vector.broadcast %cst_38 : f32 to vector<1x128xf32>
    %105 = arith.addf %101, %104 : vector<1x128xf32>
    %106 = math.rsqrt %105 : vector<1x128xf32>
    %107 = vector.broadcast %106 : vector<1x128xf32> to vector<256x128xf32>
    %108 = arith.mulf %103, %107 : vector<256x128xf32>
    %109 = vector.shape_cast %108 : vector<256x128xf32> to vector<16x16x128xf32>
    %110 = arith.addf %1, %109 : vector<16x16x128xf32>
    %c0_39 = arith.constant 0 : index
    %c0_40 = arith.constant 0 : index
    %c0_41 = arith.constant 0 : index
    %c0_42 = arith.constant 0 : index
    %111 = vector.load %arg4[%c0_39, %c0_40, %c0_41, %c0_42] : memref<1x16x16x128xf32, #tpu.memory_space<vmem>>, vector<1x16x16x128xf32>
    %112 = vector.shape_cast %111 : vector<1x16x16x128xf32> to vector<16x16x128xf32>
    %113 = vector.shape_cast %110 : vector<16x16x128xf32> to vector<1x16x16x128xf32>
    tpu.vector_store %arg4[%c0_39, %c0_40, %c0_41, %c0_42], %113 {strides = array<i32>} : memref<1x16x16x128xf32, #tpu.memory_space<vmem>>, vector<1x16x16x128xf32>,
    return
  }
  func.func @transform_0(%arg0: i32) -> (i32, i32, i32, i32) {
    %c0_i32 = arith.constant 0 : i32
    %c0_i32_0 = arith.constant 0 : i32
    %c0_i32_1 = arith.constant 0 : i32
    %c0_i32_2 = arith.constant 0 : i32
    return %arg0, %c0_i32, %c0_i32_0, %c0_i32_1 : i32, i32, i32, i32
  }
  func.func @transform_1(%arg0: i32) -> (i32, i32, i32) {
    %c0_i32 = arith.constant 0 : i32
    %c0_i32_0 = arith.constant 0 : i32
    %c0_i32_1 = arith.constant 0 : i32
    %c0_i32_2 = arith.constant 0 : i32
    return %c0_i32, %c0_i32_0, %c0_i32_1 : i32, i32, i32
  }
  func.func @transform_2(%arg0: i32) -> (i32, i32, i32) {
    %c0_i32 = arith.constant 0 : i32
    %c0_i32_0 = arith.constant 0 : i32
    %c0_i32_1 = arith.constant 0 : i32
    %c0_i32_2 = arith.constant 0 : i32
    return %c0_i32, %c0_i32_0, %c0_i32_1 : i32, i32, i32
  }
  func.func @transform_3(%arg0: i32) -> (i32, i32, i32, i32) {
    %c0_i32 = arith.constant 0 : i32
    %c0_i32_0 = arith.constant 0 : i32
    %c0_i32_1 = arith.constant 0 : i32
    %c0_i32_2 = arith.constant 0 : i32
    return %arg0, %c0_i32, %c0_i32_0, %c0_i32_1 : i32, i32, i32, i32
  }
}

</mosaic_0001>

<llo_original>
// kernel: resnet_block_forward.1
$region0: #{resnet_block_forward.1}
  #allocation0 [shape = 'u32[]', space=smem, size = 0x4, offset = 0x4, fixed_abs, tag = 'smem constant byte address 0x4 - core index']
  #allocation1 [shape = 'u32[72,128]{1,0:T(1,128)}', space=vmem, size = 0x9000, scoped, tag = 'internal scratch']
  %s0 = inlined_call_operand.vmem [shape: f32[2,16,16,128], index: 0, kind: input, shape index: {}]
  %s1 = inlined_call_operand.vmem [shape: bf16[3,384,128], index: 1, kind: input, shape index: {}]
  %s2 = inlined_call_operand.vmem [shape: bf16[3,384,128], index: 2, kind: input, shape index: {}]
  %s3 = inlined_call_operand.vmem [shape: f32[2,16,16,128], index: 3, kind: output, shape index: {}]
  %s4 = sld [smem:[#allocation0]]
  $region45: #{resnet_block_forward.1} parent=0
    _
  %s6 = ssub.s32 1, %s4
  %s7 = scalar_select 0, %s6, %s4
  loop: start=0, step=1, limit=4
  $region2: #{resnet_block_forward.1} parent=0 // loop_pre_header
    _
  $region3: #{resnet_block_forward.1} parent=0 // loop_header
    %s9 = sphi 0, %s13
    %p10 = scmp.ge.s32.totalorder %s9, 4
    %s19 = sphi 0, %s21
    %s22 = sphi 0, %s19
    %s23 = sphi 0, %s22
    %s39 = sphi 0, %s23
    %s43 = sphi 0, %s43
    %s45 = sphi 0, %s43
    %s46 = sphi 0, %s45
    %s60 = sphi 0, %s46
    %s64 = sphi 0, %s64
    %s66 = sphi 0, %s64
    %s67 = sphi 0, %s66
    %s81 = sphi 0, %s67
    %s87 = sphi 0, %s89
    %s90 = sphi 0, %s87
    %s91 = sphi 0, %s90
    %s107 = sphi 0, %s91
  $region4: #{resnet_block_forward.1} parent=0 // loop_header_branch
    %12 = sbr.rel (%p10) target = $region8
  $region5: #{resnet_block_forward.1} parent=0 // loop_body
    %s14 = ssub.s32 %s9, 1
    %s15 = ssub.s32 %s9, 2
    %s16 = sadd.s32 %s9, 1
    %s17 = ssub.s32 %s9, %s16
    %p18 = scmp.eq.s32.totalorder %s17, 0
    %s20 = sadd.s32 %s19, 1
    %s21 = scalar_select %p18, %s19, %s20
    %p24 = pneg %p18
    %p25 = scmp.eq.s32.totalorder %s9, 1
    %p26 = por %p24, %p25
    %p27 = scmp.ne.s32.totalorder %s19, %s22
    %p28 = scmp.eq.s32.totalorder %s9, 0
    %p29 = por %p27, %p28
    %p30 = scmp.ne.s32.totalorder %s19, %s22
    %p31 = scmp.eq.s32.totalorder %s14, 1
    %p32 = por %p30, %p31
    %p33 = scmp.ne.s32.totalorder %s22, %s23
    %p34 = scmp.eq.s32.totalorder %s14, 0
    %p35 = por %p33, %p34
    %p36 = scmp.ne.s32.totalorder %s22, %s23
    %p37 = scmp.eq.s32.totalorder %s15, 1
    %p38 = por %p36, %p37
    %p40 = scmp.ne.s32.totalorder %s23, %s39
    %p41 = scmp.eq.s32.totalorder %s15, 0
    %p42 = por %p40, %p41
    %s44 = sadd.s32 %s43, 1
    %p47 = scmp.eq.s32.totalorder %s9, 1
    %p48 = scmp.ne.s32.totalorder %s43, %s45
    %p49 = scmp.eq.s32.totalorder %s9, 0
    %p50 = por %p48, %p49
    %p51 = scmp.ne.s32.totalorder %s43, %s45
    %p52 = scmp.eq.s32.totalorder %s14, 1
    %p53 = por %p51, %p52
    %p54 = scmp.ne.s32.totalorder %s45, %s46
    %p55 = scmp.eq.s32.totalorder %s14, 0
    %p56 = por %p54, %p55
    %p57 = scmp.ne.s32.totalorder %s45, %s46
    %p58 = scmp.eq.s32.totalorder %s15, 1
    %p59 = por %p57, %p58
    %p61 = scmp.ne.s32.totalorder %s46, %s60
    %p62 = scmp.eq.s32.totalorder %s15, 0
    %p63 = por %p61, %p62
    %s65 = sadd.s32 %s64, 1
    %p68 = scmp.eq.s32.totalorder %s9, 1
    %p69 = scmp.ne.s32.totalorder %s64, %s66
    %p70 = scmp.eq.s32.totalorder %s9, 0
    %p71 = por %p69, %p70
    %p72 = scmp.ne.s32.totalorder %s64, %s66
    %p73 = scmp.eq.s32.totalorder %s14, 1
    %p74 = por %p72, %p73
    %p75 = scmp.ne.s32.totalorder %s66, %s67
    %p76 = scmp.eq.s32.totalorder %s14, 0
    %p77 = por %p75, %p76
    %p78 = scmp.ne.s32.totalorder %s66, %s67
    %p79 = scmp.eq.s32.totalorder %s15, 1
    %p80 = por %p78, %p79
    %p82 = scmp.ne.s32.totalorder %s67, %s81
    %p83 = scmp.eq.s32.totalorder %s15, 0
    %p84 = por %p82, %p83
    %s85 = ssub.s32 %s9, %s16
    %p86 = scmp.eq.s32.totalorder %s85, 0
    %s88 = sadd.s32 %s87, 1
    %s89 = scalar_select %p86, %s87, %s88
    %p92 = pneg %p86
    %p93 = scmp.eq.s32.totalorder %s9, 1
    %p94 = por %p92, %p93
    %p95 = scmp.ne.s32.totalorder %s87, %s90
    %p96 = scmp.eq.s32.totalorder %s9, 0
    %p97 = por %p95, %p96
    %p98 = scmp.ne.s32.totalorder %s87, %s90
    %p99 = scmp.eq.s32.totalorder %s14, 1
    %p100 = por %p98, %p99
    %p101 = scmp.ne.s32.totalorder %s90, %s91
    %p102 = scmp.eq.s32.totalorder %s14, 0
    %p103 = por %p101, %p102
    %p104 = scmp.ne.s32.totalorder %s90, %s91
    %p105 = scmp.eq.s32.totalorder %s15, 1
    %p106 = por %p104, %p105
    %p108 = scmp.ne.s32.totalorder %s91, %s107
    %p109 = scmp.eq.s32.totalorder %s15, 0
    %p110 = por %p108, %p109
    %p111 = scmp.le.s32.totalorder 1, %s9
    %p112 = scmp.lt.s32.totalorder %s9, 3
    %p113 = pnand %p111, %p112
    %p114 = pneg %p113
    // Predicated region
    $region9: #{resnet_block_forward.1} parent=5 // pred_check
      _
    $region10: #{resnet_block_forward.1} parent=5 // pred_check_branch
      %116 = sbr.rel (%p113) target = $region12
    $region11: #{resnet_block_forward.1} parent=5 // pred_region
      %s117 = ssub.s32 %s9, 1
      // Predicated region
      $region13: #{resnet_block_forward.1} parent=11 // pred_check
        %p118 = pneg %p56
      $region14: #{resnet_block_forward.1} parent=11 // pred_check_branch
        %120 = sbr.rel (%p118) target = $region16
      $region15: #{resnet_block_forward.1} parent=11 // pred_region
        _
      $region16: #{resnet_block_forward.1} parent=11 // pred_fallthru
        _
      // Predicated region
      $region17: #{resnet_block_forward.1} parent=11 // pred_check
        %p121 = pneg %p77
      $region18: #{resnet_block_forward.1} parent=11 // pred_check_branch
        %123 = sbr.rel (%p121) target = $region20
      $region19: #{resnet_block_forward.1} parent=11 // pred_region
        _
      $region20: #{resnet_block_forward.1} parent=11 // pred_fallthru
        _
    $region12: #{resnet_block_forward.1} parent=5 // pred_fallthru
      _
    %p124 = scmp.lt.s32.totalorder %s9, 2
    // Predicated region
    $region21: #{resnet_block_forward.1} parent=5 // pred_check
      %p125 = pneg %p124
    $region22: #{resnet_block_forward.1} parent=5 // pred_check_branch
      %127 = sbr.rel (%p125) target = $region24
    $region23: #{resnet_block_forward.1} parent=5 // pred_region
      // Predicated region
      $region25: #{resnet_block_forward.1} parent=23 // pred_check
        %p128 = pneg %p29
      $region26: #{resnet_block_forward.1} parent=23 // pred_check_branch
        %130 = sbr.rel (%p128) target = $region28
      $region27: #{resnet_block_forward.1} parent=23 // pred_region
        %p131 = scmp.lt.s32.totalorder %s9, 1
        %s132 = scalar_select %p131, %s9, 1
        %s133 = smul.addr %s132, 32
        %s134 = smul.addr %s133, 8
        %s135 = scalar_lea.vmem %s0, %s134
      $region28: #{resnet_block_forward.1} parent=23 // pred_fallthru
        _
    $region24: #{resnet_block_forward.1} parent=5 // pred_fallthru
      _
    %p136 = scmp.le.s32.totalorder 1, %s9
    %p137 = scmp.lt.s32.totalorder %s9, 3
    %p138 = pnand %p136, %p137
    %p139 = pneg %p138
    // Predicated region
    $region29: #{resnet_block_forward.1} parent=5 // pred_check
      _
    $region30: #{resnet_block_forward.1} parent=5 // pred_check_branch
      %141 = sbr.rel (%p138) target = $region32
    $region31: #{resnet_block_forward.1} parent=5 // pred_region
      %s142 = ssub.s32 %s9, 1
      %p143 = scmp.lt.s32.totalorder %s14, 1
      %s144 = scalar_select %p143, %s14, 1
      %s145 = smul.addr %s144, 32
      %s146 = smul.addr %s145, 8
      %s147 = scalar_lea.vmem %s0, %s146
      %p148 = pneg %p35
      %p149 = pneg %p32
      %p150 = pneg %p56
      %p151 = pneg %p53
      %p152 = pneg %p77
      %p153 = pneg %p74
      %p154 = pneg %p103
      %p155 = pneg %p100
      %p156 = scmp.lt.s32.totalorder %s14, 1
      %s157 = scalar_select %p156, %s14, 1
      %s158 = smul.addr %s157, 32
      %s159 = smul.addr %s158, 8
      %s160 = scalar_lea.vmem %s3, %s159
      %p161 = scmp.lt.s32.totalorder %s14, 1
      %s162 = scalar_select %p161, %s14, 1
      %s163 = smul.addr %s162, 32
      %s164 = smul.addr %s163, 8
      %s165 = scalar_lea.vmem %s0, %s164
      %p166 = scmp.lt.s32.totalorder %s14, 1
      %s167 = scalar_select %p166, %s14, 1
      %s168 = smul.addr %s167, 32
      %s169 = smul.addr %s168, 8
      %s170 = scalar_lea.vmem %s3, %s169
      %v171 = vld [vmem:[%s165] sm:$0xff]
      %v172 = vld [vmem:[%s165 + $0x8] sm:$0xff]
      %v173 = vld [vmem:[%s165 + $0x10] sm:$0xff]
      %v174 = vld [vmem:[%s165 + $0x18] sm:$0xff]
      %v175 = vld [vmem:[%s165 + $0x20] sm:$0xff]
      %v176 = vld [vmem:[%s165 + $0x28] sm:$0xff]
      %v177 = vld [vmem:[%s165 + $0x30] sm:$0xff]
      %v178 = vld [vmem:[%s165 + $0x38] sm:$0xff]
      %v179 = vld [vmem:[%s165 + $0x40] sm:$0xff]
      %v180 = vld [vmem:[%s165 + $0x48] sm:$0xff]
      %v181 = vld [vmem:[%s165 + $0x50] sm:$0xff]
      %v182 = vld [vmem:[%s165 + $0x58] sm:$0xff]
      %v183 = vld [vmem:[%s165 + $0x60] sm:$0xff]
      %v184 = vld [vmem:[%s165 + $0x68] sm:$0xff]
      %v185 = vld [vmem:[%s165 + $0x70] sm:$0xff]
      %v186 = vld [vmem:[%s165 + $0x78] sm:$0xff]
      %v187 = vld [vmem:[%s165 + $0x80] sm:$0xff]
      %v188 = vld [vmem:[%s165 + $0x88] sm:$0xff]
      %v189 = vld [vmem:[%s165 + $0x90] sm:$0xff]
      %v190 = vld [vmem:[%s165 + $0x98] sm:$0xff]
      %v191 = vld [vmem:[%s165 + $0xa0] sm:$0xff]
      %v192 = vld [vmem:[%s165 + $0xa8] sm:$0xff]
      %v193 = vld [vmem:[%s165 + $0xb0] sm:$0xff]
      %v194 = vld [vmem:[%s165 + $0xb8] sm:$0xff]
      %v195 = vld [vmem:[%s165 + $0xc0] sm:$0xff]
      %v196 = vld [vmem:[%s165 + $0xc8] sm:$0xff]
      %v197 = vld [vmem:[%s165 + $0xd0] sm:$0xff]
      %v198 = vld [vmem:[%s165 + $0xd8] sm:$0xff]
      %v199 = vld [vmem:[%s165 + $0xe0] sm:$0xff]
      %v200 = vld [vmem:[%s165 + $0xe8] sm:$0xff]
      %v201 = vld [vmem:[%s165 + $0xf0] sm:$0xff]
      %v202 = vld [vmem:[%s165 + $0xf8] sm:$0xff]
      %v219 = vrot.slane %v173, 1
      %v220 = vrot.slane %v171, 1
      %v221 = vrot.slane %v175, 1
      %v222 = vrot.slane %v177, 1
      %v223 = vrot.slane %v179, 1
      %v224 = vrot.slane %v181, 1
      %v225 = vrot.slane %v183, 1
      %v226 = vrot.slane %v185, 1
      %v227 = vrot.slane %v187, 1
      %v228 = vrot.slane %v189, 1
      %v229 = vrot.slane %v191, 1
      %v230 = vrot.slane %v193, 1
      %v231 = vrot.slane %v195, 1
      %v232 = vrot.slane %v197, 1
      %v233 = vrot.slane %v199, 1
      %v234 = vrot.slane %v201, 1
      %vm267 = vcmask 1040384
      %v268 = vrot.slane %v173, 7
      %v269 = vrot.slane %v174, 7
      %v270 = vsel %vm267, %v268, %v269
      %v271 = vrot.slane %v171, 7
      %v272 = vrot.slane %v172, 7
      %v273 = vsel %vm267, %v271, %v272
      %v274 = vrot.slane %v175, 7
      %v275 = vrot.slane %v176, 7
      %v276 = vsel %vm267, %v274, %v275
      %v277 = vrot.slane %v177, 7
      %v278 = vrot.slane %v178, 7
      %v279 = vsel %vm267, %v277, %v278
      %v280 = vrot.slane %v179, 7
      %v281 = vrot.slane %v180, 7
      %v282 = vsel %vm267, %v280, %v281
      %v283 = vrot.slane %v181, 7
      %v284 = vrot.slane %v182, 7
      %v285 = vsel %vm267, %v283, %v284
      %v286 = vrot.slane %v183, 7
      %v287 = vrot.slane %v184, 7
      %v288 = vsel %vm267, %v286, %v287
      %v289 = vrot.slane %v185, 7
      %v290 = vrot.slane %v186, 7
      %v291 = vsel %vm267, %v289, %v290
      %v292 = vrot.slane %v187, 7
      %v293 = vrot.slane %v188, 7
      %v294 = vsel %vm267, %v292, %v293
      %v295 = vrot.slane %v189, 7
      %v296 = vrot.slane %v190, 7
      %v297 = vsel %vm267, %v295, %v296
      %v298 = vrot.slane %v191, 7
      %v299 = vrot.slane %v192, 7
      %v300 = vsel %vm267, %v298, %v299
      %v301 = vrot.slane %v193, 7
      %v302 = vrot.slane %v194, 7
      %v303 = vsel %vm267, %v301, %v302
      %v304 = vrot.slane %v195, 7
      %v305 = vrot.slane %v196, 7
      %v306 = vsel %vm267, %v304, %v305
      %v307 = vrot.slane %v197, 7
      %v308 = vrot.slane %v198, 7
      %v309 = vsel %vm267, %v307, %v308
      %v310 = vrot.slane %v199, 7
      %v311 = vrot.slane %v200, 7
      %v312 = vsel %vm267, %v310, %v311
      %v313 = vrot.slane %v201, 7
      %v314 = vrot.slane %v202, 7
      %v315 = vsel %vm267, %v313, %v314
      %v348 = vrot.slane %v174, 5
      %v349 = vrot.slane %v172, 5
      %v350 = vrot.slane %v176, 5
      %v351 = vrot.slane %v178, 5
      %v352 = vrot.slane %v180, 5
      %v353 = vrot.slane %v182, 5
      %v354 = vrot.slane %v184, 5
      %v355 = vrot.slane %v186, 5
      %v356 = vrot.slane %v188, 5
      %v357 = vrot.slane %v190, 5
      %v358 = vrot.slane %v192, 5
      %v359 = vrot.slane %v194, 5
      %v360 = vrot.slane %v196, 5
      %v361 = vrot.slane %v198, 5
      %v362 = vrot.slane %v200, 5
      %v363 = vrot.slane %v202, 5
      %v380 = vsel %vm267, %v219, %v268
      %v381 = vsel %vm267, %v220, %v271
      %v382 = vsel %vm267, %v221, %v274
      %v383 = vsel %vm267, %v222, %v277
      %v384 = vsel %vm267, %v223, %v280
      %v385 = vsel %vm267, %v224, %v283
      %v386 = vsel %vm267, %v225, %v286
      %v387 = vsel %vm267, %v226, %v289
      %v388 = vsel %vm267, %v227, %v292
      %v389 = vsel %vm267, %v228, %v295
      %v390 = vsel %vm267, %v229, %v298
      %v391 = vsel %vm267, %v230, %v301
      %v392 = vsel %vm267, %v231, %v304
      %v393 = vsel %vm267, %v232, %v307
      %v394 = vsel %vm267, %v233, %v310
      %v395 = vsel %vm267, %v234, %v313
      %v396 = vsel %vm267, %v269, %v348
      %v397 = vsel %vm267, %v272, %v349
      %v398 = vsel %vm267, %v275, %v350
      %v399 = vsel %vm267, %v278, %v351
      %v400 = vsel %vm267, %v281, %v352
      %v401 = vsel %vm267, %v284, %v353
      %v402 = vsel %vm267, %v287, %v354
      %v403 = vsel %vm267, %v290, %v355
      %v404 = vsel %vm267, %v293, %v356
      %v405 = vsel %vm267, %v296, %v357
      %v406 = vsel %vm267, %v299, %v358
      %v407 = vsel %vm267, %v302, %v359
      %v408 = vsel %vm267, %v305, %v360
      %v409 = vsel %vm267, %v308, %v361
      %v410 = vsel %vm267, %v311, %v362
      %v411 = vsel %vm267, %v314, %v363
      %v444 = vrot.slane %v381, 6
      %v445 = vrot.slane %v380, 4
      %v446 = vrot.slane %v273, 6
      %v447 = vrot.slane %v270, 4
      %v448 = vrot.slane %v397, 6
      %v449 = vrot.slane %v396, 4
      %v450 = vrot.slane %v380, 6
      %v451 = vrot.slane %v382, 4
      %v452 = vrot.slane %v270, 6
      %v453 = vrot.slane %v276, 4
      %v454 = vrot.slane %v396, 6
      %v455 = vrot.slane %v398, 4
      %v456 = vrot.slane %v382, 6
      %v457 = vrot.slane %v383, 4
      %v458 = vrot.slane %v276, 6
      %v459 = vrot.slane %v279, 4
      %v460 = vrot.slane %v398, 6
      %v461 = vrot.slane %v399, 4
      %v462 = vrot.slane %v383, 6
      %v463 = vrot.slane %v384, 4
      %v464 = vrot.slane %v279, 6
      %v465 = vrot.slane %v282, 4
      %v466 = vrot.slane %v399, 6
      %v467 = vrot.slane %v400, 4
      %v468 = vrot.slane %v384, 6
      %v469 = vrot.slane %v385, 4
      %v470 = vrot.slane %v282, 6
      %v471 = vrot.slane %v285, 4
      %v472 = vrot.slane %v400, 6
      %v473 = vrot.slane %v401, 4
      %v474 = vrot.slane %v385, 6
      %v475 = vrot.slane %v386, 4
      %v476 = vrot.slane %v285, 6
      %v477 = vrot.slane %v288, 4
      %v478 = vrot.slane %v401, 6
      %v479 = vrot.slane %v402, 4
      %v480 = vrot.slane %v386, 6
      %v481 = vrot.slane %v387, 4
      %v482 = vrot.slane %v288, 6
      %v483 = vrot.slane %v291, 4
      %v484 = vrot.slane %v402, 6
      %v485 = vrot.slane %v403, 4
      %v486 = vrot.slane %v387, 6
      %v487 = vrot.slane %v388, 4
      %v488 = vrot.slane %v291, 6
      %v489 = vrot.slane %v294, 4
      %v490 = vrot.slane %v403, 6
      %v491 = vrot.slane %v404, 4
      %v492 = vrot.slane %v388, 6
      %v493 = vrot.slane %v389, 4
      %v494 = vrot.slane %v294, 6
      %v495 = vrot.slane %v297, 4
      %v496 = vrot.slane %v404, 6
      %v497 = vrot.slane %v405, 4
      %v498 = vrot.slane %v389, 6
      %v499 = vrot.slane %v390, 4
      %v500 = vrot.slane %v297, 6
      %v501 = vrot.slane %v300, 4
      %v502 = vrot.slane %v405, 6
      %v503 = vrot.slane %v406, 4
      %v504 = vrot.slane %v390, 6
      %v505 = vrot.slane %v391, 4
      %v506 = vrot.slane %v300, 6
      %v507 = vrot.slane %v303, 4
      %v508 = vrot.slane %v406, 6
      %v509 = vrot.slane %v407, 4
      %v510 = vrot.slane %v391, 6
      %v511 = vrot.slane %v392, 4
      %v512 = vrot.slane %v303, 6
      %v513 = vrot.slane %v306, 4
      %v514 = vrot.slane %v407, 6
      %v515 = vrot.slane %v408, 4
      %v516 = vrot.slane %v392, 6
      %v517 = vrot.slane %v393, 4
      %v518 = vrot.slane %v306, 6
      %v519 = vrot.slane %v309, 4
      %v520 = vrot.slane %v408, 6
      %v521 = vrot.slane %v409, 4
      %v522 = vrot.slane %v393, 6
      %v523 = vrot.slane %v394, 4
      %v524 = vrot.slane %v309, 6
      %v525 = vrot.slane %v312, 4
      %v526 = vrot.slane %v409, 6
      %v527 = vrot.slane %v410, 4
      %v528 = vrot.slane %v394, 6
      %v529 = vrot.slane %v395, 4
      %v530 = vrot.slane %v312, 6
      %v531 = vrot.slane %v315, 4
      %v532 = vrot.slane %v410, 6
      %v533 = vrot.slane %v411, 4
      %v534 = vrot.slane %v395, 6
      %v535 = vrot.slane %v315, 6
      %v536 = vrot.slane %v411, 6
      %vm537 = vcmask 1041408
      %v538 = vsel %vm537, %v380, %v444
      %vm539 = vcmask 1043456
      %v540 = vsel %vm539, %v538, %v445
      %vm541 = vcmask 1043458
      %v542 = vsel %vm541, %v380, %v444
      %vm543 = vcmask 1045506
      %v544 = vsel %vm543, %v542, %v445
      %v545 = vrot.slane %v544, 2
      %vm546 = vcmask 1045508
      %v547 = vsel %vm546, %v380, %v444
      %v548 = vsel %vm539, %v445, %v547
      %v549 = vrot.slane %v548, 4
      %vm550 = vcmask 1045504
      %v551 = vsel %vm550, %v444, %v380
      %v552 = vsel %vm543, %v445, %v551
      %v553 = vrot.slane %v552, 6
      %v554 = vsel %vm537, %v270, %v446
      %v555 = vsel %vm539, %v554, %v447
      %v556 = vsel %vm541, %v270, %v446
      %v557 = vsel %vm543, %v556, %v447
      %v558 = vrot.slane %v557, 2
      %v559 = vsel %vm546, %v270, %v446
      %v560 = vsel %vm539, %v447, %v559
      %v561 = vrot.slane %v560, 4
      %v562 = vsel %vm550, %v446, %v270
      %v563 = vsel %vm543, %v447, %v562
      %v564 = vrot.slane %v563, 6
      %v565 = vsel %vm537, %v396, %v448
      %v566 = vsel %vm539, %v565, %v449
      %v567 = vsel %vm537, %v381, %v450
      %v568 = vsel %vm539, %v567, %v451
      %v569 = vsel %vm541, %v381, %v450
      %v570 = vsel %vm543, %v569, %v451
      %v571 = vrot.slane %v570, 2
      %v572 = vsel %vm546, %v381, %v450
      %v573 = vsel %vm539, %v451, %v572
      %v574 = vrot.slane %v573, 4
      %v575 = vsel %vm550, %v450, %v381
      %v576 = vsel %vm543, %v451, %v575
      %v577 = vrot.slane %v576, 6
      %v578 = vsel %vm537, %v273, %v452
      %v579 = vsel %vm539, %v578, %v453
      %v580 = vsel %vm541, %v273, %v452
      %v581 = vsel %vm543, %v580, %v453
      %v582 = vrot.slane %v581, 2
      %v583 = vsel %vm546, %v273, %v452
      %v584 = vsel %vm539, %v453, %v583
      %v585 = vrot.slane %v584, 4
      %v586 = vsel %vm550, %v452, %v273
      %v587 = vsel %vm543, %v453, %v586
      %v588 = vrot.slane %v587, 6
      %v589 = vsel %vm537, %v397, %v454
      %v590 = vsel %vm539, %v589, %v455
      %v591 = vsel %vm537, %v380, %v456
      %v592 = vsel %vm539, %v591, %v457
      %v593 = vsel %vm541, %v380, %v456
      %v594 = vsel %vm543, %v593, %v457
      %v595 = vrot.slane %v594, 2
      %v596 = vsel %vm546, %v380, %v456
      %v597 = vsel %vm539, %v457, %v596
      %v598 = vrot.slane %v597, 4
      %v599 = vsel %vm550, %v456, %v380
      %v600 = vsel %vm543, %v457, %v599
      %v601 = vrot.slane %v600, 6
      %v602 = vsel %vm537, %v270, %v458
      %v603 = vsel %vm539, %v602, %v459
      %v604 = vsel %vm541, %v270, %v458
      %v605 = vsel %vm543, %v604, %v459
      %v606 = vrot.slane %v605, 2
      %v607 = vsel %vm546, %v270, %v458
      %v608 = vsel %vm539, %v459, %v607
      %v609 = vrot.slane %v608, 4
      %v610 = vsel %vm550, %v458, %v270
      %v611 = vsel %vm543, %v459, %v610
      %v612 = vrot.slane %v611, 6
      %v613 = vsel %vm537, %v396, %v460
      %v614 = vsel %vm539, %v613, %v461
      %v615 = vsel %vm537, %v382, %v462
      %v616 = vsel %vm539, %v615, %v463
      %v617 = vsel %vm541, %v382, %v462
      %v618 = vsel %vm543, %v617, %v463
      %v619 = vrot.slane %v618, 2
      %v620 = vsel %vm546, %v382, %v462
      %v621 = vsel %vm539, %v463, %v620
      %v622 = vrot.slane %v621, 4
      %v623 = vsel %vm550, %v462, %v382
      %v624 = vsel %vm543, %v463, %v623
      %v625 = vrot.slane %v624, 6
      %v626 = vsel %vm537, %v276, %v464
      %v627 = vsel %vm539, %v626, %v465
      %v628 = vsel %vm541, %v276, %v464
      %v629 = vsel %vm543, %v628, %v465
      %v630 = vrot.slane %v629, 2
      %v631 = vsel %vm546, %v276, %v464
      %v632 = vsel %vm539, %v465, %v631
      %v633 = vrot.slane %v632, 4
      %v634 = vsel %vm550, %v464, %v276
      %v635 = vsel %vm543, %v465, %v634
      %v636 = vrot.slane %v635, 6
      %v637 = vsel %vm537, %v398, %v466
      %v638 = vsel %vm539, %v637, %v467
      %v639 = vsel %vm537, %v383, %v468
      %v640 = vsel %vm539, %v639, %v469
      %v641 = vsel %vm541, %v383, %v468
      %v642 = vsel %vm543, %v641, %v469
      %v643 = vrot.slane %v642, 2
      %v644 = vsel %vm546, %v383, %v468
      %v645 = vsel %vm539, %v469, %v644
      %v646 = vrot.slane %v645, 4
      %v647 = vsel %vm550, %v468, %v383
      %v648 = vsel %vm543, %v469, %v647
      %v649 = vrot.slane %v648, 6
      %v650 = vsel %vm537, %v279, %v470
      %v651 = vsel %vm539, %v650, %v471
      %v652 = vsel %vm541, %v279, %v470
      %v653 = vsel %vm543, %v652, %v471
      %v654 = vrot.slane %v653, 2
      %v655 = vsel %vm546, %v279, %v470
      %v656 = vsel %vm539, %v471, %v655
      %v657 = vrot.slane %v656, 4
      %v658 = vsel %vm550, %v470, %v279
      %v659 = vsel %vm543, %v471, %v658
      %v660 = vrot.slane %v659, 6
      %v661 = vsel %vm537, %v399, %v472
      %v662 = vsel %vm539, %v661, %v473
      %v663 = vsel %vm537, %v384, %v474
      %v664 = vsel %vm539, %v663, %v475
      %v665 = vsel %vm541, %v384, %v474
      %v666 = vsel %vm543, %v665, %v475
      %v667 = vrot.slane %v666, 2
      %v668 = vsel %vm546, %v384, %v474
      %v669 = vsel %vm539, %v475, %v668
      %v670 = vrot.slane %v669, 4
      %v671 = vsel %vm550, %v474, %v384
      %v672 = vsel %vm543, %v475, %v671
      %v673 = vrot.slane %v672, 6
      %v674 = vsel %vm537, %v282, %v476
      %v675 = vsel %vm539, %v674, %v477
      %v676 = vsel %vm541, %v282, %v476
      %v677 = vsel %vm543, %v676, %v477
      %v678 = vrot.slane %v677, 2
      %v679 = vsel %vm546, %v282, %v476
      %v680 = vsel %vm539, %v477, %v679
      %v681 = vrot.slane %v680, 4
      %v682 = vsel %vm550, %v476, %v282
      %v683 = vsel %vm543, %v477, %v682
      %v684 = vrot.slane %v683, 6
      %v685 = vsel %vm537, %v400, %v478
      %v686 = vsel %vm539, %v685, %v479
      %v687 = vsel %vm537, %v385, %v480
      %v688 = vsel %vm539, %v687, %v481
      %v689 = vsel %vm541, %v385, %v480
      %v690 = vsel %vm543, %v689, %v481
      %v691 = vrot.slane %v690, 2
      %v692 = vsel %vm546, %v385, %v480
      %v693 = vsel %vm539, %v481, %v692
      %v694 = vrot.slane %v693, 4
      %v695 = vsel %vm550, %v480, %v385
      %v696 = vsel %vm543, %v481, %v695
      %v697 = vrot.slane %v696, 6
      %v698 = vsel %vm537, %v285, %v482
      %v699 = vsel %vm539, %v698, %v483
      %v700 = vsel %vm541, %v285, %v482
      %v701 = vsel %vm543, %v700, %v483
      %v702 = vrot.slane %v701, 2
      %v703 = vsel %vm546, %v285, %v482
      %v704 = vsel %vm539, %v483, %v703
      %v705 = vrot.slane %v704, 4
      %v706 = vsel %vm550, %v482, %v285
      %v707 = vsel %vm543, %v483, %v706
      %v708 = vrot.slane %v707, 6
      %v709 = vsel %vm537, %v401, %v484
      %v710 = vsel %vm539, %v709, %v485
      %v711 = vsel %vm537, %v386, %v486
      %v712 = vsel %vm539, %v711, %v487
      %v713 = vsel %vm541, %v386, %v486
      %v714 = vsel %vm543, %v713, %v487
      %v715 = vrot.slane %v714, 2
      %v716 = vsel %vm546, %v386, %v486
      %v717 = vsel %vm539, %v487, %v716
      %v718 = vrot.slane %v717, 4
      %v719 = vsel %vm550, %v486, %v386
      %v720 = vsel %vm543, %v487, %v719
      %v721 = vrot.slane %v720, 6
      %v722 = vsel %vm537, %v288, %v488
      %v723 = vsel %vm539, %v722, %v489
      %v724 = vsel %vm541, %v288, %v488
      %v725 = vsel %vm543, %v724, %v489
      %v726 = vrot.slane %v725, 2
      %v727 = vsel %vm546, %v288, %v488
      %v728 = vsel %vm539, %v489, %v727
      %v729 = vrot.slane %v728, 4
      %v730 = vsel %vm550, %v488, %v288
      %v731 = vsel %vm543, %v489, %v730
      %v732 = vrot.slane %v731, 6
      %v733 = vsel %vm537, %v402, %v490
      %v734 = vsel %vm539, %v733, %v491
      %v735 = vsel %vm537, %v387, %v492
      %v736 = vsel %vm539, %v735, %v493
      %v737 = vsel %vm541, %v387, %v492
      %v738 = vsel %vm543, %v737, %v493
      %v739 = vrot.slane %v738, 2
      %v740 = vsel %vm546, %v387, %v492
      %v741 = vsel %vm539, %v493, %v740
      %v742 = vrot.slane %v741, 4
      %v743 = vsel %vm550, %v492, %v387
      %v744 = vsel %vm543, %v493, %v743
      %v745 = vrot.slane %v744, 6
      %v746 = vsel %vm537, %v291, %v494
      %v747 = vsel %vm539, %v746, %v495
      %v748 = vsel %vm541, %v291, %v494
      %v749 = vsel %vm543, %v748, %v495
      %v750 = vrot.slane %v749, 2
      %v751 = vsel %vm546, %v291, %v494
      %v752 = vsel %vm539, %v495, %v751
      %v753 = vrot.slane %v752, 4
      %v754 = vsel %vm550, %v494, %v291
      %v755 = vsel %vm543, %v495, %v754
      %v756 = vrot.slane %v755, 6
      %v757 = vsel %vm537, %v403, %v496
      %v758 = vsel %vm539, %v757, %v497
      %v759 = vsel %vm537, %v388, %v498
      %v760 = vsel %vm539, %v759, %v499
      %v761 = vsel %vm541, %v388, %v498
      %v762 = vsel %vm543, %v761, %v499
      %v763 = vrot.slane %v762, 2
      %v764 = vsel %vm546, %v388, %v498
      %v765 = vsel %vm539, %v499, %v764
      %v766 = vrot.slane %v765, 4
      %v767 = vsel %vm550, %v498, %v388
      %v768 = vsel %vm543, %v499, %v767
      %v769 = vrot.slane %v768, 6
      %v770 = vsel %vm537, %v294, %v500
      %v771 = vsel %vm539, %v770, %v501
      %v772 = vsel %vm541, %v294, %v500
      %v773 = vsel %vm543, %v772, %v501
      %v774 = vrot.slane %v773, 2
      %v775 = vsel %vm546, %v294, %v500
      %v776 = vsel %vm539, %v501, %v775
      %v777 = vrot.slane %v776, 4
      %v778 = vsel %vm550, %v500, %v294
      %v779 = vsel %vm543, %v501, %v778
      %v780 = vrot.slane %v779, 6
      %v781 = vsel %vm537, %v404, %v502
      %v782 = vsel %vm539, %v781, %v503
      %v783 = vsel %vm537, %v389, %v504
      %v784 = vsel %vm539, %v783, %v505
      %v785 = vsel %vm541, %v389, %v504
      %v786 = vsel %vm543, %v785, %v505
      %v787 = vrot.slane %v786, 2
      %v788 = vsel %vm546, %v389, %v504
      %v789 = vsel %vm539, %v505, %v788
      %v790 = vrot.slane %v789, 4
      %v791 = vsel %vm550, %v504, %v389
      %v792 = vsel %vm543, %v505, %v791
      %v793 = vrot.slane %v792, 6
      %v794 = vsel %vm537, %v297, %v506
      %v795 = vsel %vm539, %v794, %v507
      %v796 = vsel %vm541, %v297, %v506
      %v797 = vsel %vm543, %v796, %v507
      %v798 = vrot.slane %v797, 2
      %v799 = vsel %vm546, %v297, %v506
      %v800 = vsel %vm539, %v507, %v799
      %v801 = vrot.slane %v800, 4
      %v802 = vsel %vm550, %v506, %v297
      %v803 = vsel %vm543, %v507, %v802
      %v804 = vrot.slane %v803, 6
      %v805 = vsel %vm537, %v405, %v508
      %v806 = vsel %vm539, %v805, %v509
      %v807 = vsel %vm537, %v390, %v510
      %v808 = vsel %vm539, %v807, %v511
      %v809 = vsel %vm541, %v390, %v510
      %v810 = vsel %vm543, %v809, %v511
      %v811 = vrot.slane %v810, 2
      %v812 = vsel %vm546, %v390, %v510
      %v813 = vsel %vm539, %v511, %v812
      %v814 = vrot.slane %v813, 4
      %v815 = vsel %vm550, %v510, %v390
      %v816 = vsel %vm543, %v511, %v815
      %v817 = vrot.slane %v816, 6
      %v818 = vsel %vm537, %v300, %v512
      %v819 = vsel %vm539, %v818, %v513
      %v820 = vsel %vm541, %v300, %v512
      %v821 = vsel %vm543, %v820, %v513
      %v822 = vrot.slane %v821, 2
      %v823 = vsel %vm546, %v300, %v512
      %v824 = vsel %vm539, %v513, %v823
      %v825 = vrot.slane %v824, 4
      %v826 = vsel %vm550, %v512, %v300
      %v827 = vsel %vm543, %v513, %v826
      %v828 = vrot.slane %v827, 6
      %v829 = vsel %vm537, %v406, %v514
      %v830 = vsel %vm539, %v829, %v515
      %v831 = vsel %vm537, %v391, %v516
      %v832 = vsel %vm539, %v831, %v517
      %v833 = vsel %vm541, %v391, %v516
      %v834 = vsel %vm543, %v833, %v517
      %v835 = vrot.slane %v834, 2
      %v836 = vsel %vm546, %v391, %v516
      %v837 = vsel %vm539, %v517, %v836
      %v838 = vrot.slane %v837, 4
      %v839 = vsel %vm550, %v516, %v391
      %v840 = vsel %vm543, %v517, %v839
      %v841 = vrot.slane %v840, 6
      %v842 = vsel %vm537, %v303, %v518
      %v843 = vsel %vm539, %v842, %v519
      %v844 = vsel %vm541, %v303, %v518
      %v845 = vsel %vm543, %v844, %v519
      %v846 = vrot.slane %v845, 2
      %v847 = vsel %vm546, %v303, %v518
      %v848 = vsel %vm539, %v519, %v847
      %v849 = vrot.slane %v848, 4
      %v850 = vsel %vm550, %v518, %v303
      %v851 = vsel %vm543, %v519, %v850
      %v852 = vrot.slane %v851, 6
      %v853 = vsel %vm537, %v407, %v520
      %v854 = vsel %vm539, %v853, %v521
      %v855 = vsel %vm537, %v392, %v522
      %v856 = vsel %vm539, %v855, %v523
      %v857 = vsel %vm541, %v392, %v522
      %v858 = vsel %vm543, %v857, %v523
      %v859 = vrot.slane %v858, 2
      %v860 = vsel %vm546, %v392, %v522
      %v861 = vsel %vm539, %v523, %v860
      %v862 = vrot.slane %v861, 4
      %v863 = vsel %vm550, %v522, %v392
      %v864 = vsel %vm543, %v523, %v863
      %v865 = vrot.slane %v864, 6
      %v866 = vsel %vm537, %v306, %v524
      %v867 = vsel %vm539, %v866, %v525
      %v868 = vsel %vm541, %v306, %v524
      %v869 = vsel %vm543, %v868, %v525
      %v870 = vrot.slane %v869, 2
      %v871 = vsel %vm546, %v306, %v524
      %v872 = vsel %vm539, %v525, %v871
      %v873 = vrot.slane %v872, 4
      %v874 = vsel %vm550, %v524, %v306
      %v875 = vsel %vm543, %v525, %v874
      %v876 = vrot.slane %v875, 6
      %v877 = vsel %vm537, %v408, %v526
      %v878 = vsel %vm539, %v877, %v527
      %v879 = vsel %vm537, %v393, %v528
      %v880 = vsel %vm539, %v879, %v529
      %v881 = vsel %vm541, %v393, %v528
      %v882 = vsel %vm543, %v881, %v529
      %v883 = vrot.slane %v882, 2
      %v884 = vsel %vm546, %v393, %v528
      %v885 = vsel %vm539, %v529, %v884
      %v886 = vrot.slane %v885, 4
      %v887 = vsel %vm550, %v528, %v393
      %v888 = vsel %vm543, %v529, %v887
      %v889 = vrot.slane %v888, 6
      %v890 = vsel %vm537, %v309, %v530
      %v891 = vsel %vm539, %v890, %v531
      %v892 = vsel %vm541, %v309, %v530
      %v893 = vsel %vm543, %v892, %v531
      %v894 = vrot.slane %v893, 2
      %v895 = vsel %vm546, %v309, %v530
      %v896 = vsel %vm539, %v531, %v895
      %v897 = vrot.slane %v896, 4
      %v898 = vsel %vm550, %v530, %v309
      %v899 = vsel %vm543, %v531, %v898
      %v900 = vrot.slane %v899, 6
      %v901 = vsel %vm537, %v409, %v532
      %v902 = vsel %vm539, %v901, %v533
      %v903 = vsel %vm537, %v394, %v534
      %v904 = vsel %vm539, %v903, %v523
      %v905 = vsel %vm541, %v394, %v534
      %v906 = vsel %vm543, %v905, %v523
      %v907 = vrot.slane %v906, 2
      %v908 = vsel %vm546, %v394, %v534
      %v909 = vsel %vm539, %v523, %v908
      %v910 = vrot.slane %v909, 4
      %v911 = vsel %vm550, %v534, %v394
      %v912 = vsel %vm543, %v523, %v911
      %v913 = vrot.slane %v912, 6
      %v914 = vsel %vm537, %v312, %v535
      %v915 = vsel %vm539, %v914, %v525
      %v916 = vsel %vm541, %v312, %v535
      %v917 = vsel %vm543, %v916, %v525
      %v918 = vrot.slane %v917, 2
      %v919 = vsel %vm546, %v312, %v535
      %v920 = vsel %vm539, %v525, %v919
      %v921 = vrot.slane %v920, 4
      %v922 = vsel %vm550, %v535, %v312
      %v923 = vsel %vm543, %v525, %v922
      %v924 = vrot.slane %v923, 6
      %v925 = vsel %vm537, %v410, %v536
      %v926 = vsel %vm539, %v925, %v527
      %927 = vst [vmem:[#allocation1] ss:$4 sm:$0xff] %v540
      %s928 = scalar_lea.vmem [#allocation1], 1
      %929 = vst [vmem:[%s928] ss:$4 sm:$0xff] %v545
      %s930 = scalar_lea.vmem [#allocation1], 2
      %931 = vst [vmem:[%s930] ss:$4 sm:$0xff] %v549
      %s932 = scalar_lea.vmem [#allocation1], 3
      %933 = vst [vmem:[%s932] ss:$4 sm:$0xff] %v553
      %s934 = scalar_lea.vmem [#allocation1], 32
      %935 = vst [vmem:[%s934] ss:$4 sm:$0xff] %v555
      %s936 = scalar_lea.vmem [#allocation1], 33
      %937 = vst [vmem:[%s936] ss:$4 sm:$0xff] %v558
      %s938 = scalar_lea.vmem [#allocation1], 34
      %939 = vst [vmem:[%s938] ss:$4 sm:$0xff] %v561
      %s940 = scalar_lea.vmem [#allocation1], 35
      %941 = vst [vmem:[%s940] ss:$4 sm:$0xff] %v564
      %v942 = vld.sshfl [vmem:[#allocation1] sm:$0xff pattern:$0x73625140]
      %v943 = vld.sshfl [vmem:[#allocation1 + $0x8] sm:$0xff pattern:$0x73625140]
      %v944 = vld.sshfl [vmem:[#allocation1 + $0x10] sm:$0xff pattern:$0x73625140]
      %v945 = vld.sshfl [vmem:[#allocation1 + $0x20] sm:$0xff pattern:$0x73625140]
      %v946 = vld.sshfl [vmem:[#allocation1 + $0x28] sm:$0xff pattern:$0x73625140]
      %v947 = vld.sshfl [vmem:[#allocation1 + $0x30] sm:$0xff pattern:$0x73625140]
      %948 = vst [vmem:[#allocation1] ss:$4 sm:$0xff] %v566
      %949 = vst [vmem:[%s928] ss:$4 sm:$0xff] %v568
      %950 = vst [vmem:[%s930] ss:$4 sm:$0xff] %v571
      %951 = vst [vmem:[%s932] ss:$4 sm:$0xff] %v574
      %952 = vst [vmem:[%s934] ss:$4 sm:$0xff] %v577
      %953 = vst [vmem:[%s936] ss:$4 sm:$0xff] %v579
      %954 = vst [vmem:[%s938] ss:$4 sm:$0xff] %v582
      %955 = vst [vmem:[%s940] ss:$4 sm:$0xff] %v585
      %v956 = vld.sshfl [vmem:[#allocation1] sm:$0xff pattern:$0x73625140]
      %v957 = vld.sshfl [vmem:[#allocation1 + $0x8] sm:$0xff pattern:$0x73625140]
      %v958 = vld.sshfl [vmem:[#allocation1 + $0x10] sm:$0xff pattern:$0x73625140]
      %v959 = vld.sshfl [vmem:[#allocation1 + $0x20] sm:$0xff pattern:$0x73625140]
      %v960 = vld.sshfl [vmem:[#allocation1 + $0x28] sm:$0xff pattern:$0x73625140]
      %v961 = vld.sshfl [vmem:[#allocation1 + $0x30] sm:$0xff pattern:$0x73625140]
      %962 = vst [vmem:[#allocation1] ss:$4 sm:$0xff] %v588
      %963 = vst [vmem:[%s928] ss:$4 sm:$0xff] %v590
      %964 = vst [vmem:[%s930] ss:$4 sm:$0xff] %v592
      %965 = vst [vmem:[%s932] ss:$4 sm:$0xff] %v595
      %966 = vst [vmem:[%s934] ss:$4 sm:$0xff] %v598
      %967 = vst [vmem:[%s936] ss:$4 sm:$0xff] %v601
      %968 = vst [vmem:[%s938] ss:$4 sm:$0xff] %v603
      %969 = vst [vmem:[%s940] ss:$4 sm:$0xff] %v606
      %v970 = vld.sshfl [vmem:[#allocation1] sm:$0xff pattern:$0x73625140]
      %v971 = vld.sshfl [vmem:[#allocation1 + $0x8] sm:$0xff pattern:$0x73625140]
      %v972 = vld.sshfl [vmem:[#allocation1 + $0x10] sm:$0xff pattern:$0x73625140]
      %v973 = vld.sshfl [vmem:[#allocation1 + $0x20] sm:$0xff pattern:$0x73625140]
      %v974 = vld.sshfl [vmem:[#allocation1 + $0x28] sm:$0xff pattern:$0x73625140]
      %v975 = vld.sshfl [vmem:[#allocation1 + $0x30] sm:$0xff pattern:$0x73625140]
      %976 = vst [vmem:[#allocation1] ss:$4 sm:$0xff] %v609
      %977 = vst [vmem:[%s928] ss:$4 sm:$0xff] %v612
      %978 = vst [vmem:[%s930] ss:$4 sm:$0xff] %v614
      %979 = vst [vmem:[%s932] ss:$4 sm:$0xff] %v616
      %980 = vst [vmem:[%s934] ss:$4 sm:$0xff] %v619
      %981 = vst [vmem:[%s936] ss:$4 sm:$0xff] %v622
      %982 = vst [vmem:[%s938] ss:$4 sm:$0xff] %v625
      %983 = vst [vmem:[%s940] ss:$4 sm:$0xff] %v627
      %v984 = vld.sshfl [vmem:[#allocation1] sm:$0xff pattern:$0x73625140]
      %v985 = vld.sshfl [vmem:[#allocation1 + $0x8] sm:$0xff pattern:$0x73625140]
      %v986 = vld.sshfl [vmem:[#allocation1 + $0x10] sm:$0xff pattern:$0x73625140]
      %v987 = vld.sshfl [vmem:[#allocation1 + $0x20] sm:$0xff pattern:$0x73625140]
      %v988 = vld.sshfl [vmem:[#allocation1 + $0x28] sm:$0xff pattern:$0x73625140]
      %v989 = vld.sshfl [vmem:[#allocation1 + $0x30] sm:$0xff pattern:$0x73625140]
      %990 = vst [vmem:[#allocation1] ss:$4 sm:$0xff] %v630
      %991 = vst [vmem:[%s928] ss:$4 sm:$0xff] %v633
      %992 = vst [vmem:[%s930] ss:$4 sm:$0xff] %v636
      %993 = vst [vmem:[%s932] ss:$4 sm:$0xff] %v638
      %994 = vst [vmem:[%s934] ss:$4 sm:$0xff] %v640
      %995 = vst [vmem:[%s936] ss:$4 sm:$0xff] %v643
      %996 = vst [vmem:[%s938] ss:$4 sm:$0xff] %v646
      %997 = vst [vmem:[%s940] ss:$4 sm:$0xff] %v649
      %v998 = vld.sshfl [vmem:[#allocation1] sm:$0xff pattern:$0x73625140]
      %v999 = vld.sshfl [vmem:[#allocation1 + $0x8] sm:$0xff pattern:$0x73625140]
      %v1000 = vld.sshfl [vmem:[#allocation1 + $0x10] sm:$0xff pattern:$0x73625140]
      %v1001 = vld.sshfl [vmem:[#allocation1 + $0x20] sm:$0xff pattern:$0x73625140]
      %v1002 = vld.sshfl [vmem:[#allocation1 + $0x28] sm:$0xff pattern:$0x73625140]
      %v1003 = vld.sshfl [vmem:[#allocation1 + $0x30] sm:$0xff pattern:$0x73625140]
      %1004 = vst [vmem:[#allocation1] ss:$4 sm:$0xff] %v651
      %1005 = vst [vmem:[%s928] ss:$4 sm:$0xff] %v654
      %1006 = vst [vmem:[%s930] ss:$4 sm:$0xff] %v657
      %1007 = vst [vmem:[%s932] ss:$4 sm:$0xff] %v660
      %1008 = vst [vmem:[%s934] ss:$4 sm:$0xff] %v662
      %1009 = vst [vmem:[%s936] ss:$4 sm:$0xff] %v664
      %1010 = vst [vmem:[%s938] ss:$4 sm:$0xff] %v667
      %1011 = vst [vmem:[%s940] ss:$4 sm:$0xff] %v670
      %v1012 = vld.sshfl [vmem:[#allocation1] sm:$0xff pattern:$0x73625140]
      %v1013 = vld.sshfl [vmem:[#allocation1 + $0x8] sm:$0xff pattern:$0x73625140]
      %v1014 = vld.sshfl [vmem:[#allocation1 + $0x10] sm:$0xff pattern:$0x73625140]
      %v1015 = vld.sshfl [vmem:[#allocation1 + $0x20] sm:$0xff pattern:$0x73625140]
      %v1016 = vld.sshfl [vmem:[#allocation1 + $0x28] sm:$0xff pattern:$0x73625140]
      %v1017 = vld.sshfl [vmem:[#allocation1 + $0x30] sm:$0xff pattern:$0x73625140]
      %1018 = vst [vmem:[#allocation1] ss:$4 sm:$0xff] %v673
      %1019 = vst [vmem:[%s928] ss:$4 sm:$0xff] %v675
      %1020 = vst [vmem:[%s930] ss:$4 sm:$0xff] %v678
      %1021 = vst [vmem:[%s932] ss:$4 sm:$0xff] %v681
      %1022 = vst [vmem:[%s934] ss:$4 sm:$0xff] %v684
      %1023 = vst [vmem:[%s936] ss:$4 sm:$0xff] %v686
      %1024 = vst [vmem:[%s938] ss:$4 sm:$0xff] %v688
      %1025 = vst [vmem:[%s940] ss:$4 sm:$0xff] %v691
      %v1026 = vld.sshfl [vmem:[#allocation1] sm:$0xff pattern:$0x73625140]
      %v1027 = vld.sshfl [vmem:[#allocation1 + $0x8] sm:$0xff pattern:$0x73625140]
      %v1028 = vld.sshfl [vmem:[#allocation1 + $0x10] sm:$0xff pattern:$0x73625140]
      %v1029 = vld.sshfl [vmem:[#allocation1 + $0x20] sm:$0xff pattern:$0x73625140]
      %v1030 = vld.sshfl [vmem:[#allocation1 + $0x28] sm:$0xff pattern:$0x73625140]
      %v1031 = vld.sshfl [vmem:[#allocation1 + $0x30] sm:$0xff pattern:$0x73625140]
      %1032 = vst [vmem:[#allocation1] ss:$4 sm:$0xff] %v694
      %1033 = vst [vmem:[%s928] ss:$4 sm:$0xff] %v697
      %1034 = vst [vmem:[%s930] ss:$4 sm:$0xff] %v699
      %1035 = vst [vmem:[%s932] ss:$4 sm:$0xff] %v702
      %1036 = vst [vmem:[%s934] ss:$4 sm:$0xff] %v705
      %1037 = vst [vmem:[%s936] ss:$4 sm:$0xff] %v708
      %1038 = vst [vmem:[%s938] ss:$4 sm:$0xff] %v710
      %1039 = vst [vmem:[%s940] ss:$4 sm:$0xff] %v712
      %v1040 = vld.sshfl [vmem:[#allocation1] sm:$0xff pattern:$0x73625140]
      %v1041 = vld.sshfl [vmem:[#allocation1 + $0x8] sm:$0xff pattern:$0x73625140]
      %v1042 = vld.sshfl [vmem:[#allocation1 + $0x10] sm:$0xff pattern:$0x73625140]
      %v1043 = vld.sshfl [vmem:[#allocation1 + $0x20] sm:$0xff pattern:$0x73625140]
      %v1044 = vld.sshfl [vmem:[#allocation1 + $0x28] sm:$0xff pattern:$0x73625140]
      %v1045 = vld.sshfl [vmem:[#allocation1 + $0x30] sm:$0xff pattern:$0x73625140]
      %1046 = vst [vmem:[#allocation1] ss:$4 sm:$0xff] %v715
      %1047 = vst [vmem:[%s928] ss:$4 sm:$0xff] %v718
      %1048 = vst [vmem:[%s930] ss:$4 sm:$0xff] %v721
      %1049 = vst [vmem:[%s932] ss:$4 sm:$0xff] %v723
      %1050 = vst [vmem:[%s934] ss:$4 sm:$0xff] %v726
      %1051 = vst [vmem:[%s936] ss:$4 sm:$0xff] %v729
      %1052 = vst [vmem:[%s938] ss:$4 sm:$0xff] %v732
      %1053 = vst [vmem:[%s940] ss:$4 sm:$0xff] %v734
      %v1054 = vld.sshfl [vmem:[#allocation1] sm:$0xff pattern:$0x73625140]
      %v1055 = vld.sshfl [vmem:[#allocation1 + $0x8] sm:$0xff pattern:$0x73625140]
      %v1056 = vld.sshfl [vmem:[#allocation1 + $0x10] sm:$0xff pattern:$0x73625140]
      %v1057 = vld.sshfl [vmem:[#allocation1 + $0x20] sm:$0xff pattern:$0x73625140]
      %v1058 = vld.sshfl [vmem:[#allocation1 + $0x28] sm:$0xff pattern:$0x73625140]
      %v1059 = vld.sshfl [vmem:[#allocation1 + $0x30] sm:$0xff pattern:$0x73625140]
      %1060 = vst [vmem:[#allocation1] ss:$4 sm:$0xff] %v736
      %1061 = vst [vmem:[%s928] ss:$4 sm:$0xff] %v739
      %1062 = vst [vmem:[%s930] ss:$4 sm:$0xff] %v742
      %1063 = vst [vmem:[%s932] ss:$4 sm:$0xff] %v745
      %1064 = vst [vmem:[%s934] ss:$4 sm:$0xff] %v747
      %1065 = vst [vmem:[%s936] ss:$4 sm:$0xff] %v750
      %1066 = vst [vmem:[%s938] ss:$4 sm:$0xff] %v753
      %1067 = vst [vmem:[%s940] ss:$4 sm:$0xff] %v756
      %v1068 = vld.sshfl [vmem:[#allocation1] sm:$0xff pattern:$0x73625140]
      %v1069 = vld.sshfl [vmem:[#allocation1 + $0x8] sm:$0xff pattern:$0x73625140]
      %v1070 = vld.sshfl [vmem:[#allocation1 + $0x10] sm:$0xff pattern:$0x73625140]
      %v1071 = vld.sshfl [vmem:[#allocation1 + $0x20] sm:$0xff pattern:$0x73625140]
      %v1072 = vld.sshfl [vmem:[#allocation1 + $0x28] sm:$0xff pattern:$0x73625140]
      %v1073 = vld.sshfl [vmem:[#allocation1 + $0x30] sm:$0xff pattern:$0x73625140]
      %1074 = vst [vmem:[#allocation1] ss:$4 sm:$0xff] %v758
      %1075 = vst [vmem:[%s928] ss:$4 sm:$0xff] %v760
      %1076 = vst [vmem:[%s930] ss:$4 sm:$0xff] %v763
      %1077 = vst [vmem:[%s932] ss:$4 sm:$0xff] %v766
      %1078 = vst [vmem:[%s934] ss:$4 sm:$0xff] %v769
      %1079 = vst [vmem:[%s936] ss:$4 sm:$0xff] %v771
      %1080 = vst [vmem:[%s938] ss:$4 sm:$0xff] %v774
      %1081 = vst [vmem:[%s940] ss:$4 sm:$0xff] %v777
      %v1082 = vld.sshfl [vmem:[#allocation1] sm:$0xff pattern:$0x73625140]
      %v1083 = vld.sshfl [vmem:[#allocation1 + $0x8] sm:$0xff pattern:$0x73625140]
      %v1084 = vld.sshfl [vmem:[#allocation1 + $0x10] sm:$0xff pattern:$0x73625140]
      %v1085 = vld.sshfl [vmem:[#allocation1 + $0x20] sm:$0xff pattern:$0x73625140]
      %v1086 = vld.sshfl [vmem:[#allocation1 + $0x28] sm:$0xff pattern:$0x73625140]
      %v1087 = vld.sshfl [vmem:[#allocation1 + $0x30] sm:$0xff pattern:$0x73625140]
      %1088 = vst [vmem:[#allocation1] ss:$4 sm:$0xff] %v780
      %1089 = vst [vmem:[%s928] ss:$4 sm:$0xff] %v782
      %1090 = vst [vmem:[%s930] ss:$4 sm:$0xff] %v784
      %1091 = vst [vmem:[%s932] ss:$4 sm:$0xff] %v787
      %1092 = vst [vmem:[%s934] ss:$4 sm:$0xff] %v790
      %1093 = vst [vmem:[%s936] ss:$4 sm:$0xff] %v793
      %1094 = vst [vmem:[%s938] ss:$4 sm:$0xff] %v795
      %1095 = vst [vmem:[%s940] ss:$4 sm:$0xff] %v798
      %v1096 = vld.sshfl [vmem:[#allocation1] sm:$0xff pattern:$0x73625140]
      %v1097 = vld.sshfl [vmem:[#allocation1 + $0x8] sm:$0xff pattern:$0x73625140]
      %v1098 = vld.sshfl [vmem:[#allocation1 + $0x10] sm:$0xff pattern:$0x73625140]
      %v1099 = vld.sshfl [vmem:[#allocation1 + $0x20] sm:$0xff pattern:$0x73625140]
      %v1100 = vld.sshfl [vmem:[#allocation1 + $0x28] sm:$0xff pattern:$0x73625140]
      %v1101 = vld.sshfl [vmem:[#allocation1 + $0x30] sm:$0xff pattern:$0x73625140]
      %1102 = vst [vmem:[#allocation1] ss:$4 sm:$0xff] %v801
      %1103 = vst [vmem:[%s928] ss:$4 sm:$0xff] %v804
      %1104 = vst [vmem:[%s930] ss:$4 sm:$0xff] %v806
      %1105 = vst [vmem:[%s932] ss:$4 sm:$0xff] %v808
      %1106 = vst [vmem:[%s934] ss:$4 sm:$0xff] %v811
      %1107 = vst [vmem:[%s936] ss:$4 sm:$0xff] %v814
      %1108 = vst [vmem:[%s938] ss:$4 sm:$0xff] %v817
      %1109 = vst [vmem:[%s940] ss:$4 sm:$0xff] %v819
      %v1110 = vld.sshfl [vmem:[#allocation1] sm:$0xff pattern:$0x73625140]
      %v1111 = vld.sshfl [vmem:[#allocation1 + $0x8] sm:$0xff pattern:$0x73625140]
      %v1112 = vld.sshfl [vmem:[#allocation1 + $0x10] sm:$0xff pattern:$0x73625140]
      %v1113 = vld.sshfl [vmem:[#allocation1 + $0x20] sm:$0xff pattern:$0x73625140]
      %v1114 = vld.sshfl [vmem:[#allocation1 + $0x28] sm:$0xff pattern:$0x73625140]
      %v1115 = vld.sshfl [vmem:[#allocation1 + $0x30] sm:$0xff pattern:$0x73625140]
      %1116 = vst [vmem:[#allocation1] ss:$4 sm:$0xff] %v822
      %1117 = vst [vmem:[%s928] ss:$4 sm:$0xff] %v825
      %1118 = vst [vmem:[%s930] ss:$4 sm:$0xff] %v828
      %1119 = vst [vmem:[%s932] ss:$4 sm:$0xff] %v830
      %1120 = vst [vmem:[%s934] ss:$4 sm:$0xff] %v832
      %1121 = vst [vmem:[%s936] ss:$4 sm:$0xff] %v835
      %1122 = vst [vmem:[%s938] ss:$4 sm:$0xff] %v838
      %1123 = vst [vmem:[%s940] ss:$4 sm:$0xff] %v841
      %v1124 = vld.sshfl [vmem:[#allocation1] sm:$0xff pattern:$0x73625140]
      %v1125 = vld.sshfl [vmem:[#allocation1 + $0x8] sm:$0xff pattern:$0x73625140]
      %v1126 = vld.sshfl [vmem:[#allocation1 + $0x10] sm:$0xff pattern:$0x73625140]
      %v1127 = vld.sshfl [vmem:[#allocation1 + $0x20] sm:$0xff pattern:$0x73625140]
      %v1128 = vld.sshfl [vmem:[#allocation1 + $0x28] sm:$0xff pattern:$0x73625140]
      %v1129 = vld.sshfl [vmem:[#allocation1 + $0x30] sm:$0xff pattern:$0x73625140]
      %1130 = vst [vmem:[#allocation1] ss:$4 sm:$0xff] %v843
      %1131 = vst [vmem:[%s928] ss:$4 sm:$0xff] %v846
      %1132 = vst [vmem:[%s930] ss:$4 sm:$0xff] %v849
      %1133 = vst [vmem:[%s932] ss:$4 sm:$0xff] %v852
      %1134 = vst [vmem:[%s934] ss:$4 sm:$0xff] %v854
      %1135 = vst [vmem:[%s936] ss:$4 sm:$0xff] %v856
      %1136 = vst [vmem:[%s938] ss:$4 sm:$0xff] %v859
      %1137 = vst [vmem:[%s940] ss:$4 sm:$0xff] %v862
      %v1138 = vld.sshfl [vmem:[#allocation1] sm:$0xff pattern:$0x73625140]
      %v1139 = vld.sshfl [vmem:[#allocation1 + $0x8] sm:$0xff pattern:$0x73625140]
      %v1140 = vld.sshfl [vmem:[#allocation1 + $0x10] sm:$0xff pattern:$0x73625140]
      %v1141 = vld.sshfl [vmem:[#allocation1 + $0x20] sm:$0xff pattern:$0x73625140]
      %v1142 = vld.sshfl [vmem:[#allocation1 + $0x28] sm:$0xff pattern:$0x73625140]
      %v1143 = vld.sshfl [vmem:[#allocation1 + $0x30] sm:$0xff pattern:$0x73625140]
      %1144 = vst [vmem:[#allocation1] ss:$4 sm:$0xff] %v865
      %1145 = vst [vmem:[%s928] ss:$4 sm:$0xff] %v867
      %1146 = vst [vmem:[%s930] ss:$4 sm:$0xff] %v870
      %1147 = vst [vmem:[%s932] ss:$4 sm:$0xff] %v873
      %1148 = vst [vmem:[%s934] ss:$4 sm:$0xff] %v876
      %1149 = vst [vmem:[%s936] ss:$4 sm:$0xff] %v878
      %1150 = vst [vmem:[%s938] ss:$4 sm:$0xff] %v880
      %1151 = vst [vmem:[%s940] ss:$4 sm:$0xff] %v883
      %v1152 = vld.sshfl [vmem:[#allocation1] sm:$0xff pattern:$0x73625140]
      %v1153 = vld.sshfl [vmem:[#allocation1 + $0x8] sm:$0xff pattern:$0x73625140]
      %v1154 = vld.sshfl [vmem:[#allocation1 + $0x10] sm:$0xff pattern:$0x73625140]
      %v1155 = vld.sshfl [vmem:[#allocation1 + $0x20] sm:$0xff pattern:$0x73625140]
      %v1156 = vld.sshfl [vmem:[#allocation1 + $0x28] sm:$0xff pattern:$0x73625140]
      %v1157 = vld.sshfl [vmem:[#allocation1 + $0x30] sm:$0xff pattern:$0x73625140]
      %1158 = vst [vmem:[#allocation1] ss:$4 sm:$0xff] %v886
      %1159 = vst [vmem:[%s928] ss:$4 sm:$0xff] %v889
      %1160 = vst [vmem:[%s930] ss:$4 sm:$0xff] %v891
      %1161 = vst [vmem:[%s932] ss:$4 sm:$0xff] %v894
      %1162 = vst [vmem:[%s934] ss:$4 sm:$0xff] %v897
      %1163 = vst [vmem:[%s936] ss:$4 sm:$0xff] %v900
      %1164 = vst [vmem:[%s938] ss:$4 sm:$0xff] %v902
      %1165 = vst [vmem:[%s940] ss:$4 sm:$0xff] %v904
      %v1166 = vld.sshfl [vmem:[#allocation1] sm:$0xff pattern:$0x73625140]
      %v1167 = vld.sshfl [vmem:[#allocation1 + $0x8] sm:$0xff pattern:$0x73625140]
      %v1168 = vld.sshfl [vmem:[#allocation1 + $0x10] sm:$0xff pattern:$0x73625140]
      %v1169 = vld.sshfl [vmem:[#allocation1 + $0x20] sm:$0xff pattern:$0x73625140]
      %v1170 = vld.sshfl [vmem:[#allocation1 + $0x28] sm:$0xff pattern:$0x73625140]
      %v1171 = vld.sshfl [vmem:[#allocation1 + $0x30] sm:$0xff pattern:$0x73625140]
      %1172 = vst [vmem:[#allocation1] ss:$4 sm:$0xff] %v907
      %1173 = vst [vmem:[%s928] ss:$4 sm:$0xff] %v910
      %1174 = vst [vmem:[%s930] ss:$4 sm:$0xff] %v913
      %1175 = vst [vmem:[%s932] ss:$4 sm:$0xff] %v915
      %1176 = vst [vmem:[%s934] ss:$4 sm:$0xff] %v918
      %1177 = vst [vmem:[%s936] ss:$4 sm:$0xff] %v921
      %1178 = vst [vmem:[%s938] ss:$4 sm:$0xff] %v924
      %1179 = vst [vmem:[%s940] ss:$4 sm:$0xff] %v926
      %v1180 = vld.sshfl [vmem:[#allocation1] sm:$0xff pattern:$0x73625140]
      %v1181 = vld.sshfl [vmem:[#allocation1 + $0x8] sm:$0xff pattern:$0x73625140]
      %v1182 = vld.sshfl [vmem:[#allocation1 + $0x10] sm:$0xff pattern:$0x73625140]
      %v1183 = vld.sshfl [vmem:[#allocation1 + $0x20] sm:$0xff pattern:$0x73625140]
      %v1184 = vld.sshfl [vmem:[#allocation1 + $0x28] sm:$0xff pattern:$0x73625140]
      %v1185 = vld.sshfl [vmem:[#allocation1 + $0x30] sm:$0xff pattern:$0x73625140]
      %v1294 = vpack.c.bf16 %v945, %v942
      %v1295 = vpack.c.bf16 %v946, %v943
      %v1296 = vpack.c.bf16 %v947, %v944
      %v1297 = vpack.c.bf16 %v959, %v956
      %v1298 = vpack.c.bf16 %v960, %v957
      %v1299 = vpack.c.bf16 %v961, %v958
      %v1300 = vpack.c.bf16 %v973, %v970
      %v1301 = vpack.c.bf16 %v974, %v971
      %v1302 = vpack.c.bf16 %v975, %v972
      %v1303 = vpack.c.bf16 %v987, %v984
      %v1304 = vpack.c.bf16 %v988, %v985
      %v1305 = vpack.c.bf16 %v989, %v986
      %v1306 = vpack.c.bf16 %v1001, %v998
      %v1307 = vpack.c.bf16 %v1002, %v999
      %v1308 = vpack.c.bf16 %v1003, %v1000
      %v1309 = vpack.c.bf16 %v1015, %v1012
      %v1310 = vpack.c.bf16 %v1016, %v1013
      %v1311 = vpack.c.bf16 %v1017, %v1014
      %v1312 = vpack.c.bf16 %v1029, %v1026
      %v1313 = vpack.c.bf16 %v1030, %v1027
      %v1314 = vpack.c.bf16 %v1031, %v1028
      %v1315 = vpack.c.bf16 %v1043, %v1040
      %v1316 = vpack.c.bf16 %v1044, %v1041
      %v1317 = vpack.c.bf16 %v1045, %v1042
      %v1318 = vpack.c.bf16 %v1057, %v1054
      %v1319 = vpack.c.bf16 %v1058, %v1055
      %v1320 = vpack.c.bf16 %v1059, %v1056
      %v1321 = vpack.c.bf16 %v1071, %v1068
      %v1322 = vpack.c.bf16 %v1072, %v1069
      %v1323 = vpack.c.bf16 %v1073, %v1070
      %v1324 = vpack.c.bf16 %v1085, %v1082
      %v1325 = vpack.c.bf16 %v1086, %v1083
      %v1326 = vpack.c.bf16 %v1087, %v1084
      %v1327 = vpack.c.bf16 %v1099, %v1096
      %v1328 = vpack.c.bf16 %v1100, %v1097
      %v1329 = vpack.c.bf16 %v1101, %v1098
      %v1330 = vpack.c.bf16 %v1113, %v1110
      %v1331 = vpack.c.bf16 %v1114, %v1111
      %v1332 = vpack.c.bf16 %v1115, %v1112
      %v1333 = vpack.c.bf16 %v1127, %v1124
      %v1334 = vpack.c.bf16 %v1128, %v1125
      %v1335 = vpack.c.bf16 %v1129, %v1126
      %v1336 = vpack.c.bf16 %v1141, %v1138
      %v1337 = vpack.c.bf16 %v1142, %v1139
      %v1338 = vpack.c.bf16 %v1143, %v1140
      %v1339 = vpack.c.bf16 %v1155, %v1152
      %v1340 = vpack.c.bf16 %v1156, %v1153
      %v1341 = vpack.c.bf16 %v1157, %v1154
      %v1342 = vpack.c.bf16 %v1169, %v1166
      %v1343 = vpack.c.bf16 %v1170, %v1167
      %v1344 = vpack.c.bf16 %v1171, %v1168
      %v1345 = vpack.c.bf16 %v1183, %v1180
      %v1346 = vpack.c.bf16 %v1184, %v1181
      %v1347 = vpack.c.bf16 %v1185, %v1182
      %v1348 = vld [vmem:[%s1] sm:$0xf]
      %v1349 = vld [vmem:[%s1 + $0x4] sm:$0xf]
      %v1350 = vld [vmem:[%s1 + $0x8] sm:$0xf]
      %v1351 = vld [vmem:[%s1 + $0xc] sm:$0xf]
      %v1352 = vld [vmem:[%s1 + $0x10] sm:$0xf]
      %v1353 = vld [vmem:[%s1 + $0x14] sm:$0xf]
      %v1354 = vld [vmem:[%s1 + $0x18] sm:$0xf]
      %v1355 = vld [vmem:[%s1 + $0x1c] sm:$0xf]
      %v1356 = vld [vmem:[%s1 + $0x20] sm:$0xf]
      %v1357 = vld [vmem:[%s1 + $0x24] sm:$0xf]
      %v1358 = vld [vmem:[%s1 + $0x28] sm:$0xf]
      %v1359 = vld [vmem:[%s1 + $0x2c] sm:$0xf]
      %v1360 = vld [vmem:[%s1 + $0x30] sm:$0xf]
      %v1361 = vld [vmem:[%s1 + $0x34] sm:$0xf]
      %v1362 = vld [vmem:[%s1 + $0x38] sm:$0xf]
      %v1363 = vld [vmem:[%s1 + $0x3c] sm:$0xf]
      %v1364 = vld [vmem:[%s1 + $0x40] sm:$0xf]
      %v1365 = vld [vmem:[%s1 + $0x44] sm:$0xf]
      %v1366 = vld [vmem:[%s1 + $0x48] sm:$0xf]
      %v1367 = vld [vmem:[%s1 + $0x4c] sm:$0xf]
      %v1368 = vld [vmem:[%s1 + $0x50] sm:$0xf]
      %v1369 = vld [vmem:[%s1 + $0x54] sm:$0xf]
      %v1370 = vld [vmem:[%s1 + $0x58] sm:$0xf]
      %v1371 = vld [vmem:[%s1 + $0x5c] sm:$0xf]
      %v1372 = vld [vmem:[%s1 + $0x60] sm:$0xf]
      %v1373 = vld [vmem:[%s1 + $0x64] sm:$0xf]
      %v1374 = vld [vmem:[%s1 + $0x68] sm:$0xf]
      %v1375 = vld [vmem:[%s1 + $0x6c] sm:$0xf]
      %v1376 = vld [vmem:[%s1 + $0x70] sm:$0xf]
      %v1377 = vld [vmem:[%s1 + $0x74] sm:$0xf]
      %v1378 = vld [vmem:[%s1 + $0x78] sm:$0xf]
      %v1379 = vld [vmem:[%s1 + $0x7c] sm:$0xf]
      %v1380 = vld [vmem:[%s1 + $0x80] sm:$0xf]
      %v1381 = vld [vmem:[%s1 + $0x84] sm:$0xf]
      %v1382 = vld [vmem:[%s1 + $0x88] sm:$0xf]
      %v1383 = vld [vmem:[%s1 + $0x8c] sm:$0xf]
      %v1384 = vld [vmem:[%s1 + $0x90] sm:$0xf]
      %v1385 = vld [vmem:[%s1 + $0x94] sm:$0xf]
      %v1386 = vld [vmem:[%s1 + $0x98] sm:$0xf]
      %v1387 = vld [vmem:[%s1 + $0x9c] sm:$0xf]
      %v1388 = vld [vmem:[%s1 + $0xa0] sm:$0xf]
      %v1389 = vld [vmem:[%s1 + $0xa4] sm:$0xf]
      %v1390 = vld [vmem:[%s1 + $0xa8] sm:$0xf]
      %v1391 = vld [vmem:[%s1 + $0xac] sm:$0xf]
      %v1392 = vld [vmem:[%s1 + $0xb0] sm:$0xf]
      %v1393 = vld [vmem:[%s1 + $0xb4] sm:$0xf]
      %v1394 = vld [vmem:[%s1 + $0xb8] sm:$0xf]
      %v1395 = vld [vmem:[%s1 + $0xbc] sm:$0xf]
      %v1444 = vunpack.c.l.b16 %v1348
      %v1445 = vunpack.c.l.b16 %v1349
      %v1446 = vunpack.c.l.b16 %v1350
      %v1447 = vunpack.c.l.b16 %v1351
      %v1448 = vunpack.c.l.b16 %v1352
      %v1449 = vunpack.c.l.b16 %v1353
      %v1450 = vunpack.c.l.b16 %v1354
      %v1451 = vunpack.c.l.b16 %v1355
      %v1452 = vunpack.c.l.b16 %v1356
      %v1453 = vunpack.c.l.b16 %v1357
      %v1454 = vunpack.c.l.b16 %v1358
      %v1455 = vunpack.c.l.b16 %v1359
      %v1456 = vunpack.c.l.b16 %v1360
      %v1457 = vunpack.c.l.b16 %v1361
      %v1458 = vunpack.c.l.b16 %v1362
      %v1459 = vunpack.c.l.b16 %v1363
      %v1460 = vunpack.c.l.b16 %v1364
      %v1461 = vunpack.c.l.b16 %v1365
      %v1462 = vunpack.c.l.b16 %v1366
      %v1463 = vunpack.c.l.b16 %v1367
      %v1464 = vunpack.c.l.b16 %v1368
      %v1465 = vunpack.c.l.b16 %v1369
      %v1466 = vunpack.c.l.b16 %v1370
      %v1467 = vunpack.c.l.b16 %v1371
      %v1468 = vunpack.c.l.b16 %v1372
      %v1469 = vunpack.c.l.b16 %v1373
      %v1470 = vunpack.c.l.b16 %v1374
      %v1471 = vunpack.c.l.b16 %v1375
      %v1472 = vunpack.c.l.b16 %v1376
      %v1473 = vunpack.c.l.b16 %v1377
      %v1474 = vunpack.c.l.b16 %v1378
      %v1475 = vunpack.c.l.b16 %v1379
      %v1476 = vunpack.c.l.b16 %v1380
      %v1477 = vunpack.c.l.b16 %v1381
      %v1478 = vunpack.c.l.b16 %v1382
      %v1479 = vunpack.c.l.b16 %v1383
      %v1480 = vunpack.c.l.b16 %v1384
      %v1481 = vunpack.c.l.b16 %v1385
      %v1482 = vunpack.c.l.b16 %v1386
      %v1483 = vunpack.c.l.b16 %v1387
      %v1484 = vunpack.c.l.b16 %v1388
      %v1485 = vunpack.c.l.b16 %v1389
      %v1486 = vunpack.c.l.b16 %v1390
      %v1487 = vunpack.c.l.b16 %v1391
      %v1488 = vunpack.c.l.b16 %v1392
      %v1489 = vunpack.c.l.b16 %v1393
      %v1490 = vunpack.c.l.b16 %v1394
      %v1491 = vunpack.c.l.b16 %v1395
      %v1492 = vpack.c.b16 %v1445, %v1444
      %v1493 = vpack.c.b16 %v1447, %v1446
      %v1494 = vpack.c.b16 %v1449, %v1448
      %v1495 = vpack.c.b16 %v1451, %v1450
      %v1496 = vpack.c.b16 %v1453, %v1452
      %v1497 = vpack.c.b16 %v1455, %v1454
      %v1498 = vpack.c.b16 %v1457, %v1456
      %v1499 = vpack.c.b16 %v1459, %v1458
      %v1500 = vpack.c.b16 %v1461, %v1460
      %v1501 = vpack.c.b16 %v1463, %v1462
      %v1502 = vpack.c.b16 %v1465, %v1464
      %v1503 = vpack.c.b16 %v1467, %v1466
      %v1504 = vpack.c.b16 %v1469, %v1468
      %v1505 = vpack.c.b16 %v1471, %v1470
      %v1506 = vpack.c.b16 %v1473, %v1472
      %v1507 = vpack.c.b16 %v1475, %v1474
      %v1508 = vpack.c.b16 %v1477, %v1476
      %v1509 = vpack.c.b16 %v1479, %v1478
      %v1510 = vpack.c.b16 %v1481, %v1480
      %v1511 = vpack.c.b16 %v1483, %v1482
      %v1512 = vpack.c.b16 %v1485, %v1484
      %v1513 = vpack.c.b16 %v1487, %v1486
      %v1514 = vpack.c.b16 %v1489, %v1488
      %v1515 = vpack.c.b16 %v1491, %v1490
      %1540 = vmatpush.bf16.msra.mxu0 %v1499
      %1541 = vmatpush.bf16.msra.mxu0 %v1498
      %1542 = vmatpush.bf16.msra.mxu0 %v1497
      %1543 = vmatpush.bf16.msra.mxu0 %v1496
      %1544 = vmatpush.bf16.msra.mxu0 %v1495
      %1545 = vmatpush.bf16.msra.mxu0 %v1494
      %1546 = vmatpush.bf16.msra.mxu0 %v1493
      %1547 = vmatpush.bf16.msra.mxu0 %v1492
      %1548 = vmatmul.bf16.gmra.mxu0 %v1294
      %v1549 = vpop.f32.mrf.mxu0
      %v1550 = vadd.f32 0.0, %v1549
      %v1551 = vpop.f32.mrf.mxu0
      %v1552 = vadd.f32 0.0, %v1551
      %1553 = vmatmul.bf16.gmra.mxu0 %v1297
      %v1554 = vpop.f32.mrf.mxu0
      %v1555 = vadd.f32 0.0, %v1554
      %v1556 = vpop.f32.mrf.mxu0
      %v1557 = vadd.f32 0.0, %v1556
      %1558 = vmatmul.bf16.gmra.mxu0 %v1300
      %v1559 = vpop.f32.mrf.mxu0
      %v1560 = vadd.f32 0.0, %v1559
      %v1561 = vpop.f32.mrf.mxu0
      %v1562 = vadd.f32 0.0, %v1561
      %1563 = vmatmul.bf16.gmra.mxu0 %v1303
      %v1564 = vpop.f32.mrf.mxu0
      %v1565 = vadd.f32 0.0, %v1564
      %v1566 = vpop.f32.mrf.mxu0
      %v1567 = vadd.f32 0.0, %v1566
      %1568 = vmatmul.bf16.gmra.mxu0 %v1306
      %v1569 = vpop.f32.mrf.mxu0
      %v1570 = vadd.f32 0.0, %v1569
      %v1571 = vpop.f32.mrf.mxu0
      %v1572 = vadd.f32 0.0, %v1571
      %1573 = vmatmul.bf16.gmra.mxu0 %v1309
      %v1574 = vpop.f32.mrf.mxu0
      %v1575 = vadd.f32 0.0, %v1574
      %v1576 = vpop.f32.mrf.mxu0
      %v1577 = vadd.f32 0.0, %v1576
      %1578 = vmatmul.bf16.gmra.mxu0 %v1312
      %v1579 = vpop.f32.mrf.mxu0
      %v1580 = vadd.f32 0.0, %v1579
      %v1581 = vpop.f32.mrf.mxu0
      %v1582 = vadd.f32 0.0, %v1581
      %1583 = vmatmul.bf16.gmra.mxu0 %v1315
      %v1584 = vpop.f32.mrf.mxu0
      %v1585 = vadd.f32 0.0, %v1584
      %v1586 = vpop.f32.mrf.mxu0
      %v1587 = vadd.f32 0.0, %v1586
      %1588 = vmatmul.bf16.gmra.mxu0 %v1318
      %v1589 = vpop.f32.mrf.mxu0
      %v1590 = vadd.f32 0.0, %v1589
      %v1591 = vpop.f32.mrf.mxu0
      %v1592 = vadd.f32 0.0, %v1591
      %1593 = vmatmul.bf16.gmra.mxu0 %v1321
      %v1594 = vpop.f32.mrf.mxu0
      %v1595 = vadd.f32 0.0, %v1594
      %v1596 = vpop.f32.mrf.mxu0
      %v1597 = vadd.f32 0.0, %v1596
      %1598 = vmatmul.bf16.gmra.mxu0 %v1324
      %v1599 = vpop.f32.mrf.mxu0
      %v1600 = vadd.f32 0.0, %v1599
      %v1601 = vpop.f32.mrf.mxu0
      %v1602 = vadd.f32 0.0, %v1601
      %1603 = vmatmul.bf16.gmra.mxu0 %v1327
      %v1604 = vpop.f32.mrf.mxu0
      %v1605 = vadd.f32 0.0, %v1604
      %v1606 = vpop.f32.mrf.mxu0
      %v1607 = vadd.f32 0.0, %v1606
      %1608 = vmatmul.bf16.gmra.mxu0 %v1330
      %v1609 = vpop.f32.mrf.mxu0
      %v1610 = vadd.f32 0.0, %v1609
      %v1611 = vpop.f32.mrf.mxu0
      %v1612 = vadd.f32 0.0, %v1611
      %1613 = vmatmul.bf16.gmra.mxu0 %v1333
      %v1614 = vpop.f32.mrf.mxu0
      %v1615 = vadd.f32 0.0, %v1614
      %v1616 = vpop.f32.mrf.mxu0
      %v1617 = vadd.f32 0.0, %v1616
      %1618 = vmatmul.bf16.gmra.mxu0 %v1336
      %v1619 = vpop.f32.mrf.mxu0
      %v1620 = vadd.f32 0.0, %v1619
      %v1621 = vpop.f32.mrf.mxu0
      %v1622 = vadd.f32 0.0, %v1621
      %1623 = vmatmul.bf16.gmra.mxu0 %v1339
      %v1624 = vpop.f32.mrf.mxu0
      %v1625 = vadd.f32 0.0, %v1624
      %v1626 = vpop.f32.mrf.mxu0
      %v1627 = vadd.f32 0.0, %v1626
      %1628 = vmatmul.bf16.gmra.mxu0 %v1342
      %v1629 = vpop.f32.mrf.mxu0
      %v1630 = vadd.f32 0.0, %v1629
      %v1631 = vpop.f32.mrf.mxu0
      %v1632 = vadd.f32 0.0, %v1631
      %1633 = vmatmul.bf16.gmra.mxu0 %v1345
      %v1634 = vpop.f32.mrf.mxu0
      %v1635 = vadd.f32 0.0, %v1634
      %v1636 = vpop.f32.mrf.mxu0
      %v1637 = vadd.f32 0.0, %v1636
      %1638 = vdwg.mxu0
      %1639 = vmatpush.bf16.msra.mxu0 %v1507
      %1640 = vmatpush.bf16.msra.mxu0 %v1506
      %1641 = vmatpush.bf16.msra.mxu0 %v1505
      %1642 = vmatpush.bf16.msra.mxu0 %v1504
      %1643 = vmatpush.bf16.msra.mxu0 %v1503
      %1644 = vmatpush.bf16.msra.mxu0 %v1502
      %1645 = vmatpush.bf16.msra.mxu0 %v1501
      %1646 = vmatpush.bf16.msra.mxu0 %v1500
      %1647 = vmatmul.bf16.gmra.mxu0 %v1295
      %v1648 = vpop.f32.mrf.mxu0
      %v1649 = vadd.f32 %v1550, %v1648
      %v1650 = vpop.f32.mrf.mxu0
      %v1651 = vadd.f32 %v1552, %v1650
      %1652 = vmatmul.bf16.gmra.mxu0 %v1298
      %v1653 = vpop.f32.mrf.mxu0
      %v1654 = vadd.f32 %v1555, %v1653
      %v1655 = vpop.f32.mrf.mxu0
      %v1656 = vadd.f32 %v1557, %v1655
      %1657 = vmatmul.bf16.gmra.mxu0 %v1301
      %v1658 = vpop.f32.mrf.mxu0
      %v1659 = vadd.f32 %v1560, %v1658
      %v1660 = vpop.f32.mrf.mxu0
      %v1661 = vadd.f32 %v1562, %v1660
      %1662 = vmatmul.bf16.gmra.mxu0 %v1304
      %v1663 = vpop.f32.mrf.mxu0
      %v1664 = vadd.f32 %v1565, %v1663
      %v1665 = vpop.f32.mrf.mxu0
      %v1666 = vadd.f32 %v1567, %v1665
      %1667 = vmatmul.bf16.gmra.mxu0 %v1307
      %v1668 = vpop.f32.mrf.mxu0
      %v1669 = vadd.f32 %v1570, %v1668
      %v1670 = vpop.f32.mrf.mxu0
      %v1671 = vadd.f32 %v1572, %v1670
      %1672 = vmatmul.bf16.gmra.mxu0 %v1310
      %v1673 = vpop.f32.mrf.mxu0
      %v1674 = vadd.f32 %v1575, %v1673
      %v1675 = vpop.f32.mrf.mxu0
      %v1676 = vadd.f32 %v1577, %v1675
      %1677 = vmatmul.bf16.gmra.mxu0 %v1313
      %v1678 = vpop.f32.mrf.mxu0
      %v1679 = vadd.f32 %v1580, %v1678
      %v1680 = vpop.f32.mrf.mxu0
      %v1681 = vadd.f32 %v1582, %v1680
      %1682 = vmatmul.bf16.gmra.mxu0 %v1316
      %v1683 = vpop.f32.mrf.mxu0
      %v1684 = vadd.f32 %v1585, %v1683
      %v1685 = vpop.f32.mrf.mxu0
      %v1686 = vadd.f32 %v1587, %v1685
      %1687 = vmatmul.bf16.gmra.mxu0 %v1319
      %v1688 = vpop.f32.mrf.mxu0
      %v1689 = vadd.f32 %v1590, %v1688
      %v1690 = vpop.f32.mrf.mxu0
      %v1691 = vadd.f32 %v1592, %v1690
      %1692 = vmatmul.bf16.gmra.mxu0 %v1322
      %v1693 = vpop.f32.mrf.mxu0
      %v1694 = vadd.f32 %v1595, %v1693
      %v1695 = vpop.f32.mrf.mxu0
      %v1696 = vadd.f32 %v1597, %v1695
      %1697 = vmatmul.bf16.gmra.mxu0 %v1325
      %v1698 = vpop.f32.mrf.mxu0
      %v1699 = vadd.f32 %v1600, %v1698
      %v1700 = vpop.f32.mrf.mxu0
      %v1701 = vadd.f32 %v1602, %v1700
      %1702 = vmatmul.bf16.gmra.mxu0 %v1328
      %v1703 = vpop.f32.mrf.mxu0
      %v1704 = vadd.f32 %v1605, %v1703
      %v1705 = vpop.f32.mrf.mxu0
      %v1706 = vadd.f32 %v1607, %v1705
      %1707 = vmatmul.bf16.gmra.mxu0 %v1331
      %v1708 = vpop.f32.mrf.mxu0
      %v1709 = vadd.f32 %v1610, %v1708
      %v1710 = vpop.f32.mrf.mxu0
      %v1711 = vadd.f32 %v1612, %v1710
      %1712 = vmatmul.bf16.gmra.mxu0 %v1334
      %v1713 = vpop.f32.mrf.mxu0
      %v1714 = vadd.f32 %v1615, %v1713
      %v1715 = vpop.f32.mrf.mxu0
      %v1716 = vadd.f32 %v1617, %v1715
      %1717 = vmatmul.bf16.gmra.mxu0 %v1337
      %v1718 = vpop.f32.mrf.mxu0
      %v1719 = vadd.f32 %v1620, %v1718
      %v1720 = vpop.f32.mrf.mxu0
      %v1721 = vadd.f32 %v1622, %v1720
      %1722 = vmatmul.bf16.gmra.mxu0 %v1340
      %v1723 = vpop.f32.mrf.mxu0
      %v1724 = vadd.f32 %v1625, %v1723
      %v1725 = vpop.f32.mrf.mxu0
      %v1726 = vadd.f32 %v1627, %v1725
      %1727 = vmatmul.bf16.gmra.mxu0 %v1343
      %v1728 = vpop.f32.mrf.mxu0
      %v1729 = vadd.f32 %v1630, %v1728
      %v1730 = vpop.f32.mrf.mxu0
      %v1731 = vadd.f32 %v1632, %v1730
      %1732 = vmatmul.bf16.gmra.mxu0 %v1346
      %v1733 = vpop.f32.mrf.mxu0
      %v1734 = vadd.f32 %v1635, %v1733
      %v1735 = vpop.f32.mrf.mxu0
      %v1736 = vadd.f32 %v1637, %v1735
      %1737 = vdwg.mxu0
      %1738 = vmatpush.bf16.msra.mxu0 %v1515
      %1739 = vmatpush.bf16.msra.mxu0 %v1514
      %1740 = vmatpush.bf16.msra.mxu0 %v1513
      %1741 = vmatpush.bf16.msra.mxu0 %v1512
      %1742 = vmatpush.bf16.msra.mxu0 %v1511
      %1743 = vmatpush.bf16.msra.mxu0 %v1510
      %1744 = vmatpush.bf16.msra.mxu0 %v1509
      %1745 = vmatpush.bf16.msra.mxu0 %v1508
      %1746 = vmatmul.bf16.gmra.mxu0 %v1296
      %v1747 = vpop.f32.mrf.mxu0
      %v1748 = vadd.f32 %v1649, %v1747
      %v1749 = vpop.f32.mrf.mxu0
      %v1750 = vadd.f32 %v1651, %v1749
      %1751 = vmatmul.bf16.gmra.mxu0 %v1299
      %v1752 = vpop.f32.mrf.mxu0
      %v1753 = vadd.f32 %v1654, %v1752
      %v1754 = vpop.f32.mrf.mxu0
      %v1755 = vadd.f32 %v1656, %v1754
      %1756 = vmatmul.bf16.gmra.mxu0 %v1302
      %v1757 = vpop.f32.mrf.mxu0
      %v1758 = vadd.f32 %v1659, %v1757
      %v1759 = vpop.f32.mrf.mxu0
      %v1760 = vadd.f32 %v1661, %v1759
      %1761 = vmatmul.bf16.gmra.mxu0 %v1305
      %v1762 = vpop.f32.mrf.mxu0
      %v1763 = vadd.f32 %v1664, %v1762
      %v1764 = vpop.f32.mrf.mxu0
      %v1765 = vadd.f32 %v1666, %v1764
      %1766 = vmatmul.bf16.gmra.mxu0 %v1308
      %v1767 = vpop.f32.mrf.mxu0
      %v1768 = vadd.f32 %v1669, %v1767
      %v1769 = vpop.f32.mrf.mxu0
      %v1770 = vadd.f32 %v1671, %v1769
      %1771 = vmatmul.bf16.gmra.mxu0 %v1311
      %v1772 = vpop.f32.mrf.mxu0
      %v1773 = vadd.f32 %v1674, %v1772
      %v1774 = vpop.f32.mrf.mxu0
      %v1775 = vadd.f32 %v1676, %v1774
      %1776 = vmatmul.bf16.gmra.mxu0 %v1314
      %v1777 = vpop.f32.mrf.mxu0
      %v1778 = vadd.f32 %v1679, %v1777
      %v1779 = vpop.f32.mrf.mxu0
      %v1780 = vadd.f32 %v1681, %v1779
      %1781 = vmatmul.bf16.gmra.mxu0 %v1317
      %v1782 = vpop.f32.mrf.mxu0
      %v1783 = vadd.f32 %v1684, %v1782
      %v1784 = vpop.f32.mrf.mxu0
      %v1785 = vadd.f32 %v1686, %v1784
      %1786 = vmatmul.bf16.gmra.mxu0 %v1320
      %v1787 = vpop.f32.mrf.mxu0
      %v1788 = vadd.f32 %v1689, %v1787
      %v1789 = vpop.f32.mrf.mxu0
      %v1790 = vadd.f32 %v1691, %v1789
      %1791 = vmatmul.bf16.gmra.mxu0 %v1323
      %v1792 = vpop.f32.mrf.mxu0
      %v1793 = vadd.f32 %v1694, %v1792
      %v1794 = vpop.f32.mrf.mxu0
      %v1795 = vadd.f32 %v1696, %v1794
      %1796 = vmatmul.bf16.gmra.mxu0 %v1326
      %v1797 = vpop.f32.mrf.mxu0
      %v1798 = vadd.f32 %v1699, %v1797
      %v1799 = vpop.f32.mrf.mxu0
      %v1800 = vadd.f32 %v1701, %v1799
      %1801 = vmatmul.bf16.gmra.mxu0 %v1329
      %v1802 = vpop.f32.mrf.mxu0
      %v1803 = vadd.f32 %v1704, %v1802
      %v1804 = vpop.f32.mrf.mxu0
      %v1805 = vadd.f32 %v1706, %v1804
      %1806 = vmatmul.bf16.gmra.mxu0 %v1332
      %v1807 = vpop.f32.mrf.mxu0
      %v1808 = vadd.f32 %v1709, %v1807
      %v1809 = vpop.f32.mrf.mxu0
      %v1810 = vadd.f32 %v1711, %v1809
      %1811 = vmatmul.bf16.gmra.mxu0 %v1335
      %v1812 = vpop.f32.mrf.mxu0
      %v1813 = vadd.f32 %v1714, %v1812
      %v1814 = vpop.f32.mrf.mxu0
      %v1815 = vadd.f32 %v1716, %v1814
      %1816 = vmatmul.bf16.gmra.mxu0 %v1338
      %v1817 = vpop.f32.mrf.mxu0
      %v1818 = vadd.f32 %v1719, %v1817
      %v1819 = vpop.f32.mrf.mxu0
      %v1820 = vadd.f32 %v1721, %v1819
      %1821 = vmatmul.bf16.gmra.mxu0 %v1341
      %v1822 = vpop.f32.mrf.mxu0
      %v1823 = vadd.f32 %v1724, %v1822
      %v1824 = vpop.f32.mrf.mxu0
      %v1825 = vadd.f32 %v1726, %v1824
      %1826 = vmatmul.bf16.gmra.mxu0 %v1344
      %v1827 = vpop.f32.mrf.mxu0
      %v1828 = vadd.f32 %v1729, %v1827
      %v1829 = vpop.f32.mrf.mxu0
      %v1830 = vadd.f32 %v1731, %v1829
      %1831 = vmatmul.bf16.gmra.mxu0 %v1347
      %v1832 = vpop.f32.mrf.mxu0
      %v1833 = vadd.f32 %v1734, %v1832
      %v1834 = vpop.f32.mrf.mxu0
      %v1835 = vadd.f32 %v1736, %v1834
      %1836 = vdwg.mxu0
      %v1873 = vrot.slane %v1748, 2
      %v1874 = vrot.slane %v1748, 4
      %v1875 = vrot.slane %v1748, 6
      %v1876 = vrot.slane %v1750, 2
      %v1877 = vrot.slane %v1750, 4
      %v1878 = vrot.slane %v1750, 6
      %v1879 = vrot.slane %v1753, 2
      %v1880 = vrot.slane %v1753, 4
      %v1881 = vrot.slane %v1753, 6
      %v1882 = vrot.slane %v1755, 2
      %v1883 = vrot.slane %v1755, 4
      %v1884 = vrot.slane %v1755, 6
      %v1885 = vrot.slane %v1758, 4
      %v1886 = vrot.slane %v1758, 6
      %v1887 = vrot.slane %v1760, 2
      %v1888 = vrot.slane %v1760, 4
      %v1889 = vrot.slane %v1760, 6
      %v1890 = vrot.slane %v1763, 2
      %v1891 = vrot.slane %v1763, 6
      %v1892 = vrot.slane %v1765, 2
      %v1893 = vrot.slane %v1765, 4
      %v1894 = vrot.slane %v1765, 6
      %v1895 = vrot.slane %v1768, 2
      %v1896 = vrot.slane %v1768, 4
      %v1897 = vrot.slane %v1770, 2
      %v1898 = vrot.slane %v1770, 4
      %v1899 = vrot.slane %v1770, 6
      %v1900 = vrot.slane %v1773, 2
      %v1901 = vrot.slane %v1773, 4
      %v1902 = vrot.slane %v1773, 6
      %v1903 = vrot.slane %v1775, 2
      %v1904 = vrot.slane %v1775, 4
      %v1905 = vrot.slane %v1775, 6
      %v1906 = vrot.slane %v1778, 2
      %v1907 = vrot.slane %v1778, 4
      %v1908 = vrot.slane %v1778, 6
      %v1909 = vrot.slane %v1780, 4
      %v1910 = vrot.slane %v1780, 6
      %v1911 = vrot.slane %v1783, 2
      %v1912 = vrot.slane %v1783, 4
      %v1913 = vrot.slane %v1783, 6
      %v1914 = vrot.slane %v1785, 2
      %v1915 = vrot.slane %v1785, 6
      %v1916 = vrot.slane %v1788, 2
      %v1917 = vrot.slane %v1788, 4
      %v1918 = vrot.slane %v1788, 6
      %v1919 = vrot.slane %v1790, 2
      %v1920 = vrot.slane %v1790, 4
      %v1921 = vrot.slane %v1793, 2
      %v1922 = vrot.slane %v1793, 4
      %v1923 = vrot.slane %v1793, 6
      %v1924 = vrot.slane %v1795, 2
      %v1925 = vrot.slane %v1795, 4
      %v1926 = vrot.slane %v1795, 6
      %v1927 = vrot.slane %v1798, 2
      %v1928 = vrot.slane %v1798, 4
      %v1929 = vrot.slane %v1798, 6
      %v1930 = vrot.slane %v1800, 2
      %v1931 = vrot.slane %v1800, 4
      %v1932 = vrot.slane %v1800, 6
      %v1933 = vrot.slane %v1803, 4
      %v1934 = vrot.slane %v1803, 6
      %v1935 = vrot.slane %v1805, 2
      %v1936 = vrot.slane %v1805, 4
      %v1937 = vrot.slane %v1805, 6
      %v1938 = vrot.slane %v1808, 2
      %v1939 = vrot.slane %v1808, 6
      %v1940 = vrot.slane %v1810, 2
      %v1941 = vrot.slane %v1810, 4
      %v1942 = vrot.slane %v1810, 6
      %v1943 = vrot.slane %v1813, 2
      %v1944 = vrot.slane %v1813, 4
      %v1945 = vrot.slane %v1815, 2
      %v1946 = vrot.slane %v1815, 4
      %v1947 = vrot.slane %v1815, 6
      %v1948 = vrot.slane %v1818, 2
      %v1949 = vrot.slane %v1818, 4
      %v1950 = vrot.slane %v1818, 6
      %v1951 = vrot.slane %v1820, 2
      %v1952 = vrot.slane %v1820, 4
      %v1953 = vrot.slane %v1820, 6
      %v1954 = vrot.slane %v1823, 2
      %v1955 = vrot.slane %v1823, 4
      %v1956 = vrot.slane %v1823, 6
      %v1957 = vrot.slane %v1825, 4
      %v1958 = vrot.slane %v1825, 6
      %v1959 = vrot.slane %v1828, 2
      %v1960 = vrot.slane %v1828, 4
      %v1961 = vrot.slane %v1828, 6
      %v1962 = vrot.slane %v1830, 2
      %v1963 = vrot.slane %v1830, 6
      %v1964 = vrot.slane %v1833, 2
      %v1965 = vrot.slane %v1833, 4
      %v1966 = vrot.slane %v1833, 6
      %v1967 = vrot.slane %v1835, 2
      %v1968 = vrot.slane %v1835, 4
      %v2065 = vadd.f32 %v1748, 0.0
      %v2066 = vadd.f32 %v1873, 0.0
      %v2067 = vadd.f32 %v1874, 0.0
      %v2068 = vadd.f32 %v1875, 0.0
      %v2069 = vadd.f32 %v1750, 0.0
      %v2070 = vadd.f32 %v1876, 0.0
      %v2071 = vadd.f32 %v1877, 0.0
      %v2072 = vadd.f32 %v1878, 0.0
      %v2073 = vadd.f32 %v1879, 0.0
      %v2074 = vadd.f32 %v1880, 0.0
      %v2075 = vadd.f32 %v1881, 0.0
      %v2076 = vadd.f32 %v1755, 0.0
      %v2077 = vadd.f32 %v1882, 0.0
      %v2078 = vadd.f32 %v1883, 0.0
      %v2079 = vadd.f32 %v1884, 0.0
      %v2080 = vadd.f32 %v1758, 0.0
      %v2081 = vadd.f32 %v1885, 0.0
      %v2082 = vadd.f32 %v1886, 0.0
      %v2083 = vadd.f32 %v1760, 0.0
      %v2084 = vadd.f32 %v1887, 0.0
      %v2085 = vadd.f32 %v1888, 0.0
      %v2086 = vadd.f32 %v1889, 0.0
      %v2087 = vadd.f32 %v1763, 0.0
      %v2088 = vadd.f32 %v1890, 0.0
      %v2089 = vadd.f32 %v1891, 0.0
      %v2090 = vadd.f32 %v1765, 0.0
      %v2091 = vadd.f32 %v1892, 0.0
      %v2092 = vadd.f32 %v1893, 0.0
      %v2093 = vadd.f32 %v1894, 0.0
      %v2094 = vadd.f32 %v1768, 0.0
      %v2095 = vadd.f32 %v1895, 0.0
      %v2096 = vadd.f32 %v1896, 0.0
      %v2097 = vadd.f32 %v1770, 0.0
      %v2098 = vadd.f32 %v1897, 0.0
      %v2099 = vadd.f32 %v1898, 0.0
      %v2100 = vadd.f32 %v1899, 0.0
      %v2101 = vadd.f32 %v1773, 0.0
      %v2102 = vadd.f32 %v1900, 0.0
      %v2103 = vadd.f32 %v1901, 0.0
      %v2104 = vadd.f32 %v1902, 0.0
      %v2105 = vadd.f32 %v1903, 0.0
      %v2106 = vadd.f32 %v1904, 0.0
      %v2107 = vadd.f32 %v1905, 0.0
      %v2108 = vadd.f32 %v1778, 0.0
      %v2109 = vadd.f32 %v1906, 0.0
      %v2110 = vadd.f32 %v1907, 0.0
      %v2111 = vadd.f32 %v1908, 0.0
      %v2112 = vadd.f32 %v1780, 0.0
      %v2113 = vadd.f32 %v1909, 0.0
      %v2114 = vadd.f32 %v1910, 0.0
      %v2115 = vadd.f32 %v1783, 0.0
      %v2116 = vadd.f32 %v1911, 0.0
      %v2117 = vadd.f32 %v1912, 0.0
      %v2118 = vadd.f32 %v1913, 0.0
      %v2119 = vadd.f32 %v1785, 0.0
      %v2120 = vadd.f32 %v1914, 0.0
      %v2121 = vadd.f32 %v1915, 0.0
      %v2122 = vadd.f32 %v1788, 0.0
      %v2123 = vadd.f32 %v1916, 0.0
      %v2124 = vadd.f32 %v1917, 0.0
      %v2125 = vadd.f32 %v1918, 0.0
      %v2126 = vadd.f32 %v1790, 0.0
      %v2127 = vadd.f32 %v1919, 0.0
      %v2128 = vadd.f32 %v1920, 0.0
      %v2129 = vadd.f32 %v1793, 0.0
      %v2130 = vadd.f32 %v1921, 0.0
      %v2131 = vadd.f32 %v1922, 0.0
      %v2132 = vadd.f32 %v1923, 0.0
      %v2133 = vadd.f32 %v1795, 0.0
      %v2134 = vadd.f32 %v1924, 0.0
      %v2135 = vadd.f32 %v1925, 0.0
      %v2136 = vadd.f32 %v1926, 0.0
      %v2137 = vadd.f32 %v1927, 0.0
      %v2138 = vadd.f32 %v1928, 0.0
      %v2139 = vadd.f32 %v1929, 0.0
      %v2140 = vadd.f32 %v1800, 0.0
      %v2141 = vadd.f32 %v1930, 0.0
      %v2142 = vadd.f32 %v1931, 0.0
      %v2143 = vadd.f32 %v1932, 0.0
      %v2144 = vadd.f32 %v1803, 0.0
      %v2145 = vadd.f32 %v1933, 0.0
      %v2146 = vadd.f32 %v1934, 0.0
      %v2147 = vadd.f32 %v1805, 0.0
      %v2148 = vadd.f32 %v1935, 0.0
      %v2149 = vadd.f32 %v1936, 0.0
      %v2150 = vadd.f32 %v1937, 0.0
      %v2151 = vadd.f32 %v1808, 0.0
      %v2152 = vadd.f32 %v1938, 0.0
      %v2153 = vadd.f32 %v1939, 0.0
      %v2154 = vadd.f32 %v1810, 0.0
      %v2155 = vadd.f32 %v1940, 0.0
      %v2156 = vadd.f32 %v1941, 0.0
      %v2157 = vadd.f32 %v1942, 0.0
      %v2158 = vadd.f32 %v1813, 0.0
      %v2159 = vadd.f32 %v1943, 0.0
      %v2160 = vadd.f32 %v1944, 0.0
      %v2161 = vadd.f32 %v1815, 0.0
      %v2162 = vadd.f32 %v1945, 0.0
      %v2163 = vadd.f32 %v1946, 0.0
      %v2164 = vadd.f32 %v1947, 0.0
      %v2165 = vadd.f32 %v1818, 0.0
      %v2166 = vadd.f32 %v1948, 0.0
      %v2167 = vadd.f32 %v1949, 0.0
      %v2168 = vadd.f32 %v1950, 0.0
      %v2169 = vadd.f32 %v1951, 0.0
      %v2170 = vadd.f32 %v1952, 0.0
      %v2171 = vadd.f32 %v1953, 0.0
      %v2172 = vadd.f32 %v1823, 0.0
      %v2173 = vadd.f32 %v1954, 0.0
      %v2174 = vadd.f32 %v1955, 0.0
      %v2175 = vadd.f32 %v1956, 0.0
      %v2176 = vadd.f32 %v1825, 0.0
      %v2177 = vadd.f32 %v1957, 0.0
      %v2178 = vadd.f32 %v1958, 0.0
      %v2179 = vadd.f32 %v1828, 0.0
      %v2180 = vadd.f32 %v1959, 0.0
      %v2181 = vadd.f32 %v1960, 0.0
      %v2182 = vadd.f32 %v1961, 0.0
      %v2183 = vadd.f32 %v1830, 0.0
      %v2184 = vadd.f32 %v1962, 0.0
      %v2185 = vadd.f32 %v1963, 0.0
      %v2186 = vadd.f32 %v1833, 0.0
      %v2187 = vadd.f32 %v1964, 0.0
      %v2188 = vadd.f32 %v1965, 0.0
      %v2189 = vadd.f32 %v1966, 0.0
      %v2190 = vadd.f32 %v1835, 0.0
      %v2191 = vadd.f32 %v1967, 0.0
      %v2192 = vadd.f32 %v1968, 0.0
      %s2193 = scalar_lea.vmem %s1, 192
      %v2194 = vld [vmem:[%s2193] sm:$0xf]
      %v2195 = vld [vmem:[%s2193 + $0x4] sm:$0xf]
      %v2196 = vld [vmem:[%s2193 + $0x8] sm:$0xf]
      %v2197 = vld [vmem:[%s2193 + $0xc] sm:$0xf]
      %v2198 = vld [vmem:[%s2193 + $0x10] sm:$0xf]
      %v2199 = vld [vmem:[%s2193 + $0x14] sm:$0xf]
      %v2200 = vld [vmem:[%s2193 + $0x18] sm:$0xf]
      %v2201 = vld [vmem:[%s2193 + $0x1c] sm:$0xf]
      %v2202 = vld [vmem:[%s2193 + $0x20] sm:$0xf]
      %v2203 = vld [vmem:[%s2193 + $0x24] sm:$0xf]
      %v2204 = vld [vmem:[%s2193 + $0x28] sm:$0xf]
      %v2205 = vld [vmem:[%s2193 + $0x2c] sm:$0xf]
      %v2206 = vld [vmem:[%s2193 + $0x30] sm:$0xf]
      %v2207 = vld [vmem:[%s2193 + $0x34] sm:$0xf]
      %v2208 = vld [vmem:[%s2193 + $0x38] sm:$0xf]
      %v2209 = vld [vmem:[%s2193 + $0x3c] sm:$0xf]
      %v2210 = vld [vmem:[%s2193 + $0x40] sm:$0xf]
      %v2211 = vld [vmem:[%s2193 + $0x44] sm:$0xf]
      %v2212 = vld [vmem:[%s2193 + $0x48] sm:$0xf]
      %v2213 = vld [vmem:[%s2193 + $0x4c] sm:$0xf]
      %v2214 = vld [vmem:[%s2193 + $0x50] sm:$0xf]
      %v2215 = vld [vmem:[%s2193 + $0x54] sm:$0xf]
      %v2216 = vld [vmem:[%s2193 + $0x58] sm:$0xf]
      %v2217 = vld [vmem:[%s2193 + $0x5c] sm:$0xf]
      %v2218 = vld [vmem:[%s2193 + $0x60] sm:$0xf]
      %v2219 = vld [vmem:[%s2193 + $0x64] sm:$0xf]
      %v2220 = vld [vmem:[%s2193 + $0x68] sm:$0xf]
      %v2221 = vld [vmem:[%s2193 + $0x6c] sm:$0xf]
      %v2222 = vld [vmem:[%s2193 + $0x70] sm:$0xf]
      %v2223 = vld [vmem:[%s2193 + $0x74] sm:$0xf]
      %v2224 = vld [vmem:[%s2193 + $0x78] sm:$0xf]
      %v2225 = vld [vmem:[%s2193 + $0x7c] sm:$0xf]
      %v2226 = vld [vmem:[%s2193 + $0x80] sm:$0xf]
      %v2227 = vld [vmem:[%s2193 + $0x84] sm:$0xf]
      %v2228 = vld [vmem:[%s2193 + $0x88] sm:$0xf]
      %v2229 = vld [vmem:[%s2193 + $0x8c] sm:$0xf]
      %v2230 = vld [vmem:[%s2193 + $0x90] sm:$0xf]
      %v2231 = vld [vmem:[%s2193 + $0x94] sm:$0xf]
      %v2232 = vld [vmem:[%s2193 + $0x98] sm:$0xf]
      %v2233 = vld [vmem:[%s2193 + $0x9c] sm:$0xf]
      %v2234 = vld [vmem:[%s2193 + $0xa0] sm:$0xf]
      %v2235 = vld [vmem:[%s2193 + $0xa4] sm:$0xf]
      %v2236 = vld [vmem:[%s2193 + $0xa8] sm:$0xf]
      %v2237 = vld [vmem:[%s2193 + $0xac] sm:$0xf]
      %v2238 = vld [vmem:[%s2193 + $0xb0] sm:$0xf]
      %v2239 = vld [vmem:[%s2193 + $0xb4] sm:$0xf]
      %v2240 = vld [vmem:[%s2193 + $0xb8] sm:$0xf]
      %v2241 = vld [vmem:[%s2193 + $0xbc] sm:$0xf]
      %v2290 = vunpack.c.l.b16 %v2194
      %v2291 = vunpack.c.l.b16 %v2195
      %v2292 = vunpack.c.l.b16 %v2196
      %v2293 = vunpack.c.l.b16 %v2197
      %v2294 = vunpack.c.l.b16 %v2198
      %v2295 = vunpack.c.l.b16 %v2199
      %v2296 = vunpack.c.l.b16 %v2200
      %v2297 = vunpack.c.l.b16 %v2201
      %v2298 = vunpack.c.l.b16 %v2202
      %v2299 = vunpack.c.l.b16 %v2203
      %v2300 = vunpack.c.l.b16 %v2204
      %v2301 = vunpack.c.l.b16 %v2205
      %v2302 = vunpack.c.l.b16 %v2206
      %v2303 = vunpack.c.l.b16 %v2207
      %v2304 = vunpack.c.l.b16 %v2208
      %v2305 = vunpack.c.l.b16 %v2209
      %v2306 = vunpack.c.l.b16 %v2210
      %v2307 = vunpack.c.l.b16 %v2211
      %v2308 = vunpack.c.l.b16 %v2212
      %v2309 = vunpack.c.l.b16 %v2213
      %v2310 = vunpack.c.l.b16 %v2214
      %v2311 = vunpack.c.l.b16 %v2215
      %v2312 = vunpack.c.l.b16 %v2216
      %v2313 = vunpack.c.l.b16 %v2217
      %v2314 = vunpack.c.l.b16 %v2218
      %v2315 = vunpack.c.l.b16 %v2219
      %v2316 = vunpack.c.l.b16 %v2220
      %v2317 = vunpack.c.l.b16 %v2221
      %v2318 = vunpack.c.l.b16 %v2222
      %v2319 = vunpack.c.l.b16 %v2223
      %v2320 = vunpack.c.l.b16 %v2224
      %v2321 = vunpack.c.l.b16 %v2225
      %v2322 = vunpack.c.l.b16 %v2226
      %v2323 = vunpack.c.l.b16 %v2227
      %v2324 = vunpack.c.l.b16 %v2228
      %v2325 = vunpack.c.l.b16 %v2229
      %v2326 = vunpack.c.l.b16 %v2230
      %v2327 = vunpack.c.l.b16 %v2231
      %v2328 = vunpack.c.l.b16 %v2232
      %v2329 = vunpack.c.l.b16 %v2233
      %v2330 = vunpack.c.l.b16 %v2234
      %v2331 = vunpack.c.l.b16 %v2235
      %v2332 = vunpack.c.l.b16 %v2236
      %v2333 = vunpack.c.l.b16 %v2237
      %v2334 = vunpack.c.l.b16 %v2238
      %v2335 = vunpack.c.l.b16 %v2239
      %v2336 = vunpack.c.l.b16 %v2240
      %v2337 = vunpack.c.l.b16 %v2241
      %v2338 = vpack.c.b16 %v2291, %v2290
      %v2339 = vpack.c.b16 %v2293, %v2292
      %v2340 = vpack.c.b16 %v2295, %v2294
      %v2341 = vpack.c.b16 %v2297, %v2296
      %v2342 = vpack.c.b16 %v2299, %v2298
      %v2343 = vpack.c.b16 %v2301, %v2300
      %v2344 = vpack.c.b16 %v2303, %v2302
      %v2345 = vpack.c.b16 %v2305, %v2304
      %v2346 = vpack.c.b16 %v2307, %v2306
      %v2347 = vpack.c.b16 %v2309, %v2308
      %v2348 = vpack.c.b16 %v2311, %v2310
      %v2349 = vpack.c.b16 %v2313, %v2312
      %v2350 = vpack.c.b16 %v2315, %v2314
      %v2351 = vpack.c.b16 %v2317, %v2316
      %v2352 = vpack.c.b16 %v2319, %v2318
      %v2353 = vpack.c.b16 %v2321, %v2320
      %v2354 = vpack.c.b16 %v2323, %v2322
      %v2355 = vpack.c.b16 %v2325, %v2324
      %v2356 = vpack.c.b16 %v2327, %v2326
      %v2357 = vpack.c.b16 %v2329, %v2328
      %v2358 = vpack.c.b16 %v2331, %v2330
      %v2359 = vpack.c.b16 %v2333, %v2332
      %v2360 = vpack.c.b16 %v2335, %v2334
      %v2361 = vpack.c.b16 %v2337, %v2336
      %2386 = vmatpush.bf16.msra.mxu0 %v2345
      %2387 = vmatpush.bf16.msra.mxu0 %v2344
      %2388 = vmatpush.bf16.msra.mxu0 %v2343
      %2389 = vmatpush.bf16.msra.mxu0 %v2342
      %2390 = vmatpush.bf16.msra.mxu0 %v2341
      %2391 = vmatpush.bf16.msra.mxu0 %v2340
      %2392 = vmatpush.bf16.msra.mxu0 %v2339
      %2393 = vmatpush.bf16.msra.mxu0 %v2338
      %2394 = vmatmul.bf16.gmra.mxu0 %v1294
      %v2395 = vpop.f32.mrf.mxu0
      %v2396 = vadd.f32 0.0, %v2395
      %v2397 = vpop.f32.mrf.mxu0
      %v2398 = vadd.f32 0.0, %v2397
      %2399 = vmatmul.bf16.gmra.mxu0 %v1297
      %v2400 = vpop.f32.mrf.mxu0
      %v2401 = vadd.f32 0.0, %v2400
      %v2402 = vpop.f32.mrf.mxu0
      %v2403 = vadd.f32 0.0, %v2402
      %2404 = vmatmul.bf16.gmra.mxu0 %v1300
      %v2405 = vpop.f32.mrf.mxu0
      %v2406 = vadd.f32 0.0, %v2405
      %v2407 = vpop.f32.mrf.mxu0
      %v2408 = vadd.f32 0.0, %v2407
      %2409 = vmatmul.bf16.gmra.mxu0 %v1303
      %v2410 = vpop.f32.mrf.mxu0
      %v2411 = vadd.f32 0.0, %v2410
      %v2412 = vpop.f32.mrf.mxu0
      %v2413 = vadd.f32 0.0, %v2412
      %2414 = vmatmul.bf16.gmra.mxu0 %v1306
      %v2415 = vpop.f32.mrf.mxu0
      %v2416 = vadd.f32 0.0, %v2415
      %v2417 = vpop.f32.mrf.mxu0
      %v2418 = vadd.f32 0.0, %v2417
      %2419 = vmatmul.bf16.gmra.mxu0 %v1309
      %v2420 = vpop.f32.mrf.mxu0
      %v2421 = vadd.f32 0.0, %v2420
      %v2422 = vpop.f32.mrf.mxu0
      %v2423 = vadd.f32 0.0, %v2422
      %2424 = vmatmul.bf16.gmra.mxu0 %v1312
      %v2425 = vpop.f32.mrf.mxu0
      %v2426 = vadd.f32 0.0, %v2425
      %v2427 = vpop.f32.mrf.mxu0
      %v2428 = vadd.f32 0.0, %v2427
      %2429 = vmatmul.bf16.gmra.mxu0 %v1315
      %v2430 = vpop.f32.mrf.mxu0
      %v2431 = vadd.f32 0.0, %v2430
      %v2432 = vpop.f32.mrf.mxu0
      %v2433 = vadd.f32 0.0, %v2432
      %2434 = vmatmul.bf16.gmra.mxu0 %v1318
      %v2435 = vpop.f32.mrf.mxu0
      %v2436 = vadd.f32 0.0, %v2435
      %v2437 = vpop.f32.mrf.mxu0
      %v2438 = vadd.f32 0.0, %v2437
      %2439 = vmatmul.bf16.gmra.mxu0 %v1321
      %v2440 = vpop.f32.mrf.mxu0
      %v2441 = vadd.f32 0.0, %v2440
      %v2442 = vpop.f32.mrf.mxu0
      %v2443 = vadd.f32 0.0, %v2442
      %2444 = vmatmul.bf16.gmra.mxu0 %v1324
      %v2445 = vpop.f32.mrf.mxu0
      %v2446 = vadd.f32 0.0, %v2445
      %v2447 = vpop.f32.mrf.mxu0
      %v2448 = vadd.f32 0.0, %v2447
      %2449 = vmatmul.bf16.gmra.mxu0 %v1327
      %v2450 = vpop.f32.mrf.mxu0
      %v2451 = vadd.f32 0.0, %v2450
      %v2452 = vpop.f32.mrf.mxu0
      %v2453 = vadd.f32 0.0, %v2452
      %2454 = vmatmul.bf16.gmra.mxu0 %v1330
      %v2455 = vpop.f32.mrf.mxu0
      %v2456 = vadd.f32 0.0, %v2455
      %v2457 = vpop.f32.mrf.mxu0
      %v2458 = vadd.f32 0.0, %v2457
      %2459 = vmatmul.bf16.gmra.mxu0 %v1333
      %v2460 = vpop.f32.mrf.mxu0
      %v2461 = vadd.f32 0.0, %v2460
      %v2462 = vpop.f32.mrf.mxu0
      %v2463 = vadd.f32 0.0, %v2462
      %2464 = vmatmul.bf16.gmra.mxu0 %v1336
      %v2465 = vpop.f32.mrf.mxu0
      %v2466 = vadd.f32 0.0, %v2465
      %v2467 = vpop.f32.mrf.mxu0
      %v2468 = vadd.f32 0.0, %v2467
      %2469 = vmatmul.bf16.gmra.mxu0 %v1339
      %v2470 = vpop.f32.mrf.mxu0
      %v2471 = vadd.f32 0.0, %v2470
      %v2472 = vpop.f32.mrf.mxu0
      %v2473 = vadd.f32 0.0, %v2472
      %2474 = vmatmul.bf16.gmra.mxu0 %v1342
      %v2475 = vpop.f32.mrf.mxu0
      %v2476 = vadd.f32 0.0, %v2475
      %v2477 = vpop.f32.mrf.mxu0
      %v2478 = vadd.f32 0.0, %v2477
      %2479 = vmatmul.bf16.gmra.mxu0 %v1345
      %v2480 = vpop.f32.mrf.mxu0
      %v2481 = vadd.f32 0.0, %v2480
      %v2482 = vpop.f32.mrf.mxu0
      %v2483 = vadd.f32 0.0, %v2482
      %2484 = vdwg.mxu0
      %2485 = vmatpush.bf16.msra.mxu0 %v2353
      %2486 = vmatpush.bf16.msra.mxu0 %v2352
      %2487 = vmatpush.bf16.msra.mxu0 %v2351
      %2488 = vmatpush.bf16.msra.mxu0 %v2350
      %2489 = vmatpush.bf16.msra.mxu0 %v2349
      %2490 = vmatpush.bf16.msra.mxu0 %v2348
      %2491 = vmatpush.bf16.msra.mxu0 %v2347
      %2492 = vmatpush.bf16.msra.mxu0 %v2346
      %2493 = vmatmul.bf16.gmra.mxu0 %v1295
      %v2494 = vpop.f32.mrf.mxu0
      %v2495 = vadd.f32 %v2396, %v2494
      %v2496 = vpop.f32.mrf.mxu0
      %v2497 = vadd.f32 %v2398, %v2496
      %2498 = vmatmul.bf16.gmra.mxu0 %v1298
      %v2499 = vpop.f32.mrf.mxu0
      %v2500 = vadd.f32 %v2401, %v2499
      %v2501 = vpop.f32.mrf.mxu0
      %v2502 = vadd.f32 %v2403, %v2501
      %2503 = vmatmul.bf16.gmra.mxu0 %v1301
      %v2504 = vpop.f32.mrf.mxu0
      %v2505 = vadd.f32 %v2406, %v2504
      %v2506 = vpop.f32.mrf.mxu0
      %v2507 = vadd.f32 %v2408, %v2506
      %2508 = vmatmul.bf16.gmra.mxu0 %v1304
      %v2509 = vpop.f32.mrf.mxu0
      %v2510 = vadd.f32 %v2411, %v2509
      %v2511 = vpop.f32.mrf.mxu0
      %v2512 = vadd.f32 %v2413, %v2511
      %2513 = vmatmul.bf16.gmra.mxu0 %v1307
      %v2514 = vpop.f32.mrf.mxu0
      %v2515 = vadd.f32 %v2416, %v2514
      %v2516 = vpop.f32.mrf.mxu0
      %v2517 = vadd.f32 %v2418, %v2516
      %2518 = vmatmul.bf16.gmra.mxu0 %v1310
      %v2519 = vpop.f32.mrf.mxu0
      %v2520 = vadd.f32 %v2421, %v2519
      %v2521 = vpop.f32.mrf.mxu0
      %v2522 = vadd.f32 %v2423, %v2521
      %2523 = vmatmul.bf16.gmra.mxu0 %v1313
      %v2524 = vpop.f32.mrf.mxu0
      %v2525 = vadd.f32 %v2426, %v2524
      %v2526 = vpop.f32.mrf.mxu0
      %v2527 = vadd.f32 %v2428, %v2526
      %2528 = vmatmul.bf16.gmra.mxu0 %v1316
      %v2529 = vpop.f32.mrf.mxu0
      %v2530 = vadd.f32 %v2431, %v2529
      %v2531 = vpop.f32.mrf.mxu0
      %v2532 = vadd.f32 %v2433, %v2531
      %2533 = vmatmul.bf16.gmra.mxu0 %v1319
      %v2534 = vpop.f32.mrf.mxu0
      %v2535 = vadd.f32 %v2436, %v2534
      %v2536 = vpop.f32.mrf.mxu0
      %v2537 = vadd.f32 %v2438, %v2536
      %2538 = vmatmul.bf16.gmra.mxu0 %v1322
      %v2539 = vpop.f32.mrf.mxu0
      %v2540 = vadd.f32 %v2441, %v2539
      %v2541 = vpop.f32.mrf.mxu0
      %v2542 = vadd.f32 %v2443, %v2541
      %2543 = vmatmul.bf16.gmra.mxu0 %v1325
      %v2544 = vpop.f32.mrf.mxu0
      %v2545 = vadd.f32 %v2446, %v2544
      %v2546 = vpop.f32.mrf.mxu0
      %v2547 = vadd.f32 %v2448, %v2546
      %2548 = vmatmul.bf16.gmra.mxu0 %v1328
      %v2549 = vpop.f32.mrf.mxu0
      %v2550 = vadd.f32 %v2451, %v2549
      %v2551 = vpop.f32.mrf.mxu0
      %v2552 = vadd.f32 %v2453, %v2551
      %2553 = vmatmul.bf16.gmra.mxu0 %v1331
      %v2554 = vpop.f32.mrf.mxu0
      %v2555 = vadd.f32 %v2456, %v2554
      %v2556 = vpop.f32.mrf.mxu0
      %v2557 = vadd.f32 %v2458, %v2556
      %2558 = vmatmul.bf16.gmra.mxu0 %v1334
      %v2559 = vpop.f32.mrf.mxu0
      %v2560 = vadd.f32 %v2461, %v2559
      %v2561 = vpop.f32.mrf.mxu0
      %v2562 = vadd.f32 %v2463, %v2561
      %2563 = vmatmul.bf16.gmra.mxu0 %v1337
      %v2564 = vpop.f32.mrf.mxu0
      %v2565 = vadd.f32 %v2466, %v2564
      %v2566 = vpop.f32.mrf.mxu0
      %v2567 = vadd.f32 %v2468, %v2566
      %2568 = vmatmul.bf16.gmra.mxu0 %v1340
      %v2569 = vpop.f32.mrf.mxu0
      %v2570 = vadd.f32 %v2471, %v2569
      %v2571 = vpop.f32.mrf.mxu0
      %v2572 = vadd.f32 %v2473, %v2571
      %2573 = vmatmul.bf16.gmra.mxu0 %v1343
      %v2574 = vpop.f32.mrf.mxu0
      %v2575 = vadd.f32 %v2476, %v2574
      %v2576 = vpop.f32.mrf.mxu0
      %v2577 = vadd.f32 %v2478, %v2576
      %2578 = vmatmul.bf16.gmra.mxu0 %v1346
      %v2579 = vpop.f32.mrf.mxu0
      %v2580 = vadd.f32 %v2481, %v2579
      %v2581 = vpop.f32.mrf.mxu0
      %v2582 = vadd.f32 %v2483, %v2581
      %2583 = vdwg.mxu0
      %2584 = vmatpush.bf16.msra.mxu0 %v2361
      %2585 = vmatpush.bf16.msra.mxu0 %v2360
      %2586 = vmatpush.bf16.msra.mxu0 %v2359
      %2587 = vmatpush.bf16.msra.mxu0 %v2358
      %2588 = vmatpush.bf16.msra.mxu0 %v2357
      %2589 = vmatpush.bf16.msra.mxu0 %v2356
      %2590 = vmatpush.bf16.msra.mxu0 %v2355
      %2591 = vmatpush.bf16.msra.mxu0 %v2354
      %2592 = vmatmul.bf16.gmra.mxu0 %v1296
      %v2593 = vpop.f32.mrf.mxu0
      %v2594 = vadd.f32 %v2495, %v2593
      %v2595 = vpop.f32.mrf.mxu0
      %v2596 = vadd.f32 %v2497, %v2595
      %2597 = vmatmul.bf16.gmra.mxu0 %v1299
      %v2598 = vpop.f32.mrf.mxu0
      %v2599 = vadd.f32 %v2500, %v2598
      %v2600 = vpop.f32.mrf.mxu0
      %v2601 = vadd.f32 %v2502, %v2600
      %2602 = vmatmul.bf16.gmra.mxu0 %v1302
      %v2603 = vpop.f32.mrf.mxu0
      %v2604 = vadd.f32 %v2505, %v2603
      %v2605 = vpop.f32.mrf.mxu0
      %v2606 = vadd.f32 %v2507, %v2605
      %2607 = vmatmul.bf16.gmra.mxu0 %v1305
      %v2608 = vpop.f32.mrf.mxu0
      %v2609 = vadd.f32 %v2510, %v2608
      %v2610 = vpop.f32.mrf.mxu0
      %v2611 = vadd.f32 %v2512, %v2610
      %2612 = vmatmul.bf16.gmra.mxu0 %v1308
      %v2613 = vpop.f32.mrf.mxu0
      %v2614 = vadd.f32 %v2515, %v2613
      %v2615 = vpop.f32.mrf.mxu0
      %v2616 = vadd.f32 %v2517, %v2615
      %2617 = vmatmul.bf16.gmra.mxu0 %v1311
      %v2618 = vpop.f32.mrf.mxu0
      %v2619 = vadd.f32 %v2520, %v2618
      %v2620 = vpop.f32.mrf.mxu0
      %v2621 = vadd.f32 %v2522, %v2620
      %2622 = vmatmul.bf16.gmra.mxu0 %v1314
      %v2623 = vpop.f32.mrf.mxu0
      %v2624 = vadd.f32 %v2525, %v2623
      %v2625 = vpop.f32.mrf.mxu0
      %v2626 = vadd.f32 %v2527, %v2625
      %2627 = vmatmul.bf16.gmra.mxu0 %v1317
      %v2628 = vpop.f32.mrf.mxu0
      %v2629 = vadd.f32 %v2530, %v2628
      %v2630 = vpop.f32.mrf.mxu0
      %v2631 = vadd.f32 %v2532, %v2630
      %2632 = vmatmul.bf16.gmra.mxu0 %v1320
      %v2633 = vpop.f32.mrf.mxu0
      %v2634 = vadd.f32 %v2535, %v2633
      %v2635 = vpop.f32.mrf.mxu0
      %v2636 = vadd.f32 %v2537, %v2635
      %2637 = vmatmul.bf16.gmra.mxu0 %v1323
      %v2638 = vpop.f32.mrf.mxu0
      %v2639 = vadd.f32 %v2540, %v2638
      %v2640 = vpop.f32.mrf.mxu0
      %v2641 = vadd.f32 %v2542, %v2640
      %2642 = vmatmul.bf16.gmra.mxu0 %v1326
      %v2643 = vpop.f32.mrf.mxu0
      %v2644 = vadd.f32 %v2545, %v2643
      %v2645 = vpop.f32.mrf.mxu0
      %v2646 = vadd.f32 %v2547, %v2645
      %2647 = vmatmul.bf16.gmra.mxu0 %v1329
      %v2648 = vpop.f32.mrf.mxu0
      %v2649 = vadd.f32 %v2550, %v2648
      %v2650 = vpop.f32.mrf.mxu0
      %v2651 = vadd.f32 %v2552, %v2650
      %2652 = vmatmul.bf16.gmra.mxu0 %v1332
      %v2653 = vpop.f32.mrf.mxu0
      %v2654 = vadd.f32 %v2555, %v2653
      %v2655 = vpop.f32.mrf.mxu0
      %v2656 = vadd.f32 %v2557, %v2655
      %2657 = vmatmul.bf16.gmra.mxu0 %v1335
      %v2658 = vpop.f32.mrf.mxu0
      %v2659 = vadd.f32 %v2560, %v2658
      %v2660 = vpop.f32.mrf.mxu0
      %v2661 = vadd.f32 %v2562, %v2660
      %2662 = vmatmul.bf16.gmra.mxu0 %v1338
      %v2663 = vpop.f32.mrf.mxu0
      %v2664 = vadd.f32 %v2565, %v2663
      %v2665 = vpop.f32.mrf.mxu0
      %v2666 = vadd.f32 %v2567, %v2665
      %2667 = vmatmul.bf16.gmra.mxu0 %v1341
      %v2668 = vpop.f32.mrf.mxu0
      %v2669 = vadd.f32 %v2570, %v2668
      %v2670 = vpop.f32.mrf.mxu0
      %v2671 = vadd.f32 %v2572, %v2670
      %2672 = vmatmul.bf16.gmra.mxu0 %v1344
      %v2673 = vpop.f32.mrf.mxu0
      %v2674 = vadd.f32 %v2575, %v2673
      %v2675 = vpop.f32.mrf.mxu0
      %v2676 = vadd.f32 %v2577, %v2675
      %2677 = vmatmul.bf16.gmra.mxu0 %v1347
      %v2678 = vpop.f32.mrf.mxu0
      %v2679 = vadd.f32 %v2580, %v2678
      %v2680 = vpop.f32.mrf.mxu0
      %v2681 = vadd.f32 %v2582, %v2680
      %2682 = vdwg.mxu0
      %v2719 = vrot.slane %v2594, 2
      %v2720 = vrot.slane %v2594, 4
      %v2721 = vrot.slane %v2594, 6
      %v2722 = vrot.slane %v2596, 2
      %v2723 = vrot.slane %v2596, 4
      %v2724 = vrot.slane %v2596, 6
      %v2725 = vrot.slane %v2599, 2
      %v2726 = vrot.slane %v2599, 4
      %v2727 = vrot.slane %v2599, 6
      %v2728 = vrot.slane %v2601, 2
      %v2729 = vrot.slane %v2601, 4
      %v2730 = vrot.slane %v2601, 6
      %v2731 = vrot.slane %v2604, 2
      %v2732 = vrot.slane %v2604, 4
      %v2733 = vrot.slane %v2604, 6
      %v2734 = vrot.slane %v2606, 2
      %v2735 = vrot.slane %v2606, 4
      %v2736 = vrot.slane %v2606, 6
      %v2737 = vrot.slane %v2609, 2
      %v2738 = vrot.slane %v2609, 4
      %v2739 = vrot.slane %v2609, 6
      %v2740 = vrot.slane %v2611, 2
      %v2741 = vrot.slane %v2611, 4
      %v2742 = vrot.slane %v2611, 6
      %v2743 = vrot.slane %v2614, 2
      %v2744 = vrot.slane %v2614, 4
      %v2745 = vrot.slane %v2614, 6
      %v2746 = vrot.slane %v2616, 2
      %v2747 = vrot.slane %v2616, 4
      %v2748 = vrot.slane %v2616, 6
      %v2749 = vrot.slane %v2619, 2
      %v2750 = vrot.slane %v2619, 4
      %v2751 = vrot.slane %v2619, 6
      %v2752 = vrot.slane %v2621, 2
      %v2753 = vrot.slane %v2621, 4
      %v2754 = vrot.slane %v2621, 6
      %v2755 = vrot.slane %v2624, 2
      %v2756 = vrot.slane %v2624, 4
      %v2757 = vrot.slane %v2624, 6
      %v2758 = vrot.slane %v2626, 2
      %v2759 = vrot.slane %v2626, 4
      %v2760 = vrot.slane %v2626, 6
      %v2761 = vrot.slane %v2629, 2
      %v2762 = vrot.slane %v2629, 4
      %v2763 = vrot.slane %v2629, 6
      %v2764 = vrot.slane %v2631, 2
      %v2765 = vrot.slane %v2631, 4
      %v2766 = vrot.slane %v2631, 6
      %v2767 = vrot.slane %v2634, 2
      %v2768 = vrot.slane %v2634, 4
      %v2769 = vrot.slane %v2634, 6
      %v2770 = vrot.slane %v2636, 2
      %v2771 = vrot.slane %v2636, 4
      %v2772 = vrot.slane %v2636, 6
      %v2773 = vrot.slane %v2639, 2
      %v2774 = vrot.slane %v2639, 4
      %v2775 = vrot.slane %v2639, 6
      %v2776 = vrot.slane %v2641, 2
      %v2777 = vrot.slane %v2641, 4
      %v2778 = vrot.slane %v2641, 6
      %v2779 = vrot.slane %v2644, 2
      %v2780 = vrot.slane %v2644, 4
      %v2781 = vrot.slane %v2644, 6
      %v2782 = vrot.slane %v2646, 2
      %v2783 = vrot.slane %v2646, 4
      %v2784 = vrot.slane %v2646, 6
      %v2785 = vrot.slane %v2649, 2
      %v2786 = vrot.slane %v2649, 4
      %v2787 = vrot.slane %v2649, 6
      %v2788 = vrot.slane %v2651, 2
      %v2789 = vrot.slane %v2651, 4
      %v2790 = vrot.slane %v2651, 6
      %v2791 = vrot.slane %v2654, 2
      %v2792 = vrot.slane %v2654, 4
      %v2793 = vrot.slane %v2654, 6
      %v2794 = vrot.slane %v2656, 2
      %v2795 = vrot.slane %v2656, 4
      %v2796 = vrot.slane %v2656, 6
      %v2797 = vrot.slane %v2659, 2
      %v2798 = vrot.slane %v2659, 4
      %v2799 = vrot.slane %v2659, 6
      %v2800 = vrot.slane %v2661, 2
      %v2801 = vrot.slane %v2661, 4
      %v2802 = vrot.slane %v2661, 6
      %v2803 = vrot.slane %v2664, 2
      %v2804 = vrot.slane %v2664, 4
      %v2805 = vrot.slane %v2664, 6
      %v2806 = vrot.slane %v2666, 2
      %v2807 = vrot.slane %v2666, 4
      %v2808 = vrot.slane %v2666, 6
      %v2809 = vrot.slane %v2669, 2
      %v2810 = vrot.slane %v2669, 4
      %v2811 = vrot.slane %v2669, 6
      %v2812 = vrot.slane %v2671, 2
      %v2813 = vrot.slane %v2671, 4
      %v2814 = vrot.slane %v2671, 6
      %v2815 = vrot.slane %v2674, 2
      %v2816 = vrot.slane %v2674, 4
      %v2817 = vrot.slane %v2674, 6
      %v2818 = vrot.slane %v2676, 2
      %v2819 = vrot.slane %v2676, 4
      %v2820 = vrot.slane %v2676, 6
      %v2821 = vrot.slane %v2679, 2
      %v2822 = vrot.slane %v2679, 4
      %v2823 = vrot.slane %v2679, 6
      %v2824 = vrot.slane %v2681, 2
      %v2825 = vrot.slane %v2681, 4
      %v2826 = vrot.slane %v2681, 6
      %vm2827 = vcmask 1042434
      %vm2828 = vmor %vm267, %vm2827
      %vm2829 = vcmask 1044484
      %vm2830 = vmor %vm2828, %vm2829
      %vm2831 = vcmask 1046534
      %vm2832 = vmor %vm2830, %vm2831
      %v2833 = vrot.slane %v2594, 7
      %v2834 = vrot.slane %v2833, 2
      %v2835 = vrot.slane %v2719, 7
      %v2836 = vsel %vm2832, %v2834, %v2835
      %v2837 = vrot.slane %v2835, 2
      %v2838 = vrot.slane %v2720, 7
      %v2839 = vsel %vm2832, %v2837, %v2838
      %v2840 = vrot.slane %v2838, 2
      %v2841 = vrot.slane %v2721, 7
      %v2842 = vsel %vm2832, %v2840, %v2841
      %v2843 = vrot.slane %v2841, 2
      %v2844 = vrot.slane %v2596, 7
      %v2845 = vsel %vm2832, %v2843, %v2844
      %v2846 = vrot.slane %v2844, 2
      %v2847 = vrot.slane %v2722, 7
      %v2848 = vsel %vm2832, %v2846, %v2847
      %v2849 = vrot.slane %v2847, 2
      %v2850 = vrot.slane %v2723, 7
      %v2851 = vsel %vm2832, %v2849, %v2850
      %v2852 = vrot.slane %v2850, 2
      %v2853 = vrot.slane %v2724, 7
      %v2854 = vsel %vm2832, %v2852, %v2853
      %v2855 = vrot.slane %v2853, 2
      %v2856 = vrot.slane %v2599, 7
      %v2857 = vsel %vm2832, %v2855, %v2856
      %v2858 = vrot.slane %v2725, 7
      %v2859 = vrot.slane %v2858, 2
      %v2860 = vrot.slane %v2726, 7
      %v2861 = vsel %vm2832, %v2859, %v2860
      %v2862 = vrot.slane %v2860, 2
      %v2863 = vrot.slane %v2727, 7
      %v2864 = vsel %vm2832, %v2862, %v2863
      %v2865 = vrot.slane %v2863, 2
      %v2866 = vrot.slane %v2601, 7
      %v2867 = vsel %vm2832, %v2865, %v2866
      %v2868 = vrot.slane %v2866, 2
      %v2869 = vrot.slane %v2728, 7
      %v2870 = vsel %vm2832, %v2868, %v2869
      %v2871 = vrot.slane %v2869, 2
      %v2872 = vrot.slane %v2729, 7
      %v2873 = vsel %vm2832, %v2871, %v2872
      %v2874 = vrot.slane %v2872, 2
      %v2875 = vrot.slane %v2730, 7
      %v2876 = vsel %vm2832, %v2874, %v2875
      %v2877 = vrot.slane %v2875, 2
      %v2878 = vrot.slane %v2604, 7
      %v2879 = vsel %vm2832, %v2877, %v2878
      %v2880 = vrot.slane %v2878, 2
      %v2881 = vrot.slane %v2731, 7
      %v2882 = vsel %vm2832, %v2880, %v2881
      %v2883 = vrot.slane %v2732, 7
      %v2884 = vrot.slane %v2883, 2
      %v2885 = vrot.slane %v2733, 7
      %v2886 = vsel %vm2832, %v2884, %v2885
      %v2887 = vrot.slane %v2885, 2
      %v2888 = vrot.slane %v2606, 7
      %v2889 = vsel %vm2832, %v2887, %v2888
      %v2890 = vrot.slane %v2888, 2
      %v2891 = vrot.slane %v2734, 7
      %v2892 = vsel %vm2832, %v2890, %v2891
      %v2893 = vrot.slane %v2891, 2
      %v2894 = vrot.slane %v2735, 7
      %v2895 = vsel %vm2832, %v2893, %v2894
      %v2896 = vrot.slane %v2894, 2
      %v2897 = vrot.slane %v2736, 7
      %v2898 = vsel %vm2832, %v2896, %v2897
      %v2899 = vrot.slane %v2897, 2
      %v2900 = vrot.slane %v2609, 7
      %v2901 = vsel %vm2832, %v2899, %v2900
      %v2902 = vrot.slane %v2900, 2
      %v2903 = vrot.slane %v2737, 7
      %v2904 = vsel %vm2832, %v2902, %v2903
      %v2905 = vrot.slane %v2903, 2
      %v2906 = vrot.slane %v2738, 7
      %v2907 = vsel %vm2832, %v2905, %v2906
      %v2908 = vrot.slane %v2739, 7
      %v2909 = vrot.slane %v2908, 2
      %v2910 = vrot.slane %v2611, 7
      %v2911 = vsel %vm2832, %v2909, %v2910
      %v2912 = vrot.slane %v2910, 2
      %v2913 = vrot.slane %v2740, 7
      %v2914 = vsel %vm2832, %v2912, %v2913
      %v2915 = vrot.slane %v2913, 2
      %v2916 = vrot.slane %v2741, 7
      %v2917 = vsel %vm2832, %v2915, %v2916
      %v2918 = vrot.slane %v2916, 2
      %v2919 = vrot.slane %v2742, 7
      %v2920 = vsel %vm2832, %v2918, %v2919
      %v2921 = vrot.slane %v2919, 2
      %v2922 = vrot.slane %v2614, 7
      %v2923 = vsel %vm2832, %v2921, %v2922
      %v2924 = vrot.slane %v2922, 2
      %v2925 = vrot.slane %v2743, 7
      %v2926 = vsel %vm2832, %v2924, %v2925
      %v2927 = vrot.slane %v2925, 2
      %v2928 = vrot.slane %v2744, 7
      %v2929 = vsel %vm2832, %v2927, %v2928
      %v2930 = vrot.slane %v2928, 2
      %v2931 = vrot.slane %v2745, 7
      %v2932 = vsel %vm2832, %v2930, %v2931
      %v2933 = vrot.slane %v2616, 7
      %v2934 = vrot.slane %v2933, 2
      %v2935 = vrot.slane %v2746, 7
      %v2936 = vsel %vm2832, %v2934, %v2935
      %v2937 = vrot.slane %v2935, 2
      %v2938 = vrot.slane %v2747, 7
      %v2939 = vsel %vm2832, %v2937, %v2938
      %v2940 = vrot.slane %v2938, 2
      %v2941 = vrot.slane %v2748, 7
      %v2942 = vsel %vm2832, %v2940, %v2941
      %v2943 = vrot.slane %v2941, 2
      %v2944 = vrot.slane %v2619, 7
      %v2945 = vsel %vm2832, %v2943, %v2944
      %v2946 = vrot.slane %v2944, 2
      %v2947 = vrot.slane %v2749, 7
      %v2948 = vsel %vm2832, %v2946, %v2947
      %v2949 = vrot.slane %v2947, 2
      %v2950 = vrot.slane %v2750, 7
      %v2951 = vsel %vm2832, %v2949, %v2950
      %v2952 = vrot.slane %v2950, 2
      %v2953 = vrot.slane %v2751, 7
      %v2954 = vsel %vm2832, %v2952, %v2953
      %v2955 = vrot.slane %v2953, 2
      %v2956 = vrot.slane %v2621, 7
      %v2957 = vsel %vm2832, %v2955, %v2956
      %v2958 = vrot.slane %v2752, 7
      %v2959 = vrot.slane %v2958, 2
      %v2960 = vrot.slane %v2753, 7
      %v2961 = vsel %vm2832, %v2959, %v2960
      %v2962 = vrot.slane %v2960, 2
      %v2963 = vrot.slane %v2754, 7
      %v2964 = vsel %vm2832, %v2962, %v2963
      %v2965 = vrot.slane %v2963, 2
      %v2966 = vrot.slane %v2624, 7
      %v2967 = vsel %vm2832, %v2965, %v2966
      %v2968 = vrot.slane %v2966, 2
      %v2969 = vrot.slane %v2755, 7
      %v2970 = vsel %vm2832, %v2968, %v2969
      %v2971 = vrot.slane %v2969, 2
      %v2972 = vrot.slane %v2756, 7
      %v2973 = vsel %vm2832, %v2971, %v2972
      %v2974 = vrot.slane %v2972, 2
      %v2975 = vrot.slane %v2757, 7
      %v2976 = vsel %vm2832, %v2974, %v2975
      %v2977 = vrot.slane %v2975, 2
      %v2978 = vrot.slane %v2626, 7
      %v2979 = vsel %vm2832, %v2977, %v2978
      %v2980 = vrot.slane %v2978, 2
      %v2981 = vrot.slane %v2758, 7
      %v2982 = vsel %vm2832, %v2980, %v2981
      %v2983 = vrot.slane %v2759, 7
      %v2984 = vrot.slane %v2983, 2
      %v2985 = vrot.slane %v2760, 7
      %v2986 = vsel %vm2832, %v2984, %v2985
      %v2987 = vrot.slane %v2985, 2
      %v2988 = vrot.slane %v2629, 7
      %v2989 = vsel %vm2832, %v2987, %v2988
      %v2990 = vrot.slane %v2988, 2
      %v2991 = vrot.slane %v2761, 7
      %v2992 = vsel %vm2832, %v2990, %v2991
      %v2993 = vrot.slane %v2991, 2
      %v2994 = vrot.slane %v2762, 7
      %v2995 = vsel %vm2832, %v2993, %v2994
      %v2996 = vrot.slane %v2994, 2
      %v2997 = vrot.slane %v2763, 7
      %v2998 = vsel %vm2832, %v2996, %v2997
      %v2999 = vrot.slane %v2997, 2
      %v3000 = vrot.slane %v2631, 7
      %v3001 = vsel %vm2832, %v2999, %v3000
      %v3002 = vrot.slane %v3000, 2
      %v3003 = vrot.slane %v2764, 7
      %v3004 = vsel %vm2832, %v3002, %v3003
      %v3005 = vrot.slane %v3003, 2
      %v3006 = vrot.slane %v2765, 7
      %v3007 = vsel %vm2832, %v3005, %v3006
      %v3008 = vrot.slane %v2766, 7
      %v3009 = vrot.slane %v3008, 2
      %v3010 = vrot.slane %v2634, 7
      %v3011 = vsel %vm2832, %v3009, %v3010
      %v3012 = vrot.slane %v3010, 2
      %v3013 = vrot.slane %v2767, 7
      %v3014 = vsel %vm2832, %v3012, %v3013
      %v3015 = vrot.slane %v3013, 2
      %v3016 = vrot.slane %v2768, 7
      %v3017 = vsel %vm2832, %v3015, %v3016
      %v3018 = vrot.slane %v3016, 2
      %v3019 = vrot.slane %v2769, 7
      %v3020 = vsel %vm2832, %v3018, %v3019
      %v3021 = vrot.slane %v3019, 2
      %v3022 = vrot.slane %v2636, 7
      %v3023 = vsel %vm2832, %v3021, %v3022
      %v3024 = vrot.slane %v3022, 2
      %v3025 = vrot.slane %v2770, 7
      %v3026 = vsel %vm2832, %v3024, %v3025
      %v3027 = vrot.slane %v3025, 2
      %v3028 = vrot.slane %v2771, 7
      %v3029 = vsel %vm2832, %v3027, %v3028
      %v3030 = vrot.slane %v3028, 2
      %v3031 = vrot.slane %v2772, 7
      %v3032 = vsel %vm2832, %v3030, %v3031
      %v3033 = vrot.slane %v2639, 7
      %v3034 = vrot.slane %v3033, 2
      %v3035 = vrot.slane %v2773, 7
      %v3036 = vsel %vm2832, %v3034, %v3035
      %v3037 = vrot.slane %v3035, 2
      %v3038 = vrot.slane %v2774, 7
      %v3039 = vsel %vm2832, %v3037, %v3038
      %v3040 = vrot.slane %v3038, 2
      %v3041 = vrot.slane %v2775, 7
      %v3042 = vsel %vm2832, %v3040, %v3041
      %v3043 = vrot.slane %v3041, 2
      %v3044 = vrot.slane %v2641, 7
      %v3045 = vsel %vm2832, %v3043, %v3044
      %v3046 = vrot.slane %v3044, 2
      %v3047 = vrot.slane %v2776, 7
      %v3048 = vsel %vm2832, %v3046, %v3047
      %v3049 = vrot.slane %v3047, 2
      %v3050 = vrot.slane %v2777, 7
      %v3051 = vsel %vm2832, %v3049, %v3050
      %v3052 = vrot.slane %v3050, 2
      %v3053 = vrot.slane %v2778, 7
      %v3054 = vsel %vm2832, %v3052, %v3053
      %v3055 = vrot.slane %v3053, 2
      %v3056 = vrot.slane %v2644, 7
      %v3057 = vsel %vm2832, %v3055, %v3056
      %v3058 = vrot.slane %v2779, 7
      %v3059 = vrot.slane %v3058, 2
      %v3060 = vrot.slane %v2780, 7
      %v3061 = vsel %vm2832, %v3059, %v3060
      %v3062 = vrot.slane %v3060, 2
      %v3063 = vrot.slane %v2781, 7
      %v3064 = vsel %vm2832, %v3062, %v3063
      %v3065 = vrot.slane %v3063, 2
      %v3066 = vrot.slane %v2646, 7
      %v3067 = vsel %vm2832, %v3065, %v3066
      %v3068 = vrot.slane %v3066, 2
      %v3069 = vrot.slane %v2782, 7
      %v3070 = vsel %vm2832, %v3068, %v3069
      %v3071 = vrot.slane %v3069, 2
      %v3072 = vrot.slane %v2783, 7
      %v3073 = vsel %vm2832, %v3071, %v3072
      %v3074 = vrot.slane %v3072, 2
      %v3075 = vrot.slane %v2784, 7
      %v3076 = vsel %vm2832, %v3074, %v3075
      %v3077 = vrot.slane %v3075, 2
      %v3078 = vrot.slane %v2649, 7
      %v3079 = vsel %vm2832, %v3077, %v3078
      %v3080 = vrot.slane %v3078, 2
      %v3081 = vrot.slane %v2785, 7
      %v3082 = vsel %vm2832, %v3080, %v3081
      %v3083 = vrot.slane %v2786, 7
      %v3084 = vrot.slane %v3083, 2
      %v3085 = vrot.slane %v2787, 7
      %v3086 = vsel %vm2832, %v3084, %v3085
      %v3087 = vrot.slane %v3085, 2
      %v3088 = vrot.slane %v2651, 7
      %v3089 = vsel %vm2832, %v3087, %v3088
      %v3090 = vrot.slane %v3088, 2
      %v3091 = vrot.slane %v2788, 7
      %v3092 = vsel %vm2832, %v3090, %v3091
      %v3093 = vrot.slane %v3091, 2
      %v3094 = vrot.slane %v2789, 7
      %v3095 = vsel %vm2832, %v3093, %v3094
      %v3096 = vrot.slane %v3094, 2
      %v3097 = vrot.slane %v2790, 7
      %v3098 = vsel %vm2832, %v3096, %v3097
      %v3099 = vrot.slane %v3097, 2
      %v3100 = vrot.slane %v2654, 7
      %v3101 = vsel %vm2832, %v3099, %v3100
      %v3102 = vrot.slane %v3100, 2
      %v3103 = vrot.slane %v2791, 7
      %v3104 = vsel %vm2832, %v3102, %v3103
      %v3105 = vrot.slane %v3103, 2
      %v3106 = vrot.slane %v2792, 7
      %v3107 = vsel %vm2832, %v3105, %v3106
      %v3108 = vrot.slane %v2793, 7
      %v3109 = vrot.slane %v3108, 2
      %v3110 = vrot.slane %v2656, 7
      %v3111 = vsel %vm2832, %v3109, %v3110
      %v3112 = vrot.slane %v3110, 2
      %v3113 = vrot.slane %v2794, 7
      %v3114 = vsel %vm2832, %v3112, %v3113
      %v3115 = vrot.slane %v3113, 2
      %v3116 = vrot.slane %v2795, 7
      %v3117 = vsel %vm2832, %v3115, %v3116
      %v3118 = vrot.slane %v3116, 2
      %v3119 = vrot.slane %v2796, 7
      %v3120 = vsel %vm2832, %v3118, %v3119
      %v3121 = vrot.slane %v3119, 2
      %v3122 = vrot.slane %v2659, 7
      %v3123 = vsel %vm2832, %v3121, %v3122
      %v3124 = vrot.slane %v3122, 2
      %v3125 = vrot.slane %v2797, 7
      %v3126 = vsel %vm2832, %v3124, %v3125
      %v3127 = vrot.slane %v3125, 2
      %v3128 = vrot.slane %v2798, 7
      %v3129 = vsel %vm2832, %v3127, %v3128
      %v3130 = vrot.slane %v3128, 2
      %v3131 = vrot.slane %v2799, 7
      %v3132 = vsel %vm2832, %v3130, %v3131
      %v3133 = vrot.slane %v2661, 7
      %v3134 = vrot.slane %v3133, 2
      %v3135 = vrot.slane %v2800, 7
      %v3136 = vsel %vm2832, %v3134, %v3135
      %v3137 = vrot.slane %v3135, 2
      %v3138 = vrot.slane %v2801, 7
      %v3139 = vsel %vm2832, %v3137, %v3138
      %v3140 = vrot.slane %v3138, 2
      %v3141 = vrot.slane %v2802, 7
      %v3142 = vsel %vm2832, %v3140, %v3141
      %v3143 = vrot.slane %v3141, 2
      %v3144 = vrot.slane %v2664, 7
      %v3145 = vsel %vm2832, %v3143, %v3144
      %v3146 = vrot.slane %v3144, 2
      %v3147 = vrot.slane %v2803, 7
      %v3148 = vsel %vm2832, %v3146, %v3147
      %v3149 = vrot.slane %v3147, 2
      %v3150 = vrot.slane %v2804, 7
      %v3151 = vsel %vm2832, %v3149, %v3150
      %v3152 = vrot.slane %v3150, 2
      %v3153 = vrot.slane %v2805, 7
      %v3154 = vsel %vm2832, %v3152, %v3153
      %v3155 = vrot.slane %v3153, 2
      %v3156 = vrot.slane %v2666, 7
      %v3157 = vsel %vm2832, %v3155, %v3156
      %v3158 = vrot.slane %v2806, 7
      %v3159 = vrot.slane %v3158, 2
      %v3160 = vrot.slane %v2807, 7
      %v3161 = vsel %vm2832, %v3159, %v3160
      %v3162 = vrot.slane %v3160, 2
      %v3163 = vrot.slane %v2808, 7
      %v3164 = vsel %vm2832, %v3162, %v3163
      %v3165 = vrot.slane %v3163, 2
      %v3166 = vrot.slane %v2669, 7
      %v3167 = vsel %vm2832, %v3165, %v3166
      %v3168 = vrot.slane %v3166, 2
      %v3169 = vrot.slane %v2809, 7
      %v3170 = vsel %vm2832, %v3168, %v3169
      %v3171 = vrot.slane %v3169, 2
      %v3172 = vrot.slane %v2810, 7
      %v3173 = vsel %vm2832, %v3171, %v3172
      %v3174 = vrot.slane %v3172, 2
      %v3175 = vrot.slane %v2811, 7
      %v3176 = vsel %vm2832, %v3174, %v3175
      %v3177 = vrot.slane %v3175, 2
      %v3178 = vrot.slane %v2671, 7
      %v3179 = vsel %vm2832, %v3177, %v3178
      %v3180 = vrot.slane %v3178, 2
      %v3181 = vrot.slane %v2812, 7
      %v3182 = vsel %vm2832, %v3180, %v3181
      %v3183 = vrot.slane %v2813, 7
      %v3184 = vrot.slane %v3183, 2
      %v3185 = vrot.slane %v2814, 7
      %v3186 = vsel %vm2832, %v3184, %v3185
      %v3187 = vrot.slane %v3185, 2
      %v3188 = vrot.slane %v2674, 7
      %v3189 = vsel %vm2832, %v3187, %v3188
      %v3190 = vrot.slane %v3188, 2
      %v3191 = vrot.slane %v2815, 7
      %v3192 = vsel %vm2832, %v3190, %v3191
      %v3193 = vrot.slane %v3191, 2
      %v3194 = vrot.slane %v2816, 7
      %v3195 = vsel %vm2832, %v3193, %v3194
      %v3196 = vrot.slane %v3194, 2
      %v3197 = vrot.slane %v2817, 7
      %v3198 = vsel %vm2832, %v3196, %v3197
      %v3199 = vrot.slane %v3197, 2
      %v3200 = vrot.slane %v2676, 7
      %v3201 = vsel %vm2832, %v3199, %v3200
      %v3202 = vrot.slane %v3200, 2
      %v3203 = vrot.slane %v2818, 7
      %v3204 = vsel %vm2832, %v3202, %v3203
      %v3205 = vrot.slane %v3203, 2
      %v3206 = vrot.slane %v2819, 7
      %v3207 = vsel %vm2832, %v3205, %v3206
      %v3208 = vrot.slane %v2820, 7
      %v3209 = vrot.slane %v3208, 2
      %v3210 = vrot.slane %v2679, 7
      %v3211 = vsel %vm2832, %v3209, %v3210
      %v3212 = vrot.slane %v3210, 2
      %v3213 = vrot.slane %v2821, 7
      %v3214 = vsel %vm2832, %v3212, %v3213
      %v3215 = vrot.slane %v3213, 2
      %v3216 = vrot.slane %v2822, 7
      %v3217 = vsel %vm2832, %v3215, %v3216
      %v3218 = vrot.slane %v3216, 2
      %v3219 = vrot.slane %v2823, 7
      %v3220 = vsel %vm2832, %v3218, %v3219
      %v3221 = vrot.slane %v3219, 2
      %v3222 = vrot.slane %v2681, 7
      %v3223 = vsel %vm2832, %v3221, %v3222
      %v3224 = vrot.slane %v3222, 2
      %v3225 = vrot.slane %v2824, 7
      %v3226 = vsel %vm2832, %v3224, %v3225
      %v3227 = vrot.slane %v3225, 2
      %v3228 = vrot.slane %v2825, 7
      %v3229 = vsel %vm2832, %v3227, %v3228
      %v3230 = vrot.slane %v3228, 2
      %v3231 = vrot.slane %v2826, 7
      %v3232 = vsel %vm2832, %v3230, %v3231
      %v3361 = vadd.f32 %v2065, %v2836
      %v3362 = vadd.f32 %v2066, %v2839
      %v3363 = vadd.f32 %v2067, %v2842
      %v3364 = vadd.f32 %v2068, %v2845
      %v3365 = vadd.f32 %v2069, %v2848
      %v3366 = vadd.f32 %v2070, %v2851
      %v3367 = vadd.f32 %v2071, %v2854
      %v3368 = vadd.f32 %v2072, %v2857
      %v3369 = vadd.f32 %v2073, %v2861
      %v3370 = vadd.f32 %v2074, %v2864
      %v3371 = vadd.f32 %v2075, %v2867
      %v3372 = vadd.f32 %v2076, %v2870
      %v3373 = vadd.f32 %v2077, %v2873
      %v3374 = vadd.f32 %v2078, %v2876
      %v3375 = vadd.f32 %v2079, %v2879
      %v3376 = vadd.f32 %v2080, %v2882
      %v3377 = vadd.f32 %v2081, %v2886
      %v3378 = vadd.f32 %v2082, %v2889
      %v3379 = vadd.f32 %v2083, %v2892
      %v3380 = vadd.f32 %v2084, %v2895
      %v3381 = vadd.f32 %v2085, %v2898
      %v3382 = vadd.f32 %v2086, %v2901
      %v3383 = vadd.f32 %v2087, %v2904
      %v3384 = vadd.f32 %v2088, %v2907
      %v3385 = vadd.f32 %v2089, %v2911
      %v3386 = vadd.f32 %v2090, %v2914
      %v3387 = vadd.f32 %v2091, %v2917
      %v3388 = vadd.f32 %v2092, %v2920
      %v3389 = vadd.f32 %v2093, %v2923
      %v3390 = vadd.f32 %v2094, %v2926
      %v3391 = vadd.f32 %v2095, %v2929
      %v3392 = vadd.f32 %v2096, %v2932
      %v3393 = vadd.f32 %v2097, %v2936
      %v3394 = vadd.f32 %v2098, %v2939
      %v3395 = vadd.f32 %v2099, %v2942
      %v3396 = vadd.f32 %v2100, %v2945
      %v3397 = vadd.f32 %v2101, %v2948
      %v3398 = vadd.f32 %v2102, %v2951
      %v3399 = vadd.f32 %v2103, %v2954
      %v3400 = vadd.f32 %v2104, %v2957
      %v3401 = vadd.f32 %v2105, %v2961
      %v3402 = vadd.f32 %v2106, %v2964
      %v3403 = vadd.f32 %v2107, %v2967
      %v3404 = vadd.f32 %v2108, %v2970
      %v3405 = vadd.f32 %v2109, %v2973
      %v3406 = vadd.f32 %v2110, %v2976
      %v3407 = vadd.f32 %v2111, %v2979
      %v3408 = vadd.f32 %v2112, %v2982
      %v3409 = vadd.f32 %v2113, %v2986
      %v3410 = vadd.f32 %v2114, %v2989
      %v3411 = vadd.f32 %v2115, %v2992
      %v3412 = vadd.f32 %v2116, %v2995
      %v3413 = vadd.f32 %v2117, %v2998
      %v3414 = vadd.f32 %v2118, %v3001
      %v3415 = vadd.f32 %v2119, %v3004
      %v3416 = vadd.f32 %v2120, %v3007
      %v3417 = vadd.f32 %v2121, %v3011
      %v3418 = vadd.f32 %v2122, %v3014
      %v3419 = vadd.f32 %v2123, %v3017
      %v3420 = vadd.f32 %v2124, %v3020
      %v3421 = vadd.f32 %v2125, %v3023
      %v3422 = vadd.f32 %v2126, %v3026
      %v3423 = vadd.f32 %v2127, %v3029
      %v3424 = vadd.f32 %v2128, %v3032
      %v3425 = vadd.f32 %v2129, %v3036
      %v3426 = vadd.f32 %v2130, %v3039
      %v3427 = vadd.f32 %v2131, %v3042
      %v3428 = vadd.f32 %v2132, %v3045
      %v3429 = vadd.f32 %v2133, %v3048
      %v3430 = vadd.f32 %v2134, %v3051
      %v3431 = vadd.f32 %v2135, %v3054
      %v3432 = vadd.f32 %v2136, %v3057
      %v3433 = vadd.f32 %v2137, %v3061
      %v3434 = vadd.f32 %v2138, %v3064
      %v3435 = vadd.f32 %v2139, %v3067
      %v3436 = vadd.f32 %v2140, %v3070
      %v3437 = vadd.f32 %v2141, %v3073
      %v3438 = vadd.f32 %v2142, %v3076
      %v3439 = vadd.f32 %v2143, %v3079
      %v3440 = vadd.f32 %v2144, %v3082
      %v3441 = vadd.f32 %v2145, %v3086
      %v3442 = vadd.f32 %v2146, %v3089
      %v3443 = vadd.f32 %v2147, %v3092
      %v3444 = vadd.f32 %v2148, %v3095
      %v3445 = vadd.f32 %v2149, %v3098
      %v3446 = vadd.f32 %v2150, %v3101
      %v3447 = vadd.f32 %v2151, %v3104
      %v3448 = vadd.f32 %v2152, %v3107
      %v3449 = vadd.f32 %v2153, %v3111
      %v3450 = vadd.f32 %v2154, %v3114
      %v3451 = vadd.f32 %v2155, %v3117
      %v3452 = vadd.f32 %v2156, %v3120
      %v3453 = vadd.f32 %v2157, %v3123
      %v3454 = vadd.f32 %v2158, %v3126
      %v3455 = vadd.f32 %v2159, %v3129
      %v3456 = vadd.f32 %v2160, %v3132
      %v3457 = vadd.f32 %v2161, %v3136
      %v3458 = vadd.f32 %v2162, %v3139
      %v3459 = vadd.f32 %v2163, %v3142
      %v3460 = vadd.f32 %v2164, %v3145
      %v3461 = vadd.f32 %v2165, %v3148
      %v3462 = vadd.f32 %v2166, %v3151
      %v3463 = vadd.f32 %v2167, %v3154
      %v3464 = vadd.f32 %v2168, %v3157
      %v3465 = vadd.f32 %v2169, %v3161
      %v3466 = vadd.f32 %v2170, %v3164
      %v3467 = vadd.f32 %v2171, %v3167
      %v3468 = vadd.f32 %v2172, %v3170
      %v3469 = vadd.f32 %v2173, %v3173
      %v3470 = vadd.f32 %v2174, %v3176
      %v3471 = vadd.f32 %v2175, %v3179
      %v3472 = vadd.f32 %v2176, %v3182
      %v3473 = vadd.f32 %v2177, %v3186
      %v3474 = vadd.f32 %v2178, %v3189
      %v3475 = vadd.f32 %v2179, %v3192
      %v3476 = vadd.f32 %v2180, %v3195
      %v3477 = vadd.f32 %v2181, %v3198
      %v3478 = vadd.f32 %v2182, %v3201
      %v3479 = vadd.f32 %v2183, %v3204
      %v3480 = vadd.f32 %v2184, %v3207
      %v3481 = vadd.f32 %v2185, %v3211
      %v3482 = vadd.f32 %v2186, %v3214
      %v3483 = vadd.f32 %v2187, %v3217
      %v3484 = vadd.f32 %v2188, %v3220
      %v3485 = vadd.f32 %v2189, %v3223
      %v3486 = vadd.f32 %v2190, %v3226
      %v3487 = vadd.f32 %v2191, %v3229
      %v3488 = vadd.f32 %v2192, %v3232
      %s3489 = scalar_lea.vmem %s1, 384
      %v3490 = vld [vmem:[%s3489] sm:$0xf]
      %v3491 = vld [vmem:[%s3489 + $0x4] sm:$0xf]
      %v3492 = vld [vmem:[%s3489 + $0x8] sm:$0xf]
      %v3493 = vld [vmem:[%s3489 + $0xc] sm:$0xf]
      %v3494 = vld [vmem:[%s3489 + $0x10] sm:$0xf]
      %v3495 = vld [vmem:[%s3489 + $0x14] sm:$0xf]
      %v3496 = vld [vmem:[%s3489 + $0x18] sm:$0xf]
      %v3497 = vld [vmem:[%s3489 + $0x1c] sm:$0xf]
      %v3498 = vld [vmem:[%s3489 + $0x20] sm:$0xf]
      %v3499 = vld [vmem:[%s3489 + $0x24] sm:$0xf]
      %v3500 = vld [vmem:[%s3489 + $0x28] sm:$0xf]
      %v3501 = vld [vmem:[%s3489 + $0x2c] sm:$0xf]
      %v3502 = vld [vmem:[%s3489 + $0x30] sm:$0xf]
      %v3503 = vld [vmem:[%s3489 + $0x34] sm:$0xf]
      %v3504 = vld [vmem:[%s3489 + $0x38] sm:$0xf]
      %v3505 = vld [vmem:[%s3489 + $0x3c] sm:$0xf]
      %v3506 = vld [vmem:[%s3489 + $0x40] sm:$0xf]
      %v3507 = vld [vmem:[%s3489 + $0x44] sm:$0xf]
      %v3508 = vld [vmem:[%s3489 + $0x48] sm:$0xf]
      %v3509 = vld [vmem:[%s3489 + $0x4c] sm:$0xf]
      %v3510 = vld [vmem:[%s3489 + $0x50] sm:$0xf]
      %v3511 = vld [vmem:[%s3489 + $0x54] sm:$0xf]
      %v3512 = vld [vmem:[%s3489 + $0x58] sm:$0xf]
      %v3513 = vld [vmem:[%s3489 + $0x5c] sm:$0xf]
      %v3514 = vld [vmem:[%s3489 + $0x60] sm:$0xf]
      %v3515 = vld [vmem:[%s3489 + $0x64] sm:$0xf]
      %v3516 = vld [vmem:[%s3489 + $0x68] sm:$0xf]
      %v3517 = vld [vmem:[%s3489 + $0x6c] sm:$0xf]
      %v3518 = vld [vmem:[%s3489 + $0x70] sm:$0xf]
      %v3519 = vld [vmem:[%s3489 + $0x74] sm:$0xf]
      %v3520 = vld [vmem:[%s3489 + $0x78] sm:$0xf]
      %v3521 = vld [vmem:[%s3489 + $0x7c] sm:$0xf]
      %v3522 = vld [vmem:[%s3489 + $0x80] sm:$0xf]
      %v3523 = vld [vmem:[%s3489 + $0x84] sm:$0xf]
      %v3524 = vld [vmem:[%s3489 + $0x88] sm:$0xf]
      %v3525 = vld [vmem:[%s3489 + $0x8c] sm:$0xf]
      %v3526 = vld [vmem:[%s3489 + $0x90] sm:$0xf]
      %v3527 = vld [vmem:[%s3489 + $0x94] sm:$0xf]
      %v3528 = vld [vmem:[%s3489 + $0x98] sm:$0xf]
      %v3529 = vld [vmem:[%s3489 + $0x9c] sm:$0xf]
      %v3530 = vld [vmem:[%s3489 + $0xa0] sm:$0xf]
      %v3531 = vld [vmem:[%s3489 + $0xa4] sm:$0xf]
      %v3532 = vld [vmem:[%s3489 + $0xa8] sm:$0xf]
      %v3533 = vld [vmem:[%s3489 + $0xac] sm:$0xf]
      %v3534 = vld [vmem:[%s3489 + $0xb0] sm:$0xf]
      %v3535 = vld [vmem:[%s3489 + $0xb4] sm:$0xf]
      %v3536 = vld [vmem:[%s3489 + $0xb8] sm:$0xf]
      %v3537 = vld [vmem:[%s3489 + $0xbc] sm:$0xf]
      %v3586 = vunpack.c.l.b16 %v3490
      %v3587 = vunpack.c.l.b16 %v3491
      %v3588 = vunpack.c.l.b16 %v3492
      %v3589 = vunpack.c.l.b16 %v3493
      %v3590 = vunpack.c.l.b16 %v3494
      %v3591 = vunpack.c.l.b16 %v3495
      %v3592 = vunpack.c.l.b16 %v3496
      %v3593 = vunpack.c.l.b16 %v3497
      %v3594 = vunpack.c.l.b16 %v3498
      %v3595 = vunpack.c.l.b16 %v3499
      %v3596 = vunpack.c.l.b16 %v3500
      %v3597 = vunpack.c.l.b16 %v3501
      %v3598 = vunpack.c.l.b16 %v3502
      %v3599 = vunpack.c.l.b16 %v3503
      %v3600 = vunpack.c.l.b16 %v3504
      %v3601 = vunpack.c.l.b16 %v3505
      %v3602 = vunpack.c.l.b16 %v3506
      %v3603 = vunpack.c.l.b16 %v3507
      %v3604 = vunpack.c.l.b16 %v3508
      %v3605 = vunpack.c.l.b16 %v3509
      %v3606 = vunpack.c.l.b16 %v3510
      %v3607 = vunpack.c.l.b16 %v3511
      %v3608 = vunpack.c.l.b16 %v3512
      %v3609 = vunpack.c.l.b16 %v3513
      %v3610 = vunpack.c.l.b16 %v3514
      %v3611 = vunpack.c.l.b16 %v3515
      %v3612 = vunpack.c.l.b16 %v3516
      %v3613 = vunpack.c.l.b16 %v3517
      %v3614 = vunpack.c.l.b16 %v3518
      %v3615 = vunpack.c.l.b16 %v3519
      %v3616 = vunpack.c.l.b16 %v3520
      %v3617 = vunpack.c.l.b16 %v3521
      %v3618 = vunpack.c.l.b16 %v3522
      %v3619 = vunpack.c.l.b16 %v3523
      %v3620 = vunpack.c.l.b16 %v3524
      %v3621 = vunpack.c.l.b16 %v3525
      %v3622 = vunpack.c.l.b16 %v3526
      %v3623 = vunpack.c.l.b16 %v3527
      %v3624 = vunpack.c.l.b16 %v3528
      %v3625 = vunpack.c.l.b16 %v3529
      %v3626 = vunpack.c.l.b16 %v3530
      %v3627 = vunpack.c.l.b16 %v3531
      %v3628 = vunpack.c.l.b16 %v3532
      %v3629 = vunpack.c.l.b16 %v3533
      %v3630 = vunpack.c.l.b16 %v3534
      %v3631 = vunpack.c.l.b16 %v3535
      %v3632 = vunpack.c.l.b16 %v3536
      %v3633 = vunpack.c.l.b16 %v3537
      %v3634 = vpack.c.b16 %v3587, %v3586
      %v3635 = vpack.c.b16 %v3589, %v3588
      %v3636 = vpack.c.b16 %v3591, %v3590
      %v3637 = vpack.c.b16 %v3593, %v3592
      %v3638 = vpack.c.b16 %v3595, %v3594
      %v3639 = vpack.c.b16 %v3597, %v3596
      %v3640 = vpack.c.b16 %v3599, %v3598
      %v3641 = vpack.c.b16 %v3601, %v3600
      %v3642 = vpack.c.b16 %v3603, %v3602
      %v3643 = vpack.c.b16 %v3605, %v3604
      %v3644 = vpack.c.b16 %v3607, %v3606
      %v3645 = vpack.c.b16 %v3609, %v3608
      %v3646 = vpack.c.b16 %v3611, %v3610
      %v3647 = vpack.c.b16 %v3613, %v3612
      %v3648 = vpack.c.b16 %v3615, %v3614
      %v3649 = vpack.c.b16 %v3617, %v3616
      %v3650 = vpack.c.b16 %v3619, %v3618
      %v3651 = vpack.c.b16 %v3621, %v3620
      %v3652 = vpack.c.b16 %v3623, %v3622
      %v3653 = vpack.c.b16 %v3625, %v3624
      %v3654 = vpack.c.b16 %v3627, %v3626
      %v3655 = vpack.c.b16 %v3629, %v3628
      %v3656 = vpack.c.b16 %v3631, %v3630
      %v3657 = vpack.c.b16 %v3633, %v3632
      %3682 = vmatpush.bf16.msra.mxu0 %v3641
      %3683 = vmatpush.bf16.msra.mxu0 %v3640
      %3684 = vmatpush.bf16.msra.mxu0 %v3639
      %3685 = vmatpush.bf16.msra.mxu0 %v3638
      %3686 = vmatpush.bf16.msra.mxu0 %v3637
      %3687 = vmatpush.bf16.msra.mxu0 %v3636
      %3688 = vmatpush.bf16.msra.mxu0 %v3635
      %3689 = vmatpush.bf16.msra.mxu0 %v3634
      %3690 = vmatmul.bf16.gmra.mxu0 %v1294
      %v3691 = vpop.f32.mrf.mxu0
      %v3692 = vadd.f32 0.0, %v3691
      %v3693 = vpop.f32.mrf.mxu0
      %v3694 = vadd.f32 0.0, %v3693
      %3695 = vmatmul.bf16.gmra.mxu0 %v1297
      %v3696 = vpop.f32.mrf.mxu0
      %v3697 = vadd.f32 0.0, %v3696
      %v3698 = vpop.f32.mrf.mxu0
      %v3699 = vadd.f32 0.0, %v3698
      %3700 = vmatmul.bf16.gmra.mxu0 %v1300
      %v3701 = vpop.f32.mrf.mxu0
      %v3702 = vadd.f32 0.0, %v3701
      %v3703 = vpop.f32.mrf.mxu0
      %v3704 = vadd.f32 0.0, %v3703
      %3705 = vmatmul.bf16.gmra.mxu0 %v1303
      %v3706 = vpop.f32.mrf.mxu0
      %v3707 = vadd.f32 0.0, %v3706
      %v3708 = vpop.f32.mrf.mxu0
      %v3709 = vadd.f32 0.0, %v3708
      %3710 = vmatmul.bf16.gmra.mxu0 %v1306
      %v3711 = vpop.f32.mrf.mxu0
      %v3712 = vadd.f32 0.0, %v3711
      %v3713 = vpop.f32.mrf.mxu0
      %v3714 = vadd.f32 0.0, %v3713
      %3715 = vmatmul.bf16.gmra.mxu0 %v1309
      %v3716 = vpop.f32.mrf.mxu0
      %v3717 = vadd.f32 0.0, %v3716
      %v3718 = vpop.f32.mrf.mxu0
      %v3719 = vadd.f32 0.0, %v3718
      %3720 = vmatmul.bf16.gmra.mxu0 %v1312
      %v3721 = vpop.f32.mrf.mxu0
      %v3722 = vadd.f32 0.0, %v3721
      %v3723 = vpop.f32.mrf.mxu0
      %v3724 = vadd.f32 0.0, %v3723
      %3725 = vmatmul.bf16.gmra.mxu0 %v1315
      %v3726 = vpop.f32.mrf.mxu0
      %v3727 = vadd.f32 0.0, %v3726
      %v3728 = vpop.f32.mrf.mxu0
      %v3729 = vadd.f32 0.0, %v3728
      %3730 = vmatmul.bf16.gmra.mxu0 %v1318
      %v3731 = vpop.f32.mrf.mxu0
      %v3732 = vadd.f32 0.0, %v3731
      %v3733 = vpop.f32.mrf.mxu0
      %v3734 = vadd.f32 0.0, %v3733
      %3735 = vmatmul.bf16.gmra.mxu0 %v1321
      %v3736 = vpop.f32.mrf.mxu0
      %v3737 = vadd.f32 0.0, %v3736
      %v3738 = vpop.f32.mrf.mxu0
      %v3739 = vadd.f32 0.0, %v3738
      %3740 = vmatmul.bf16.gmra.mxu0 %v1324
      %v3741 = vpop.f32.mrf.mxu0
      %v3742 = vadd.f32 0.0, %v3741
      %v3743 = vpop.f32.mrf.mxu0
      %v3744 = vadd.f32 0.0, %v3743
      %3745 = vmatmul.bf16.gmra.mxu0 %v1327
      %v3746 = vpop.f32.mrf.mxu0
      %v3747 = vadd.f32 0.0, %v3746
      %v3748 = vpop.f32.mrf.mxu0
      %v3749 = vadd.f32 0.0, %v3748
      %3750 = vmatmul.bf16.gmra.mxu0 %v1330
      %v3751 = vpop.f32.mrf.mxu0
      %v3752 = vadd.f32 0.0, %v3751
      %v3753 = vpop.f32.mrf.mxu0
      %v3754 = vadd.f32 0.0, %v3753
      %3755 = vmatmul.bf16.gmra.mxu0 %v1333
      %v3756 = vpop.f32.mrf.mxu0
      %v3757 = vadd.f32 0.0, %v3756
      %v3758 = vpop.f32.mrf.mxu0
      %v3759 = vadd.f32 0.0, %v3758
      %3760 = vmatmul.bf16.gmra.mxu0 %v1336
      %v3761 = vpop.f32.mrf.mxu0
      %v3762 = vadd.f32 0.0, %v3761
      %v3763 = vpop.f32.mrf.mxu0
      %v3764 = vadd.f32 0.0, %v3763
      %3765 = vmatmul.bf16.gmra.mxu0 %v1339
      %v3766 = vpop.f32.mrf.mxu0
      %v3767 = vadd.f32 0.0, %v3766
      %v3768 = vpop.f32.mrf.mxu0
      %v3769 = vadd.f32 0.0, %v3768
      %3770 = vmatmul.bf16.gmra.mxu0 %v1342
      %v3771 = vpop.f32.mrf.mxu0
      %v3772 = vadd.f32 0.0, %v3771
      %v3773 = vpop.f32.mrf.mxu0
      %v3774 = vadd.f32 0.0, %v3773
      %3775 = vmatmul.bf16.gmra.mxu0 %v1345
      %v3776 = vpop.f32.mrf.mxu0
      %v3777 = vadd.f32 0.0, %v3776
      %v3778 = vpop.f32.mrf.mxu0
      %v3779 = vadd.f32 0.0, %v3778
      %3780 = vdwg.mxu0
      %3781 = vmatpush.bf16.msra.mxu0 %v3649
      %3782 = vmatpush.bf16.msra.mxu0 %v3648
      %3783 = vmatpush.bf16.msra.mxu0 %v3647
      %3784 = vmatpush.bf16.msra.mxu0 %v3646
      %3785 = vmatpush.bf16.msra.mxu0 %v3645
      %3786 = vmatpush.bf16.msra.mxu0 %v3644
      %3787 = vmatpush.bf16.msra.mxu0 %v3643
      %3788 = vmatpush.bf16.msra.mxu0 %v3642
      %3789 = vmatmul.bf16.gmra.mxu0 %v1295
      %v3790 = vpop.f32.mrf.mxu0
      %v3791 = vadd.f32 %v3692, %v3790
      %v3792 = vpop.f32.mrf.mxu0
      %v3793 = vadd.f32 %v3694, %v3792
      %3794 = vmatmul.bf16.gmra.mxu0 %v1298
      %v3795 = vpop.f32.mrf.mxu0
      %v3796 = vadd.f32 %v3697, %v3795
      %v3797 = vpop.f32.mrf.mxu0
      %v3798 = vadd.f32 %v3699, %v3797
      %3799 = vmatmul.bf16.gmra.mxu0 %v1301
      %v3800 = vpop.f32.mrf.mxu0
      %v3801 = vadd.f32 %v3702, %v3800
      %v3802 = vpop.f32.mrf.mxu0
      %v3803 = vadd.f32 %v3704, %v3802
      %3804 = vmatmul.bf16.gmra.mxu0 %v1304
      %v3805 = vpop.f32.mrf.mxu0
      %v3806 = vadd.f32 %v3707, %v3805
      %v3807 = vpop.f32.mrf.mxu0
      %v3808 = vadd.f32 %v3709, %v3807
      %3809 = vmatmul.bf16.gmra.mxu0 %v1307
      %v3810 = vpop.f32.mrf.mxu0
      %v3811 = vadd.f32 %v3712, %v3810
      %v3812 = vpop.f32.mrf.mxu0
      %v3813 = vadd.f32 %v3714, %v3812
      %3814 = vmatmul.bf16.gmra.mxu0 %v1310
      %v3815 = vpop.f32.mrf.mxu0
      %v3816 = vadd.f32 %v3717, %v3815
      %v3817 = vpop.f32.mrf.mxu0
      %v3818 = vadd.f32 %v3719, %v3817
      %3819 = vmatmul.bf16.gmra.mxu0 %v1313
      %v3820 = vpop.f32.mrf.mxu0
      %v3821 = vadd.f32 %v3722, %v3820
      %v3822 = vpop.f32.mrf.mxu0
      %v3823 = vadd.f32 %v3724, %v3822
      %3824 = vmatmul.bf16.gmra.mxu0 %v1316
      %v3825 = vpop.f32.mrf.mxu0
      %v3826 = vadd.f32 %v3727, %v3825
      %v3827 = vpop.f32.mrf.mxu0
      %v3828 = vadd.f32 %v3729, %v3827
      %3829 = vmatmul.bf16.gmra.mxu0 %v1319
      %v3830 = vpop.f32.mrf.mxu0
      %v3831 = vadd.f32 %v3732, %v3830
      %v3832 = vpop.f32.mrf.mxu0
      %v3833 = vadd.f32 %v3734, %v3832
      %3834 = vmatmul.bf16.gmra.mxu0 %v1322
      %v3835 = vpop.f32.mrf.mxu0
      %v3836 = vadd.f32 %v3737, %v3835
      %v3837 = vpop.f32.mrf.mxu0
      %v3838 = vadd.f32 %v3739, %v3837
      %3839 = vmatmul.bf16.gmra.mxu0 %v1325
      %v3840 = vpop.f32.mrf.mxu0
      %v3841 = vadd.f32 %v3742, %v3840
      %v3842 = vpop.f32.mrf.mxu0
      %v3843 = vadd.f32 %v3744, %v3842
      %3844 = vmatmul.bf16.gmra.mxu0 %v1328
      %v3845 = vpop.f32.mrf.mxu0
      %v3846 = vadd.f32 %v3747, %v3845
      %v3847 = vpop.f32.mrf.mxu0
      %v3848 = vadd.f32 %v3749, %v3847
      %3849 = vmatmul.bf16.gmra.mxu0 %v1331
      %v3850 = vpop.f32.mrf.mxu0
      %v3851 = vadd.f32 %v3752, %v3850
      %v3852 = vpop.f32.mrf.mxu0
      %v3853 = vadd.f32 %v3754, %v3852
      %3854 = vmatmul.bf16.gmra.mxu0 %v1334
      %v3855 = vpop.f32.mrf.mxu0
      %v3856 = vadd.f32 %v3757, %v3855
      %v3857 = vpop.f32.mrf.mxu0
      %v3858 = vadd.f32 %v3759, %v3857
      %3859 = vmatmul.bf16.gmra.mxu0 %v1337
      %v3860 = vpop.f32.mrf.mxu0
      %v3861 = vadd.f32 %v3762, %v3860
      %v3862 = vpop.f32.mrf.mxu0
      %v3863 = vadd.f32 %v3764, %v3862
      %3864 = vmatmul.bf16.gmra.mxu0 %v1340
      %v3865 = vpop.f32.mrf.mxu0
      %v3866 = vadd.f32 %v3767, %v3865
      %v3867 = vpop.f32.mrf.mxu0
      %v3868 = vadd.f32 %v3769, %v3867
      %3869 = vmatmul.bf16.gmra.mxu0 %v1343
      %v3870 = vpop.f32.mrf.mxu0
      %v3871 = vadd.f32 %v3772, %v3870
      %v3872 = vpop.f32.mrf.mxu0
      %v3873 = vadd.f32 %v3774, %v3872
      %3874 = vmatmul.bf16.gmra.mxu0 %v1346
      %v3875 = vpop.f32.mrf.mxu0
      %v3876 = vadd.f32 %v3777, %v3875
      %v3877 = vpop.f32.mrf.mxu0
      %v3878 = vadd.f32 %v3779, %v3877
      %3879 = vdwg.mxu0
      %3880 = vmatpush.bf16.msra.mxu0 %v3657
      %3881 = vmatpush.bf16.msra.mxu0 %v3656
      %3882 = vmatpush.bf16.msra.mxu0 %v3655
      %3883 = vmatpush.bf16.msra.mxu0 %v3654
      %3884 = vmatpush.bf16.msra.mxu0 %v3653
      %3885 = vmatpush.bf16.msra.mxu0 %v3652
      %3886 = vmatpush.bf16.msra.mxu0 %v3651
      %3887 = vmatpush.bf16.msra.mxu0 %v3650
      %3888 = vmatmul.bf16.gmra.mxu0 %v1296
      %v3889 = vpop.f32.mrf.mxu0
      %v3890 = vadd.f32 %v3791, %v3889
      %v3891 = vpop.f32.mrf.mxu0
      %v3892 = vadd.f32 %v3793, %v3891
      %3893 = vmatmul.bf16.gmra.mxu0 %v1299
      %v3894 = vpop.f32.mrf.mxu0
      %v3895 = vadd.f32 %v3796, %v3894
      %v3896 = vpop.f32.mrf.mxu0
      %v3897 = vadd.f32 %v3798, %v3896
      %3898 = vmatmul.bf16.gmra.mxu0 %v1302
      %v3899 = vpop.f32.mrf.mxu0
      %v3900 = vadd.f32 %v3801, %v3899
      %v3901 = vpop.f32.mrf.mxu0
      %v3902 = vadd.f32 %v3803, %v3901
      %3903 = vmatmul.bf16.gmra.mxu0 %v1305
      %v3904 = vpop.f32.mrf.mxu0
      %v3905 = vadd.f32 %v3806, %v3904
      %v3906 = vpop.f32.mrf.mxu0
      %v3907 = vadd.f32 %v3808, %v3906
      %3908 = vmatmul.bf16.gmra.mxu0 %v1308
      %v3909 = vpop.f32.mrf.mxu0
      %v3910 = vadd.f32 %v3811, %v3909
      %v3911 = vpop.f32.mrf.mxu0
      %v3912 = vadd.f32 %v3813, %v3911
      %3913 = vmatmul.bf16.gmra.mxu0 %v1311
      %v3914 = vpop.f32.mrf.mxu0
      %v3915 = vadd.f32 %v3816, %v3914
      %v3916 = vpop.f32.mrf.mxu0
      %v3917 = vadd.f32 %v3818, %v3916
      %3918 = vmatmul.bf16.gmra.mxu0 %v1314
      %v3919 = vpop.f32.mrf.mxu0
      %v3920 = vadd.f32 %v3821, %v3919
      %v3921 = vpop.f32.mrf.mxu0
      %v3922 = vadd.f32 %v3823, %v3921
      %3923 = vmatmul.bf16.gmra.mxu0 %v1317
      %v3924 = vpop.f32.mrf.mxu0
      %v3925 = vadd.f32 %v3826, %v3924
      %v3926 = vpop.f32.mrf.mxu0
      %v3927 = vadd.f32 %v3828, %v3926
      %3928 = vmatmul.bf16.gmra.mxu0 %v1320
      %v3929 = vpop.f32.mrf.mxu0
      %v3930 = vadd.f32 %v3831, %v3929
      %v3931 = vpop.f32.mrf.mxu0
      %v3932 = vadd.f32 %v3833, %v3931
      %3933 = vmatmul.bf16.gmra.mxu0 %v1323
      %v3934 = vpop.f32.mrf.mxu0
      %v3935 = vadd.f32 %v3836, %v3934
      %v3936 = vpop.f32.mrf.mxu0
      %v3937 = vadd.f32 %v3838, %v3936
      %3938 = vmatmul.bf16.gmra.mxu0 %v1326
      %v3939 = vpop.f32.mrf.mxu0
      %v3940 = vadd.f32 %v3841, %v3939
      %v3941 = vpop.f32.mrf.mxu0
      %v3942 = vadd.f32 %v3843, %v3941
      %3943 = vmatmul.bf16.gmra.mxu0 %v1329
      %v3944 = vpop.f32.mrf.mxu0
      %v3945 = vadd.f32 %v3846, %v3944
      %v3946 = vpop.f32.mrf.mxu0
      %v3947 = vadd.f32 %v3848, %v3946
      %3948 = vmatmul.bf16.gmra.mxu0 %v1332
      %v3949 = vpop.f32.mrf.mxu0
      %v3950 = vadd.f32 %v3851, %v3949
      %v3951 = vpop.f32.mrf.mxu0
      %v3952 = vadd.f32 %v3853, %v3951
      %3953 = vmatmul.bf16.gmra.mxu0 %v1335
      %v3954 = vpop.f32.mrf.mxu0
      %v3955 = vadd.f32 %v3856, %v3954
      %v3956 = vpop.f32.mrf.mxu0
      %v3957 = vadd.f32 %v3858, %v3956
      %3958 = vmatmul.bf16.gmra.mxu0 %v1338
      %v3959 = vpop.f32.mrf.mxu0
      %v3960 = vadd.f32 %v3861, %v3959
      %v3961 = vpop.f32.mrf.mxu0
      %v3962 = vadd.f32 %v3863, %v3961
      %3963 = vmatmul.bf16.gmra.mxu0 %v1341
      %v3964 = vpop.f32.mrf.mxu0
      %v3965 = vadd.f32 %v3866, %v3964
      %v3966 = vpop.f32.mrf.mxu0
      %v3967 = vadd.f32 %v3868, %v3966
      %3968 = vmatmul.bf16.gmra.mxu0 %v1344
      %v3969 = vpop.f32.mrf.mxu0
      %v3970 = vadd.f32 %v3871, %v3969
      %v3971 = vpop.f32.mrf.mxu0
      %v3972 = vadd.f32 %v3873, %v3971
      %3973 = vmatmul.bf16.gmra.mxu0 %v1347
      %v3974 = vpop.f32.mrf.mxu0
      %v3975 = vadd.f32 %v3876, %v3974
      %v3976 = vpop.f32.mrf.mxu0
      %v3977 = vadd.f32 %v3878, %v3976
      %3978 = vdwg.mxu0
      %v4015 = vrot.slane %v3890, 2
      %v4016 = vrot.slane %v3890, 4
      %v4017 = vrot.slane %v3890, 6
      %v4018 = vrot.slane %v3892, 2
      %v4019 = vrot.slane %v3892, 4
      %v4020 = vrot.slane %v3892, 6
      %v4021 = vrot.slane %v3895, 4
      %v4022 = vrot.slane %v3895, 6
      %v4023 = vrot.slane %v3897, 2
      %v4024 = vrot.slane %v3897, 4
      %v4025 = vrot.slane %v3897, 6
      %v4026 = vrot.slane %v3900, 2
      %v4027 = vrot.slane %v3900, 6
      %v4028 = vrot.slane %v3902, 2
      %v4029 = vrot.slane %v3902, 4
      %v4030 = vrot.slane %v3902, 6
      %v4031 = vrot.slane %v3905, 2
      %v4032 = vrot.slane %v3905, 4
      %v4033 = vrot.slane %v3907, 2
      %v4034 = vrot.slane %v3907, 4
      %v4035 = vrot.slane %v3907, 6
      %v4036 = vrot.slane %v3910, 2
      %v4037 = vrot.slane %v3910, 4
      %v4038 = vrot.slane %v3910, 6
      %v4039 = vrot.slane %v3912, 2
      %v4040 = vrot.slane %v3912, 4
      %v4041 = vrot.slane %v3912, 6
      %v4042 = vrot.slane %v3915, 2
      %v4043 = vrot.slane %v3915, 4
      %v4044 = vrot.slane %v3915, 6
      %v4045 = vrot.slane %v3917, 4
      %v4046 = vrot.slane %v3917, 6
      %v4047 = vrot.slane %v3920, 2
      %v4048 = vrot.slane %v3920, 4
      %v4049 = vrot.slane %v3920, 6
      %v4050 = vrot.slane %v3922, 2
      %v4051 = vrot.slane %v3922, 6
      %v4052 = vrot.slane %v3925, 2
      %v4053 = vrot.slane %v3925, 4
      %v4054 = vrot.slane %v3925, 6
      %v4055 = vrot.slane %v3927, 2
      %v4056 = vrot.slane %v3927, 4
      %v4057 = vrot.slane %v3930, 2
      %v4058 = vrot.slane %v3930, 4
      %v4059 = vrot.slane %v3930, 6
      %v4060 = vrot.slane %v3932, 2
      %v4061 = vrot.slane %v3932, 4
      %v4062 = vrot.slane %v3932, 6
      %v4063 = vrot.slane %v3935, 2
      %v4064 = vrot.slane %v3935, 4
      %v4065 = vrot.slane %v3935, 6
      %v4066 = vrot.slane %v3937, 2
      %v4067 = vrot.slane %v3937, 4
      %v4068 = vrot.slane %v3937, 6
      %v4069 = vrot.slane %v3940, 4
      %v4070 = vrot.slane %v3940, 6
      %v4071 = vrot.slane %v3942, 2
      %v4072 = vrot.slane %v3942, 4
      %v4073 = vrot.slane %v3942, 6
      %v4074 = vrot.slane %v3945, 2
      %v4075 = vrot.slane %v3945, 6
      %v4076 = vrot.slane %v3947, 2
      %v4077 = vrot.slane %v3947, 4
      %v4078 = vrot.slane %v3947, 6
      %v4079 = vrot.slane %v3950, 2
      %v4080 = vrot.slane %v3950, 4
      %v4081 = vrot.slane %v3952, 2
      %v4082 = vrot.slane %v3952, 4
      %v4083 = vrot.slane %v3952, 6
      %v4084 = vrot.slane %v3955, 2
      %v4085 = vrot.slane %v3955, 4
      %v4086 = vrot.slane %v3955, 6
      %v4087 = vrot.slane %v3957, 2
      %v4088 = vrot.slane %v3957, 4
      %v4089 = vrot.slane %v3957, 6
      %v4090 = vrot.slane %v3960, 2
      %v4091 = vrot.slane %v3960, 4
      %v4092 = vrot.slane %v3960, 6
      %v4093 = vrot.slane %v3962, 4
      %v4094 = vrot.slane %v3962, 6
      %v4095 = vrot.slane %v3965, 2
      %v4096 = vrot.slane %v3965, 4
      %v4097 = vrot.slane %v3965, 6
      %v4098 = vrot.slane %v3967, 2
      %v4099 = vrot.slane %v3967, 6
      %v4100 = vrot.slane %v3970, 2
      %v4101 = vrot.slane %v3970, 4
      %v4102 = vrot.slane %v3970, 6
      %v4103 = vrot.slane %v3972, 2
      %v4104 = vrot.slane %v3972, 4
      %v4105 = vrot.slane %v3975, 2
      %v4106 = vrot.slane %v3975, 4
      %v4107 = vrot.slane %v3975, 6
      %v4108 = vrot.slane %v3977, 2
      %v4109 = vrot.slane %v3977, 4
      %v4110 = vrot.slane %v3977, 6
      %v4207 = vadd.f32 %v3361, %v4015
      %v4208 = vadd.f32 %v3362, %v4016
      %v4209 = vadd.f32 %v3363, %v4017
      %v4210 = vadd.f32 %v3364, %v3892
      %v4211 = vadd.f32 %v3365, %v4018
      %v4212 = vadd.f32 %v3366, %v4019
      %v4213 = vadd.f32 %v3367, %v4020
      %v4214 = vadd.f32 %v3368, %v3895
      %v4215 = vadd.f32 %v3369, %v4021
      %v4216 = vadd.f32 %v3370, %v4022
      %v4217 = vadd.f32 %v3371, %v3897
      %v4218 = vadd.f32 %v3372, %v4023
      %v4219 = vadd.f32 %v3373, %v4024
      %v4220 = vadd.f32 %v3374, %v4025
      %v4221 = vadd.f32 %v3375, %v3900
      %v4222 = vadd.f32 %v3376, %v4026
      %v4223 = vadd.f32 %v3377, %v4027
      %v4224 = vadd.f32 %v3378, %v3902
      %v4225 = vadd.f32 %v3379, %v4028
      %v4226 = vadd.f32 %v3380, %v4029
      %v4227 = vadd.f32 %v3381, %v4030
      %v4228 = vadd.f32 %v3382, %v3905
      %v4229 = vadd.f32 %v3383, %v4031
      %v4230 = vadd.f32 %v3384, %v4032
      %v4231 = vadd.f32 %v3385, %v3907
      %v4232 = vadd.f32 %v3386, %v4033
      %v4233 = vadd.f32 %v3387, %v4034
      %v4234 = vadd.f32 %v3388, %v4035
      %v4235 = vadd.f32 %v3389, %v3910
      %v4236 = vadd.f32 %v3390, %v4036
      %v4237 = vadd.f32 %v3391, %v4037
      %v4238 = vadd.f32 %v3392, %v4038
      %v4239 = vadd.f32 %v3393, %v4039
      %v4240 = vadd.f32 %v3394, %v4040
      %v4241 = vadd.f32 %v3395, %v4041
      %v4242 = vadd.f32 %v3396, %v3915
      %v4243 = vadd.f32 %v3397, %v4042
      %v4244 = vadd.f32 %v3398, %v4043
      %v4245 = vadd.f32 %v3399, %v4044
      %v4246 = vadd.f32 %v3400, %v3917
      %v4247 = vadd.f32 %v3401, %v4045
      %v4248 = vadd.f32 %v3402, %v4046
      %v4249 = vadd.f32 %v3403, %v3920
      %v4250 = vadd.f32 %v3404, %v4047
      %v4251 = vadd.f32 %v3405, %v4048
      %v4252 = vadd.f32 %v3406, %v4049
      %v4253 = vadd.f32 %v3407, %v3922
      %v4254 = vadd.f32 %v3408, %v4050
      %v4255 = vadd.f32 %v3409, %v4051
      %v4256 = vadd.f32 %v3410, %v3925
      %v4257 = vadd.f32 %v3411, %v4052
      %v4258 = vadd.f32 %v3412, %v4053
      %v4259 = vadd.f32 %v3413, %v4054
      %v4260 = vadd.f32 %v3414, %v3927
      %v4261 = vadd.f32 %v3415, %v4055
      %v4262 = vadd.f32 %v3416, %v4056
      %v4263 = vadd.f32 %v3417, %v3930
      %v4264 = vadd.f32 %v3418, %v4057
      %v4265 = vadd.f32 %v3419, %v4058
      %v4266 = vadd.f32 %v3420, %v4059
      %v4267 = vadd.f32 %v3421, %v3932
      %v4268 = vadd.f32 %v3422, %v4060
      %v4269 = vadd.f32 %v3423, %v4061
      %v4270 = vadd.f32 %v3424, %v4062
      %v4271 = vadd.f32 %v3425, %v4063
      %v4272 = vadd.f32 %v3426, %v4064
      %v4273 = vadd.f32 %v3427, %v4065
      %v4274 = vadd.f32 %v3428, %v3937
      %v4275 = vadd.f32 %v3429, %v4066
      %v4276 = vadd.f32 %v3430, %v4067
      %v4277 = vadd.f32 %v3431, %v4068
      %v4278 = vadd.f32 %v3432, %v3940
      %v4279 = vadd.f32 %v3433, %v4069
      %v4280 = vadd.f32 %v3434, %v4070
      %v4281 = vadd.f32 %v3435, %v3942
      %v4282 = vadd.f32 %v3436, %v4071
      %v4283 = vadd.f32 %v3437, %v4072
      %v4284 = vadd.f32 %v3438, %v4073
      %v4285 = vadd.f32 %v3439, %v3945
      %v4286 = vadd.f32 %v3440, %v4074
      %v4287 = vadd.f32 %v3441, %v4075
      %v4288 = vadd.f32 %v3442, %v3947
      %v4289 = vadd.f32 %v3443, %v4076
      %v4290 = vadd.f32 %v3444, %v4077
      %v4291 = vadd.f32 %v3445, %v4078
      %v4292 = vadd.f32 %v3446, %v3950
      %v4293 = vadd.f32 %v3447, %v4079
      %v4294 = vadd.f32 %v3448, %v4080
      %v4295 = vadd.f32 %v3449, %v3952
      %v4296 = vadd.f32 %v3450, %v4081
      %v4297 = vadd.f32 %v3451, %v4082
      %v4298 = vadd.f32 %v3452, %v4083
      %v4299 = vadd.f32 %v3453, %v3955
      %v4300 = vadd.f32 %v3454, %v4084
      %v4301 = vadd.f32 %v3455, %v4085
      %v4302 = vadd.f32 %v3456, %v4086
      %v4303 = vadd.f32 %v3457, %v4087
      %v4304 = vadd.f32 %v3458, %v4088
      %v4305 = vadd.f32 %v3459, %v4089
      %v4306 = vadd.f32 %v3460, %v3960
      %v4307 = vadd.f32 %v3461, %v4090
      %v4308 = vadd.f32 %v3462, %v4091
      %v4309 = vadd.f32 %v3463, %v4092
      %v4310 = vadd.f32 %v3464, %v3962
      %v4311 = vadd.f32 %v3465, %v4093
      %v4312 = vadd.f32 %v3466, %v4094
      %v4313 = vadd.f32 %v3467, %v3965
      %v4314 = vadd.f32 %v3468, %v4095
      %v4315 = vadd.f32 %v3469, %v4096
      %v4316 = vadd.f32 %v3470, %v4097
      %v4317 = vadd.f32 %v3471, %v3967
      %v4318 = vadd.f32 %v3472, %v4098
      %v4319 = vadd.f32 %v3473, %v4099
      %v4320 = vadd.f32 %v3474, %v3970
      %v4321 = vadd.f32 %v3475, %v4100
      %v4322 = vadd.f32 %v3476, %v4101
      %v4323 = vadd.f32 %v3477, %v4102
      %v4324 = vadd.f32 %v3478, %v3972
      %v4325 = vadd.f32 %v3479, %v4103
      %v4326 = vadd.f32 %v3480, %v4104
      %v4327 = vadd.f32 %v3481, %v3975
      %v4328 = vadd.f32 %v3482, %v4105
      %v4329 = vadd.f32 %v3483, %v4106
      %v4330 = vadd.f32 %v3484, %v4107
      %v4331 = vadd.f32 %v3485, %v3977
      %v4332 = vadd.f32 %v3486, %v4108
      %v4333 = vadd.f32 %v3487, %v4109
      %v4334 = vadd.f32 %v3488, %v4110
      %4463 = vst [vmem:[#allocation1] ss:$4 sm:$0xff] %v4207
      %s4464 = scalar_lea.vmem [#allocation1], 1
      %4465 = vst [vmem:[%s4464] ss:$4 sm:$0xff] %v4208
      %s4466 = scalar_lea.vmem [#allocation1], 2
      %4467 = vst [vmem:[%s4466] ss:$4 sm:$0xff] %v4209
      %s4468 = scalar_lea.vmem [#allocation1], 3
      %4469 = vst [vmem:[%s4468] ss:$4 sm:$0xff] %v4210
      %s4470 = scalar_lea.vmem [#allocation1], 32
      %4471 = vst [vmem:[%s4470] ss:$4 sm:$0xff] %v4211
      %s4472 = scalar_lea.vmem [#allocation1], 33
      %4473 = vst [vmem:[%s4472] ss:$4 sm:$0xff] %v4212
      %s4474 = scalar_lea.vmem [#allocation1], 34
      %4475 = vst [vmem:[%s4474] ss:$4 sm:$0xff] %v4213
      %s4476 = scalar_lea.vmem [#allocation1], 35
      %4477 = vst [vmem:[%s4476] ss:$4 sm:$0xff] %v4214
      %v4478 = vld.sshfl [vmem:[#allocation1] sm:$0xff pattern:$0x73625140]
      %v4479 = vld.sshfl [vmem:[#allocation1 + $0x20] sm:$0xff pattern:$0x73625140]
      %4480 = vst [vmem:[#allocation1] ss:$4 sm:$0xff] %v4215
      %4481 = vst [vmem:[%s4464] ss:$4 sm:$0xff] %v4216
      %4482 = vst [vmem:[%s4466] ss:$4 sm:$0xff] %v4217
      %4483 = vst [vmem:[%s4468] ss:$4 sm:$0xff] %v4218
      %4484 = vst [vmem:[%s4470] ss:$4 sm:$0xff] %v4219
      %4485 = vst [vmem:[%s4472] ss:$4 sm:$0xff] %v4220
      %4486 = vst [vmem:[%s4474] ss:$4 sm:$0xff] %v4221
      %4487 = vst [vmem:[%s4476] ss:$4 sm:$0xff] %v4222
      %v4488 = vld.sshfl [vmem:[#allocation1] sm:$0xff pattern:$0x73625140]
      %v4489 = vld.sshfl [vmem:[#allocation1 + $0x20] sm:$0xff pattern:$0x73625140]
      %4490 = vst [vmem:[#allocation1] ss:$4 sm:$0xff] %v4223
      %4491 = vst [vmem:[%s4464] ss:$4 sm:$0xff] %v4224
      %4492 = vst [vmem:[%s4466] ss:$4 sm:$0xff] %v4225
      %4493 = vst [vmem:[%s4468] ss:$4 sm:$0xff] %v4226
      %4494 = vst [vmem:[%s4470] ss:$4 sm:$0xff] %v4227
      %4495 = vst [vmem:[%s4472] ss:$4 sm:$0xff] %v4228
      %4496 = vst [vmem:[%s4474] ss:$4 sm:$0xff] %v4229
      %4497 = vst [vmem:[%s4476] ss:$4 sm:$0xff] %v4230
      %v4498 = vld.sshfl [vmem:[#allocation1] sm:$0xff pattern:$0x73625140]
      %v4499 = vld.sshfl [vmem:[#allocation1 + $0x20] sm:$0xff pattern:$0x73625140]
      %4500 = vst [vmem:[#allocation1] ss:$4 sm:$0xff] %v4231
      %4501 = vst [vmem:[%s4464] ss:$4 sm:$0xff] %v4232
      %4502 = vst [vmem:[%s4466] ss:$4 sm:$0xff] %v4233
      %4503 = vst [vmem:[%s4468] ss:$4 sm:$0xff] %v4234
      %4504 = vst [vmem:[%s4470] ss:$4 sm:$0xff] %v4235
      %4505 = vst [vmem:[%s4472] ss:$4 sm:$0xff] %v4236
      %4506 = vst [vmem:[%s4474] ss:$4 sm:$0xff] %v4237
      %4507 = vst [vmem:[%s4476] ss:$4 sm:$0xff] %v4238
      %v4508 = vld.sshfl [vmem:[#allocation1] sm:$0xff pattern:$0x73625140]
      %v4509 = vld.sshfl [vmem:[#allocation1 + $0x20] sm:$0xff pattern:$0x73625140]
      %4510 = vst [vmem:[#allocation1] ss:$4 sm:$0xff] %v4239
      %4511 = vst [vmem:[%s4464] ss:$4 sm:$0xff] %v4240
      %4512 = vst [vmem:[%s4466] ss:$4 sm:$0xff] %v4241
      %4513 = vst [vmem:[%s4468] ss:$4 sm:$0xff] %v4242
      %4514 = vst [vmem:[%s4470] ss:$4 sm:$0xff] %v4243
      %4515 = vst [vmem:[%s4472] ss:$4 sm:$0xff] %v4244
      %4516 = vst [vmem:[%s4474] ss:$4 sm:$0xff] %v4245
      %4517 = vst [vmem:[%s4476] ss:$4 sm:$0xff] %v4246
      %v4518 = vld.sshfl [vmem:[#allocation1] sm:$0xff pattern:$0x73625140]
      %v4519 = vld.sshfl [vmem:[#allocation1 + $0x20] sm:$0xff pattern:$0x73625140]
      %4520 = vst [vmem:[#allocation1] ss:$4 sm:$0xff] %v4247
      %4521 = vst [vmem:[%s4464] ss:$4 sm:$0xff] %v4248
      %4522 = vst [vmem:[%s4466] ss:$4 sm:$0xff] %v4249
      %4523 = vst [vmem:[%s4468] ss:$4 sm:$0xff] %v4250
      %4524 = vst [vmem:[%s4470] ss:$4 sm:$0xff] %v4251
      %4525 = vst [vmem:[%s4472] ss:$4 sm:$0xff] %v4252
      %4526 = vst [vmem:[%s4474] ss:$4 sm:$0xff] %v4253
      %4527 = vst [vmem:[%s4476] ss:$4 sm:$0xff] %v4254
      %v4528 = vld.sshfl [vmem:[#allocation1] sm:$0xff pattern:$0x73625140]
      %v4529 = vld.sshfl [vmem:[#allocation1 + $0x20] sm:$0xff pattern:$0x73625140]
      %4530 = vst [vmem:[#allocation1] ss:$4 sm:$0xff] %v4255
      %4531 = vst [vmem:[%s4464] ss:$4 sm:$0xff] %v4256
      %4532 = vst [vmem:[%s4466] ss:$4 sm:$0xff] %v4257
      %4533 = vst [vmem:[%s4468] ss:$4 sm:$0xff] %v4258
      %4534 = vst [vmem:[%s4470] ss:$4 sm:$0xff] %v4259
      %4535 = vst [vmem:[%s4472] ss:$4 sm:$0xff] %v4260
      %4536 = vst [vmem:[%s4474] ss:$4 sm:$0xff] %v4261
      %4537 = vst [vmem:[%s4476] ss:$4 sm:$0xff] %v4262
      %v4538 = vld.sshfl [vmem:[#allocation1] sm:$0xff pattern:$0x73625140]
      %v4539 = vld.sshfl [vmem:[#allocation1 + $0x20] sm:$0xff pattern:$0x73625140]
      %4540 = vst [vmem:[#allocation1] ss:$4 sm:$0xff] %v4263
      %4541 = vst [vmem:[%s4464] ss:$4 sm:$0xff] %v4264
      %4542 = vst [vmem:[%s4466] ss:$4 sm:$0xff] %v4265
      %4543 = vst [vmem:[%s4468] ss:$4 sm:$0xff] %v4266
      %4544 = vst [vmem:[%s4470] ss:$4 sm:$0xff] %v4267
      %4545 = vst [vmem:[%s4472] ss:$4 sm:$0xff] %v4268
      %4546 = vst [vmem:[%s4474] ss:$4 sm:$0xff] %v4269
      %4547 = vst [vmem:[%s4476] ss:$4 sm:$0xff] %v4270
      %v4548 = vld.sshfl [vmem:[#allocation1] sm:$0xff pattern:$0x73625140]
      %v4549 = vld.sshfl [vmem:[#allocation1 + $0x20] sm:$0xff pattern:$0x73625140]
      %4550 = vst [vmem:[#allocation1] ss:$4 sm:$0xff] %v4271
      %4551 = vst [vmem:[%s4464] ss:$4 sm:$0xff] %v4272
      %4552 = vst [vmem:[%s4466] ss:$4 sm:$0xff] %v4273
      %4553 = vst [vmem:[%s4468] ss:$4 sm:$0xff] %v4274
      %4554 = vst [vmem:[%s4470] ss:$4 sm:$0xff] %v4275
      %4555 = vst [vmem:[%s4472] ss:$4 sm:$0xff] %v4276
      %4556 = vst [vmem:[%s4474] ss:$4 sm:$0xff] %v4277
      %4557 = vst [vmem:[%s4476] ss:$4 sm:$0xff] %v4278
      %v4558 = vld.sshfl [vmem:[#allocation1] sm:$0xff pattern:$0x73625140]
      %v4559 = vld.sshfl [vmem:[#allocation1 + $0x20] sm:$0xff pattern:$0x73625140]
      %4560 = vst [vmem:[#allocation1] ss:$4 sm:$0xff] %v4279
      %4561 = vst [vmem:[%s4464] ss:$4 sm:$0xff] %v4280
      %4562 = vst [vmem:[%s4466] ss:$4 sm:$0xff] %v4281
      %4563 = vst [vmem:[%s4468] ss:$4 sm:$0xff] %v4282
      %4564 = vst [vmem:[%s4470] ss:$4 sm:$0xff] %v4283
      %4565 = vst [vmem:[%s4472] ss:$4 sm:$0xff] %v4284
      %4566 = vst [vmem:[%s4474] ss:$4 sm:$0xff] %v4285
      %4567 = vst [vmem:[%s4476] ss:$4 sm:$0xff] %v4286
      %v4568 = vld.sshfl [vmem:[#allocation1] sm:$0xff pattern:$0x73625140]
      %v4569 = vld.sshfl [vmem:[#allocation1 + $0x20] sm:$0xff pattern:$0x73625140]
      %4570 = vst [vmem:[#allocation1] ss:$4 sm:$0xff] %v4287
      %4571 = vst [vmem:[%s4464] ss:$4 sm:$0xff] %v4288
      %4572 = vst [vmem:[%s4466] ss:$4 sm:$0xff] %v4289
      %4573 = vst [vmem:[%s4468] ss:$4 sm:$0xff] %v4290
      %4574 = vst [vmem:[%s4470] ss:$4 sm:$0xff] %v4291
      %4575 = vst [vmem:[%s4472] ss:$4 sm:$0xff] %v4292
      %4576 = vst [vmem:[%s4474] ss:$4 sm:$0xff] %v4293
      %4577 = vst [vmem:[%s4476] ss:$4 sm:$0xff] %v4294
      %v4578 = vld.sshfl [vmem:[#allocation1] sm:$0xff pattern:$0x73625140]
      %v4579 = vld.sshfl [vmem:[#allocation1 + $0x20] sm:$0xff pattern:$0x73625140]
      %4580 = vst [vmem:[#allocation1] ss:$4 sm:$0xff] %v4295
      %4581 = vst [vmem:[%s4464] ss:$4 sm:$0xff] %v4296
      %4582 = vst [vmem:[%s4466] ss:$4 sm:$0xff] %v4297
      %4583 = vst [vmem:[%s4468] ss:$4 sm:$0xff] %v4298
      %4584 = vst [vmem:[%s4470] ss:$4 sm:$0xff] %v4299
      %4585 = vst [vmem:[%s4472] ss:$4 sm:$0xff] %v4300
      %4586 = vst [vmem:[%s4474] ss:$4 sm:$0xff] %v4301
      %4587 = vst [vmem:[%s4476] ss:$4 sm:$0xff] %v4302
      %v4588 = vld.sshfl [vmem:[#allocation1] sm:$0xff pattern:$0x73625140]
      %v4589 = vld.sshfl [vmem:[#allocation1 + $0x20] sm:$0xff pattern:$0x73625140]
      %4590 = vst [vmem:[#allocation1] ss:$4 sm:$0xff] %v4303
      %4591 = vst [vmem:[%s4464] ss:$4 sm:$0xff] %v4304
      %4592 = vst [vmem:[%s4466] ss:$4 sm:$0xff] %v4305
      %4593 = vst [vmem:[%s4468] ss:$4 sm:$0xff] %v4306
      %4594 = vst [vmem:[%s4470] ss:$4 sm:$0xff] %v4307
      %4595 = vst [vmem:[%s4472] ss:$4 sm:$0xff] %v4308
      %4596 = vst [vmem:[%s4474] ss:$4 sm:$0xff] %v4309
      %4597 = vst [vmem:[%s4476] ss:$4 sm:$0xff] %v4310
      %v4598 = vld.sshfl [vmem:[#allocation1] sm:$0xff pattern:$0x73625140]
      %v4599 = vld.sshfl [vmem:[#allocation1 + $0x20] sm:$0xff pattern:$0x73625140]
      %4600 = vst [vmem:[#allocation1] ss:$4 sm:$0xff] %v4311
      %4601 = vst [vmem:[%s4464] ss:$4 sm:$0xff] %v4312
      %4602 = vst [vmem:[%s4466] ss:$4 sm:$0xff] %v4313
      %4603 = vst [vmem:[%s4468] ss:$4 sm:$0xff] %v4314
      %4604 = vst [vmem:[%s4470] ss:$4 sm:$0xff] %v4315
      %4605 = vst [vmem:[%s4472] ss:$4 sm:$0xff] %v4316
      %4606 = vst [vmem:[%s4474] ss:$4 sm:$0xff] %v4317
      %4607 = vst [vmem:[%s4476] ss:$4 sm:$0xff] %v4318
      %v4608 = vld.sshfl [vmem:[#allocation1] sm:$0xff pattern:$0x73625140]
      %v4609 = vld.sshfl [vmem:[#allocation1 + $0x20] sm:$0xff pattern:$0x73625140]
      %4610 = vst [vmem:[#allocation1] ss:$4 sm:$0xff] %v4319
      %4611 = vst [vmem:[%s4464] ss:$4 sm:$0xff] %v4320
      %4612 = vst [vmem:[%s4466] ss:$4 sm:$0xff] %v4321
      %4613 = vst [vmem:[%s4468] ss:$4 sm:$0xff] %v4322
      %4614 = vst [vmem:[%s4470] ss:$4 sm:$0xff] %v4323
      %4615 = vst [vmem:[%s4472] ss:$4 sm:$0xff] %v4324
      %4616 = vst [vmem:[%s4474] ss:$4 sm:$0xff] %v4325
      %4617 = vst [vmem:[%s4476] ss:$4 sm:$0xff] %v4326
      %v4618 = vld.sshfl [vmem:[#allocation1] sm:$0xff pattern:$0x73625140]
      %v4619 = vld.sshfl [vmem:[#allocation1 + $0x20] sm:$0xff pattern:$0x73625140]
      %4620 = vst [vmem:[#allocation1] ss:$4 sm:$0xff] %v4327
      %4621 = vst [vmem:[%s4464] ss:$4 sm:$0xff] %v4328
      %4622 = vst [vmem:[%s4466] ss:$4 sm:$0xff] %v4329
      %4623 = vst [vmem:[%s4468] ss:$4 sm:$0xff] %v4330
      %4624 = vst [vmem:[%s4470] ss:$4 sm:$0xff] %v4331
      %4625 = vst [vmem:[%s4472] ss:$4 sm:$0xff] %v4332
      %4626 = vst [vmem:[%s4474] ss:$4 sm:$0xff] %v4333
      %4627 = vst [vmem:[%s4476] ss:$4 sm:$0xff] %v4334
      %v4628 = vld.sshfl [vmem:[#allocation1] sm:$0xff pattern:$0x73625140]
      %v4629 = vld.sshfl [vmem:[#allocation1 + $0x20] sm:$0xff pattern:$0x73625140]
      %v4662 = vadd.f32 %v4478, %v4479
      %v4663 = vadd.f32 %v4662, %v4488
      %v4664 = vadd.f32 %v4663, %v4489
      %v4665 = vadd.f32 %v4664, %v4498
      %v4666 = vadd.f32 %v4665, %v4499
      %v4667 = vadd.f32 %v4666, %v4508
      %v4668 = vadd.f32 %v4667, %v4509
      %v4669 = vadd.f32 %v4668, %v4518
      %v4670 = vadd.f32 %v4669, %v4519
      %v4671 = vadd.f32 %v4670, %v4528
      %v4672 = vadd.f32 %v4671, %v4529
      %v4673 = vadd.f32 %v4672, %v4538
      %v4674 = vadd.f32 %v4673, %v4539
      %v4675 = vadd.f32 %v4674, %v4548
      %v4676 = vadd.f32 %v4675, %v4549
      %v4677 = vadd.f32 %v4676, %v4558
      %v4678 = vadd.f32 %v4677, %v4559
      %v4679 = vadd.f32 %v4678, %v4568
      %v4680 = vadd.f32 %v4679, %v4569
      %v4681 = vadd.f32 %v4680, %v4578
      %v4682 = vadd.f32 %v4681, %v4579
      %v4683 = vadd.f32 %v4682, %v4588
      %v4684 = vadd.f32 %v4683, %v4589
      %v4685 = vadd.f32 %v4684, %v4598
      %v4686 = vadd.f32 %v4685, %v4599
      %v4687 = vadd.f32 %v4686, %v4608
      %v4688 = vadd.f32 %v4687, %v4609
      %v4689 = vadd.f32 %v4688, %v4618
      %v4690 = vadd.f32 %v4689, %v4619
      %v4691 = vadd.f32 %v4690, %v4628
      %v4692 = vadd.f32 %v4691, %v4629
      %v4693 = vrot.slane %v4692, 4
      %v4694 = vadd.f32 %v4692, %v4693
      %v4695 = vrot.slane %v4694, 2
      %v4696 = vadd.f32 %v4694, %v4695
      %v4697 = vrot.slane %v4696, 1
      %v4698 = vadd.f32 %v4696, %v4697
      %v4699 = vmul.f32 %v4207, %v4207
      %v4700 = vmul.f32 %v4208, %v4208
      %v4701 = vmul.f32 %v4209, %v4209
      %v4702 = vmul.f32 %v4210, %v4210
      %v4703 = vmul.f32 %v4211, %v4211
      %v4704 = vmul.f32 %v4212, %v4212
      %v4705 = vmul.f32 %v4213, %v4213
      %v4706 = vmul.f32 %v4214, %v4214
      %v4707 = vmul.f32 %v4215, %v4215
      %v4708 = vmul.f32 %v4216, %v4216
      %v4709 = vmul.f32 %v4217, %v4217
      %v4710 = vmul.f32 %v4218, %v4218
      %v4711 = vmul.f32 %v4219, %v4219
      %v4712 = vmul.f32 %v4220, %v4220
      %v4713 = vmul.f32 %v4221, %v4221
      %v4714 = vmul.f32 %v4222, %v4222
      %v4715 = vmul.f32 %v4223, %v4223
      %v4716 = vmul.f32 %v4224, %v4224
      %v4717 = vmul.f32 %v4225, %v4225
      %v4718 = vmul.f32 %v4226, %v4226
      %v4719 = vmul.f32 %v4227, %v4227
      %v4720 = vmul.f32 %v4228, %v4228
      %v4721 = vmul.f32 %v4229, %v4229
      %v4722 = vmul.f32 %v4230, %v4230
      %v4723 = vmul.f32 %v4231, %v4231
      %v4724 = vmul.f32 %v4232, %v4232
      %v4725 = vmul.f32 %v4233, %v4233
      %v4726 = vmul.f32 %v4234, %v4234
      %v4727 = vmul.f32 %v4235, %v4235
      %v4728 = vmul.f32 %v4236, %v4236
      %v4729 = vmul.f32 %v4237, %v4237
      %v4730 = vmul.f32 %v4238, %v4238
      %v4731 = vmul.f32 %v4239, %v4239
      %v4732 = vmul.f32 %v4240, %v4240
      %v4733 = vmul.f32 %v4241, %v4241
      %v4734 = vmul.f32 %v4242, %v4242
      %v4735 = vmul.f32 %v4243, %v4243
      %v4736 = vmul.f32 %v4244, %v4244
      %v4737 = vmul.f32 %v4245, %v4245
      %v4738 = vmul.f32 %v4246, %v4246
      %v4739 = vmul.f32 %v4247, %v4247
      %v4740 = vmul.f32 %v4248, %v4248
      %v4741 = vmul.f32 %v4249, %v4249
      %v4742 = vmul.f32 %v4250, %v4250
      %v4743 = vmul.f32 %v4251, %v4251
      %v4744 = vmul.f32 %v4252, %v4252
      %v4745 = vmul.f32 %v4253, %v4253
      %v4746 = vmul.f32 %v4254, %v4254
      %v4747 = vmul.f32 %v4255, %v4255
      %v4748 = vmul.f32 %v4256, %v4256
      %v4749 = vmul.f32 %v4257, %v4257
      %v4750 = vmul.f32 %v4258, %v4258
      %v4751 = vmul.f32 %v4259, %v4259
      %v4752 = vmul.f32 %v4260, %v4260
      %v4753 = vmul.f32 %v4261, %v4261
      %v4754 = vmul.f32 %v4262, %v4262
      %v4755 = vmul.f32 %v4263, %v4263
      %v4756 = vmul.f32 %v4264, %v4264
      %v4757 = vmul.f32 %v4265, %v4265
      %v4758 = vmul.f32 %v4266, %v4266
      %v4759 = vmul.f32 %v4267, %v4267
      %v4760 = vmul.f32 %v4268, %v4268
      %v4761 = vmul.f32 %v4269, %v4269
      %v4762 = vmul.f32 %v4270, %v4270
      %v4763 = vmul.f32 %v4271, %v4271
      %v4764 = vmul.f32 %v4272, %v4272
      %v4765 = vmul.f32 %v4273, %v4273
      %v4766 = vmul.f32 %v4274, %v4274
      %v4767 = vmul.f32 %v4275, %v4275
      %v4768 = vmul.f32 %v4276, %v4276
      %v4769 = vmul.f32 %v4277, %v4277
      %v4770 = vmul.f32 %v4278, %v4278
      %v4771 = vmul.f32 %v4279, %v4279
      %v4772 = vmul.f32 %v4280, %v4280
      %v4773 = vmul.f32 %v4281, %v4281
      %v4774 = vmul.f32 %v4282, %v4282
      %v4775 = vmul.f32 %v4283, %v4283
      %v4776 = vmul.f32 %v4284, %v4284
      %v4777 = vmul.f32 %v4285, %v4285
      %v4778 = vmul.f32 %v4286, %v4286
      %v4779 = vmul.f32 %v4287, %v4287
      %v4780 = vmul.f32 %v4288, %v4288
      %v4781 = vmul.f32 %v4289, %v4289
      %v4782 = vmul.f32 %v4290, %v4290
      %v4783 = vmul.f32 %v4291, %v4291
      %v4784 = vmul.f32 %v4292, %v4292
      %v4785 = vmul.f32 %v4293, %v4293
      %v4786 = vmul.f32 %v4294, %v4294
      %v4787 = vmul.f32 %v4295, %v4295
      %v4788 = vmul.f32 %v4296, %v4296
      %v4789 = vmul.f32 %v4297, %v4297
      %v4790 = vmul.f32 %v4298, %v4298
      %v4791 = vmul.f32 %v4299, %v4299
      %v4792 = vmul.f32 %v4300, %v4300
      %v4793 = vmul.f32 %v4301, %v4301
      %v4794 = vmul.f32 %v4302, %v4302
      %v4795 = vmul.f32 %v4303, %v4303
      %v4796 = vmul.f32 %v4304, %v4304
      %v4797 = vmul.f32 %v4305, %v4305
      %v4798 = vmul.f32 %v4306, %v4306
      %v4799 = vmul.f32 %v4307, %v4307
      %v4800 = vmul.f32 %v4308, %v4308
      %v4801 = vmul.f32 %v4309, %v4309
      %v4802 = vmul.f32 %v4310, %v4310
      %v4803 = vmul.f32 %v4311, %v4311
      %v4804 = vmul.f32 %v4312, %v4312
      %v4805 = vmul.f32 %v4313, %v4313
      %v4806 = vmul.f32 %v4314, %v4314
      %v4807 = vmul.f32 %v4315, %v4315
      %v4808 = vmul.f32 %v4316, %v4316
      %v4809 = vmul.f32 %v4317, %v4317
      %v4810 = vmul.f32 %v4318, %v4318
      %v4811 = vmul.f32 %v4319, %v4319
      %v4812 = vmul.f32 %v4320, %v4320
      %v4813 = vmul.f32 %v4321, %v4321
      %v4814 = vmul.f32 %v4322, %v4322
      %v4815 = vmul.f32 %v4323, %v4323
      %v4816 = vmul.f32 %v4324, %v4324
      %v4817 = vmul.f32 %v4325, %v4325
      %v4818 = vmul.f32 %v4326, %v4326
      %v4819 = vmul.f32 %v4327, %v4327
      %v4820 = vmul.f32 %v4328, %v4328
      %v4821 = vmul.f32 %v4329, %v4329
      %v4822 = vmul.f32 %v4330, %v4330
      %v4823 = vmul.f32 %v4331, %v4331
      %v4824 = vmul.f32 %v4332, %v4332
      %v4825 = vmul.f32 %v4333, %v4333
      %v4826 = vmul.f32 %v4334, %v4334
      %4955 = vst [vmem:[#allocation1] ss:$4 sm:$0xff] %v4699
      %s4956 = scalar_lea.vmem [#allocation1], 1
      %4957 = vst [vmem:[%s4956] ss:$4 sm:$0xff] %v4700
      %s4958 = scalar_lea.vmem [#allocation1], 2
      %4959 = vst [vmem:[%s4958] ss:$4 sm:$0xff] %v4701
      %s4960 = scalar_lea.vmem [#allocation1], 3
      %4961 = vst [vmem:[%s4960] ss:$4 sm:$0xff] %v4702
      %s4962 = scalar_lea.vmem [#allocation1], 32
      %4963 = vst [vmem:[%s4962] ss:$4 sm:$0xff] %v4703
      %s4964 = scalar_lea.vmem [#allocation1], 33
      %4965 = vst [vmem:[%s4964] ss:$4 sm:$0xff] %v4704
      %s4966 = scalar_lea.vmem [#allocation1], 34
      %4967 = vst [vmem:[%s4966] ss:$4 sm:$0xff] %v4705
      %s4968 = scalar_lea.vmem [#allocation1], 35
      %4969 = vst [vmem:[%s4968] ss:$4 sm:$0xff] %v4706
      %v4970 = vld.sshfl [vmem:[#allocation1] sm:$0xff pattern:$0x73625140]
      %v4971 = vld.sshfl [vmem:[#allocation1 + $0x20] sm:$0xff pattern:$0x73625140]
      %4972 = vst [vmem:[#allocation1] ss:$4 sm:$0xff] %v4707
      %4973 = vst [vmem:[%s4956] ss:$4 sm:$0xff] %v4708
      %4974 = vst [vmem:[%s4958] ss:$4 sm:$0xff] %v4709
      %4975 = vst [vmem:[%s4960] ss:$4 sm:$0xff] %v4710
      %4976 = vst [vmem:[%s4962] ss:$4 sm:$0xff] %v4711
      %4977 = vst [vmem:[%s4964] ss:$4 sm:$0xff] %v4712
      %4978 = vst [vmem:[%s4966] ss:$4 sm:$0xff] %v4713
      %4979 = vst [vmem:[%s4968] ss:$4 sm:$0xff] %v4714
      %v4980 = vld.sshfl [vmem:[#allocation1] sm:$0xff pattern:$0x73625140]
      %v4981 = vld.sshfl [vmem:[#allocation1 + $0x20] sm:$0xff pattern:$0x73625140]
      %4982 = vst [vmem:[#allocation1] ss:$4 sm:$0xff] %v4715
      %4983 = vst [vmem:[%s4956] ss:$4 sm:$0xff] %v4716
      %4984 = vst [vmem:[%s4958] ss:$4 sm:$0xff] %v4717
      %4985 = vst [vmem:[%s4960] ss:$4 sm:$0xff] %v4718
      %4986 = vst [vmem:[%s4962] ss:$4 sm:$0xff] %v4719
      %4987 = vst [vmem:[%s4964] ss:$4 sm:$0xff] %v4720
      %4988 = vst [vmem:[%s4966] ss:$4 sm:$0xff] %v4721
      %4989 = vst [vmem:[%s4968] ss:$4 sm:$0xff] %v4722
      %v4990 = vld.sshfl [vmem:[#allocation1] sm:$0xff pattern:$0x73625140]
      %v4991 = vld.sshfl [vmem:[#allocation1 + $0x20] sm:$0xff pattern:$0x73625140]
      %4992 = vst [vmem:[#allocation1] ss:$4 sm:$0xff] %v4723
      %4993 = vst [vmem:[%s4956] ss:$4 sm:$0xff] %v4724
      %4994 = vst [vmem:[%s4958] ss:$4 sm:$0xff] %v4725
      %4995 = vst [vmem:[%s4960] ss:$4 sm:$0xff] %v4726
      %4996 = vst [vmem:[%s4962] ss:$4 sm:$0xff] %v4727
      %4997 = vst [vmem:[%s4964] ss:$4 sm:$0xff] %v4728
      %4998 = vst [vmem:[%s4966] ss:$4 sm:$0xff] %v4729
      %4999 = vst [vmem:[%s4968] ss:$4 sm:$0xff] %v4730
      %v5000 = vld.sshfl [vmem:[#allocation1] sm:$0xff pattern:$0x73625140]
      %v5001 = vld.sshfl [vmem:[#allocation1 + $0x20] sm:$0xff pattern:$0x73625140]
      %5002 = vst [vmem:[#allocation1] ss:$4 sm:$0xff] %v4731
      %5003 = vst [vmem:[%s4956] ss:$4 sm:$0xff] %v4732
      %5004 = vst [vmem:[%s4958] ss:$4 sm:$0xff] %v4733
      %5005 = vst [vmem:[%s4960] ss:$4 sm:$0xff] %v4734
      %5006 = vst [vmem:[%s4962] ss:$4 sm:$0xff] %v4735
      %5007 = vst [vmem:[%s4964] ss:$4 sm:$0xff] %v4736
      %5008 = vst [vmem:[%s4966] ss:$4 sm:$0xff] %v4737
      %5009 = vst [vmem:[%s4968] ss:$4 sm:$0xff] %v4738
      %v5010 = vld.sshfl [vmem:[#allocation1] sm:$0xff pattern:$0x73625140]
      %v5011 = vld.sshfl [vmem:[#allocation1 + $0x20] sm:$0xff pattern:$0x73625140]
      %5012 = vst [vmem:[#allocation1] ss:$4 sm:$0xff] %v4739
      %5013 = vst [vmem:[%s4956] ss:$4 sm:$0xff] %v4740
      %5014 = vst [vmem:[%s4958] ss:$4 sm:$0xff] %v4741
      %5015 = vst [vmem:[%s4960] ss:$4 sm:$0xff] %v4742
      %5016 = vst [vmem:[%s4962] ss:$4 sm:$0xff] %v4743
      %5017 = vst [vmem:[%s4964] ss:$4 sm:$0xff] %v4744
      %5018 = vst [vmem:[%s4966] ss:$4 sm:$0xff] %v4745
      %5019 = vst [vmem:[%s4968] ss:$4 sm:$0xff] %v4746
      %v5020 = vld.sshfl [vmem:[#allocation1] sm:$0xff pattern:$0x73625140]
      %v5021 = vld.sshfl [vmem:[#allocation1 + $0x20] sm:$0xff pattern:$0x73625140]
      %5022 = vst [vmem:[#allocation1] ss:$4 sm:$0xff] %v4747
      %5023 = vst [vmem:[%s4956] ss:$4 sm:$0xff] %v4748
      %5024 = vst [vmem:[%s4958] ss:$4 sm:$0xff] %v4749
      %5025 = vst [vmem:[%s4960] ss:$4 sm:$0xff] %v4750
      %5026 = vst [vmem:[%s4962] ss:$4 sm:$0xff] %v4751
      %5027 = vst [vmem:[%s4964] ss:$4 sm:$0xff] %v4752
      %5028 = vst [vmem:[%s4966] ss:$4 sm:$0xff] %v4753
      %5029 = vst [vmem:[%s4968] ss:$4 sm:$0xff] %v4754
      %v5030 = vld.sshfl [vmem:[#allocation1] sm:$0xff pattern:$0x73625140]
      %v5031 = vld.sshfl [vmem:[#allocation1 + $0x20] sm:$0xff pattern:$0x73625140]
      %5032 = vst [vmem:[#allocation1] ss:$4 sm:$0xff] %v4755
      %5033 = vst [vmem:[%s4956] ss:$4 sm:$0xff] %v4756
      %5034 = vst [vmem:[%s4958] ss:$4 sm:$0xff] %v4757
      %5035 = vst [vmem:[%s4960] ss:$4 sm:$0xff] %v4758
      %5036 = vst [vmem:[%s4962] ss:$4 sm:$0xff] %v4759
      %5037 = vst [vmem:[%s4964] ss:$4 sm:$0xff] %v4760
      %5038 = vst [vmem:[%s4966] ss:$4 sm:$0xff] %v4761
      %5039 = vst [vmem:[%s4968] ss:$4 sm:$0xff] %v4762
      %v5040 = vld.sshfl [vmem:[#allocation1] sm:$0xff pattern:$0x73625140]
      %v5041 = vld.sshfl [vmem:[#allocation1 + $0x20] sm:$0xff pattern:$0x73625140]
      %5042 = vst [vmem:[#allocation1] ss:$4 sm:$0xff] %v4763
      %5043 = vst [vmem:[%s4956] ss:$4 sm:$0xff] %v4764
      %5044 = vst [vmem:[%s4958] ss:$4 sm:$0xff] %v4765
      %5045 = vst [vmem:[%s4960] ss:$4 sm:$0xff] %v4766
      %5046 = vst [vmem:[%s4962] ss:$4 sm:$0xff] %v4767
      %5047 = vst [vmem:[%s4964] ss:$4 sm:$0xff] %v4768
      %5048 = vst [vmem:[%s4966] ss:$4 sm:$0xff] %v4769
      %5049 = vst [vmem:[%s4968] ss:$4 sm:$0xff] %v4770
      %v5050 = vld.sshfl [vmem:[#allocation1] sm:$0xff pattern:$0x73625140]
      %v5051 = vld.sshfl [vmem:[#allocation1 + $0x20] sm:$0xff pattern:$0x73625140]
      %5052 = vst [vmem:[#allocation1] ss:$4 sm:$0xff] %v4771
      %5053 = vst [vmem:[%s4956] ss:$4 sm:$0xff] %v4772
      %5054 = vst [vmem:[%s4958] ss:$4 sm:$0xff] %v4773
      %5055 = vst [vmem:[%s4960] ss:$4 sm:$0xff] %v4774
      %5056 = vst [vmem:[%s4962] ss:$4 sm:$0xff] %v4775
      %5057 = vst [vmem:[%s4964] ss:$4 sm:$0xff] %v4776
      %5058 = vst [vmem:[%s4966] ss:$4 sm:$0xff] %v4777
      %5059 = vst [vmem:[%s4968] ss:$4 sm:$0xff] %v4778
      %v5060 = vld.sshfl [vmem:[#allocation1] sm:$0xff pattern:$0x73625140]
      %v5061 = vld.sshfl [vmem:[#allocation1 + $0x20] sm:$0xff pattern:$0x73625140]
      %5062 = vst [vmem:[#allocation1] ss:$4 sm:$0xff] %v4779
      %5063 = vst [vmem:[%s4956] ss:$4 sm:$0xff] %v4780
      %5064 = vst [vmem:[%s4958] ss:$4 sm:$0xff] %v4781
      %5065 = vst [vmem:[%s4960] ss:$4 sm:$0xff] %v4782
      %5066 = vst [vmem:[%s4962] ss:$4 sm:$0xff] %v4783
      %5067 = vst [vmem:[%s4964] ss:$4 sm:$0xff] %v4784
      %5068 = vst [vmem:[%s4966] ss:$4 sm:$0xff] %v4785
      %5069 = vst [vmem:[%s4968] ss:$4 sm:$0xff] %v4786
      %v5070 = vld.sshfl [vmem:[#allocation1] sm:$0xff pattern:$0x73625140]
      %v5071 = vld.sshfl [vmem:[#allocation1 + $0x20] sm:$0xff pattern:$0x73625140]
      %5072 = vst [vmem:[#allocation1] ss:$4 sm:$0xff] %v4787
      %5073 = vst [vmem:[%s4956] ss:$4 sm:$0xff] %v4788
      %5074 = vst [vmem:[%s4958] ss:$4 sm:$0xff] %v4789
      %5075 = vst [vmem:[%s4960] ss:$4 sm:$0xff] %v4790
      %5076 = vst [vmem:[%s4962] ss:$4 sm:$0xff] %v4791
      %5077 = vst [vmem:[%s4964] ss:$4 sm:$0xff] %v4792
      %5078 = vst [vmem:[%s4966] ss:$4 sm:$0xff] %v4793
      %5079 = vst [vmem:[%s4968] ss:$4 sm:$0xff] %v4794
      %v5080 = vld.sshfl [vmem:[#allocation1] sm:$0xff pattern:$0x73625140]
      %v5081 = vld.sshfl [vmem:[#allocation1 + $0x20] sm:$0xff pattern:$0x73625140]
      %5082 = vst [vmem:[#allocation1] ss:$4 sm:$0xff] %v4795
      %5083 = vst [vmem:[%s4956] ss:$4 sm:$0xff] %v4796
      %5084 = vst [vmem:[%s4958] ss:$4 sm:$0xff] %v4797
      %5085 = vst [vmem:[%s4960] ss:$4 sm:$0xff] %v4798
      %5086 = vst [vmem:[%s4962] ss:$4 sm:$0xff] %v4799
      %5087 = vst [vmem:[%s4964] ss:$4 sm:$0xff] %v4800
      %5088 = vst [vmem:[%s4966] ss:$4 sm:$0xff] %v4801
      %5089 = vst [vmem:[%s4968] ss:$4 sm:$0xff] %v4802
      %v5090 = vld.sshfl [vmem:[#allocation1] sm:$0xff pattern:$0x73625140]
      %v5091 = vld.sshfl [vmem:[#allocation1 + $0x20] sm:$0xff pattern:$0x73625140]
      %5092 = vst [vmem:[#allocation1] ss:$4 sm:$0xff] %v4803
      %5093 = vst [vmem:[%s4956] ss:$4 sm:$0xff] %v4804
      %5094 = vst [vmem:[%s4958] ss:$4 sm:$0xff] %v4805
      %5095 = vst [vmem:[%s4960] ss:$4 sm:$0xff] %v4806
      %5096 = vst [vmem:[%s4962] ss:$4 sm:$0xff] %v4807
      %5097 = vst [vmem:[%s4964] ss:$4 sm:$0xff] %v4808
      %5098 = vst [vmem:[%s4966] ss:$4 sm:$0xff] %v4809
      %5099 = vst [vmem:[%s4968] ss:$4 sm:$0xff] %v4810
      %v5100 = vld.sshfl [vmem:[#allocation1] sm:$0xff pattern:$0x73625140]
      %v5101 = vld.sshfl [vmem:[#allocation1 + $0x20] sm:$0xff pattern:$0x73625140]
      %5102 = vst [vmem:[#allocation1] ss:$4 sm:$0xff] %v4811
      %5103 = vst [vmem:[%s4956] ss:$4 sm:$0xff] %v4812
      %5104 = vst [vmem:[%s4958] ss:$4 sm:$0xff] %v4813
      %5105 = vst [vmem:[%s4960] ss:$4 sm:$0xff] %v4814
      %5106 = vst [vmem:[%s4962] ss:$4 sm:$0xff] %v4815
      %5107 = vst [vmem:[%s4964] ss:$4 sm:$0xff] %v4816
      %5108 = vst [vmem:[%s4966] ss:$4 sm:$0xff] %v4817
      %5109 = vst [vmem:[%s4968] ss:$4 sm:$0xff] %v4818
      %v5110 = vld.sshfl [vmem:[#allocation1] sm:$0xff pattern:$0x73625140]
      %v5111 = vld.sshfl [vmem:[#allocation1 + $0x20] sm:$0xff pattern:$0x73625140]
      %5112 = vst [vmem:[#allocation1] ss:$4 sm:$0xff] %v4819
      %5113 = vst [vmem:[%s4956] ss:$4 sm:$0xff] %v4820
      %5114 = vst [vmem:[%s4958] ss:$4 sm:$0xff] %v4821
      %5115 = vst [vmem:[%s4960] ss:$4 sm:$0xff] %v4822
      %5116 = vst [vmem:[%s4962] ss:$4 sm:$0xff] %v4823
      %5117 = vst [vmem:[%s4964] ss:$4 sm:$0xff] %v4824
      %5118 = vst [vmem:[%s4966] ss:$4 sm:$0xff] %v4825
      %5119 = vst [vmem:[%s4968] ss:$4 sm:$0xff] %v4826
      %v5120 = vld.sshfl [vmem:[#allocation1] sm:$0xff pattern:$0x73625140]
      %v5121 = vld.sshfl [vmem:[#allocation1 + $0x20] sm:$0xff pattern:$0x73625140]
      %v5154 = vadd.f32 %v4970, %v4971
      %v5155 = vadd.f32 %v5154, %v4980
      %v5156 = vadd.f32 %v5155, %v4981
      %v5157 = vadd.f32 %v5156, %v4990
      %v5158 = vadd.f32 %v5157, %v4991
      %v5159 = vadd.f32 %v5158, %v5000
      %v5160 = vadd.f32 %v5159, %v5001
      %v5161 = vadd.f32 %v5160, %v5010
      %v5162 = vadd.f32 %v5161, %v5011
      %v5163 = vadd.f32 %v5162, %v5020
      %v5164 = vadd.f32 %v5163, %v5021
      %v5165 = vadd.f32 %v5164, %v5030
      %v5166 = vadd.f32 %v5165, %v5031
      %v5167 = vadd.f32 %v5166, %v5040
      %v5168 = vadd.f32 %v5167, %v5041
      %v5169 = vadd.f32 %v5168, %v5050
      %v5170 = vadd.f32 %v5169, %v5051
      %v5171 = vadd.f32 %v5170, %v5060
      %v5172 = vadd.f32 %v5171, %v5061
      %v5173 = vadd.f32 %v5172, %v5070
      %v5174 = vadd.f32 %v5173, %v5071
      %v5175 = vadd.f32 %v5174, %v5080
      %v5176 = vadd.f32 %v5175, %v5081
      %v5177 = vadd.f32 %v5176, %v5090
      %v5178 = vadd.f32 %v5177, %v5091
      %v5179 = vadd.f32 %v5178, %v5100
      %v5180 = vadd.f32 %v5179, %v5101
      %v5181 = vadd.f32 %v5180, %v5110
      %v5182 = vadd.f32 %v5181, %v5111
      %v5183 = vadd.f32 %v5182, %v5120
      %v5184 = vadd.f32 %v5183, %v5121
      %v5185 = vrot.slane %v5184, 4
      %v5186 = vadd.f32 %v5184, %v5185
      %v5187 = vrot.slane %v5186, 2
      %v5188 = vadd.f32 %v5186, %v5187
      %v5189 = vrot.slane %v5188, 1
      %v5190 = vadd.f32 %v5188, %v5189
      %v5191 = vmul.f32 %v4698, 0.00390625
      %v5192 = vmul.f32 %v5190, 0.00390625
      %v5193 = vmul.f32 %v5191, %v5191
      %v5194 = vsub.f32 %v5192, %v5193
      %v5195 = vmax.f32 %v5194, 0.0
      %v5197 = vrot.slane %v5191, 2
      %v5198 = vrot.slane %v5191, 4
      %v5199 = vrot.slane %v5191, 6
      %v5203 = vsub.f32 %v4207, %v5191
      %v5204 = vsub.f32 %v4208, %v5197
      %v5205 = vsub.f32 %v4209, %v5198
      %v5206 = vsub.f32 %v4210, %v5199
      %v5207 = vsub.f32 %v4211, %v5191
      %v5208 = vsub.f32 %v4212, %v5197
      %v5209 = vsub.f32 %v4213, %v5198
      %v5210 = vsub.f32 %v4214, %v5199
      %v5211 = vsub.f32 %v4215, %v5191
      %v5212 = vsub.f32 %v4216, %v5197
      %v5213 = vsub.f32 %v4217, %v5198
      %v5214 = vsub.f32 %v4218, %v5199
      %v5215 = vsub.f32 %v4219, %v5191
      %v5216 = vsub.f32 %v4220, %v5197
      %v5217 = vsub.f32 %v4221, %v5198
      %v5218 = vsub.f32 %v4222, %v5199
      %v5219 = vsub.f32 %v4223, %v5191
      %v5220 = vsub.f32 %v4224, %v5197
      %v5221 = vsub.f32 %v4225, %v5198
      %v5222 = vsub.f32 %v4226, %v5199
      %v5223 = vsub.f32 %v4227, %v5191
      %v5224 = vsub.f32 %v4228, %v5197
      %v5225 = vsub.f32 %v4229, %v5198
      %v5226 = vsub.f32 %v4230, %v5199
      %v5227 = vsub.f32 %v4231, %v5191
      %v5228 = vsub.f32 %v4232, %v5197
      %v5229 = vsub.f32 %v4233, %v5198
      %v5230 = vsub.f32 %v4234, %v5199
      %v5231 = vsub.f32 %v4235, %v5191
      %v5232 = vsub.f32 %v4236, %v5197
      %v5233 = vsub.f32 %v4237, %v5198
      %v5234 = vsub.f32 %v4238, %v5199
      %v5235 = vsub.f32 %v4239, %v5191
      %v5236 = vsub.f32 %v4240, %v5197
      %v5237 = vsub.f32 %v4241, %v5198
      %v5238 = vsub.f32 %v4242, %v5199
      %v5239 = vsub.f32 %v4243, %v5191
      %v5240 = vsub.f32 %v4244, %v5197
      %v5241 = vsub.f32 %v4245, %v5198
      %v5242 = vsub.f32 %v4246, %v5199
      %v5243 = vsub.f32 %v4247, %v5191
      %v5244 = vsub.f32 %v4248, %v5197
      %v5245 = vsub.f32 %v4249, %v5198
      %v5246 = vsub.f32 %v4250, %v5199
      %v5247 = vsub.f32 %v4251, %v5191
      %v5248 = vsub.f32 %v4252, %v5197
      %v5249 = vsub.f32 %v4253, %v5198
      %v5250 = vsub.f32 %v4254, %v5199
      %v5251 = vsub.f32 %v4255, %v5191
      %v5252 = vsub.f32 %v4256, %v5197
      %v5253 = vsub.f32 %v4257, %v5198
      %v5254 = vsub.f32 %v4258, %v5199
      %v5255 = vsub.f32 %v4259, %v5191
      %v5256 = vsub.f32 %v4260, %v5197
      %v5257 = vsub.f32 %v4261, %v5198
      %v5258 = vsub.f32 %v4262, %v5199
      %v5259 = vsub.f32 %v4263, %v5191
      %v5260 = vsub.f32 %v4264, %v5197
      %v5261 = vsub.f32 %v4265, %v5198
      %v5262 = vsub.f32 %v4266, %v5199
      %v5263 = vsub.f32 %v4267, %v5191
      %v5264 = vsub.f32 %v4268, %v5197
      %v5265 = vsub.f32 %v4269, %v5198
      %v5266 = vsub.f32 %v4270, %v5199
      %v5267 = vsub.f32 %v4271, %v5191
      %v5268 = vsub.f32 %v4272, %v5197
      %v5269 = vsub.f32 %v4273, %v5198
      %v5270 = vsub.f32 %v4274, %v5199
      %v5271 = vsub.f32 %v4275, %v5191
      %v5272 = vsub.f32 %v4276, %v5197
      %v5273 = vsub.f32 %v4277, %v5198
      %v5274 = vsub.f32 %v4278, %v5199
      %v5275 = vsub.f32 %v4279, %v5191
      %v5276 = vsub.f32 %v4280, %v5197
      %v5277 = vsub.f32 %v4281, %v5198
      %v5278 = vsub.f32 %v4282, %v5199
      %v5279 = vsub.f32 %v4283, %v5191
      %v5280 = vsub.f32 %v4284, %v5197
      %v5281 = vsub.f32 %v4285, %v5198
      %v5282 = vsub.f32 %v4286, %v5199
      %v5283 = vsub.f32 %v4287, %v5191
      %v5284 = vsub.f32 %v4288, %v5197
      %v5285 = vsub.f32 %v4289, %v5198
      %v5286 = vsub.f32 %v4290, %v5199
      %v5287 = vsub.f32 %v4291, %v5191
      %v5288 = vsub.f32 %v4292, %v5197
      %v5289 = vsub.f32 %v4293, %v5198
      %v5290 = vsub.f32 %v4294, %v5199
      %v5291 = vsub.f32 %v4295, %v5191
      %v5292 = vsub.f32 %v4296, %v5197
      %v5293 = vsub.f32 %v4297, %v5198
      %v5294 = vsub.f32 %v4298, %v5199
      %v5295 = vsub.f32 %v4299, %v5191
      %v5296 = vsub.f32 %v4300, %v5197
      %v5297 = vsub.f32 %v4301, %v5198
      %v5298 = vsub.f32 %v4302, %v5199
      %v5299 = vsub.f32 %v4303, %v5191
      %v5300 = vsub.f32 %v4304, %v5197
      %v5301 = vsub.f32 %v4305, %v5198
      %v5302 = vsub.f32 %v4306, %v5199
      %v5303 = vsub.f32 %v4307, %v5191
      %v5304 = vsub.f32 %v4308, %v5197
      %v5305 = vsub.f32 %v4309, %v5198
      %v5306 = vsub.f32 %v4310, %v5199
      %v5307 = vsub.f32 %v4311, %v5191
      %v5308 = vsub.f32 %v4312, %v5197
      %v5309 = vsub.f32 %v4313, %v5198
      %v5310 = vsub.f32 %v4314, %v5199
      %v5311 = vsub.f32 %v4315, %v5191
      %v5312 = vsub.f32 %v4316, %v5197
      %v5313 = vsub.f32 %v4317, %v5198
      %v5314 = vsub.f32 %v4318, %v5199
      %v5315 = vsub.f32 %v4319, %v5191
      %v5316 = vsub.f32 %v4320, %v5197
      %v5317 = vsub.f32 %v4321, %v5198
      %v5318 = vsub.f32 %v4322, %v5199
      %v5319 = vsub.f32 %v4323, %v5191
      %v5320 = vsub.f32 %v4324, %v5197
      %v5321 = vsub.f32 %v4325, %v5198
      %v5322 = vsub.f32 %v4326, %v5199
      %v5323 = vsub.f32 %v4327, %v5191
      %v5324 = vsub.f32 %v4328, %v5197
      %v5325 = vsub.f32 %v4329, %v5198
      %v5326 = vsub.f32 %v4330, %v5199
      %v5327 = vsub.f32 %v4331, %v5191
      %v5328 = vsub.f32 %v4332, %v5197
      %v5329 = vsub.f32 %v4333, %v5198
      %v5330 = vsub.f32 %v4334, %v5199
      %v5331 = vadd.f32 %v5195, 1e-05
      %v5332 = vrsqrt.pop %v5331
      %v5333 = vmul.f32 %v5332, %v5331
      %v5334 = vmul.f32 %v5333, %v5332
      %v5335 = vmul.f32 0.5, %v5334
      %v5336 = vsub.f32 1.5, %v5335
      %v5337 = vmul.f32 %v5332, %v5336
      %vm5338 = vweird.f32 %v5331
      %vm5339 = vweird.f32 %v5332
      %vm5340 = vmor %vm5338, %vm5339
      %v5341 = vsel %vm5340, %v5332, %v5337
      %v5343 = vrot.slane %v5341, 2
      %v5344 = vrot.slane %v5341, 4
      %v5345 = vrot.slane %v5341, 6
      %v5349 = vmul.f32 %v5203, %v5341
      %v5350 = vmul.f32 %v5204, %v5343
      %v5351 = vmul.f32 %v5205, %v5344
      %v5352 = vmul.f32 %v5206, %v5345
      %v5353 = vmul.f32 %v5207, %v5341
      %v5354 = vmul.f32 %v5208, %v5343
      %v5355 = vmul.f32 %v5209, %v5344
      %v5356 = vmul.f32 %v5210, %v5345
      %v5357 = vmul.f32 %v5211, %v5341
      %v5358 = vmul.f32 %v5212, %v5343
      %v5359 = vmul.f32 %v5213, %v5344
      %v5360 = vmul.f32 %v5214, %v5345
      %v5361 = vmul.f32 %v5215, %v5341
      %v5362 = vmul.f32 %v5216, %v5343
      %v5363 = vmul.f32 %v5217, %v5344
      %v5364 = vmul.f32 %v5218, %v5345
      %v5365 = vmul.f32 %v5219, %v5341
      %v5366 = vmul.f32 %v5220, %v5343
      %v5367 = vmul.f32 %v5221, %v5344
      %v5368 = vmul.f32 %v5222, %v5345
      %v5369 = vmul.f32 %v5223, %v5341
      %v5370 = vmul.f32 %v5224, %v5343
      %v5371 = vmul.f32 %v5225, %v5344
      %v5372 = vmul.f32 %v5226, %v5345
      %v5373 = vmul.f32 %v5227, %v5341
      %v5374 = vmul.f32 %v5228, %v5343
      %v5375 = vmul.f32 %v5229, %v5344
      %v5376 = vmul.f32 %v5230, %v5345
      %v5377 = vmul.f32 %v5231, %v5341
      %v5378 = vmul.f32 %v5232, %v5343
      %v5379 = vmul.f32 %v5233, %v5344
      %v5380 = vmul.f32 %v5234, %v5345
      %v5381 = vmul.f32 %v5235, %v5341
      %v5382 = vmul.f32 %v5236, %v5343
      %v5383 = vmul.f32 %v5237, %v5344
      %v5384 = vmul.f32 %v5238, %v5345
      %v5385 = vmul.f32 %v5239, %v5341
      %v5386 = vmul.f32 %v5240, %v5343
      %v5387 = vmul.f32 %v5241, %v5344
      %v5388 = vmul.f32 %v5242, %v5345
      %v5389 = vmul.f32 %v5243, %v5341
      %v5390 = vmul.f32 %v5244, %v5343
      %v5391 = vmul.f32 %v5245, %v5344
      %v5392 = vmul.f32 %v5246, %v5345
      %v5393 = vmul.f32 %v5247, %v5341
      %v5394 = vmul.f32 %v5248, %v5343
      %v5395 = vmul.f32 %v5249, %v5344
      %v5396 = vmul.f32 %v5250, %v5345
      %v5397 = vmul.f32 %v5251, %v5341
      %v5398 = vmul.f32 %v5252, %v5343
      %v5399 = vmul.f32 %v5253, %v5344
      %v5400 = vmul.f32 %v5254, %v5345
      %v5401 = vmul.f32 %v5255, %v5341
      %v5402 = vmul.f32 %v5256, %v5343
      %v5403 = vmul.f32 %v5257, %v5344
      %v5404 = vmul.f32 %v5258, %v5345
      %v5405 = vmul.f32 %v5259, %v5341
      %v5406 = vmul.f32 %v5260, %v5343
      %v5407 = vmul.f32 %v5261, %v5344
      %v5408 = vmul.f32 %v5262, %v5345
      %v5409 = vmul.f32 %v5263, %v5341
      %v5410 = vmul.f32 %v5264, %v5343
      %v5411 = vmul.f32 %v5265, %v5344
      %v5412 = vmul.f32 %v5266, %v5345
      %v5413 = vmul.f32 %v5267, %v5341
      %v5414 = vmul.f32 %v5268, %v5343
      %v5415 = vmul.f32 %v5269, %v5344
      %v5416 = vmul.f32 %v5270, %v5345
      %v5417 = vmul.f32 %v5271, %v5341
      %v5418 = vmul.f32 %v5272, %v5343
      %v5419 = vmul.f32 %v5273, %v5344
      %v5420 = vmul.f32 %v5274, %v5345
      %v5421 = vmul.f32 %v5275, %v5341
      %v5422 = vmul.f32 %v5276, %v5343
      %v5423 = vmul.f32 %v5277, %v5344
      %v5424 = vmul.f32 %v5278, %v5345
      %v5425 = vmul.f32 %v5279, %v5341
      %v5426 = vmul.f32 %v5280, %v5343
      %v5427 = vmul.f32 %v5281, %v5344
      %v5428 = vmul.f32 %v5282, %v5345
      %v5429 = vmul.f32 %v5283, %v5341
      %v5430 = vmul.f32 %v5284, %v5343
      %v5431 = vmul.f32 %v5285, %v5344
      %v5432 = vmul.f32 %v5286, %v5345
      %v5433 = vmul.f32 %v5287, %v5341
      %v5434 = vmul.f32 %v5288, %v5343
      %v5435 = vmul.f32 %v5289, %v5344
      %v5436 = vmul.f32 %v5290, %v5345
      %v5437 = vmul.f32 %v5291, %v5341
      %v5438 = vmul.f32 %v5292, %v5343
      %v5439 = vmul.f32 %v5293, %v5344
      %v5440 = vmul.f32 %v5294, %v5345
      %v5441 = vmul.f32 %v5295, %v5341
      %v5442 = vmul.f32 %v5296, %v5343
      %v5443 = vmul.f32 %v5297, %v5344
      %v5444 = vmul.f32 %v5298, %v5345
      %v5445 = vmul.f32 %v5299, %v5341
      %v5446 = vmul.f32 %v5300, %v5343
      %v5447 = vmul.f32 %v5301, %v5344
      %v5448 = vmul.f32 %v5302, %v5345
      %v5449 = vmul.f32 %v5303, %v5341
      %v5450 = vmul.f32 %v5304, %v5343
      %v5451 = vmul.f32 %v5305, %v5344
      %v5452 = vmul.f32 %v5306, %v5345
      %v5453 = vmul.f32 %v5307, %v5341
      %v5454 = vmul.f32 %v5308, %v5343
      %v5455 = vmul.f32 %v5309, %v5344
      %v5456 = vmul.f32 %v5310, %v5345
      %v5457 = vmul.f32 %v5311, %v5341
      %v5458 = vmul.f32 %v5312, %v5343
      %v5459 = vmul.f32 %v5313, %v5344
      %v5460 = vmul.f32 %v5314, %v5345
      %v5461 = vmul.f32 %v5315, %v5341
      %v5462 = vmul.f32 %v5316, %v5343
      %v5463 = vmul.f32 %v5317, %v5344
      %v5464 = vmul.f32 %v5318, %v5345
      %v5465 = vmul.f32 %v5319, %v5341
      %v5466 = vmul.f32 %v5320, %v5343
      %v5467 = vmul.f32 %v5321, %v5344
      %v5468 = vmul.f32 %v5322, %v5345
      %v5469 = vmul.f32 %v5323, %v5341
      %v5470 = vmul.f32 %v5324, %v5343
      %v5471 = vmul.f32 %v5325, %v5344
      %v5472 = vmul.f32 %v5326, %v5345
      %v5473 = vmul.f32 %v5327, %v5341
      %v5474 = vmul.f32 %v5328, %v5343
      %v5475 = vmul.f32 %v5329, %v5344
      %v5476 = vmul.f32 %v5330, %v5345
      %v5477 = vmax.f32 %v5349, 0.0
      %v5478 = vmax.f32 %v5350, 0.0
      %v5479 = vmax.f32 %v5351, 0.0
      %v5480 = vmax.f32 %v5352, 0.0
      %v5481 = vmax.f32 %v5353, 0.0
      %v5482 = vmax.f32 %v5354, 0.0
      %v5483 = vmax.f32 %v5355, 0.0
      %v5484 = vmax.f32 %v5356, 0.0
      %v5485 = vmax.f32 %v5357, 0.0
      %v5486 = vmax.f32 %v5358, 0.0
      %v5487 = vmax.f32 %v5359, 0.0
      %v5488 = vmax.f32 %v5360, 0.0
      %v5489 = vmax.f32 %v5361, 0.0
      %v5490 = vmax.f32 %v5362, 0.0
      %v5491 = vmax.f32 %v5363, 0.0
      %v5492 = vmax.f32 %v5364, 0.0
      %v5493 = vmax.f32 %v5365, 0.0
      %v5494 = vmax.f32 %v5366, 0.0
      %v5495 = vmax.f32 %v5367, 0.0
      %v5496 = vmax.f32 %v5368, 0.0
      %v5497 = vmax.f32 %v5369, 0.0
      %v5498 = vmax.f32 %v5370, 0.0
      %v5499 = vmax.f32 %v5371, 0.0
      %v5500 = vmax.f32 %v5372, 0.0
      %v5501 = vmax.f32 %v5373, 0.0
      %v5502 = vmax.f32 %v5374, 0.0
      %v5503 = vmax.f32 %v5375, 0.0
      %v5504 = vmax.f32 %v5376, 0.0
      %v5505 = vmax.f32 %v5377, 0.0
      %v5506 = vmax.f32 %v5378, 0.0
      %v5507 = vmax.f32 %v5379, 0.0
      %v5508 = vmax.f32 %v5380, 0.0
      %v5509 = vmax.f32 %v5381, 0.0
      %v5510 = vmax.f32 %v5382, 0.0
      %v5511 = vmax.f32 %v5383, 0.0
      %v5512 = vmax.f32 %v5384, 0.0
      %v5513 = vmax.f32 %v5385, 0.0
      %v5514 = vmax.f32 %v5386, 0.0
      %v5515 = vmax.f32 %v5387, 0.0
      %v5516 = vmax.f32 %v5388, 0.0
      %v5517 = vmax.f32 %v5389, 0.0
      %v5518 = vmax.f32 %v5390, 0.0
      %v5519 = vmax.f32 %v5391, 0.0
      %v5520 = vmax.f32 %v5392, 0.0
      %v5521 = vmax.f32 %v5393, 0.0
      %v5522 = vmax.f32 %v5394, 0.0
      %v5523 = vmax.f32 %v5395, 0.0
      %v5524 = vmax.f32 %v5396, 0.0
      %v5525 = vmax.f32 %v5397, 0.0
      %v5526 = vmax.f32 %v5398, 0.0
      %v5527 = vmax.f32 %v5399, 0.0
      %v5528 = vmax.f32 %v5400, 0.0
      %v5529 = vmax.f32 %v5401, 0.0
      %v5530 = vmax.f32 %v5402, 0.0
      %v5531 = vmax.f32 %v5403, 0.0
      %v5532 = vmax.f32 %v5404, 0.0
      %v5533 = vmax.f32 %v5405, 0.0
      %v5534 = vmax.f32 %v5406, 0.0
      %v5535 = vmax.f32 %v5407, 0.0
      %v5536 = vmax.f32 %v5408, 0.0
      %v5537 = vmax.f32 %v5409, 0.0
      %v5538 = vmax.f32 %v5410, 0.0
      %v5539 = vmax.f32 %v5411, 0.0
      %v5540 = vmax.f32 %v5412, 0.0
      %v5541 = vmax.f32 %v5413, 0.0
      %v5542 = vmax.f32 %v5414, 0.0
      %v5543 = vmax.f32 %v5415, 0.0
      %v5544 = vmax.f32 %v5416, 0.0
      %v5545 = vmax.f32 %v5417, 0.0
      %v5546 = vmax.f32 %v5418, 0.0
      %v5547 = vmax.f32 %v5419, 0.0
      %v5548 = vmax.f32 %v5420, 0.0
      %v5549 = vmax.f32 %v5421, 0.0
      %v5550 = vmax.f32 %v5422, 0.0
      %v5551 = vmax.f32 %v5423, 0.0
      %v5552 = vmax.f32 %v5424, 0.0
      %v5553 = vmax.f32 %v5425, 0.0
      %v5554 = vmax.f32 %v5426, 0.0
      %v5555 = vmax.f32 %v5427, 0.0
      %v5556 = vmax.f32 %v5428, 0.0
      %v5557 = vmax.f32 %v5429, 0.0
      %v5558 = vmax.f32 %v5430, 0.0
      %v5559 = vmax.f32 %v5431, 0.0
      %v5560 = vmax.f32 %v5432, 0.0
      %v5561 = vmax.f32 %v5433, 0.0
      %v5562 = vmax.f32 %v5434, 0.0
      %v5563 = vmax.f32 %v5435, 0.0
      %v5564 = vmax.f32 %v5436, 0.0
      %v5565 = vmax.f32 %v5437, 0.0
      %v5566 = vmax.f32 %v5438, 0.0
      %v5567 = vmax.f32 %v5439, 0.0
      %v5568 = vmax.f32 %v5440, 0.0
      %v5569 = vmax.f32 %v5441, 0.0
      %v5570 = vmax.f32 %v5442, 0.0
      %v5571 = vmax.f32 %v5443, 0.0
      %v5572 = vmax.f32 %v5444, 0.0
      %v5573 = vmax.f32 %v5445, 0.0
      %v5574 = vmax.f32 %v5446, 0.0
      %v5575 = vmax.f32 %v5447, 0.0
      %v5576 = vmax.f32 %v5448, 0.0
      %v5577 = vmax.f32 %v5449, 0.0
      %v5578 = vmax.f32 %v5450, 0.0
      %v5579 = vmax.f32 %v5451, 0.0
      %v5580 = vmax.f32 %v5452, 0.0
      %v5581 = vmax.f32 %v5453, 0.0
      %v5582 = vmax.f32 %v5454, 0.0
      %v5583 = vmax.f32 %v5455, 0.0
      %v5584 = vmax.f32 %v5456, 0.0
      %v5585 = vmax.f32 %v5457, 0.0
      %v5586 = vmax.f32 %v5458, 0.0
      %v5587 = vmax.f32 %v5459, 0.0
      %v5588 = vmax.f32 %v5460, 0.0
      %v5589 = vmax.f32 %v5461, 0.0
      %v5590 = vmax.f32 %v5462, 0.0
      %v5591 = vmax.f32 %v5463, 0.0
      %v5592 = vmax.f32 %v5464, 0.0
      %v5593 = vmax.f32 %v5465, 0.0
      %v5594 = vmax.f32 %v5466, 0.0
      %v5595 = vmax.f32 %v5467, 0.0
      %v5596 = vmax.f32 %v5468, 0.0
      %v5597 = vmax.f32 %v5469, 0.0
      %v5598 = vmax.f32 %v5470, 0.0
      %v5599 = vmax.f32 %v5471, 0.0
      %v5600 = vmax.f32 %v5472, 0.0
      %v5601 = vmax.f32 %v5473, 0.0
      %v5602 = vmax.f32 %v5474, 0.0
      %v5603 = vmax.f32 %v5475, 0.0
      %v5604 = vmax.f32 %v5476, 0.0
      %v5621 = vperm.slane %v5485, 1
      %v5622 = vperm.slane %v5477, 1
      %v5623 = vperm.slane %v5493, 1
      %v5624 = vperm.slane %v5501, 1
      %v5625 = vperm.slane %v5509, 1
      %v5626 = vperm.slane %v5517, 1
      %v5627 = vperm.slane %v5525, 1
      %v5628 = vperm.slane %v5533, 1
      %v5629 = vperm.slane %v5541, 1
      %v5630 = vperm.slane %v5549, 1
      %v5631 = vperm.slane %v5557, 1
      %v5632 = vperm.slane %v5565, 1
      %v5633 = vperm.slane %v5573, 1
      %v5634 = vperm.slane %v5581, 1
      %v5635 = vperm.slane %v5589, 1
      %v5636 = vperm.slane %v5597, 1
      %5765 = vst [vmem:[#allocation1] ss:$4 sm:$0xff] %v5485
      %s5766 = scalar_lea.vmem [#allocation1], 1
      %5767 = vst [vmem:[%s5766] ss:$4 sm:$0xff] %v5486
      %s5768 = scalar_lea.vmem [#allocation1], 2
      %5769 = vst [vmem:[%s5768] ss:$4 sm:$0xff] %v5487
      %s5770 = scalar_lea.vmem [#allocation1], 3
      %5771 = vst [vmem:[%s5770] ss:$4 sm:$0xff] %v5488
      %s5772 = scalar_lea.vmem [#allocation1], 32
      %5773 = vst [vmem:[%s5772] ss:$4 sm:$0xff] %v5489
      %s5774 = scalar_lea.vmem [#allocation1], 33
      %5775 = vst [vmem:[%s5774] ss:$4 sm:$0xff] %v5490
      %s5776 = scalar_lea.vmem [#allocation1], 34
      %5777 = vst [vmem:[%s5776] ss:$4 sm:$0xff] %v5491
      %s5778 = scalar_lea.vmem [#allocation1], 35
      %5779 = vst [vmem:[%s5778] ss:$4 sm:$0xff] %v5492
      %v5780 = vld.sshfl [vmem:[#allocation1] sm:$0xff pattern:$0x73625140]
      %v5781 = vld.sshfl [vmem:[#allocation1 + $0x20] sm:$0xff pattern:$0x73625140]
      %5782 = vst [vmem:[#allocation1] ss:$4 sm:$0xff] %v5477
      %5783 = vst [vmem:[%s5766] ss:$4 sm:$0xff] %v5478
      %5784 = vst [vmem:[%s5768] ss:$4 sm:$0xff] %v5479
      %5785 = vst [vmem:[%s5770] ss:$4 sm:$0xff] %v5480
      %5786 = vst [vmem:[%s5772] ss:$4 sm:$0xff] %v5481
      %5787 = vst [vmem:[%s5774] ss:$4 sm:$0xff] %v5482
      %5788 = vst [vmem:[%s5776] ss:$4 sm:$0xff] %v5483
      %5789 = vst [vmem:[%s5778] ss:$4 sm:$0xff] %v5484
      %v5790 = vld.sshfl [vmem:[#allocation1] sm:$0xff pattern:$0x73625140]
      %v5791 = vld.sshfl [vmem:[#allocation1 + $0x20] sm:$0xff pattern:$0x73625140]
      %5792 = vst [vmem:[#allocation1] ss:$4 sm:$0xff] %v5485
      %5793 = vst [vmem:[%s5766] ss:$4 sm:$0xff] %v5486
      %5794 = vst [vmem:[%s5768] ss:$4 sm:$0xff] %v5487
      %5795 = vst [vmem:[%s5770] ss:$4 sm:$0xff] %v5488
      %5796 = vst [vmem:[%s5772] ss:$4 sm:$0xff] %v5489
      %5797 = vst [vmem:[%s5774] ss:$4 sm:$0xff] %v5490
      %5798 = vst [vmem:[%s5776] ss:$4 sm:$0xff] %v5491
      %5799 = vst [vmem:[%s5778] ss:$4 sm:$0xff] %v5492
      %v5800 = vld.sshfl [vmem:[#allocation1] sm:$0xff pattern:$0x73625140]
      %v5801 = vld.sshfl [vmem:[#allocation1 + $0x20] sm:$0xff pattern:$0x73625140]
      %5802 = vst [vmem:[#allocation1] ss:$4 sm:$0xff] %v5493
      %5803 = vst [vmem:[%s5766] ss:$4 sm:$0xff] %v5494
      %5804 = vst [vmem:[%s5768] ss:$4 sm:$0xff] %v5495
      %5805 = vst [vmem:[%s5770] ss:$4 sm:$0xff] %v5496
      %5806 = vst [vmem:[%s5772] ss:$4 sm:$0xff] %v5497
      %5807 = vst [vmem:[%s5774] ss:$4 sm:$0xff] %v5498
      %5808 = vst [vmem:[%s5776] ss:$4 sm:$0xff] %v5499
      %5809 = vst [vmem:[%s5778] ss:$4 sm:$0xff] %v5500
      %v5810 = vld.sshfl [vmem:[#allocation1] sm:$0xff pattern:$0x73625140]
      %v5811 = vld.sshfl [vmem:[#allocation1 + $0x20] sm:$0xff pattern:$0x73625140]
      %5812 = vst [vmem:[#allocation1] ss:$4 sm:$0xff] %v5501
      %5813 = vst [vmem:[%s5766] ss:$4 sm:$0xff] %v5502
      %5814 = vst [vmem:[%s5768] ss:$4 sm:$0xff] %v5503
      %5815 = vst [vmem:[%s5770] ss:$4 sm:$0xff] %v5504
      %5816 = vst [vmem:[%s5772] ss:$4 sm:$0xff] %v5505
      %5817 = vst [vmem:[%s5774] ss:$4 sm:$0xff] %v5506
      %5818 = vst [vmem:[%s5776] ss:$4 sm:$0xff] %v5507
      %5819 = vst [vmem:[%s5778] ss:$4 sm:$0xff] %v5508
      %v5820 = vld.sshfl [vmem:[#allocation1] sm:$0xff pattern:$0x73625140]
      %v5821 = vld.sshfl [vmem:[#allocation1 + $0x20] sm:$0xff pattern:$0x73625140]
      %5822 = vst [vmem:[#allocation1] ss:$4 sm:$0xff] %v5509
      %5823 = vst [vmem:[%s5766] ss:$4 sm:$0xff] %v5510
      %5824 = vst [vmem:[%s5768] ss:$4 sm:$0xff] %v5511
      %5825 = vst [vmem:[%s5770] ss:$4 sm:$0xff] %v5512
      %5826 = vst [vmem:[%s5772] ss:$4 sm:$0xff] %v5513
      %5827 = vst [vmem:[%s5774] ss:$4 sm:$0xff] %v5514
      %5828 = vst [vmem:[%s5776] ss:$4 sm:$0xff] %v5515
      %5829 = vst [vmem:[%s5778] ss:$4 sm:$0xff] %v5516
      %v5830 = vld.sshfl [vmem:[#allocation1] sm:$0xff pattern:$0x73625140]
      %v5831 = vld.sshfl [vmem:[#allocation1 + $0x20] sm:$0xff pattern:$0x73625140]
      %5832 = vst [vmem:[#allocation1] ss:$4 sm:$0xff] %v5517
      %5833 = vst [vmem:[%s5766] ss:$4 sm:$0xff] %v5518
      %5834 = vst [vmem:[%s5768] ss:$4 sm:$0xff] %v5519
      %5835 = vst [vmem:[%s5770] ss:$4 sm:$0xff] %v5520
      %5836 = vst [vmem:[%s5772] ss:$4 sm:$0xff] %v5521
      %5837 = vst [vmem:[%s5774] ss:$4 sm:$0xff] %v5522
      %5838 = vst [vmem:[%s5776] ss:$4 sm:$0xff] %v5523
      %5839 = vst [vmem:[%s5778] ss:$4 sm:$0xff] %v5524
      %v5840 = vld.sshfl [vmem:[#allocation1] sm:$0xff pattern:$0x73625140]
      %v5841 = vld.sshfl [vmem:[#allocation1 + $0x20] sm:$0xff pattern:$0x73625140]
      %5842 = vst [vmem:[#allocation1] ss:$4 sm:$0xff] %v5525
      %5843 = vst [vmem:[%s5766] ss:$4 sm:$0xff] %v5526
      %5844 = vst [vmem:[%s5768] ss:$4 sm:$0xff] %v5527
      %5845 = vst [vmem:[%s5770] ss:$4 sm:$0xff] %v5528
      %5846 = vst [vmem:[%s5772] ss:$4 sm:$0xff] %v5529
      %5847 = vst [vmem:[%s5774] ss:$4 sm:$0xff] %v5530
      %5848 = vst [vmem:[%s5776] ss:$4 sm:$0xff] %v5531
      %5849 = vst [vmem:[%s5778] ss:$4 sm:$0xff] %v5532
      %v5850 = vld.sshfl [vmem:[#allocation1] sm:$0xff pattern:$0x73625140]
      %v5851 = vld.sshfl [vmem:[#allocation1 + $0x20] sm:$0xff pattern:$0x73625140]
      %5852 = vst [vmem:[#allocation1] ss:$4 sm:$0xff] %v5533
      %5853 = vst [vmem:[%s5766] ss:$4 sm:$0xff] %v5534
      %5854 = vst [vmem:[%s5768] ss:$4 sm:$0xff] %v5535
      %5855 = vst [vmem:[%s5770] ss:$4 sm:$0xff] %v5536
      %5856 = vst [vmem:[%s5772] ss:$4 sm:$0xff] %v5537
      %5857 = vst [vmem:[%s5774] ss:$4 sm:$0xff] %v5538
      %5858 = vst [vmem:[%s5776] ss:$4 sm:$0xff] %v5539
      %5859 = vst [vmem:[%s5778] ss:$4 sm:$0xff] %v5540
      %v5860 = vld.sshfl [vmem:[#allocation1] sm:$0xff pattern:$0x73625140]
      %v5861 = vld.sshfl [vmem:[#allocation1 + $0x20] sm:$0xff pattern:$0x73625140]
      %5862 = vst [vmem:[#allocation1] ss:$4 sm:$0xff] %v5541
      %5863 = vst [vmem:[%s5766] ss:$4 sm:$0xff] %v5542
      %5864 = vst [vmem:[%s5768] ss:$4 sm:$0xff] %v5543
      %5865 = vst [vmem:[%s5770] ss:$4 sm:$0xff] %v5544
      %5866 = vst [vmem:[%s5772] ss:$4 sm:$0xff] %v5545
      %5867 = vst [vmem:[%s5774] ss:$4 sm:$0xff] %v5546
      %5868 = vst [vmem:[%s5776] ss:$4 sm:$0xff] %v5547
      %5869 = vst [vmem:[%s5778] ss:$4 sm:$0xff] %v5548
      %v5870 = vld.sshfl [vmem:[#allocation1] sm:$0xff pattern:$0x73625140]
      %v5871 = vld.sshfl [vmem:[#allocation1 + $0x20] sm:$0xff pattern:$0x73625140]
      %5872 = vst [vmem:[#allocation1] ss:$4 sm:$0xff] %v5549
      %5873 = vst [vmem:[%s5766] ss:$4 sm:$0xff] %v5550
      %5874 = vst [vmem:[%s5768] ss:$4 sm:$0xff] %v5551
      %5875 = vst [vmem:[%s5770] ss:$4 sm:$0xff] %v5552
      %5876 = vst [vmem:[%s5772] ss:$4 sm:$0xff] %v5553
      %5877 = vst [vmem:[%s5774] ss:$4 sm:$0xff] %v5554
      %5878 = vst [vmem:[%s5776] ss:$4 sm:$0xff] %v5555
      %5879 = vst [vmem:[%s5778] ss:$4 sm:$0xff] %v5556
      %v5880 = vld.sshfl [vmem:[#allocation1] sm:$0xff pattern:$0x73625140]
      %v5881 = vld.sshfl [vmem:[#allocation1 + $0x20] sm:$0xff pattern:$0x73625140]
      %5882 = vst [vmem:[#allocation1] ss:$4 sm:$0xff] %v5557
      %5883 = vst [vmem:[%s5766] ss:$4 sm:$0xff] %v5558
      %5884 = vst [vmem:[%s5768] ss:$4 sm:$0xff] %v5559
      %5885 = vst [vmem:[%s5770] ss:$4 sm:$0xff] %v5560
      %5886 = vst [vmem:[%s5772] ss:$4 sm:$0xff] %v5561
      %5887 = vst [vmem:[%s5774] ss:$4 sm:$0xff] %v5562
      %5888 = vst [vmem:[%s5776] ss:$4 sm:$0xff] %v5563
      %5889 = vst [vmem:[%s5778] ss:$4 sm:$0xff] %v5564
      %v5890 = vld.sshfl [vmem:[#allocation1] sm:$0xff pattern:$0x73625140]
      %v5891 = vld.sshfl [vmem:[#allocation1 + $0x20] sm:$0xff pattern:$0x73625140]
      %5892 = vst [vmem:[#allocation1] ss:$4 sm:$0xff] %v5565
      %5893 = vst [vmem:[%s5766] ss:$4 sm:$0xff] %v5566
      %5894 = vst [vmem:[%s5768] ss:$4 sm:$0xff] %v5567
      %5895 = vst [vmem:[%s5770] ss:$4 sm:$0xff] %v5568
      %5896 = vst [vmem:[%s5772] ss:$4 sm:$0xff] %v5569
      %5897 = vst [vmem:[%s5774] ss:$4 sm:$0xff] %v5570
      %5898 = vst [vmem:[%s5776] ss:$4 sm:$0xff] %v5571
      %5899 = vst [vmem:[%s5778] ss:$4 sm:$0xff] %v5572
      %v5900 = vld.sshfl [vmem:[#allocation1] sm:$0xff pattern:$0x73625140]
      %v5901 = vld.sshfl [vmem:[#allocation1 + $0x20] sm:$0xff pattern:$0x73625140]
      %5902 = vst [vmem:[#allocation1] ss:$4 sm:$0xff] %v5573
      %5903 = vst [vmem:[%s5766] ss:$4 sm:$0xff] %v5574
      %5904 = vst [vmem:[%s5768] ss:$4 sm:$0xff] %v5575
      %5905 = vst [vmem:[%s5770] ss:$4 sm:$0xff] %v5576
      %5906 = vst [vmem:[%s5772] ss:$4 sm:$0xff] %v5577
      %5907 = vst [vmem:[%s5774] ss:$4 sm:$0xff] %v5578
      %5908 = vst [vmem:[%s5776] ss:$4 sm:$0xff] %v5579
      %5909 = vst [vmem:[%s5778] ss:$4 sm:$0xff] %v5580
      %v5910 = vld.sshfl [vmem:[#allocation1] sm:$0xff pattern:$0x73625140]
      %v5911 = vld.sshfl [vmem:[#allocation1 + $0x20] sm:$0xff pattern:$0x73625140]
      %5912 = vst [vmem:[#allocation1] ss:$4 sm:$0xff] %v5581
      %5913 = vst [vmem:[%s5766] ss:$4 sm:$0xff] %v5582
      %5914 = vst [vmem:[%s5768] ss:$4 sm:$0xff] %v5583
      %5915 = vst [vmem:[%s5770] ss:$4 sm:$0xff] %v5584
      %5916 = vst [vmem:[%s5772] ss:$4 sm:$0xff] %v5585
      %5917 = vst [vmem:[%s5774] ss:$4 sm:$0xff] %v5586
      %5918 = vst [vmem:[%s5776] ss:$4 sm:$0xff] %v5587
      %5919 = vst [vmem:[%s5778] ss:$4 sm:$0xff] %v5588
      %v5920 = vld.sshfl [vmem:[#allocation1] sm:$0xff pattern:$0x73625140]
      %v5921 = vld.sshfl [vmem:[#allocation1 + $0x20] sm:$0xff pattern:$0x73625140]
      %5922 = vst [vmem:[#allocation1] ss:$4 sm:$0xff] %v5589
      %5923 = vst [vmem:[%s5766] ss:$4 sm:$0xff] %v5590
      %5924 = vst [vmem:[%s5768] ss:$4 sm:$0xff] %v5591
      %5925 = vst [vmem:[%s5770] ss:$4 sm:$0xff] %v5592
      %5926 = vst [vmem:[%s5772] ss:$4 sm:$0xff] %v5593
      %5927 = vst [vmem:[%s5774] ss:$4 sm:$0xff] %v5594
      %5928 = vst [vmem:[%s5776] ss:$4 sm:$0xff] %v5595
      %5929 = vst [vmem:[%s5778] ss:$4 sm:$0xff] %v5596
      %v5930 = vld.sshfl [vmem:[#allocation1] sm:$0xff pattern:$0x73625140]
      %v5931 = vld.sshfl [vmem:[#allocation1 + $0x20] sm:$0xff pattern:$0x73625140]
      %5932 = vst [vmem:[#allocation1] ss:$4 sm:$0xff] %v5597
      %5933 = vst [vmem:[%s5766] ss:$4 sm:$0xff] %v5598
      %5934 = vst [vmem:[%s5768] ss:$4 sm:$0xff] %v5599
      %5935 = vst [vmem:[%s5770] ss:$4 sm:$0xff] %v5600
      %5936 = vst [vmem:[%s5772] ss:$4 sm:$0xff] %v5601
      %5937 = vst [vmem:[%s5774] ss:$4 sm:$0xff] %v5602
      %5938 = vst [vmem:[%s5776] ss:$4 sm:$0xff] %v5603
      %5939 = vst [vmem:[%s5778] ss:$4 sm:$0xff] %v5604
      %v5940 = vld.sshfl [vmem:[#allocation1] sm:$0xff pattern:$0x73625140]
      %v5941 = vld.sshfl [vmem:[#allocation1 + $0x20] sm:$0xff pattern:$0x73625140]
      %5942 = vst [vmem:[#allocation1] ss:$4 sm:$0xff] %v5589
      %5943 = vst [vmem:[%s5766] ss:$4 sm:$0xff] %v5590
      %5944 = vst [vmem:[%s5768] ss:$4 sm:$0xff] %v5591
      %5945 = vst [vmem:[%s5770] ss:$4 sm:$0xff] %v5592
      %5946 = vst [vmem:[%s5772] ss:$4 sm:$0xff] %v5593
      %5947 = vst [vmem:[%s5774] ss:$4 sm:$0xff] %v5594
      %5948 = vst [vmem:[%s5776] ss:$4 sm:$0xff] %v5595
      %5949 = vst [vmem:[%s5778] ss:$4 sm:$0xff] %v5596
      %v5950 = vld.sshfl [vmem:[#allocation1] sm:$0xff pattern:$0x73625140]
      %v5951 = vld.sshfl [vmem:[#allocation1 + $0x20] sm:$0xff pattern:$0x73625140]
      %v5952 = vrot.slane %v5780, 7
      %v5953 = vrot.slane %v5781, 7
      %v5954 = vsel %vm267, %v5952, %v5953
      %v5955 = vrot.slane %v5790, 7
      %v5956 = vrot.slane %v5791, 7
      %v5957 = vsel %vm267, %v5955, %v5956
      %v5958 = vrot.slane %v5800, 7
      %v5959 = vrot.slane %v5801, 7
      %v5960 = vsel %vm267, %v5958, %v5959
      %v5961 = vrot.slane %v5810, 7
      %v5962 = vrot.slane %v5811, 7
      %v5963 = vsel %vm267, %v5961, %v5962
      %v5964 = vrot.slane %v5820, 7
      %v5965 = vrot.slane %v5821, 7
      %v5966 = vsel %vm267, %v5964, %v5965
      %v5967 = vrot.slane %v5830, 7
      %v5968 = vrot.slane %v5831, 7
      %v5969 = vsel %vm267, %v5967, %v5968
      %v5970 = vrot.slane %v5840, 7
      %v5971 = vrot.slane %v5841, 7
      %v5972 = vsel %vm267, %v5970, %v5971
      %v5973 = vrot.slane %v5850, 7
      %v5974 = vrot.slane %v5851, 7
      %v5975 = vsel %vm267, %v5973, %v5974
      %v5976 = vrot.slane %v5860, 7
      %v5977 = vrot.slane %v5861, 7
      %v5978 = vsel %vm267, %v5976, %v5977
      %v5979 = vrot.slane %v5870, 7
      %v5980 = vrot.slane %v5871, 7
      %v5981 = vsel %vm267, %v5979, %v5980
      %v5982 = vrot.slane %v5880, 7
      %v5983 = vrot.slane %v5881, 7
      %v5984 = vsel %vm267, %v5982, %v5983
      %v5985 = vrot.slane %v5890, 7
      %v5986 = vrot.slane %v5891, 7
      %v5987 = vsel %vm267, %v5985, %v5986
      %v5988 = vrot.slane %v5900, 7
      %v5989 = vrot.slane %v5901, 7
      %v5990 = vsel %vm267, %v5988, %v5989
      %v5991 = vrot.slane %v5910, 7
      %v5992 = vrot.slane %v5911, 7
      %v5993 = vsel %vm267, %v5991, %v5992
      %v5994 = vrot.slane %v5920, 7
      %v5995 = vrot.slane %v5921, 7
      %v5996 = vsel %vm267, %v5994, %v5995
      %v5997 = vrot.slane %v5930, 7
      %v5998 = vrot.slane %v5931, 7
      %v5999 = vsel %vm267, %v5997, %v5998
      %v6000 = vrot.slane %v5940, 7
      %v6001 = vrot.slane %v5941, 7
      %v6002 = vsel %vm267, %v6000, %v6001
      %v6003 = vrot.slane %v5950, 7
      %v6004 = vrot.slane %v5951, 7
      %v6005 = vsel %vm267, %v6003, %v6004
      %v6042 = vperm.slane %v5492, 0
      %v6043 = vperm.slane %v5484, 0
      %v6044 = vperm.slane %v5500, 0
      %v6045 = vperm.slane %v5508, 0
      %v6046 = vperm.slane %v5516, 0
      %v6047 = vperm.slane %v5524, 0
      %v6048 = vperm.slane %v5532, 0
      %v6049 = vperm.slane %v5540, 0
      %v6050 = vperm.slane %v5548, 0
      %v6051 = vperm.slane %v5556, 0
      %v6052 = vperm.slane %v5564, 0
      %v6053 = vperm.slane %v5572, 0
      %v6054 = vperm.slane %v5580, 0
      %v6055 = vperm.slane %v5588, 0
      %v6056 = vperm.slane %v5596, 0
      %v6057 = vperm.slane %v5604, 0
      %v6074 = vsel %vm267, %v5621, %v5952
      %v6075 = vsel %vm267, %v5622, %v5955
      %v6076 = vsel %vm267, %v5621, %v5958
      %v6077 = vsel %vm267, %v5623, %v5961
      %v6078 = vsel %vm267, %v5624, %v5964
      %v6079 = vsel %vm267, %v5625, %v5967
      %v6080 = vsel %vm267, %v5626, %v5970
      %v6081 = vsel %vm267, %v5627, %v5973
      %v6082 = vsel %vm267, %v5628, %v5976
      %v6083 = vsel %vm267, %v5629, %v5979
      %v6084 = vsel %vm267, %v5630, %v5982
      %v6085 = vsel %vm267, %v5631, %v5985
      %v6086 = vsel %vm267, %v5632, %v5988
      %v6087 = vsel %vm267, %v5633, %v5991
      %v6088 = vsel %vm267, %v5634, %v5994
      %v6089 = vsel %vm267, %v5635, %v5997
      %v6090 = vsel %vm267, %v5636, %v6000
      %v6091 = vsel %vm267, %v5635, %v6003
      %v6092 = vsel %vm267, %v5953, %v6042
      %v6093 = vsel %vm267, %v5956, %v6043
      %v6094 = vsel %vm267, %v5959, %v6042
      %v6095 = vsel %vm267, %v5962, %v6044
      %v6096 = vsel %vm267, %v5965, %v6045
      %v6097 = vsel %vm267, %v5968, %v6046
      %v6098 = vsel %vm267, %v5971, %v6047
      %v6099 = vsel %vm267, %v5974, %v6048
      %v6100 = vsel %vm267, %v5977, %v6049
      %v6101 = vsel %vm267, %v5980, %v6050
      %v6102 = vsel %vm267, %v5983, %v6051
      %v6103 = vsel %vm267, %v5986, %v6052
      %v6104 = vsel %vm267, %v5989, %v6053
      %v6105 = vsel %vm267, %v5992, %v6054
      %v6106 = vsel %vm267, %v5995, %v6055
      %v6107 = vsel %vm267, %v5998, %v6056
      %v6108 = vsel %vm267, %v6001, %v6057
      %v6109 = vsel %vm267, %v6004, %v6056
      %v6146 = vrot.slane %v6075, 6
      %v6147 = vrot.slane %v6076, 4
      %v6148 = vrot.slane %v5957, 6
      %v6149 = vrot.slane %v5960, 4
      %v6150 = vrot.slane %v6093, 6
      %v6151 = vrot.slane %v6094, 4
      %v6152 = vrot.slane %v6076, 6
      %v6153 = vrot.slane %v6077, 4
      %v6154 = vrot.slane %v5960, 6
      %v6155 = vrot.slane %v5963, 4
      %v6156 = vrot.slane %v6094, 6
      %v6157 = vrot.slane %v6095, 4
      %v6158 = vrot.slane %v6077, 6
      %v6159 = vrot.slane %v6078, 4
      %v6160 = vrot.slane %v5963, 6
      %v6161 = vrot.slane %v5966, 4
      %v6162 = vrot.slane %v6095, 6
      %v6163 = vrot.slane %v6096, 4
      %v6164 = vrot.slane %v6078, 6
      %v6165 = vrot.slane %v6079, 4
      %v6166 = vrot.slane %v5966, 6
      %v6167 = vrot.slane %v5969, 4
      %v6168 = vrot.slane %v6096, 6
      %v6169 = vrot.slane %v6097, 4
      %v6170 = vrot.slane %v6079, 6
      %v6171 = vrot.slane %v6080, 4
      %v6172 = vrot.slane %v5969, 6
      %v6173 = vrot.slane %v5972, 4
      %v6174 = vrot.slane %v6097, 6
      %v6175 = vrot.slane %v6098, 4
      %v6176 = vrot.slane %v6080, 6
      %v6177 = vrot.slane %v6081, 4
      %v6178 = vrot.slane %v5972, 6
      %v6179 = vrot.slane %v5975, 4
      %v6180 = vrot.slane %v6098, 6
      %v6181 = vrot.slane %v6099, 4
      %v6182 = vrot.slane %v6081, 6
      %v6183 = vrot.slane %v6082, 4
      %v6184 = vrot.slane %v5975, 6
      %v6185 = vrot.slane %v5978, 4
      %v6186 = vrot.slane %v6099, 6
      %v6187 = vrot.slane %v6100, 4
      %v6188 = vrot.slane %v6082, 6
      %v6189 = vrot.slane %v6083, 4
      %v6190 = vrot.slane %v5978, 6
      %v6191 = vrot.slane %v5981, 4
      %v6192 = vrot.slane %v6100, 6
      %v6193 = vrot.slane %v6101, 4
      %v6194 = vrot.slane %v6083, 6
      %v6195 = vrot.slane %v6084, 4
      %v6196 = vrot.slane %v5981, 6
      %v6197 = vrot.slane %v5984, 4
      %v6198 = vrot.slane %v6101, 6
      %v6199 = vrot.slane %v6102, 4
      %v6200 = vrot.slane %v6084, 6
      %v6201 = vrot.slane %v6085, 4
      %v6202 = vrot.slane %v5984, 6
      %v6203 = vrot.slane %v5987, 4
      %v6204 = vrot.slane %v6102, 6
      %v6205 = vrot.slane %v6103, 4
      %v6206 = vrot.slane %v6085, 6
      %v6207 = vrot.slane %v6086, 4
      %v6208 = vrot.slane %v5987, 6
      %v6209 = vrot.slane %v5990, 4
      %v6210 = vrot.slane %v6103, 6
      %v6211 = vrot.slane %v6104, 4
      %v6212 = vrot.slane %v6086, 6
      %v6213 = vrot.slane %v6087, 4
      %v6214 = vrot.slane %v5990, 6
      %v6215 = vrot.slane %v5993, 4
      %v6216 = vrot.slane %v6104, 6
      %v6217 = vrot.slane %v6105, 4
      %v6218 = vrot.slane %v6087, 6
      %v6219 = vrot.slane %v6088, 4
      %v6220 = vrot.slane %v5993, 6
      %v6221 = vrot.slane %v5996, 4
      %v6222 = vrot.slane %v6105, 6
      %v6223 = vrot.slane %v6106, 4
      %v6224 = vrot.slane %v6088, 6
      %v6225 = vrot.slane %v6089, 4
      %v6226 = vrot.slane %v5996, 6
      %v6227 = vrot.slane %v5999, 4
      %v6228 = vrot.slane %v6106, 6
      %v6229 = vrot.slane %v6107, 4
      %v6230 = vrot.slane %v6089, 6
      %v6231 = vrot.slane %v6090, 4
      %v6232 = vrot.slane %v5999, 6
      %v6233 = vrot.slane %v6002, 4
      %v6234 = vrot.slane %v6107, 6
      %v6235 = vrot.slane %v6108, 4
      %v6236 = vrot.slane %v6090, 6
      %v6237 = vrot.slane %v6091, 4
      %v6238 = vrot.slane %v6002, 6
      %v6239 = vrot.slane %v6005, 4
      %v6240 = vrot.slane %v6108, 6
      %v6241 = vrot.slane %v6109, 4
      %v6242 = vsel %vm537, %v6074, %v6146
      %v6243 = vsel %vm539, %v6242, %v6147
      %v6244 = vsel %vm541, %v6074, %v6146
      %v6245 = vsel %vm543, %v6244, %v6147
      %v6246 = vrot.slane %v6245, 2
      %v6247 = vsel %vm546, %v6074, %v6146
      %v6248 = vsel %vm539, %v6147, %v6247
      %v6249 = vrot.slane %v6248, 4
      %v6250 = vsel %vm550, %v6146, %v6074
      %v6251 = vsel %vm543, %v6147, %v6250
      %v6252 = vrot.slane %v6251, 6
      %v6253 = vsel %vm537, %v5954, %v6148
      %v6254 = vsel %vm539, %v6253, %v6149
      %v6255 = vsel %vm541, %v5954, %v6148
      %v6256 = vsel %vm543, %v6255, %v6149
      %v6257 = vrot.slane %v6256, 2
      %v6258 = vsel %vm546, %v5954, %v6148
      %v6259 = vsel %vm539, %v6149, %v6258
      %v6260 = vrot.slane %v6259, 4
      %v6261 = vsel %vm550, %v6148, %v5954
      %v6262 = vsel %vm543, %v6149, %v6261
      %v6263 = vrot.slane %v6262, 6
      %v6264 = vsel %vm537, %v6092, %v6150
      %v6265 = vsel %vm539, %v6264, %v6151
      %v6266 = vsel %vm537, %v6075, %v6152
      %v6267 = vsel %vm539, %v6266, %v6153
      %v6268 = vsel %vm541, %v6075, %v6152
      %v6269 = vsel %vm543, %v6268, %v6153
      %v6270 = vrot.slane %v6269, 2
      %v6271 = vsel %vm546, %v6075, %v6152
      %v6272 = vsel %vm539, %v6153, %v6271
      %v6273 = vrot.slane %v6272, 4
      %v6274 = vsel %vm550, %v6152, %v6075
      %v6275 = vsel %vm543, %v6153, %v6274
      %v6276 = vrot.slane %v6275, 6
      %v6277 = vsel %vm537, %v5957, %v6154
      %v6278 = vsel %vm539, %v6277, %v6155
      %v6279 = vsel %vm541, %v5957, %v6154
      %v6280 = vsel %vm543, %v6279, %v6155
      %v6281 = vrot.slane %v6280, 2
      %v6282 = vsel %vm546, %v5957, %v6154
      %v6283 = vsel %vm539, %v6155, %v6282
      %v6284 = vrot.slane %v6283, 4
      %v6285 = vsel %vm550, %v6154, %v5957
      %v6286 = vsel %vm543, %v6155, %v6285
      %v6287 = vrot.slane %v6286, 6
      %v6288 = vsel %vm537, %v6093, %v6156
      %v6289 = vsel %vm539, %v6288, %v6157
      %v6290 = vsel %vm537, %v6076, %v6158
      %v6291 = vsel %vm539, %v6290, %v6159
      %v6292 = vsel %vm541, %v6076, %v6158
      %v6293 = vsel %vm543, %v6292, %v6159
      %v6294 = vrot.slane %v6293, 2
      %v6295 = vsel %vm546, %v6076, %v6158
      %v6296 = vsel %vm539, %v6159, %v6295
      %v6297 = vrot.slane %v6296, 4
      %v6298 = vsel %vm550, %v6158, %v6076
      %v6299 = vsel %vm543, %v6159, %v6298
      %v6300 = vrot.slane %v6299, 6
      %v6301 = vsel %vm537, %v5960, %v6160
      %v6302 = vsel %vm539, %v6301, %v6161
      %v6303 = vsel %vm541, %v5960, %v6160
      %v6304 = vsel %vm543, %v6303, %v6161
      %v6305 = vrot.slane %v6304, 2
      %v6306 = vsel %vm546, %v5960, %v6160
      %v6307 = vsel %vm539, %v6161, %v6306
      %v6308 = vrot.slane %v6307, 4
      %v6309 = vsel %vm550, %v6160, %v5960
      %v6310 = vsel %vm543, %v6161, %v6309
      %v6311 = vrot.slane %v6310, 6
      %v6312 = vsel %vm537, %v6094, %v6162
      %v6313 = vsel %vm539, %v6312, %v6163
      %v6314 = vsel %vm537, %v6077, %v6164
      %v6315 = vsel %vm539, %v6314, %v6165
      %v6316 = vsel %vm541, %v6077, %v6164
      %v6317 = vsel %vm543, %v6316, %v6165
      %v6318 = vrot.slane %v6317, 2
      %v6319 = vsel %vm546, %v6077, %v6164
      %v6320 = vsel %vm539, %v6165, %v6319
      %v6321 = vrot.slane %v6320, 4
      %v6322 = vsel %vm550, %v6164, %v6077
      %v6323 = vsel %vm543, %v6165, %v6322
      %v6324 = vrot.slane %v6323, 6
      %v6325 = vsel %vm537, %v5963, %v6166
      %v6326 = vsel %vm539, %v6325, %v6167
      %v6327 = vsel %vm541, %v5963, %v6166
      %v6328 = vsel %vm543, %v6327, %v6167
      %v6329 = vrot.slane %v6328, 2
      %v6330 = vsel %vm546, %v5963, %v6166
      %v6331 = vsel %vm539, %v6167, %v6330
      %v6332 = vrot.slane %v6331, 4
      %v6333 = vsel %vm550, %v6166, %v5963
      %v6334 = vsel %vm543, %v6167, %v6333
      %v6335 = vrot.slane %v6334, 6
      %v6336 = vsel %vm537, %v6095, %v6168
      %v6337 = vsel %vm539, %v6336, %v6169
      %v6338 = vsel %vm537, %v6078, %v6170
      %v6339 = vsel %vm539, %v6338, %v6171
      %v6340 = vsel %vm541, %v6078, %v6170
      %v6341 = vsel %vm543, %v6340, %v6171
      %v6342 = vrot.slane %v6341, 2
      %v6343 = vsel %vm546, %v6078, %v6170
      %v6344 = vsel %vm539, %v6171, %v6343
      %v6345 = vrot.slane %v6344, 4
      %v6346 = vsel %vm550, %v6170, %v6078
      %v6347 = vsel %vm543, %v6171, %v6346
      %v6348 = vrot.slane %v6347, 6
      %v6349 = vsel %vm537, %v5966, %v6172
      %v6350 = vsel %vm539, %v6349, %v6173
      %v6351 = vsel %vm541, %v5966, %v6172
      %v6352 = vsel %vm543, %v6351, %v6173
      %v6353 = vrot.slane %v6352, 2
      %v6354 = vsel %vm546, %v5966, %v6172
      %v6355 = vsel %vm539, %v6173, %v6354
      %v6356 = vrot.slane %v6355, 4
      %v6357 = vsel %vm550, %v6172, %v5966
      %v6358 = vsel %vm543, %v6173, %v6357
      %v6359 = vrot.slane %v6358, 6
      %v6360 = vsel %vm537, %v6096, %v6174
      %v6361 = vsel %vm539, %v6360, %v6175
      %v6362 = vsel %vm537, %v6079, %v6176
      %v6363 = vsel %vm539, %v6362, %v6177
      %v6364 = vsel %vm541, %v6079, %v6176
      %v6365 = vsel %vm543, %v6364, %v6177
      %v6366 = vrot.slane %v6365, 2
      %v6367 = vsel %vm546, %v6079, %v6176
      %v6368 = vsel %vm539, %v6177, %v6367
      %v6369 = vrot.slane %v6368, 4
      %v6370 = vsel %vm550, %v6176, %v6079
      %v6371 = vsel %vm543, %v6177, %v6370
      %v6372 = vrot.slane %v6371, 6
      %v6373 = vsel %vm537, %v5969, %v6178
      %v6374 = vsel %vm539, %v6373, %v6179
      %v6375 = vsel %vm541, %v5969, %v6178
      %v6376 = vsel %vm543, %v6375, %v6179
      %v6377 = vrot.slane %v6376, 2
      %v6378 = vsel %vm546, %v5969, %v6178
      %v6379 = vsel %vm539, %v6179, %v6378
      %v6380 = vrot.slane %v6379, 4
      %v6381 = vsel %vm550, %v6178, %v5969
      %v6382 = vsel %vm543, %v6179, %v6381
      %v6383 = vrot.slane %v6382, 6
      %v6384 = vsel %vm537, %v6097, %v6180
      %v6385 = vsel %vm539, %v6384, %v6181
      %v6386 = vsel %vm537, %v6080, %v6182
      %v6387 = vsel %vm539, %v6386, %v6183
      %v6388 = vsel %vm541, %v6080, %v6182
      %v6389 = vsel %vm543, %v6388, %v6183
      %v6390 = vrot.slane %v6389, 2
      %v6391 = vsel %vm546, %v6080, %v6182
      %v6392 = vsel %vm539, %v6183, %v6391
      %v6393 = vrot.slane %v6392, 4
      %v6394 = vsel %vm550, %v6182, %v6080
      %v6395 = vsel %vm543, %v6183, %v6394
      %v6396 = vrot.slane %v6395, 6
      %v6397 = vsel %vm537, %v5972, %v6184
      %v6398 = vsel %vm539, %v6397, %v6185
      %v6399 = vsel %vm541, %v5972, %v6184
      %v6400 = vsel %vm543, %v6399, %v6185
      %v6401 = vrot.slane %v6400, 2
      %v6402 = vsel %vm546, %v5972, %v6184
      %v6403 = vsel %vm539, %v6185, %v6402
      %v6404 = vrot.slane %v6403, 4
      %v6405 = vsel %vm550, %v6184, %v5972
      %v6406 = vsel %vm543, %v6185, %v6405
      %v6407 = vrot.slane %v6406, 6
      %v6408 = vsel %vm537, %v6098, %v6186
      %v6409 = vsel %vm539, %v6408, %v6187
      %v6410 = vsel %vm537, %v6081, %v6188
      %v6411 = vsel %vm539, %v6410, %v6189
      %v6412 = vsel %vm541, %v6081, %v6188
      %v6413 = vsel %vm543, %v6412, %v6189
      %v6414 = vrot.slane %v6413, 2
      %v6415 = vsel %vm546, %v6081, %v6188
      %v6416 = vsel %vm539, %v6189, %v6415
      %v6417 = vrot.slane %v6416, 4
      %v6418 = vsel %vm550, %v6188, %v6081
      %v6419 = vsel %vm543, %v6189, %v6418
      %v6420 = vrot.slane %v6419, 6
      %v6421 = vsel %vm537, %v5975, %v6190
      %v6422 = vsel %vm539, %v6421, %v6191
      %v6423 = vsel %vm541, %v5975, %v6190
      %v6424 = vsel %vm543, %v6423, %v6191
      %v6425 = vrot.slane %v6424, 2
      %v6426 = vsel %vm546, %v5975, %v6190
      %v6427 = vsel %vm539, %v6191, %v6426
      %v6428 = vrot.slane %v6427, 4
      %v6429 = vsel %vm550, %v6190, %v5975
      %v6430 = vsel %vm543, %v6191, %v6429
      %v6431 = vrot.slane %v6430, 6
      %v6432 = vsel %vm537, %v6099, %v6192
      %v6433 = vsel %vm539, %v6432, %v6193
      %v6434 = vsel %vm537, %v6082, %v6194
      %v6435 = vsel %vm539, %v6434, %v6195
      %v6436 = vsel %vm541, %v6082, %v6194
      %v6437 = vsel %vm543, %v6436, %v6195
      %v6438 = vrot.slane %v6437, 2
      %v6439 = vsel %vm546, %v6082, %v6194
      %v6440 = vsel %vm539, %v6195, %v6439
      %v6441 = vrot.slane %v6440, 4
      %v6442 = vsel %vm550, %v6194, %v6082
      %v6443 = vsel %vm543, %v6195, %v6442
      %v6444 = vrot.slane %v6443, 6
      %v6445 = vsel %vm537, %v5978, %v6196
      %v6446 = vsel %vm539, %v6445, %v6197
      %v6447 = vsel %vm541, %v5978, %v6196
      %v6448 = vsel %vm543, %v6447, %v6197
      %v6449 = vrot.slane %v6448, 2
      %v6450 = vsel %vm546, %v5978, %v6196
      %v6451 = vsel %vm539, %v6197, %v6450
      %v6452 = vrot.slane %v6451, 4
      %v6453 = vsel %vm550, %v6196, %v5978
      %v6454 = vsel %vm543, %v6197, %v6453
      %v6455 = vrot.slane %v6454, 6
      %v6456 = vsel %vm537, %v6100, %v6198
      %v6457 = vsel %vm539, %v6456, %v6199
      %v6458 = vsel %vm537, %v6083, %v6200
      %v6459 = vsel %vm539, %v6458, %v6201
      %v6460 = vsel %vm541, %v6083, %v6200
      %v6461 = vsel %vm543, %v6460, %v6201
      %v6462 = vrot.slane %v6461, 2
      %v6463 = vsel %vm546, %v6083, %v6200
      %v6464 = vsel %vm539, %v6201, %v6463
      %v6465 = vrot.slane %v6464, 4
      %v6466 = vsel %vm550, %v6200, %v6083
      %v6467 = vsel %vm543, %v6201, %v6466
      %v6468 = vrot.slane %v6467, 6
      %v6469 = vsel %vm537, %v5981, %v6202
      %v6470 = vsel %vm539, %v6469, %v6203
      %v6471 = vsel %vm541, %v5981, %v6202
      %v6472 = vsel %vm543, %v6471, %v6203
      %v6473 = vrot.slane %v6472, 2
      %v6474 = vsel %vm546, %v5981, %v6202
      %v6475 = vsel %vm539, %v6203, %v6474
      %v6476 = vrot.slane %v6475, 4
      %v6477 = vsel %vm550, %v6202, %v5981
      %v6478 = vsel %vm543, %v6203, %v6477
      %v6479 = vrot.slane %v6478, 6
      %v6480 = vsel %vm537, %v6101, %v6204
      %v6481 = vsel %vm539, %v6480, %v6205
      %v6482 = vsel %vm537, %v6084, %v6206
      %v6483 = vsel %vm539, %v6482, %v6207
      %v6484 = vsel %vm541, %v6084, %v6206
      %v6485 = vsel %vm543, %v6484, %v6207
      %v6486 = vrot.slane %v6485, 2
      %v6487 = vsel %vm546, %v6084, %v6206
      %v6488 = vsel %vm539, %v6207, %v6487
      %v6489 = vrot.slane %v6488, 4
      %v6490 = vsel %vm550, %v6206, %v6084
      %v6491 = vsel %vm543, %v6207, %v6490
      %v6492 = vrot.slane %v6491, 6
      %v6493 = vsel %vm537, %v5984, %v6208
      %v6494 = vsel %vm539, %v6493, %v6209
      %v6495 = vsel %vm541, %v5984, %v6208
      %v6496 = vsel %vm543, %v6495, %v6209
      %v6497 = vrot.slane %v6496, 2
      %v6498 = vsel %vm546, %v5984, %v6208
      %v6499 = vsel %vm539, %v6209, %v6498
      %v6500 = vrot.slane %v6499, 4
      %v6501 = vsel %vm550, %v6208, %v5984
      %v6502 = vsel %vm543, %v6209, %v6501
      %v6503 = vrot.slane %v6502, 6
      %v6504 = vsel %vm537, %v6102, %v6210
      %v6505 = vsel %vm539, %v6504, %v6211
      %v6506 = vsel %vm537, %v6085, %v6212
      %v6507 = vsel %vm539, %v6506, %v6213
      %v6508 = vsel %vm541, %v6085, %v6212
      %v6509 = vsel %vm543, %v6508, %v6213
      %v6510 = vrot.slane %v6509, 2
      %v6511 = vsel %vm546, %v6085, %v6212
      %v6512 = vsel %vm539, %v6213, %v6511
      %v6513 = vrot.slane %v6512, 4
      %v6514 = vsel %vm550, %v6212, %v6085
      %v6515 = vsel %vm543, %v6213, %v6514
      %v6516 = vrot.slane %v6515, 6
      %v6517 = vsel %vm537, %v5987, %v6214
      %v6518 = vsel %vm539, %v6517, %v6215
      %v6519 = vsel %vm541, %v5987, %v6214
      %v6520 = vsel %vm543, %v6519, %v6215
      %v6521 = vrot.slane %v6520, 2
      %v6522 = vsel %vm546, %v5987, %v6214
      %v6523 = vsel %vm539, %v6215, %v6522
      %v6524 = vrot.slane %v6523, 4
      %v6525 = vsel %vm550, %v6214, %v5987
      %v6526 = vsel %vm543, %v6215, %v6525
      %v6527 = vrot.slane %v6526, 6
      %v6528 = vsel %vm537, %v6103, %v6216
      %v6529 = vsel %vm539, %v6528, %v6217
      %v6530 = vsel %vm537, %v6086, %v6218
      %v6531 = vsel %vm539, %v6530, %v6219
      %v6532 = vsel %vm541, %v6086, %v6218
      %v6533 = vsel %vm543, %v6532, %v6219
      %v6534 = vrot.slane %v6533, 2
      %v6535 = vsel %vm546, %v6086, %v6218
      %v6536 = vsel %vm539, %v6219, %v6535
      %v6537 = vrot.slane %v6536, 4
      %v6538 = vsel %vm550, %v6218, %v6086
      %v6539 = vsel %vm543, %v6219, %v6538
      %v6540 = vrot.slane %v6539, 6
      %v6541 = vsel %vm537, %v5990, %v6220
      %v6542 = vsel %vm539, %v6541, %v6221
      %v6543 = vsel %vm541, %v5990, %v6220
      %v6544 = vsel %vm543, %v6543, %v6221
      %v6545 = vrot.slane %v6544, 2
      %v6546 = vsel %vm546, %v5990, %v6220
      %v6547 = vsel %vm539, %v6221, %v6546
      %v6548 = vrot.slane %v6547, 4
      %v6549 = vsel %vm550, %v6220, %v5990
      %v6550 = vsel %vm543, %v6221, %v6549
      %v6551 = vrot.slane %v6550, 6
      %v6552 = vsel %vm537, %v6104, %v6222
      %v6553 = vsel %vm539, %v6552, %v6223
      %v6554 = vsel %vm537, %v6087, %v6224
      %v6555 = vsel %vm539, %v6554, %v6225
      %v6556 = vsel %vm541, %v6087, %v6224
      %v6557 = vsel %vm543, %v6556, %v6225
      %v6558 = vrot.slane %v6557, 2
      %v6559 = vsel %vm546, %v6087, %v6224
      %v6560 = vsel %vm539, %v6225, %v6559
      %v6561 = vrot.slane %v6560, 4
      %v6562 = vsel %vm550, %v6224, %v6087
      %v6563 = vsel %vm543, %v6225, %v6562
      %v6564 = vrot.slane %v6563, 6
      %v6565 = vsel %vm537, %v5993, %v6226
      %v6566 = vsel %vm539, %v6565, %v6227
      %v6567 = vsel %vm541, %v5993, %v6226
      %v6568 = vsel %vm543, %v6567, %v6227
      %v6569 = vrot.slane %v6568, 2
      %v6570 = vsel %vm546, %v5993, %v6226
      %v6571 = vsel %vm539, %v6227, %v6570
      %v6572 = vrot.slane %v6571, 4
      %v6573 = vsel %vm550, %v6226, %v5993
      %v6574 = vsel %vm543, %v6227, %v6573
      %v6575 = vrot.slane %v6574, 6
      %v6576 = vsel %vm537, %v6105, %v6228
      %v6577 = vsel %vm539, %v6576, %v6229
      %v6578 = vsel %vm537, %v6088, %v6230
      %v6579 = vsel %vm539, %v6578, %v6231
      %v6580 = vsel %vm541, %v6088, %v6230
      %v6581 = vsel %vm543, %v6580, %v6231
      %v6582 = vrot.slane %v6581, 2
      %v6583 = vsel %vm546, %v6088, %v6230
      %v6584 = vsel %vm539, %v6231, %v6583
      %v6585 = vrot.slane %v6584, 4
      %v6586 = vsel %vm550, %v6230, %v6088
      %v6587 = vsel %vm543, %v6231, %v6586
      %v6588 = vrot.slane %v6587, 6
      %v6589 = vsel %vm537, %v5996, %v6232
      %v6590 = vsel %vm539, %v6589, %v6233
      %v6591 = vsel %vm541, %v5996, %v6232
      %v6592 = vsel %vm543, %v6591, %v6233
      %v6593 = vrot.slane %v6592, 2
      %v6594 = vsel %vm546, %v5996, %v6232
      %v6595 = vsel %vm539, %v6233, %v6594
      %v6596 = vrot.slane %v6595, 4
      %v6597 = vsel %vm550, %v6232, %v5996
      %v6598 = vsel %vm543, %v6233, %v6597
      %v6599 = vrot.slane %v6598, 6
      %v6600 = vsel %vm537, %v6106, %v6234
      %v6601 = vsel %vm539, %v6600, %v6235
      %v6602 = vsel %vm537, %v6089, %v6236
      %v6603 = vsel %vm539, %v6602, %v6237
      %v6604 = vsel %vm541, %v6089, %v6236
      %v6605 = vsel %vm543, %v6604, %v6237
      %v6606 = vrot.slane %v6605, 2
      %v6607 = vsel %vm546, %v6089, %v6236
      %v6608 = vsel %vm539, %v6237, %v6607
      %v6609 = vrot.slane %v6608, 4
      %v6610 = vsel %vm550, %v6236, %v6089
      %v6611 = vsel %vm543, %v6237, %v6610
      %v6612 = vrot.slane %v6611, 6
      %v6613 = vsel %vm537, %v5999, %v6238
      %v6614 = vsel %vm539, %v6613, %v6239
      %v6615 = vsel %vm541, %v5999, %v6238
      %v6616 = vsel %vm543, %v6615, %v6239
      %v6617 = vrot.slane %v6616, 2
      %v6618 = vsel %vm546, %v5999, %v6238
      %v6619 = vsel %vm539, %v6239, %v6618
      %v6620 = vrot.slane %v6619, 4
      %v6621 = vsel %vm550, %v6238, %v5999
      %v6622 = vsel %vm543, %v6239, %v6621
      %v6623 = vrot.slane %v6622, 6
      %v6624 = vsel %vm537, %v6107, %v6240
      %v6625 = vsel %vm539, %v6624, %v6241
      %6626 = vst [vmem:[#allocation1] ss:$4 sm:$0xff] %v6243
      %s6627 = scalar_lea.vmem [#allocation1], 1
      %6628 = vst [vmem:[%s6627] ss:$4 sm:$0xff] %v6246
      %s6629 = scalar_lea.vmem [#allocation1], 2
      %6630 = vst [vmem:[%s6629] ss:$4 sm:$0xff] %v6249
      %s6631 = scalar_lea.vmem [#allocation1], 3
      %6632 = vst [vmem:[%s6631] ss:$4 sm:$0xff] %v6252
      %s6633 = scalar_lea.vmem [#allocation1], 32
      %6634 = vst [vmem:[%s6633] ss:$4 sm:$0xff] %v6254
      %s6635 = scalar_lea.vmem [#allocation1], 33
      %6636 = vst [vmem:[%s6635] ss:$4 sm:$0xff] %v6257
      %s6637 = scalar_lea.vmem [#allocation1], 34
      %6638 = vst [vmem:[%s6637] ss:$4 sm:$0xff] %v6260
      %s6639 = scalar_lea.vmem [#allocation1], 35
      %6640 = vst [vmem:[%s6639] ss:$4 sm:$0xff] %v6263
      %v6641 = vld.sshfl [vmem:[#allocation1] sm:$0xff pattern:$0x73625140]
      %v6642 = vld.sshfl [vmem:[#allocation1 + $0x8] sm:$0xff pattern:$0x73625140]
      %v6643 = vld.sshfl [vmem:[#allocation1 + $0x10] sm:$0xff pattern:$0x73625140]
      %v6644 = vld.sshfl [vmem:[#allocation1 + $0x20] sm:$0xff pattern:$0x73625140]
      %v6645 = vld.sshfl [vmem:[#allocation1 + $0x28] sm:$0xff pattern:$0x73625140]
      %v6646 = vld.sshfl [vmem:[#allocation1 + $0x30] sm:$0xff pattern:$0x73625140]
      %6647 = vst [vmem:[#allocation1] ss:$4 sm:$0xff] %v6265
      %6648 = vst [vmem:[%s6627] ss:$4 sm:$0xff] %v6267
      %6649 = vst [vmem:[%s6629] ss:$4 sm:$0xff] %v6270
      %6650 = vst [vmem:[%s6631] ss:$4 sm:$0xff] %v6273
      %6651 = vst [vmem:[%s6633] ss:$4 sm:$0xff] %v6276
      %6652 = vst [vmem:[%s6635] ss:$4 sm:$0xff] %v6278
      %6653 = vst [vmem:[%s6637] ss:$4 sm:$0xff] %v6281
      %6654 = vst [vmem:[%s6639] ss:$4 sm:$0xff] %v6284
      %v6655 = vld.sshfl [vmem:[#allocation1] sm:$0xff pattern:$0x73625140]
      %v6656 = vld.sshfl [vmem:[#allocation1 + $0x8] sm:$0xff pattern:$0x73625140]
      %v6657 = vld.sshfl [vmem:[#allocation1 + $0x10] sm:$0xff pattern:$0x73625140]
      %v6658 = vld.sshfl [vmem:[#allocation1 + $0x20] sm:$0xff pattern:$0x73625140]
      %v6659 = vld.sshfl [vmem:[#allocation1 + $0x28] sm:$0xff pattern:$0x73625140]
      %v6660 = vld.sshfl [vmem:[#allocation1 + $0x30] sm:$0xff pattern:$0x73625140]
      %6661 = vst [vmem:[#allocation1] ss:$4 sm:$0xff] %v6287
      %6662 = vst [vmem:[%s6627] ss:$4 sm:$0xff] %v6289
      %6663 = vst [vmem:[%s6629] ss:$4 sm:$0xff] %v6291
      %6664 = vst [vmem:[%s6631] ss:$4 sm:$0xff] %v6294
      %6665 = vst [vmem:[%s6633] ss:$4 sm:$0xff] %v6297
      %6666 = vst [vmem:[%s6635] ss:$4 sm:$0xff] %v6300
      %6667 = vst [vmem:[%s6637] ss:$4 sm:$0xff] %v6302
      %6668 = vst [vmem:[%s6639] ss:$4 sm:$0xff] %v6305
      %v6669 = vld.sshfl [vmem:[#allocation1] sm:$0xff pattern:$0x73625140]
      %v6670 = vld.sshfl [vmem:[#allocation1 + $0x8] sm:$0xff pattern:$0x73625140]
      %v6671 = vld.sshfl [vmem:[#allocation1 + $0x10] sm:$0xff pattern:$0x73625140]
      %v6672 = vld.sshfl [vmem:[#allocation1 + $0x20] sm:$0xff pattern:$0x73625140]
      %v6673 = vld.sshfl [vmem:[#allocation1 + $0x28] sm:$0xff pattern:$0x73625140]
      %v6674 = vld.sshfl [vmem:[#allocation1 + $0x30] sm:$0xff pattern:$0x73625140]
      %6675 = vst [vmem:[#allocation1] ss:$4 sm:$0xff] %v6308
      %6676 = vst [vmem:[%s6627] ss:$4 sm:$0xff] %v6311
      %6677 = vst [vmem:[%s6629] ss:$4 sm:$0xff] %v6313
      %6678 = vst [vmem:[%s6631] ss:$4 sm:$0xff] %v6315
      %6679 = vst [vmem:[%s6633] ss:$4 sm:$0xff] %v6318
      %6680 = vst [vmem:[%s6635] ss:$4 sm:$0xff] %v6321
      %6681 = vst [vmem:[%s6637] ss:$4 sm:$0xff] %v6324
      %6682 = vst [vmem:[%s6639] ss:$4 sm:$0xff] %v6326
      %v6683 = vld.sshfl [vmem:[#allocation1] sm:$0xff pattern:$0x73625140]
      %v6684 = vld.sshfl [vmem:[#allocation1 + $0x8] sm:$0xff pattern:$0x73625140]
      %v6685 = vld.sshfl [vmem:[#allocation1 + $0x10] sm:$0xff pattern:$0x73625140]
      %v6686 = vld.sshfl [vmem:[#allocation1 + $0x20] sm:$0xff pattern:$0x73625140]
      %v6687 = vld.sshfl [vmem:[#allocation1 + $0x28] sm:$0xff pattern:$0x73625140]
      %v6688 = vld.sshfl [vmem:[#allocation1 + $0x30] sm:$0xff pattern:$0x73625140]
      %6689 = vst [vmem:[#allocation1] ss:$4 sm:$0xff] %v6329
      %6690 = vst [vmem:[%s6627] ss:$4 sm:$0xff] %v6332
      %6691 = vst [vmem:[%s6629] ss:$4 sm:$0xff] %v6335
      %6692 = vst [vmem:[%s6631] ss:$4 sm:$0xff] %v6337
      %6693 = vst [vmem:[%s6633] ss:$4 sm:$0xff] %v6339
      %6694 = vst [vmem:[%s6635] ss:$4 sm:$0xff] %v6342
      %6695 = vst [vmem:[%s6637] ss:$4 sm:$0xff] %v6345
      %6696 = vst [vmem:[%s6639] ss:$4 sm:$0xff] %v6348
      %v6697 = vld.sshfl [vmem:[#allocation1] sm:$0xff pattern:$0x73625140]
      %v6698 = vld.sshfl [vmem:[#allocation1 + $0x8] sm:$0xff pattern:$0x73625140]
      %v6699 = vld.sshfl [vmem:[#allocation1 + $0x10] sm:$0xff pattern:$0x73625140]
      %v6700 = vld.sshfl [vmem:[#allocation1 + $0x20] sm:$0xff pattern:$0x73625140]
      %v6701 = vld.sshfl [vmem:[#allocation1 + $0x28] sm:$0xff pattern:$0x73625140]
      %v6702 = vld.sshfl [vmem:[#allocation1 + $0x30] sm:$0xff pattern:$0x73625140]
      %6703 = vst [vmem:[#allocation1] ss:$4 sm:$0xff] %v6350
      %6704 = vst [vmem:[%s6627] ss:$4 sm:$0xff] %v6353
      %6705 = vst [vmem:[%s6629] ss:$4 sm:$0xff] %v6356
      %6706 = vst [vmem:[%s6631] ss:$4 sm:$0xff] %v6359
      %6707 = vst [vmem:[%s6633] ss:$4 sm:$0xff] %v6361
      %6708 = vst [vmem:[%s6635] ss:$4 sm:$0xff] %v6363
      %6709 = vst [vmem:[%s6637] ss:$4 sm:$0xff] %v6366
      %6710 = vst [vmem:[%s6639] ss:$4 sm:$0xff] %v6369
      %v6711 = vld.sshfl [vmem:[#allocation1] sm:$0xff pattern:$0x73625140]
      %v6712 = vld.sshfl [vmem:[#allocation1 + $0x8] sm:$0xff pattern:$0x73625140]
      %v6713 = vld.sshfl [vmem:[#allocation1 + $0x10] sm:$0xff pattern:$0x73625140]
      %v6714 = vld.sshfl [vmem:[#allocation1 + $0x20] sm:$0xff pattern:$0x73625140]
      %v6715 = vld.sshfl [vmem:[#allocation1 + $0x28] sm:$0xff pattern:$0x73625140]
      %v6716 = vld.sshfl [vmem:[#allocation1 + $0x30] sm:$0xff pattern:$0x73625140]
      %6717 = vst [vmem:[#allocation1] ss:$4 sm:$0xff] %v6372
      %6718 = vst [vmem:[%s6627] ss:$4 sm:$0xff] %v6374
      %6719 = vst [vmem:[%s6629] ss:$4 sm:$0xff] %v6377
      %6720 = vst [vmem:[%s6631] ss:$4 sm:$0xff] %v6380
      %6721 = vst [vmem:[%s6633] ss:$4 sm:$0xff] %v6383
      %6722 = vst [vmem:[%s6635] ss:$4 sm:$0xff] %v6385
      %6723 = vst [vmem:[%s6637] ss:$4 sm:$0xff] %v6387
      %6724 = vst [vmem:[%s6639] ss:$4 sm:$0xff] %v6390
      %v6725 = vld.sshfl [vmem:[#allocation1] sm:$0xff pattern:$0x73625140]
      %v6726 = vld.sshfl [vmem:[#allocation1 + $0x8] sm:$0xff pattern:$0x73625140]
      %v6727 = vld.sshfl [vmem:[#allocation1 + $0x10] sm:$0xff pattern:$0x73625140]
      %v6728 = vld.sshfl [vmem:[#allocation1 + $0x20] sm:$0xff pattern:$0x73625140]
      %v6729 = vld.sshfl [vmem:[#allocation1 + $0x28] sm:$0xff pattern:$0x73625140]
      %v6730 = vld.sshfl [vmem:[#allocation1 + $0x30] sm:$0xff pattern:$0x73625140]
      %6731 = vst [vmem:[#allocation1] ss:$4 sm:$0xff] %v6393
      %6732 = vst [vmem:[%s6627] ss:$4 sm:$0xff] %v6396
      %6733 = vst [vmem:[%s6629] ss:$4 sm:$0xff] %v6398
      %6734 = vst [vmem:[%s6631] ss:$4 sm:$0xff] %v6401
      %6735 = vst [vmem:[%s6633] ss:$4 sm:$0xff] %v6404
      %6736 = vst [vmem:[%s6635] ss:$4 sm:$0xff] %v6407
      %6737 = vst [vmem:[%s6637] ss:$4 sm:$0xff] %v6409
      %6738 = vst [vmem:[%s6639] ss:$4 sm:$0xff] %v6411
      %v6739 = vld.sshfl [vmem:[#allocation1] sm:$0xff pattern:$0x73625140]
      %v6740 = vld.sshfl [vmem:[#allocation1 + $0x8] sm:$0xff pattern:$0x73625140]
      %v6741 = vld.sshfl [vmem:[#allocation1 + $0x10] sm:$0xff pattern:$0x73625140]
      %v6742 = vld.sshfl [vmem:[#allocation1 + $0x20] sm:$0xff pattern:$0x73625140]
      %v6743 = vld.sshfl [vmem:[#allocation1 + $0x28] sm:$0xff pattern:$0x73625140]
      %v6744 = vld.sshfl [vmem:[#allocation1 + $0x30] sm:$0xff pattern:$0x73625140]
      %6745 = vst [vmem:[#allocation1] ss:$4 sm:$0xff] %v6414
      %6746 = vst [vmem:[%s6627] ss:$4 sm:$0xff] %v6417
      %6747 = vst [vmem:[%s6629] ss:$4 sm:$0xff] %v6420
      %6748 = vst [vmem:[%s6631] ss:$4 sm:$0xff] %v6422
      %6749 = vst [vmem:[%s6633] ss:$4 sm:$0xff] %v6425
      %6750 = vst [vmem:[%s6635] ss:$4 sm:$0xff] %v6428
      %6751 = vst [vmem:[%s6637] ss:$4 sm:$0xff] %v6431
      %6752 = vst [vmem:[%s6639] ss:$4 sm:$0xff] %v6433
      %v6753 = vld.sshfl [vmem:[#allocation1] sm:$0xff pattern:$0x73625140]
      %v6754 = vld.sshfl [vmem:[#allocation1 + $0x8] sm:$0xff pattern:$0x73625140]
      %v6755 = vld.sshfl [vmem:[#allocation1 + $0x10] sm:$0xff pattern:$0x73625140]
      %v6756 = vld.sshfl [vmem:[#allocation1 + $0x20] sm:$0xff pattern:$0x73625140]
      %v6757 = vld.sshfl [vmem:[#allocation1 + $0x28] sm:$0xff pattern:$0x73625140]
      %v6758 = vld.sshfl [vmem:[#allocation1 + $0x30] sm:$0xff pattern:$0x73625140]
      %6759 = vst [vmem:[#allocation1] ss:$4 sm:$0xff] %v6435
      %6760 = vst [vmem:[%s6627] ss:$4 sm:$0xff] %v6438
      %6761 = vst [vmem:[%s6629] ss:$4 sm:$0xff] %v6441
      %6762 = vst [vmem:[%s6631] ss:$4 sm:$0xff] %v6444
      %6763 = vst [vmem:[%s6633] ss:$4 sm:$0xff] %v6446
      %6764 = vst [vmem:[%s6635] ss:$4 sm:$0xff] %v6449
      %6765 = vst [vmem:[%s6637] ss:$4 sm:$0xff] %v6452
      %6766 = vst [vmem:[%s6639] ss:$4 sm:$0xff] %v6455
      %v6767 = vld.sshfl [vmem:[#allocation1] sm:$0xff pattern:$0x73625140]
      %v6768 = vld.sshfl [vmem:[#allocation1 + $0x8] sm:$0xff pattern:$0x73625140]
      %v6769 = vld.sshfl [vmem:[#allocation1 + $0x10] sm:$0xff pattern:$0x73625140]
      %v6770 = vld.sshfl [vmem:[#allocation1 + $0x20] sm:$0xff pattern:$0x73625140]
      %v6771 = vld.sshfl [vmem:[#allocation1 + $0x28] sm:$0xff pattern:$0x73625140]
      %v6772 = vld.sshfl [vmem:[#allocation1 + $0x30] sm:$0xff pattern:$0x73625140]
      %6773 = vst [vmem:[#allocation1] ss:$4 sm:$0xff] %v6457
      %6774 = vst [vmem:[%s6627] ss:$4 sm:$0xff] %v6459
      %6775 = vst [vmem:[%s6629] ss:$4 sm:$0xff] %v6462
      %6776 = vst [vmem:[%s6631] ss:$4 sm:$0xff] %v6465
      %6777 = vst [vmem:[%s6633] ss:$4 sm:$0xff] %v6468
      %6778 = vst [vmem:[%s6635] ss:$4 sm:$0xff] %v6470
      %6779 = vst [vmem:[%s6637] ss:$4 sm:$0xff] %v6473
      %6780 = vst [vmem:[%s6639] ss:$4 sm:$0xff] %v6476
      %v6781 = vld.sshfl [vmem:[#allocation1] sm:$0xff pattern:$0x73625140]
      %v6782 = vld.sshfl [vmem:[#allocation1 + $0x8] sm:$0xff pattern:$0x73625140]
      %v6783 = vld.sshfl [vmem:[#allocation1 + $0x10] sm:$0xff pattern:$0x73625140]
      %v6784 = vld.sshfl [vmem:[#allocation1 + $0x20] sm:$0xff pattern:$0x73625140]
      %v6785 = vld.sshfl [vmem:[#allocation1 + $0x28] sm:$0xff pattern:$0x73625140]
      %v6786 = vld.sshfl [vmem:[#allocation1 + $0x30] sm:$0xff pattern:$0x73625140]
      %6787 = vst [vmem:[#allocation1] ss:$4 sm:$0xff] %v6479
      %6788 = vst [vmem:[%s6627] ss:$4 sm:$0xff] %v6481
      %6789 = vst [vmem:[%s6629] ss:$4 sm:$0xff] %v6483
      %6790 = vst [vmem:[%s6631] ss:$4 sm:$0xff] %v6486
      %6791 = vst [vmem:[%s6633] ss:$4 sm:$0xff] %v6489
      %6792 = vst [vmem:[%s6635] ss:$4 sm:$0xff] %v6492
      %6793 = vst [vmem:[%s6637] ss:$4 sm:$0xff] %v6494
      %6794 = vst [vmem:[%s6639] ss:$4 sm:$0xff] %v6497
      %v6795 = vld.sshfl [vmem:[#allocation1] sm:$0xff pattern:$0x73625140]
      %v6796 = vld.sshfl [vmem:[#allocation1 + $0x8] sm:$0xff pattern:$0x73625140]
      %v6797 = vld.sshfl [vmem:[#allocation1 + $0x10] sm:$0xff pattern:$0x73625140]
      %v6798 = vld.sshfl [vmem:[#allocation1 + $0x20] sm:$0xff pattern:$0x73625140]
      %v6799 = vld.sshfl [vmem:[#allocation1 + $0x28] sm:$0xff pattern:$0x73625140]
      %v6800 = vld.sshfl [vmem:[#allocation1 + $0x30] sm:$0xff pattern:$0x73625140]
      %6801 = vst [vmem:[#allocation1] ss:$4 sm:$0xff] %v6500
      %6802 = vst [vmem:[%s6627] ss:$4 sm:$0xff] %v6503
      %6803 = vst [vmem:[%s6629] ss:$4 sm:$0xff] %v6505
      %6804 = vst [vmem:[%s6631] ss:$4 sm:$0xff] %v6507
      %6805 = vst [vmem:[%s6633] ss:$4 sm:$0xff] %v6510
      %6806 = vst [vmem:[%s6635] ss:$4 sm:$0xff] %v6513
      %6807 = vst [vmem:[%s6637] ss:$4 sm:$0xff] %v6516
      %6808 = vst [vmem:[%s6639] ss:$4 sm:$0xff] %v6518
      %v6809 = vld.sshfl [vmem:[#allocation1] sm:$0xff pattern:$0x73625140]
      %v6810 = vld.sshfl [vmem:[#allocation1 + $0x8] sm:$0xff pattern:$0x73625140]
      %v6811 = vld.sshfl [vmem:[#allocation1 + $0x10] sm:$0xff pattern:$0x73625140]
      %v6812 = vld.sshfl [vmem:[#allocation1 + $0x20] sm:$0xff pattern:$0x73625140]
      %v6813 = vld.sshfl [vmem:[#allocation1 + $0x28] sm:$0xff pattern:$0x73625140]
      %v6814 = vld.sshfl [vmem:[#allocation1 + $0x30] sm:$0xff pattern:$0x73625140]
      %6815 = vst [vmem:[#allocation1] ss:$4 sm:$0xff] %v6521
      %6816 = vst [vmem:[%s6627] ss:$4 sm:$0xff] %v6524
      %6817 = vst [vmem:[%s6629] ss:$4 sm:$0xff] %v6527
      %6818 = vst [vmem:[%s6631] ss:$4 sm:$0xff] %v6529
      %6819 = vst [vmem:[%s6633] ss:$4 sm:$0xff] %v6531
      %6820 = vst [vmem:[%s6635] ss:$4 sm:$0xff] %v6534
      %6821 = vst [vmem:[%s6637] ss:$4 sm:$0xff] %v6537
      %6822 = vst [vmem:[%s6639] ss:$4 sm:$0xff] %v6540
      %v6823 = vld.sshfl [vmem:[#allocation1] sm:$0xff pattern:$0x73625140]
      %v6824 = vld.sshfl [vmem:[#allocation1 + $0x8] sm:$0xff pattern:$0x73625140]
      %v6825 = vld.sshfl [vmem:[#allocation1 + $0x10] sm:$0xff pattern:$0x73625140]
      %v6826 = vld.sshfl [vmem:[#allocation1 + $0x20] sm:$0xff pattern:$0x73625140]
      %v6827 = vld.sshfl [vmem:[#allocation1 + $0x28] sm:$0xff pattern:$0x73625140]
      %v6828 = vld.sshfl [vmem:[#allocation1 + $0x30] sm:$0xff pattern:$0x73625140]
      %6829 = vst [vmem:[#allocation1] ss:$4 sm:$0xff] %v6542
      %6830 = vst [vmem:[%s6627] ss:$4 sm:$0xff] %v6545
      %6831 = vst [vmem:[%s6629] ss:$4 sm:$0xff] %v6548
      %6832 = vst [vmem:[%s6631] ss:$4 sm:$0xff] %v6551
      %6833 = vst [vmem:[%s6633] ss:$4 sm:$0xff] %v6553
      %6834 = vst [vmem:[%s6635] ss:$4 sm:$0xff] %v6555
      %6835 = vst [vmem:[%s6637] ss:$4 sm:$0xff] %v6558
      %6836 = vst [vmem:[%s6639] ss:$4 sm:$0xff] %v6561
      %v6837 = vld.sshfl [vmem:[#allocation1] sm:$0xff pattern:$0x73625140]
      %v6838 = vld.sshfl [vmem:[#allocation1 + $0x8] sm:$0xff pattern:$0x73625140]
      %v6839 = vld.sshfl [vmem:[#allocation1 + $0x10] sm:$0xff pattern:$0x73625140]
      %v6840 = vld.sshfl [vmem:[#allocation1 + $0x20] sm:$0xff pattern:$0x73625140]
      %v6841 = vld.sshfl [vmem:[#allocation1 + $0x28] sm:$0xff pattern:$0x73625140]
      %v6842 = vld.sshfl [vmem:[#allocation1 + $0x30] sm:$0xff pattern:$0x73625140]
      %6843 = vst [vmem:[#allocation1] ss:$4 sm:$0xff] %v6564
      %6844 = vst [vmem:[%s6627] ss:$4 sm:$0xff] %v6566
      %6845 = vst [vmem:[%s6629] ss:$4 sm:$0xff] %v6569
      %6846 = vst [vmem:[%s6631] ss:$4 sm:$0xff] %v6572
      %6847 = vst [vmem:[%s6633] ss:$4 sm:$0xff] %v6575
      %6848 = vst [vmem:[%s6635] ss:$4 sm:$0xff] %v6577
      %6849 = vst [vmem:[%s6637] ss:$4 sm:$0xff] %v6579
      %6850 = vst [vmem:[%s6639] ss:$4 sm:$0xff] %v6582
      %v6851 = vld.sshfl [vmem:[#allocation1] sm:$0xff pattern:$0x73625140]
      %v6852 = vld.sshfl [vmem:[#allocation1 + $0x8] sm:$0xff pattern:$0x73625140]
      %v6853 = vld.sshfl [vmem:[#allocation1 + $0x10] sm:$0xff pattern:$0x73625140]
      %v6854 = vld.sshfl [vmem:[#allocation1 + $0x20] sm:$0xff pattern:$0x73625140]
      %v6855 = vld.sshfl [vmem:[#allocation1 + $0x28] sm:$0xff pattern:$0x73625140]
      %v6856 = vld.sshfl [vmem:[#allocation1 + $0x30] sm:$0xff pattern:$0x73625140]
      %6857 = vst [vmem:[#allocation1] ss:$4 sm:$0xff] %v6585
      %6858 = vst [vmem:[%s6627] ss:$4 sm:$0xff] %v6588
      %6859 = vst [vmem:[%s6629] ss:$4 sm:$0xff] %v6590
      %6860 = vst [vmem:[%s6631] ss:$4 sm:$0xff] %v6593
      %6861 = vst [vmem:[%s6633] ss:$4 sm:$0xff] %v6596
      %6862 = vst [vmem:[%s6635] ss:$4 sm:$0xff] %v6599
      %6863 = vst [vmem:[%s6637] ss:$4 sm:$0xff] %v6601
      %6864 = vst [vmem:[%s6639] ss:$4 sm:$0xff] %v6603
      %v6865 = vld.sshfl [vmem:[#allocation1] sm:$0xff pattern:$0x73625140]
      %v6866 = vld.sshfl [vmem:[#allocation1 + $0x8] sm:$0xff pattern:$0x73625140]
      %v6867 = vld.sshfl [vmem:[#allocation1 + $0x10] sm:$0xff pattern:$0x73625140]
      %v6868 = vld.sshfl [vmem:[#allocation1 + $0x20] sm:$0xff pattern:$0x73625140]
      %v6869 = vld.sshfl [vmem:[#allocation1 + $0x28] sm:$0xff pattern:$0x73625140]
      %v6870 = vld.sshfl [vmem:[#allocation1 + $0x30] sm:$0xff pattern:$0x73625140]
      %6871 = vst [vmem:[#allocation1] ss:$4 sm:$0xff] %v6606
      %6872 = vst [vmem:[%s6627] ss:$4 sm:$0xff] %v6609
      %6873 = vst [vmem:[%s6629] ss:$4 sm:$0xff] %v6612
      %6874 = vst [vmem:[%s6631] ss:$4 sm:$0xff] %v6614
      %6875 = vst [vmem:[%s6633] ss:$4 sm:$0xff] %v6617
      %6876 = vst [vmem:[%s6635] ss:$4 sm:$0xff] %v6620
      %6877 = vst [vmem:[%s6637] ss:$4 sm:$0xff] %v6623
      %6878 = vst [vmem:[%s6639] ss:$4 sm:$0xff] %v6625
      %v6879 = vld.sshfl [vmem:[#allocation1] sm:$0xff pattern:$0x73625140]
      %v6880 = vld.sshfl [vmem:[#allocation1 + $0x8] sm:$0xff pattern:$0x73625140]
      %v6881 = vld.sshfl [vmem:[#allocation1 + $0x10] sm:$0xff pattern:$0x73625140]
      %v6882 = vld.sshfl [vmem:[#allocation1 + $0x20] sm:$0xff pattern:$0x73625140]
      %v6883 = vld.sshfl [vmem:[#allocation1 + $0x28] sm:$0xff pattern:$0x73625140]
      %v6884 = vld.sshfl [vmem:[#allocation1 + $0x30] sm:$0xff pattern:$0x73625140]
      %v6993 = vpack.c.bf16 %v6644, %v6641
      %v6994 = vpack.c.bf16 %v6645, %v6642
      %v6995 = vpack.c.bf16 %v6646, %v6643
      %v6996 = vpack.c.bf16 %v6658, %v6655
      %v6997 = vpack.c.bf16 %v6659, %v6656
      %v6998 = vpack.c.bf16 %v6660, %v6657
      %v6999 = vpack.c.bf16 %v6672, %v6669
      %v7000 = vpack.c.bf16 %v6673, %v6670
      %v7001 = vpack.c.bf16 %v6674, %v6671
      %v7002 = vpack.c.bf16 %v6686, %v6683
      %v7003 = vpack.c.bf16 %v6687, %v6684
      %v7004 = vpack.c.bf16 %v6688, %v6685
      %v7005 = vpack.c.bf16 %v6700, %v6697
      %v7006 = vpack.c.bf16 %v6701, %v6698
      %v7007 = vpack.c.bf16 %v6702, %v6699
      %v7008 = vpack.c.bf16 %v6714, %v6711
      %v7009 = vpack.c.bf16 %v6715, %v6712
      %v7010 = vpack.c.bf16 %v6716, %v6713
      %v7011 = vpack.c.bf16 %v6728, %v6725
      %v7012 = vpack.c.bf16 %v6729, %v6726
      %v7013 = vpack.c.bf16 %v6730, %v6727
      %v7014 = vpack.c.bf16 %v6742, %v6739
      %v7015 = vpack.c.bf16 %v6743, %v6740
      %v7016 = vpack.c.bf16 %v6744, %v6741
      %v7017 = vpack.c.bf16 %v6756, %v6753
      %v7018 = vpack.c.bf16 %v6757, %v6754
      %v7019 = vpack.c.bf16 %v6758, %v6755
      %v7020 = vpack.c.bf16 %v6770, %v6767
      %v7021 = vpack.c.bf16 %v6771, %v6768
      %v7022 = vpack.c.bf16 %v6772, %v6769
      %v7023 = vpack.c.bf16 %v6784, %v6781
      %v7024 = vpack.c.bf16 %v6785, %v6782
      %v7025 = vpack.c.bf16 %v6786, %v6783
      %v7026 = vpack.c.bf16 %v6798, %v6795
      %v7027 = vpack.c.bf16 %v6799, %v6796
      %v7028 = vpack.c.bf16 %v6800, %v6797
      %v7029 = vpack.c.bf16 %v6812, %v6809
      %v7030 = vpack.c.bf16 %v6813, %v6810
      %v7031 = vpack.c.bf16 %v6814, %v6811
      %v7032 = vpack.c.bf16 %v6826, %v6823
      %v7033 = vpack.c.bf16 %v6827, %v6824
      %v7034 = vpack.c.bf16 %v6828, %v6825
      %v7035 = vpack.c.bf16 %v6840, %v6837
      %v7036 = vpack.c.bf16 %v6841, %v6838
      %v7037 = vpack.c.bf16 %v6842, %v6839
      %v7038 = vpack.c.bf16 %v6854, %v6851
      %v7039 = vpack.c.bf16 %v6855, %v6852
      %v7040 = vpack.c.bf16 %v6856, %v6853
      %v7041 = vpack.c.bf16 %v6868, %v6865
      %v7042 = vpack.c.bf16 %v6869, %v6866
      %v7043 = vpack.c.bf16 %v6870, %v6867
      %v7044 = vpack.c.bf16 %v6882, %v6879
      %v7045 = vpack.c.bf16 %v6883, %v6880
      %v7046 = vpack.c.bf16 %v6884, %v6881
      %v7047 = vld [vmem:[%s2] sm:$0xf]
      %v7048 = vld [vmem:[%s2 + $0x4] sm:$0xf]
      %v7049 = vld [vmem:[%s2 + $0x8] sm:$0xf]
      %v7050 = vld [vmem:[%s2 + $0xc] sm:$0xf]
      %v7051 = vld [vmem:[%s2 + $0x10] sm:$0xf]
      %v7052 = vld [vmem:[%s2 + $0x14] sm:$0xf]
      %v7053 = vld [vmem:[%s2 + $0x18] sm:$0xf]
      %v7054 = vld [vmem:[%s2 + $0x1c] sm:$0xf]
      %v7055 = vld [vmem:[%s2 + $0x20] sm:$0xf]
      %v7056 = vld [vmem:[%s2 + $0x24] sm:$0xf]
      %v7057 = vld [vmem:[%s2 + $0x28] sm:$0xf]
      %v7058 = vld [vmem:[%s2 + $0x2c] sm:$0xf]
      %v7059 = vld [vmem:[%s2 + $0x30] sm:$0xf]
      %v7060 = vld [vmem:[%s2 + $0x34] sm:$0xf]
      %v7061 = vld [vmem:[%s2 + $0x38] sm:$0xf]
      %v7062 = vld [vmem:[%s2 + $0x3c] sm:$0xf]
      %v7063 = vld [vmem:[%s2 + $0x40] sm:$0xf]
      %v7064 = vld [vmem:[%s2 + $0x44] sm:$0xf]
      %v7065 = vld [vmem:[%s2 + $0x48] sm:$0xf]
      %v7066 = vld [vmem:[%s2 + $0x4c] sm:$0xf]
      %v7067 = vld [vmem:[%s2 + $0x50] sm:$0xf]
      %v7068 = vld [vmem:[%s2 + $0x54] sm:$0xf]
      %v7069 = vld [vmem:[%s2 + $0x58] sm:$0xf]
      %v7070 = vld [vmem:[%s2 + $0x5c] sm:$0xf]
      %v7071 = vld [vmem:[%s2 + $0x60] sm:$0xf]
      %v7072 = vld [vmem:[%s2 + $0x64] sm:$0xf]
      %v7073 = vld [vmem:[%s2 + $0x68] sm:$0xf]
      %v7074 = vld [vmem:[%s2 + $0x6c] sm:$0xf]
      %v7075 = vld [vmem:[%s2 + $0x70] sm:$0xf]
      %v7076 = vld [vmem:[%s2 + $0x74] sm:$0xf]
      %v7077 = vld [vmem:[%s2 + $0x78] sm:$0xf]
      %v7078 = vld [vmem:[%s2 + $0x7c] sm:$0xf]
      %v7079 = vld [vmem:[%s2 + $0x80] sm:$0xf]
      %v7080 = vld [vmem:[%s2 + $0x84] sm:$0xf]
      %v7081 = vld [vmem:[%s2 + $0x88] sm:$0xf]
      %v7082 = vld [vmem:[%s2 + $0x8c] sm:$0xf]
      %v7083 = vld [vmem:[%s2 + $0x90] sm:$0xf]
      %v7084 = vld [vmem:[%s2 + $0x94] sm:$0xf]
      %v7085 = vld [vmem:[%s2 + $0x98] sm:$0xf]
      %v7086 = vld [vmem:[%s2 + $0x9c] sm:$0xf]
      %v7087 = vld [vmem:[%s2 + $0xa0] sm:$0xf]
      %v7088 = vld [vmem:[%s2 + $0xa4] sm:$0xf]
      %v7089 = vld [vmem:[%s2 + $0xa8] sm:$0xf]
      %v7090 = vld [vmem:[%s2 + $0xac] sm:$0xf]
      %v7091 = vld [vmem:[%s2 + $0xb0] sm:$0xf]
      %v7092 = vld [vmem:[%s2 + $0xb4] sm:$0xf]
      %v7093 = vld [vmem:[%s2 + $0xb8] sm:$0xf]
      %v7094 = vld [vmem:[%s2 + $0xbc] sm:$0xf]
      %v7143 = vunpack.c.l.b16 %v7047
      %v7144 = vunpack.c.l.b16 %v7048
      %v7145 = vunpack.c.l.b16 %v7049
      %v7146 = vunpack.c.l.b16 %v7050
      %v7147 = vunpack.c.l.b16 %v7051
      %v7148 = vunpack.c.l.b16 %v7052
      %v7149 = vunpack.c.l.b16 %v7053
      %v7150 = vunpack.c.l.b16 %v7054
      %v7151 = vunpack.c.l.b16 %v7055
      %v7152 = vunpack.c.l.b16 %v7056
      %v7153 = vunpack.c.l.b16 %v7057
      %v7154 = vunpack.c.l.b16 %v7058
      %v7155 = vunpack.c.l.b16 %v7059
      %v7156 = vunpack.c.l.b16 %v7060
      %v7157 = vunpack.c.l.b16 %v7061
      %v7158 = vunpack.c.l.b16 %v7062
      %v7159 = vunpack.c.l.b16 %v7063
      %v7160 = vunpack.c.l.b16 %v7064
      %v7161 = vunpack.c.l.b16 %v7065
      %v7162 = vunpack.c.l.b16 %v7066
      %v7163 = vunpack.c.l.b16 %v7067
      %v7164 = vunpack.c.l.b16 %v7068
      %v7165 = vunpack.c.l.b16 %v7069
      %v7166 = vunpack.c.l.b16 %v7070
      %v7167 = vunpack.c.l.b16 %v7071
      %v7168 = vunpack.c.l.b16 %v7072
      %v7169 = vunpack.c.l.b16 %v7073
      %v7170 = vunpack.c.l.b16 %v7074
      %v7171 = vunpack.c.l.b16 %v7075
      %v7172 = vunpack.c.l.b16 %v7076
      %v7173 = vunpack.c.l.b16 %v7077
      %v7174 = vunpack.c.l.b16 %v7078
      %v7175 = vunpack.c.l.b16 %v7079
      %v7176 = vunpack.c.l.b16 %v7080
      %v7177 = vunpack.c.l.b16 %v7081
      %v7178 = vunpack.c.l.b16 %v7082
      %v7179 = vunpack.c.l.b16 %v7083
      %v7180 = vunpack.c.l.b16 %v7084
      %v7181 = vunpack.c.l.b16 %v7085
      %v7182 = vunpack.c.l.b16 %v7086
      %v7183 = vunpack.c.l.b16 %v7087
      %v7184 = vunpack.c.l.b16 %v7088
      %v7185 = vunpack.c.l.b16 %v7089
      %v7186 = vunpack.c.l.b16 %v7090
      %v7187 = vunpack.c.l.b16 %v7091
      %v7188 = vunpack.c.l.b16 %v7092
      %v7189 = vunpack.c.l.b16 %v7093
      %v7190 = vunpack.c.l.b16 %v7094
      %v7191 = vpack.c.b16 %v7144, %v7143
      %v7192 = vpack.c.b16 %v7146, %v7145
      %v7193 = vpack.c.b16 %v7148, %v7147
      %v7194 = vpack.c.b16 %v7150, %v7149
      %v7195 = vpack.c.b16 %v7152, %v7151
      %v7196 = vpack.c.b16 %v7154, %v7153
      %v7197 = vpack.c.b16 %v7156, %v7155
      %v7198 = vpack.c.b16 %v7158, %v7157
      %v7199 = vpack.c.b16 %v7160, %v7159
      %v7200 = vpack.c.b16 %v7162, %v7161
      %v7201 = vpack.c.b16 %v7164, %v7163
      %v7202 = vpack.c.b16 %v7166, %v7165
      %v7203 = vpack.c.b16 %v7168, %v7167
      %v7204 = vpack.c.b16 %v7170, %v7169
      %v7205 = vpack.c.b16 %v7172, %v7171
      %v7206 = vpack.c.b16 %v7174, %v7173
      %v7207 = vpack.c.b16 %v7176, %v7175
      %v7208 = vpack.c.b16 %v7178, %v7177
      %v7209 = vpack.c.b16 %v7180, %v7179
      %v7210 = vpack.c.b16 %v7182, %v7181
      %v7211 = vpack.c.b16 %v7184, %v7183
      %v7212 = vpack.c.b16 %v7186, %v7185
      %v7213 = vpack.c.b16 %v7188, %v7187
      %v7214 = vpack.c.b16 %v7190, %v7189
      %7239 = vmatpush.bf16.msra.mxu0 %v7198
      %7240 = vmatpush.bf16.msra.mxu0 %v7197
      %7241 = vmatpush.bf16.msra.mxu0 %v7196
      %7242 = vmatpush.bf16.msra.mxu0 %v7195
      %7243 = vmatpush.bf16.msra.mxu0 %v7194
      %7244 = vmatpush.bf16.msra.mxu0 %v7193
      %7245 = vmatpush.bf16.msra.mxu0 %v7192
      %7246 = vmatpush.bf16.msra.mxu0 %v7191
      %7247 = vmatmul.bf16.gmra.mxu0 %v6993
      %v7248 = vpop.f32.mrf.mxu0
      %v7249 = vadd.f32 0.0, %v7248
      %v7250 = vpop.f32.mrf.mxu0
      %v7251 = vadd.f32 0.0, %v7250
      %7252 = vmatmul.bf16.gmra.mxu0 %v6996
      %v7253 = vpop.f32.mrf.mxu0
      %v7254 = vadd.f32 0.0, %v7253
      %v7255 = vpop.f32.mrf.mxu0
      %v7256 = vadd.f32 0.0, %v7255
      %7257 = vmatmul.bf16.gmra.mxu0 %v6999
      %v7258 = vpop.f32.mrf.mxu0
      %v7259 = vadd.f32 0.0, %v7258
      %v7260 = vpop.f32.mrf.mxu0
      %v7261 = vadd.f32 0.0, %v7260
      %7262 = vmatmul.bf16.gmra.mxu0 %v7002
      %v7263 = vpop.f32.mrf.mxu0
      %v7264 = vadd.f32 0.0, %v7263
      %v7265 = vpop.f32.mrf.mxu0
      %v7266 = vadd.f32 0.0, %v7265
      %7267 = vmatmul.bf16.gmra.mxu0 %v7005
      %v7268 = vpop.f32.mrf.mxu0
      %v7269 = vadd.f32 0.0, %v7268
      %v7270 = vpop.f32.mrf.mxu0
      %v7271 = vadd.f32 0.0, %v7270
      %7272 = vmatmul.bf16.gmra.mxu0 %v7008
      %v7273 = vpop.f32.mrf.mxu0
      %v7274 = vadd.f32 0.0, %v7273
      %v7275 = vpop.f32.mrf.mxu0
      %v7276 = vadd.f32 0.0, %v7275
      %7277 = vmatmul.bf16.gmra.mxu0 %v7011
      %v7278 = vpop.f32.mrf.mxu0
      %v7279 = vadd.f32 0.0, %v7278
      %v7280 = vpop.f32.mrf.mxu0
      %v7281 = vadd.f32 0.0, %v7280
      %7282 = vmatmul.bf16.gmra.mxu0 %v7014
      %v7283 = vpop.f32.mrf.mxu0
      %v7284 = vadd.f32 0.0, %v7283
      %v7285 = vpop.f32.mrf.mxu0
      %v7286 = vadd.f32 0.0, %v7285
      %7287 = vmatmul.bf16.gmra.mxu0 %v7017
      %v7288 = vpop.f32.mrf.mxu0
      %v7289 = vadd.f32 0.0, %v7288
      %v7290 = vpop.f32.mrf.mxu0
      %v7291 = vadd.f32 0.0, %v7290
      %7292 = vmatmul.bf16.gmra.mxu0 %v7020
      %v7293 = vpop.f32.mrf.mxu0
      %v7294 = vadd.f32 0.0, %v7293
      %v7295 = vpop.f32.mrf.mxu0
      %v7296 = vadd.f32 0.0, %v7295
      %7297 = vmatmul.bf16.gmra.mxu0 %v7023
      %v7298 = vpop.f32.mrf.mxu0
      %v7299 = vadd.f32 0.0, %v7298
      %v7300 = vpop.f32.mrf.mxu0
      %v7301 = vadd.f32 0.0, %v7300
      %7302 = vmatmul.bf16.gmra.mxu0 %v7026
      %v7303 = vpop.f32.mrf.mxu0
      %v7304 = vadd.f32 0.0, %v7303
      %v7305 = vpop.f32.mrf.mxu0
      %v7306 = vadd.f32 0.0, %v7305
      %7307 = vmatmul.bf16.gmra.mxu0 %v7029
      %v7308 = vpop.f32.mrf.mxu0
      %v7309 = vadd.f32 0.0, %v7308
      %v7310 = vpop.f32.mrf.mxu0
      %v7311 = vadd.f32 0.0, %v7310
      %7312 = vmatmul.bf16.gmra.mxu0 %v7032
      %v7313 = vpop.f32.mrf.mxu0
      %v7314 = vadd.f32 0.0, %v7313
      %v7315 = vpop.f32.mrf.mxu0
      %v7316 = vadd.f32 0.0, %v7315
      %7317 = vmatmul.bf16.gmra.mxu0 %v7035
      %v7318 = vpop.f32.mrf.mxu0
      %v7319 = vadd.f32 0.0, %v7318
      %v7320 = vpop.f32.mrf.mxu0
      %v7321 = vadd.f32 0.0, %v7320
      %7322 = vmatmul.bf16.gmra.mxu0 %v7038
      %v7323 = vpop.f32.mrf.mxu0
      %v7324 = vadd.f32 0.0, %v7323
      %v7325 = vpop.f32.mrf.mxu0
      %v7326 = vadd.f32 0.0, %v7325
      %7327 = vmatmul.bf16.gmra.mxu0 %v7041
      %v7328 = vpop.f32.mrf.mxu0
      %v7329 = vadd.f32 0.0, %v7328
      %v7330 = vpop.f32.mrf.mxu0
      %v7331 = vadd.f32 0.0, %v7330
      %7332 = vmatmul.bf16.gmra.mxu0 %v7044
      %v7333 = vpop.f32.mrf.mxu0
      %v7334 = vadd.f32 0.0, %v7333
      %v7335 = vpop.f32.mrf.mxu0
      %v7336 = vadd.f32 0.0, %v7335
      %7337 = vdwg.mxu0
      %7338 = vmatpush.bf16.msra.mxu0 %v7206
      %7339 = vmatpush.bf16.msra.mxu0 %v7205
      %7340 = vmatpush.bf16.msra.mxu0 %v7204
      %7341 = vmatpush.bf16.msra.mxu0 %v7203
      %7342 = vmatpush.bf16.msra.mxu0 %v7202
      %7343 = vmatpush.bf16.msra.mxu0 %v7201
      %7344 = vmatpush.bf16.msra.mxu0 %v7200
      %7345 = vmatpush.bf16.msra.mxu0 %v7199
      %7346 = vmatmul.bf16.gmra.mxu0 %v6994
      %v7347 = vpop.f32.mrf.mxu0
      %v7348 = vadd.f32 %v7249, %v7347
      %v7349 = vpop.f32.mrf.mxu0
      %v7350 = vadd.f32 %v7251, %v7349
      %7351 = vmatmul.bf16.gmra.mxu0 %v6997
      %v7352 = vpop.f32.mrf.mxu0
      %v7353 = vadd.f32 %v7254, %v7352
      %v7354 = vpop.f32.mrf.mxu0
      %v7355 = vadd.f32 %v7256, %v7354
      %7356 = vmatmul.bf16.gmra.mxu0 %v7000
      %v7357 = vpop.f32.mrf.mxu0
      %v7358 = vadd.f32 %v7259, %v7357
      %v7359 = vpop.f32.mrf.mxu0
      %v7360 = vadd.f32 %v7261, %v7359
      %7361 = vmatmul.bf16.gmra.mxu0 %v7003
      %v7362 = vpop.f32.mrf.mxu0
      %v7363 = vadd.f32 %v7264, %v7362
      %v7364 = vpop.f32.mrf.mxu0
      %v7365 = vadd.f32 %v7266, %v7364
      %7366 = vmatmul.bf16.gmra.mxu0 %v7006
      %v7367 = vpop.f32.mrf.mxu0
      %v7368 = vadd.f32 %v7269, %v7367
      %v7369 = vpop.f32.mrf.mxu0
      %v7370 = vadd.f32 %v7271, %v7369
      %7371 = vmatmul.bf16.gmra.mxu0 %v7009
      %v7372 = vpop.f32.mrf.mxu0
      %v7373 = vadd.f32 %v7274, %v7372
      %v7374 = vpop.f32.mrf.mxu0
      %v7375 = vadd.f32 %v7276, %v7374
      %7376 = vmatmul.bf16.gmra.mxu0 %v7012
      %v7377 = vpop.f32.mrf.mxu0
      %v7378 = vadd.f32 %v7279, %v7377
      %v7379 = vpop.f32.mrf.mxu0
      %v7380 = vadd.f32 %v7281, %v7379
      %7381 = vmatmul.bf16.gmra.mxu0 %v7015
      %v7382 = vpop.f32.mrf.mxu0
      %v7383 = vadd.f32 %v7284, %v7382
      %v7384 = vpop.f32.mrf.mxu0
      %v7385 = vadd.f32 %v7286, %v7384
      %7386 = vmatmul.bf16.gmra.mxu0 %v7018
      %v7387 = vpop.f32.mrf.mxu0
      %v7388 = vadd.f32 %v7289, %v7387
      %v7389 = vpop.f32.mrf.mxu0
      %v7390 = vadd.f32 %v7291, %v7389
      %7391 = vmatmul.bf16.gmra.mxu0 %v7021
      %v7392 = vpop.f32.mrf.mxu0
      %v7393 = vadd.f32 %v7294, %v7392
      %v7394 = vpop.f32.mrf.mxu0
      %v7395 = vadd.f32 %v7296, %v7394
      %7396 = vmatmul.bf16.gmra.mxu0 %v7024
      %v7397 = vpop.f32.mrf.mxu0
      %v7398 = vadd.f32 %v7299, %v7397
      %v7399 = vpop.f32.mrf.mxu0
      %v7400 = vadd.f32 %v7301, %v7399
      %7401 = vmatmul.bf16.gmra.mxu0 %v7027
      %v7402 = vpop.f32.mrf.mxu0
      %v7403 = vadd.f32 %v7304, %v7402
      %v7404 = vpop.f32.mrf.mxu0
      %v7405 = vadd.f32 %v7306, %v7404
      %7406 = vmatmul.bf16.gmra.mxu0 %v7030
      %v7407 = vpop.f32.mrf.mxu0
      %v7408 = vadd.f32 %v7309, %v7407
      %v7409 = vpop.f32.mrf.mxu0
      %v7410 = vadd.f32 %v7311, %v7409
      %7411 = vmatmul.bf16.gmra.mxu0 %v7033
      %v7412 = vpop.f32.mrf.mxu0
      %v7413 = vadd.f32 %v7314, %v7412
      %v7414 = vpop.f32.mrf.mxu0
      %v7415 = vadd.f32 %v7316, %v7414
      %7416 = vmatmul.bf16.gmra.mxu0 %v7036
      %v7417 = vpop.f32.mrf.mxu0
      %v7418 = vadd.f32 %v7319, %v7417
      %v7419 = vpop.f32.mrf.mxu0
      %v7420 = vadd.f32 %v7321, %v7419
      %7421 = vmatmul.bf16.gmra.mxu0 %v7039
      %v7422 = vpop.f32.mrf.mxu0
      %v7423 = vadd.f32 %v7324, %v7422
      %v7424 = vpop.f32.mrf.mxu0
      %v7425 = vadd.f32 %v7326, %v7424
      %7426 = vmatmul.bf16.gmra.mxu0 %v7042
      %v7427 = vpop.f32.mrf.mxu0
      %v7428 = vadd.f32 %v7329, %v7427
      %v7429 = vpop.f32.mrf.mxu0
      %v7430 = vadd.f32 %v7331, %v7429
      %7431 = vmatmul.bf16.gmra.mxu0 %v7045
      %v7432 = vpop.f32.mrf.mxu0
      %v7433 = vadd.f32 %v7334, %v7432
      %v7434 = vpop.f32.mrf.mxu0
      %v7435 = vadd.f32 %v7336, %v7434
      %7436 = vdwg.mxu0
      %7437 = vmatpush.bf16.msra.mxu0 %v7214
      %7438 = vmatpush.bf16.msra.mxu0 %v7213
      %7439 = vmatpush.bf16.msra.mxu0 %v7212
      %7440 = vmatpush.bf16.msra.mxu0 %v7211
      %7441 = vmatpush.bf16.msra.mxu0 %v7210
      %7442 = vmatpush.bf16.msra.mxu0 %v7209
      %7443 = vmatpush.bf16.msra.mxu0 %v7208
      %7444 = vmatpush.bf16.msra.mxu0 %v7207
      %7445 = vmatmul.bf16.gmra.mxu0 %v6995
      %v7446 = vpop.f32.mrf.mxu0
      %v7447 = vadd.f32 %v7348, %v7446
      %v7448 = vpop.f32.mrf.mxu0
      %v7449 = vadd.f32 %v7350, %v7448
      %7450 = vmatmul.bf16.gmra.mxu0 %v6998
      %v7451 = vpop.f32.mrf.mxu0
      %v7452 = vadd.f32 %v7353, %v7451
      %v7453 = vpop.f32.mrf.mxu0
      %v7454 = vadd.f32 %v7355, %v7453
      %7455 = vmatmul.bf16.gmra.mxu0 %v7001
      %v7456 = vpop.f32.mrf.mxu0
      %v7457 = vadd.f32 %v7358, %v7456
      %v7458 = vpop.f32.mrf.mxu0
      %v7459 = vadd.f32 %v7360, %v7458
      %7460 = vmatmul.bf16.gmra.mxu0 %v7004
      %v7461 = vpop.f32.mrf.mxu0
      %v7462 = vadd.f32 %v7363, %v7461
      %v7463 = vpop.f32.mrf.mxu0
      %v7464 = vadd.f32 %v7365, %v7463
      %7465 = vmatmul.bf16.gmra.mxu0 %v7007
      %v7466 = vpop.f32.mrf.mxu0
      %v7467 = vadd.f32 %v7368, %v7466
      %v7468 = vpop.f32.mrf.mxu0
      %v7469 = vadd.f32 %v7370, %v7468
      %7470 = vmatmul.bf16.gmra.mxu0 %v7010
      %v7471 = vpop.f32.mrf.mxu0
      %v7472 = vadd.f32 %v7373, %v7471
      %v7473 = vpop.f32.mrf.mxu0
      %v7474 = vadd.f32 %v7375, %v7473
      %7475 = vmatmul.bf16.gmra.mxu0 %v7013
      %v7476 = vpop.f32.mrf.mxu0
      %v7477 = vadd.f32 %v7378, %v7476
      %v7478 = vpop.f32.mrf.mxu0
      %v7479 = vadd.f32 %v7380, %v7478
      %7480 = vmatmul.bf16.gmra.mxu0 %v7016
      %v7481 = vpop.f32.mrf.mxu0
      %v7482 = vadd.f32 %v7383, %v7481
      %v7483 = vpop.f32.mrf.mxu0
      %v7484 = vadd.f32 %v7385, %v7483
      %7485 = vmatmul.bf16.gmra.mxu0 %v7019
      %v7486 = vpop.f32.mrf.mxu0
      %v7487 = vadd.f32 %v7388, %v7486
      %v7488 = vpop.f32.mrf.mxu0
      %v7489 = vadd.f32 %v7390, %v7488
      %7490 = vmatmul.bf16.gmra.mxu0 %v7022
      %v7491 = vpop.f32.mrf.mxu0
      %v7492 = vadd.f32 %v7393, %v7491
      %v7493 = vpop.f32.mrf.mxu0
      %v7494 = vadd.f32 %v7395, %v7493
      %7495 = vmatmul.bf16.gmra.mxu0 %v7025
      %v7496 = vpop.f32.mrf.mxu0
      %v7497 = vadd.f32 %v7398, %v7496
      %v7498 = vpop.f32.mrf.mxu0
      %v7499 = vadd.f32 %v7400, %v7498
      %7500 = vmatmul.bf16.gmra.mxu0 %v7028
      %v7501 = vpop.f32.mrf.mxu0
      %v7502 = vadd.f32 %v7403, %v7501
      %v7503 = vpop.f32.mrf.mxu0
      %v7504 = vadd.f32 %v7405, %v7503
      %7505 = vmatmul.bf16.gmra.mxu0 %v7031
      %v7506 = vpop.f32.mrf.mxu0
      %v7507 = vadd.f32 %v7408, %v7506
      %v7508 = vpop.f32.mrf.mxu0
      %v7509 = vadd.f32 %v7410, %v7508
      %7510 = vmatmul.bf16.gmra.mxu0 %v7034
      %v7511 = vpop.f32.mrf.mxu0
      %v7512 = vadd.f32 %v7413, %v7511
      %v7513 = vpop.f32.mrf.mxu0
      %v7514 = vadd.f32 %v7415, %v7513
      %7515 = vmatmul.bf16.gmra.mxu0 %v7037
      %v7516 = vpop.f32.mrf.mxu0
      %v7517 = vadd.f32 %v7418, %v7516
      %v7518 = vpop.f32.mrf.mxu0
      %v7519 = vadd.f32 %v7420, %v7518
      %7520 = vmatmul.bf16.gmra.mxu0 %v7040
      %v7521 = vpop.f32.mrf.mxu0
      %v7522 = vadd.f32 %v7423, %v7521
      %v7523 = vpop.f32.mrf.mxu0
      %v7524 = vadd.f32 %v7425, %v7523
      %7525 = vmatmul.bf16.gmra.mxu0 %v7043
      %v7526 = vpop.f32.mrf.mxu0
      %v7527 = vadd.f32 %v7428, %v7526
      %v7528 = vpop.f32.mrf.mxu0
      %v7529 = vadd.f32 %v7430, %v7528
      %7530 = vmatmul.bf16.gmra.mxu0 %v7046
      %v7531 = vpop.f32.mrf.mxu0
      %v7532 = vadd.f32 %v7433, %v7531
      %v7533 = vpop.f32.mrf.mxu0
      %v7534 = vadd.f32 %v7435, %v7533
      %7535 = vdwg.mxu0
      %v7572 = vrot.slane %v7447, 2
      %v7573 = vrot.slane %v7447, 4
      %v7574 = vrot.slane %v7447, 6
      %v7575 = vrot.slane %v7449, 2
      %v7576 = vrot.slane %v7449, 4
      %v7577 = vrot.slane %v7449, 6
      %v7578 = vrot.slane %v7452, 2
      %v7579 = vrot.slane %v7452, 4
      %v7580 = vrot.slane %v7452, 6
      %v7581 = vrot.slane %v7454, 2
      %v7582 = vrot.slane %v7454, 4
      %v7583 = vrot.slane %v7454, 6
      %v7584 = vrot.slane %v7457, 4
      %v7585 = vrot.slane %v7457, 6
      %v7586 = vrot.slane %v7459, 2
      %v7587 = vrot.slane %v7459, 4
      %v7588 = vrot.slane %v7459, 6
      %v7589 = vrot.slane %v7462, 2
      %v7590 = vrot.slane %v7462, 6
      %v7591 = vrot.slane %v7464, 2
      %v7592 = vrot.slane %v7464, 4
      %v7593 = vrot.slane %v7464, 6
      %v7594 = vrot.slane %v7467, 2
      %v7595 = vrot.slane %v7467, 4
      %v7596 = vrot.slane %v7469, 2
      %v7597 = vrot.slane %v7469, 4
      %v7598 = vrot.slane %v7469, 6
      %v7599 = vrot.slane %v7472, 2
      %v7600 = vrot.slane %v7472, 4
      %v7601 = vrot.slane %v7472, 6
      %v7602 = vrot.slane %v7474, 2
      %v7603 = vrot.slane %v7474, 4
      %v7604 = vrot.slane %v7474, 6
      %v7605 = vrot.slane %v7477, 2
      %v7606 = vrot.slane %v7477, 4
      %v7607 = vrot.slane %v7477, 6
      %v7608 = vrot.slane %v7479, 4
      %v7609 = vrot.slane %v7479, 6
      %v7610 = vrot.slane %v7482, 2
      %v7611 = vrot.slane %v7482, 4
      %v7612 = vrot.slane %v7482, 6
      %v7613 = vrot.slane %v7484, 2
      %v7614 = vrot.slane %v7484, 6
      %v7615 = vrot.slane %v7487, 2
      %v7616 = vrot.slane %v7487, 4
      %v7617 = vrot.slane %v7487, 6
      %v7618 = vrot.slane %v7489, 2
      %v7619 = vrot.slane %v7489, 4
      %v7620 = vrot.slane %v7492, 2
      %v7621 = vrot.slane %v7492, 4
      %v7622 = vrot.slane %v7492, 6
      %v7623 = vrot.slane %v7494, 2
      %v7624 = vrot.slane %v7494, 4
      %v7625 = vrot.slane %v7494, 6
      %v7626 = vrot.slane %v7497, 2
      %v7627 = vrot.slane %v7497, 4
      %v7628 = vrot.slane %v7497, 6
      %v7629 = vrot.slane %v7499, 2
      %v7630 = vrot.slane %v7499, 4
      %v7631 = vrot.slane %v7499, 6
      %v7632 = vrot.slane %v7502, 4
      %v7633 = vrot.slane %v7502, 6
      %v7634 = vrot.slane %v7504, 2
      %v7635 = vrot.slane %v7504, 4
      %v7636 = vrot.slane %v7504, 6
      %v7637 = vrot.slane %v7507, 2
      %v7638 = vrot.slane %v7507, 6
      %v7639 = vrot.slane %v7509, 2
      %v7640 = vrot.slane %v7509, 4
      %v7641 = vrot.slane %v7509, 6
      %v7642 = vrot.slane %v7512, 2
      %v7643 = vrot.slane %v7512, 4
      %v7644 = vrot.slane %v7514, 2
      %v7645 = vrot.slane %v7514, 4
      %v7646 = vrot.slane %v7514, 6
      %v7647 = vrot.slane %v7517, 2
      %v7648 = vrot.slane %v7517, 4
      %v7649 = vrot.slane %v7517, 6
      %v7650 = vrot.slane %v7519, 2
      %v7651 = vrot.slane %v7519, 4
      %v7652 = vrot.slane %v7519, 6
      %v7653 = vrot.slane %v7522, 2
      %v7654 = vrot.slane %v7522, 4
      %v7655 = vrot.slane %v7522, 6
      %v7656 = vrot.slane %v7524, 4
      %v7657 = vrot.slane %v7524, 6
      %v7658 = vrot.slane %v7527, 2
      %v7659 = vrot.slane %v7527, 4
      %v7660 = vrot.slane %v7527, 6
      %v7661 = vrot.slane %v7529, 2
      %v7662 = vrot.slane %v7529, 6
      %v7663 = vrot.slane %v7532, 2
      %v7664 = vrot.slane %v7532, 4
      %v7665 = vrot.slane %v7532, 6
      %v7666 = vrot.slane %v7534, 2
      %v7667 = vrot.slane %v7534, 4
      %v7764 = vadd.f32 %v7447, 0.0
      %v7765 = vadd.f32 %v7572, 0.0
      %v7766 = vadd.f32 %v7573, 0.0
      %v7767 = vadd.f32 %v7574, 0.0
      %v7768 = vadd.f32 %v7449, 0.0
      %v7769 = vadd.f32 %v7575, 0.0
      %v7770 = vadd.f32 %v7576, 0.0
      %v7771 = vadd.f32 %v7577, 0.0
      %v7772 = vadd.f32 %v7578, 0.0
      %v7773 = vadd.f32 %v7579, 0.0
      %v7774 = vadd.f32 %v7580, 0.0
      %v7775 = vadd.f32 %v7454, 0.0
      %v7776 = vadd.f32 %v7581, 0.0
      %v7777 = vadd.f32 %v7582, 0.0
      %v7778 = vadd.f32 %v7583, 0.0
      %v7779 = vadd.f32 %v7457, 0.0
      %v7780 = vadd.f32 %v7584, 0.0
      %v7781 = vadd.f32 %v7585, 0.0
      %v7782 = vadd.f32 %v7459, 0.0
      %v7783 = vadd.f32 %v7586, 0.0
      %v7784 = vadd.f32 %v7587, 0.0
      %v7785 = vadd.f32 %v7588, 0.0
      %v7786 = vadd.f32 %v7462, 0.0
      %v7787 = vadd.f32 %v7589, 0.0
      %v7788 = vadd.f32 %v7590, 0.0
      %v7789 = vadd.f32 %v7464, 0.0
      %v7790 = vadd.f32 %v7591, 0.0
      %v7791 = vadd.f32 %v7592, 0.0
      %v7792 = vadd.f32 %v7593, 0.0
      %v7793 = vadd.f32 %v7467, 0.0
      %v7794 = vadd.f32 %v7594, 0.0
      %v7795 = vadd.f32 %v7595, 0.0
      %v7796 = vadd.f32 %v7469, 0.0
      %v7797 = vadd.f32 %v7596, 0.0
      %v7798 = vadd.f32 %v7597, 0.0
      %v7799 = vadd.f32 %v7598, 0.0
      %v7800 = vadd.f32 %v7472, 0.0
      %v7801 = vadd.f32 %v7599, 0.0
      %v7802 = vadd.f32 %v7600, 0.0
      %v7803 = vadd.f32 %v7601, 0.0
      %v7804 = vadd.f32 %v7602, 0.0
      %v7805 = vadd.f32 %v7603, 0.0
      %v7806 = vadd.f32 %v7604, 0.0
      %v7807 = vadd.f32 %v7477, 0.0
      %v7808 = vadd.f32 %v7605, 0.0
      %v7809 = vadd.f32 %v7606, 0.0
      %v7810 = vadd.f32 %v7607, 0.0
      %v7811 = vadd.f32 %v7479, 0.0
      %v7812 = vadd.f32 %v7608, 0.0
      %v7813 = vadd.f32 %v7609, 0.0
      %v7814 = vadd.f32 %v7482, 0.0
      %v7815 = vadd.f32 %v7610, 0.0
      %v7816 = vadd.f32 %v7611, 0.0
      %v7817 = vadd.f32 %v7612, 0.0
      %v7818 = vadd.f32 %v7484, 0.0
      %v7819 = vadd.f32 %v7613, 0.0
      %v7820 = vadd.f32 %v7614, 0.0
      %v7821 = vadd.f32 %v7487, 0.0
      %v7822 = vadd.f32 %v7615, 0.0
      %v7823 = vadd.f32 %v7616, 0.0
      %v7824 = vadd.f32 %v7617, 0.0
      %v7825 = vadd.f32 %v7489, 0.0
      %v7826 = vadd.f32 %v7618, 0.0
      %v7827 = vadd.f32 %v7619, 0.0
      %v7828 = vadd.f32 %v7492, 0.0
      %v7829 = vadd.f32 %v7620, 0.0
      %v7830 = vadd.f32 %v7621, 0.0
      %v7831 = vadd.f32 %v7622, 0.0
      %v7832 = vadd.f32 %v7494, 0.0
      %v7833 = vadd.f32 %v7623, 0.0
      %v7834 = vadd.f32 %v7624, 0.0
      %v7835 = vadd.f32 %v7625, 0.0
      %v7836 = vadd.f32 %v7626, 0.0
      %v7837 = vadd.f32 %v7627, 0.0
      %v7838 = vadd.f32 %v7628, 0.0
      %v7839 = vadd.f32 %v7499, 0.0
      %v7840 = vadd.f32 %v7629, 0.0
      %v7841 = vadd.f32 %v7630, 0.0
      %v7842 = vadd.f32 %v7631, 0.0
      %v7843 = vadd.f32 %v7502, 0.0
      %v7844 = vadd.f32 %v7632, 0.0
      %v7845 = vadd.f32 %v7633, 0.0
      %v7846 = vadd.f32 %v7504, 0.0
      %v7847 = vadd.f32 %v7634, 0.0
      %v7848 = vadd.f32 %v7635, 0.0
      %v7849 = vadd.f32 %v7636, 0.0
      %v7850 = vadd.f32 %v7507, 0.0
      %v7851 = vadd.f32 %v7637, 0.0
      %v7852 = vadd.f32 %v7638, 0.0
      %v7853 = vadd.f32 %v7509, 0.0
      %v7854 = vadd.f32 %v7639, 0.0
      %v7855 = vadd.f32 %v7640, 0.0
      %v7856 = vadd.f32 %v7641, 0.0
      %v7857 = vadd.f32 %v7512, 0.0
      %v7858 = vadd.f32 %v7642, 0.0
      %v7859 = vadd.f32 %v7643, 0.0
      %v7860 = vadd.f32 %v7514, 0.0
      %v7861 = vadd.f32 %v7644, 0.0
      %v7862 = vadd.f32 %v7645, 0.0
      %v7863 = vadd.f32 %v7646, 0.0
      %v7864 = vadd.f32 %v7517, 0.0
      %v7865 = vadd.f32 %v7647, 0.0
      %v7866 = vadd.f32 %v7648, 0.0
      %v7867 = vadd.f32 %v7649, 0.0
      %v7868 = vadd.f32 %v7650, 0.0
      %v7869 = vadd.f32 %v7651, 0.0
      %v7870 = vadd.f32 %v7652, 0.0
      %v7871 = vadd.f32 %v7522, 0.0
      %v7872 = vadd.f32 %v7653, 0.0
      %v7873 = vadd.f32 %v7654, 0.0
      %v7874 = vadd.f32 %v7655, 0.0
      %v7875 = vadd.f32 %v7524, 0.0
      %v7876 = vadd.f32 %v7656, 0.0
      %v7877 = vadd.f32 %v7657, 0.0
      %v7878 = vadd.f32 %v7527, 0.0
      %v7879 = vadd.f32 %v7658, 0.0
      %v7880 = vadd.f32 %v7659, 0.0
      %v7881 = vadd.f32 %v7660, 0.0
      %v7882 = vadd.f32 %v7529, 0.0
      %v7883 = vadd.f32 %v7661, 0.0
      %v7884 = vadd.f32 %v7662, 0.0
      %v7885 = vadd.f32 %v7532, 0.0
      %v7886 = vadd.f32 %v7663, 0.0
      %v7887 = vadd.f32 %v7664, 0.0
      %v7888 = vadd.f32 %v7665, 0.0
      %v7889 = vadd.f32 %v7534, 0.0
      %v7890 = vadd.f32 %v7666, 0.0
      %v7891 = vadd.f32 %v7667, 0.0
      %s7892 = scalar_lea.vmem %s2, 192
      %v7893 = vld [vmem:[%s7892] sm:$0xf]
      %v7894 = vld [vmem:[%s7892 + $0x4] sm:$0xf]
      %v7895 = vld [vmem:[%s7892 + $0x8] sm:$0xf]
      %v7896 = vld [vmem:[%s7892 + $0xc] sm:$0xf]
      %v7897 = vld [vmem:[%s7892 + $0x10] sm:$0xf]
      %v7898 = vld [vmem:[%s7892 + $0x14] sm:$0xf]
      %v7899 = vld [vmem:[%s7892 + $0x18] sm:$0xf]
      %v7900 = vld [vmem:[%s7892 + $0x1c] sm:$0xf]
      %v7901 = vld [vmem:[%s7892 + $0x20] sm:$0xf]
      %v7902 = vld [vmem:[%s7892 + $0x24] sm:$0xf]
      %v7903 = vld [vmem:[%s7892 + $0x28] sm:$0xf]
      %v7904 = vld [vmem:[%s7892 + $0x2c] sm:$0xf]
      %v7905 = vld [vmem:[%s7892 + $0x30] sm:$0xf]
      %v7906 = vld [vmem:[%s7892 + $0x34] sm:$0xf]
      %v7907 = vld [vmem:[%s7892 + $0x38] sm:$0xf]
      %v7908 = vld [vmem:[%s7892 + $0x3c] sm:$0xf]
      %v7909 = vld [vmem:[%s7892 + $0x40] sm:$0xf]
      %v7910 = vld [vmem:[%s7892 + $0x44] sm:$0xf]
      %v7911 = vld [vmem:[%s7892 + $0x48] sm:$0xf]
      %v7912 = vld [vmem:[%s7892 + $0x4c] sm:$0xf]
      %v7913 = vld [vmem:[%s7892 + $0x50] sm:$0xf]
      %v7914 = vld [vmem:[%s7892 + $0x54] sm:$0xf]
      %v7915 = vld [vmem:[%s7892 + $0x58] sm:$0xf]
      %v7916 = vld [vmem:[%s7892 + $0x5c] sm:$0xf]
      %v7917 = vld [vmem:[%s7892 + $0x60] sm:$0xf]
      %v7918 = vld [vmem:[%s7892 + $0x64] sm:$0xf]
      %v7919 = vld [vmem:[%s7892 + $0x68] sm:$0xf]
      %v7920 = vld [vmem:[%s7892 + $0x6c] sm:$0xf]
      %v7921 = vld [vmem:[%s7892 + $0x70] sm:$0xf]
      %v7922 = vld [vmem:[%s7892 + $0x74] sm:$0xf]
      %v7923 = vld [vmem:[%s7892 + $0x78] sm:$0xf]
      %v7924 = vld [vmem:[%s7892 + $0x7c] sm:$0xf]
      %v7925 = vld [vmem:[%s7892 + $0x80] sm:$0xf]
      %v7926 = vld [vmem:[%s7892 + $0x84] sm:$0xf]
      %v7927 = vld [vmem:[%s7892 + $0x88] sm:$0xf]
      %v7928 = vld [vmem:[%s7892 + $0x8c] sm:$0xf]
      %v7929 = vld [vmem:[%s7892 + $0x90] sm:$0xf]
      %v7930 = vld [vmem:[%s7892 + $0x94] sm:$0xf]
      %v7931 = vld [vmem:[%s7892 + $0x98] sm:$0xf]
      %v7932 = vld [vmem:[%s7892 + $0x9c] sm:$0xf]
      %v7933 = vld [vmem:[%s7892 + $0xa0] sm:$0xf]
      %v7934 = vld [vmem:[%s7892 + $0xa4] sm:$0xf]
      %v7935 = vld [vmem:[%s7892 + $0xa8] sm:$0xf]
      %v7936 = vld [vmem:[%s7892 + $0xac] sm:$0xf]
      %v7937 = vld [vmem:[%s7892 + $0xb0] sm:$0xf]
      %v7938 = vld [vmem:[%s7892 + $0xb4] sm:$0xf]
      %v7939 = vld [vmem:[%s7892 + $0xb8] sm:$0xf]
      %v7940 = vld [vmem:[%s7892 + $0xbc] sm:$0xf]
      %v7989 = vunpack.c.l.b16 %v7893
      %v7990 = vunpack.c.l.b16 %v7894
      %v7991 = vunpack.c.l.b16 %v7895
      %v7992 = vunpack.c.l.b16 %v7896
      %v7993 = vunpack.c.l.b16 %v7897
      %v7994 = vunpack.c.l.b16 %v7898
      %v7995 = vunpack.c.l.b16 %v7899
      %v7996 = vunpack.c.l.b16 %v7900
      %v7997 = vunpack.c.l.b16 %v7901
      %v7998 = vunpack.c.l.b16 %v7902
      %v7999 = vunpack.c.l.b16 %v7903
      %v8000 = vunpack.c.l.b16 %v7904
      %v8001 = vunpack.c.l.b16 %v7905
      %v8002 = vunpack.c.l.b16 %v7906
      %v8003 = vunpack.c.l.b16 %v7907
      %v8004 = vunpack.c.l.b16 %v7908
      %v8005 = vunpack.c.l.b16 %v7909
      %v8006 = vunpack.c.l.b16 %v7910
      %v8007 = vunpack.c.l.b16 %v7911
      %v8008 = vunpack.c.l.b16 %v7912
      %v8009 = vunpack.c.l.b16 %v7913
      %v8010 = vunpack.c.l.b16 %v7914
      %v8011 = vunpack.c.l.b16 %v7915
      %v8012 = vunpack.c.l.b16 %v7916
      %v8013 = vunpack.c.l.b16 %v7917
      %v8014 = vunpack.c.l.b16 %v7918
      %v8015 = vunpack.c.l.b16 %v7919
      %v8016 = vunpack.c.l.b16 %v7920
      %v8017 = vunpack.c.l.b16 %v7921
      %v8018 = vunpack.c.l.b16 %v7922
      %v8019 = vunpack.c.l.b16 %v7923
      %v8020 = vunpack.c.l.b16 %v7924
      %v8021 = vunpack.c.l.b16 %v7925
      %v8022 = vunpack.c.l.b16 %v7926
      %v8023 = vunpack.c.l.b16 %v7927
      %v8024 = vunpack.c.l.b16 %v7928
      %v8025 = vunpack.c.l.b16 %v7929
      %v8026 = vunpack.c.l.b16 %v7930
      %v8027 = vunpack.c.l.b16 %v7931
      %v8028 = vunpack.c.l.b16 %v7932
      %v8029 = vunpack.c.l.b16 %v7933
      %v8030 = vunpack.c.l.b16 %v7934
      %v8031 = vunpack.c.l.b16 %v7935
      %v8032 = vunpack.c.l.b16 %v7936
      %v8033 = vunpack.c.l.b16 %v7937
      %v8034 = vunpack.c.l.b16 %v7938
      %v8035 = vunpack.c.l.b16 %v7939
      %v8036 = vunpack.c.l.b16 %v7940
      %v8037 = vpack.c.b16 %v7990, %v7989
      %v8038 = vpack.c.b16 %v7992, %v7991
      %v8039 = vpack.c.b16 %v7994, %v7993
      %v8040 = vpack.c.b16 %v7996, %v7995
      %v8041 = vpack.c.b16 %v7998, %v7997
      %v8042 = vpack.c.b16 %v8000, %v7999
      %v8043 = vpack.c.b16 %v8002, %v8001
      %v8044 = vpack.c.b16 %v8004, %v8003
      %v8045 = vpack.c.b16 %v8006, %v8005
      %v8046 = vpack.c.b16 %v8008, %v8007
      %v8047 = vpack.c.b16 %v8010, %v8009
      %v8048 = vpack.c.b16 %v8012, %v8011
      %v8049 = vpack.c.b16 %v8014, %v8013
      %v8050 = vpack.c.b16 %v8016, %v8015
      %v8051 = vpack.c.b16 %v8018, %v8017
      %v8052 = vpack.c.b16 %v8020, %v8019
      %v8053 = vpack.c.b16 %v8022, %v8021
      %v8054 = vpack.c.b16 %v8024, %v8023
      %v8055 = vpack.c.b16 %v8026, %v8025
      %v8056 = vpack.c.b16 %v8028, %v8027
      %v8057 = vpack.c.b16 %v8030, %v8029
      %v8058 = vpack.c.b16 %v8032, %v8031
      %v8059 = vpack.c.b16 %v8034, %v8033
      %v8060 = vpack.c.b16 %v8036, %v8035
      %8085 = vmatpush.bf16.msra.mxu0 %v8044
      %8086 = vmatpush.bf16.msra.mxu0 %v8043
      %8087 = vmatpush.bf16.msra.mxu0 %v8042
      %8088 = vmatpush.bf16.msra.mxu0 %v8041
      %8089 = vmatpush.bf16.msra.mxu0 %v8040
      %8090 = vmatpush.bf16.msra.mxu0 %v8039
      %8091 = vmatpush.bf16.msra.mxu0 %v8038
      %8092 = vmatpush.bf16.msra.mxu0 %v8037
      %8093 = vmatmul.bf16.gmra.mxu0 %v6993
      %v8094 = vpop.f32.mrf.mxu0
      %v8095 = vadd.f32 0.0, %v8094
      %v8096 = vpop.f32.mrf.mxu0
      %v8097 = vadd.f32 0.0, %v8096
      %8098 = vmatmul.bf16.gmra.mxu0 %v6996
      %v8099 = vpop.f32.mrf.mxu0
      %v8100 = vadd.f32 0.0, %v8099
      %v8101 = vpop.f32.mrf.mxu0
      %v8102 = vadd.f32 0.0, %v8101
      %8103 = vmatmul.bf16.gmra.mxu0 %v6999
      %v8104 = vpop.f32.mrf.mxu0
      %v8105 = vadd.f32 0.0, %v8104
      %v8106 = vpop.f32.mrf.mxu0
      %v8107 = vadd.f32 0.0, %v8106
      %8108 = vmatmul.bf16.gmra.mxu0 %v7002
      %v8109 = vpop.f32.mrf.mxu0
      %v8110 = vadd.f32 0.0, %v8109
      %v8111 = vpop.f32.mrf.mxu0
      %v8112 = vadd.f32 0.0, %v8111
      %8113 = vmatmul.bf16.gmra.mxu0 %v7005
      %v8114 = vpop.f32.mrf.mxu0
      %v8115 = vadd.f32 0.0, %v8114
      %v8116 = vpop.f32.mrf.mxu0
      %v8117 = vadd.f32 0.0, %v8116
      %8118 = vmatmul.bf16.gmra.mxu0 %v7008
      %v8119 = vpop.f32.mrf.mxu0
      %v8120 = vadd.f32 0.0, %v8119
      %v8121 = vpop.f32.mrf.mxu0
      %v8122 = vadd.f32 0.0, %v8121
      %8123 = vmatmul.bf16.gmra.mxu0 %v7011
      %v8124 = vpop.f32.mrf.mxu0
      %v8125 = vadd.f32 0.0, %v8124
      %v8126 = vpop.f32.mrf.mxu0
      %v8127 = vadd.f32 0.0, %v8126
      %8128 = vmatmul.bf16.gmra.mxu0 %v7014
      %v8129 = vpop.f32.mrf.mxu0
      %v8130 = vadd.f32 0.0, %v8129
      %v8131 = vpop.f32.mrf.mxu0
      %v8132 = vadd.f32 0.0, %v8131
      %8133 = vmatmul.bf16.gmra.mxu0 %v7017
      %v8134 = vpop.f32.mrf.mxu0
      %v8135 = vadd.f32 0.0, %v8134
      %v8136 = vpop.f32.mrf.mxu0
      %v8137 = vadd.f32 0.0, %v8136
      %8138 = vmatmul.bf16.gmra.mxu0 %v7020
      %v8139 = vpop.f32.mrf.mxu0
      %v8140 = vadd.f32 0.0, %v8139
      %v8141 = vpop.f32.mrf.mxu0
      %v8142 = vadd.f32 0.0, %v8141
      %8143 = vmatmul.bf16.gmra.mxu0 %v7023
      %v8144 = vpop.f32.mrf.mxu0
      %v8145 = vadd.f32 0.0, %v8144
      %v8146 = vpop.f32.mrf.mxu0
      %v8147 = vadd.f32 0.0, %v8146
      %8148 = vmatmul.bf16.gmra.mxu0 %v7026
      %v8149 = vpop.f32.mrf.mxu0
      %v8150 = vadd.f32 0.0, %v8149
      %v8151 = vpop.f32.mrf.mxu0
      %v8152 = vadd.f32 0.0, %v8151
      %8153 = vmatmul.bf16.gmra.mxu0 %v7029
      %v8154 = vpop.f32.mrf.mxu0
      %v8155 = vadd.f32 0.0, %v8154
      %v8156 = vpop.f32.mrf.mxu0
      %v8157 = vadd.f32 0.0, %v8156
      %8158 = vmatmul.bf16.gmra.mxu0 %v7032
      %v8159 = vpop.f32.mrf.mxu0
      %v8160 = vadd.f32 0.0, %v8159
      %v8161 = vpop.f32.mrf.mxu0
      %v8162 = vadd.f32 0.0, %v8161
      %8163 = vmatmul.bf16.gmra.mxu0 %v7035
      %v8164 = vpop.f32.mrf.mxu0
      %v8165 = vadd.f32 0.0, %v8164
      %v8166 = vpop.f32.mrf.mxu0
      %v8167 = vadd.f32 0.0, %v8166
      %8168 = vmatmul.bf16.gmra.mxu0 %v7038
      %v8169 = vpop.f32.mrf.mxu0
      %v8170 = vadd.f32 0.0, %v8169
      %v8171 = vpop.f32.mrf.mxu0
      %v8172 = vadd.f32 0.0, %v8171
      %8173 = vmatmul.bf16.gmra.mxu0 %v7041
      %v8174 = vpop.f32.mrf.mxu0
      %v8175 = vadd.f32 0.0, %v8174
      %v8176 = vpop.f32.mrf.mxu0
      %v8177 = vadd.f32 0.0, %v8176
      %8178 = vmatmul.bf16.gmra.mxu0 %v7044
      %v8179 = vpop.f32.mrf.mxu0
      %v8180 = vadd.f32 0.0, %v8179
      %v8181 = vpop.f32.mrf.mxu0
      %v8182 = vadd.f32 0.0, %v8181
      %8183 = vdwg.mxu0
      %8184 = vmatpush.bf16.msra.mxu0 %v8052
      %8185 = vmatpush.bf16.msra.mxu0 %v8051
      %8186 = vmatpush.bf16.msra.mxu0 %v8050
      %8187 = vmatpush.bf16.msra.mxu0 %v8049
      %8188 = vmatpush.bf16.msra.mxu0 %v8048
      %8189 = vmatpush.bf16.msra.mxu0 %v8047
      %8190 = vmatpush.bf16.msra.mxu0 %v8046
      %8191 = vmatpush.bf16.msra.mxu0 %v8045
      %8192 = vmatmul.bf16.gmra.mxu0 %v6994
      %v8193 = vpop.f32.mrf.mxu0
      %v8194 = vadd.f32 %v8095, %v8193
      %v8195 = vpop.f32.mrf.mxu0
      %v8196 = vadd.f32 %v8097, %v8195
      %8197 = vmatmul.bf16.gmra.mxu0 %v6997
      %v8198 = vpop.f32.mrf.mxu0
      %v8199 = vadd.f32 %v8100, %v8198
      %v8200 = vpop.f32.mrf.mxu0
      %v8201 = vadd.f32 %v8102, %v8200
      %8202 = vmatmul.bf16.gmra.mxu0 %v7000
      %v8203 = vpop.f32.mrf.mxu0
      %v8204 = vadd.f32 %v8105, %v8203
      %v8205 = vpop.f32.mrf.mxu0
      %v8206 = vadd.f32 %v8107, %v8205
      %8207 = vmatmul.bf16.gmra.mxu0 %v7003
      %v8208 = vpop.f32.mrf.mxu0
      %v8209 = vadd.f32 %v8110, %v8208
      %v8210 = vpop.f32.mrf.mxu0
      %v8211 = vadd.f32 %v8112, %v8210
      %8212 = vmatmul.bf16.gmra.mxu0 %v7006
      %v8213 = vpop.f32.mrf.mxu0
      %v8214 = vadd.f32 %v8115, %v8213
      %v8215 = vpop.f32.mrf.mxu0
      %v8216 = vadd.f32 %v8117, %v8215
      %8217 = vmatmul.bf16.gmra.mxu0 %v7009
      %v8218 = vpop.f32.mrf.mxu0
      %v8219 = vadd.f32 %v8120, %v8218
      %v8220 = vpop.f32.mrf.mxu0
      %v8221 = vadd.f32 %v8122, %v8220
      %8222 = vmatmul.bf16.gmra.mxu0 %v7012
      %v8223 = vpop.f32.mrf.mxu0
      %v8224 = vadd.f32 %v8125, %v8223
      %v8225 = vpop.f32.mrf.mxu0
      %v8226 = vadd.f32 %v8127, %v8225
      %8227 = vmatmul.bf16.gmra.mxu0 %v7015
      %v8228 = vpop.f32.mrf.mxu0
      %v8229 = vadd.f32 %v8130, %v8228
      %v8230 = vpop.f32.mrf.mxu0
      %v8231 = vadd.f32 %v8132, %v8230
      %8232 = vmatmul.bf16.gmra.mxu0 %v7018
      %v8233 = vpop.f32.mrf.mxu0
      %v8234 = vadd.f32 %v8135, %v8233
      %v8235 = vpop.f32.mrf.mxu0
      %v8236 = vadd.f32 %v8137, %v8235
      %8237 = vmatmul.bf16.gmra.mxu0 %v7021
      %v8238 = vpop.f32.mrf.mxu0
      %v8239 = vadd.f32 %v8140, %v8238
      %v8240 = vpop.f32.mrf.mxu0
      %v8241 = vadd.f32 %v8142, %v8240
      %8242 = vmatmul.bf16.gmra.mxu0 %v7024
      %v8243 = vpop.f32.mrf.mxu0
      %v8244 = vadd.f32 %v8145, %v8243
      %v8245 = vpop.f32.mrf.mxu0
      %v8246 = vadd.f32 %v8147, %v8245
      %8247 = vmatmul.bf16.gmra.mxu0 %v7027
      %v8248 = vpop.f32.mrf.mxu0
      %v8249 = vadd.f32 %v8150, %v8248
      %v8250 = vpop.f32.mrf.mxu0
      %v8251 = vadd.f32 %v8152, %v8250
      %8252 = vmatmul.bf16.gmra.mxu0 %v7030
      %v8253 = vpop.f32.mrf.mxu0
      %v8254 = vadd.f32 %v8155, %v8253
      %v8255 = vpop.f32.mrf.mxu0
      %v8256 = vadd.f32 %v8157, %v8255
      %8257 = vmatmul.bf16.gmra.mxu0 %v7033
      %v8258 = vpop.f32.mrf.mxu0
      %v8259 = vadd.f32 %v8160, %v8258
      %v8260 = vpop.f32.mrf.mxu0
      %v8261 = vadd.f32 %v8162, %v8260
      %8262 = vmatmul.bf16.gmra.mxu0 %v7036
      %v8263 = vpop.f32.mrf.mxu0
      %v8264 = vadd.f32 %v8165, %v8263
      %v8265 = vpop.f32.mrf.mxu0
      %v8266 = vadd.f32 %v8167, %v8265
      %8267 = vmatmul.bf16.gmra.mxu0 %v7039
      %v8268 = vpop.f32.mrf.mxu0
      %v8269 = vadd.f32 %v8170, %v8268
      %v8270 = vpop.f32.mrf.mxu0
      %v8271 = vadd.f32 %v8172, %v8270
      %8272 = vmatmul.bf16.gmra.mxu0 %v7042
      %v8273 = vpop.f32.mrf.mxu0
      %v8274 = vadd.f32 %v8175, %v8273
      %v8275 = vpop.f32.mrf.mxu0
      %v8276 = vadd.f32 %v8177, %v8275
      %8277 = vmatmul.bf16.gmra.mxu0 %v7045
      %v8278 = vpop.f32.mrf.mxu0
      %v8279 = vadd.f32 %v8180, %v8278
      %v8280 = vpop.f32.mrf.mxu0
      %v8281 = vadd.f32 %v8182, %v8280
      %8282 = vdwg.mxu0
      %8283 = vmatpush.bf16.msra.mxu0 %v8060
      %8284 = vmatpush.bf16.msra.mxu0 %v8059
      %8285 = vmatpush.bf16.msra.mxu0 %v8058
      %8286 = vmatpush.bf16.msra.mxu0 %v8057
      %8287 = vmatpush.bf16.msra.mxu0 %v8056
      %8288 = vmatpush.bf16.msra.mxu0 %v8055
      %8289 = vmatpush.bf16.msra.mxu0 %v8054
      %8290 = vmatpush.bf16.msra.mxu0 %v8053
      %8291 = vmatmul.bf16.gmra.mxu0 %v6995
      %v8292 = vpop.f32.mrf.mxu0
      %v8293 = vadd.f32 %v8194, %v8292
      %v8294 = vpop.f32.mrf.mxu0
      %v8295 = vadd.f32 %v8196, %v8294
      %8296 = vmatmul.bf16.gmra.mxu0 %v6998
      %v8297 = vpop.f32.mrf.mxu0
      %v8298 = vadd.f32 %v8199, %v8297
      %v8299 = vpop.f32.mrf.mxu0
      %v8300 = vadd.f32 %v8201, %v8299
      %8301 = vmatmul.bf16.gmra.mxu0 %v7001
      %v8302 = vpop.f32.mrf.mxu0
      %v8303 = vadd.f32 %v8204, %v8302
      %v8304 = vpop.f32.mrf.mxu0
      %v8305 = vadd.f32 %v8206, %v8304
      %8306 = vmatmul.bf16.gmra.mxu0 %v7004
      %v8307 = vpop.f32.mrf.mxu0
      %v8308 = vadd.f32 %v8209, %v8307
      %v8309 = vpop.f32.mrf.mxu0
      %v8310 = vadd.f32 %v8211, %v8309
      %8311 = vmatmul.bf16.gmra.mxu0 %v7007
      %v8312 = vpop.f32.mrf.mxu0
      %v8313 = vadd.f32 %v8214, %v8312
      %v8314 = vpop.f32.mrf.mxu0
      %v8315 = vadd.f32 %v8216, %v8314
      %8316 = vmatmul.bf16.gmra.mxu0 %v7010
      %v8317 = vpop.f32.mrf.mxu0
      %v8318 = vadd.f32 %v8219, %v8317
      %v8319 = vpop.f32.mrf.mxu0
      %v8320 = vadd.f32 %v8221, %v8319
      %8321 = vmatmul.bf16.gmra.mxu0 %v7013
      %v8322 = vpop.f32.mrf.mxu0
      %v8323 = vadd.f32 %v8224, %v8322
      %v8324 = vpop.f32.mrf.mxu0
      %v8325 = vadd.f32 %v8226, %v8324
      %8326 = vmatmul.bf16.gmra.mxu0 %v7016
      %v8327 = vpop.f32.mrf.mxu0
      %v8328 = vadd.f32 %v8229, %v8327
      %v8329 = vpop.f32.mrf.mxu0
      %v8330 = vadd.f32 %v8231, %v8329
      %8331 = vmatmul.bf16.gmra.mxu0 %v7019
      %v8332 = vpop.f32.mrf.mxu0
      %v8333 = vadd.f32 %v8234, %v8332
      %v8334 = vpop.f32.mrf.mxu0
      %v8335 = vadd.f32 %v8236, %v8334
      %8336 = vmatmul.bf16.gmra.mxu0 %v7022
      %v8337 = vpop.f32.mrf.mxu0
      %v8338 = vadd.f32 %v8239, %v8337
      %v8339 = vpop.f32.mrf.mxu0
      %v8340 = vadd.f32 %v8241, %v8339
      %8341 = vmatmul.bf16.gmra.mxu0 %v7025
      %v8342 = vpop.f32.mrf.mxu0
      %v8343 = vadd.f32 %v8244, %v8342
      %v8344 = vpop.f32.mrf.mxu0
      %v8345 = vadd.f32 %v8246, %v8344
      %8346 = vmatmul.bf16.gmra.mxu0 %v7028
      %v8347 = vpop.f32.mrf.mxu0
      %v8348 = vadd.f32 %v8249, %v8347
      %v8349 = vpop.f32.mrf.mxu0
      %v8350 = vadd.f32 %v8251, %v8349
      %8351 = vmatmul.bf16.gmra.mxu0 %v7031
      %v8352 = vpop.f32.mrf.mxu0
      %v8353 = vadd.f32 %v8254, %v8352
      %v8354 = vpop.f32.mrf.mxu0
      %v8355 = vadd.f32 %v8256, %v8354
      %8356 = vmatmul.bf16.gmra.mxu0 %v7034
      %v8357 = vpop.f32.mrf.mxu0
      %v8358 = vadd.f32 %v8259, %v8357
      %v8359 = vpop.f32.mrf.mxu0
      %v8360 = vadd.f32 %v8261, %v8359
      %8361 = vmatmul.bf16.gmra.mxu0 %v7037
      %v8362 = vpop.f32.mrf.mxu0
      %v8363 = vadd.f32 %v8264, %v8362
      %v8364 = vpop.f32.mrf.mxu0
      %v8365 = vadd.f32 %v8266, %v8364
      %8366 = vmatmul.bf16.gmra.mxu0 %v7040
      %v8367 = vpop.f32.mrf.mxu0
      %v8368 = vadd.f32 %v8269, %v8367
      %v8369 = vpop.f32.mrf.mxu0
      %v8370 = vadd.f32 %v8271, %v8369
      %8371 = vmatmul.bf16.gmra.mxu0 %v7043
      %v8372 = vpop.f32.mrf.mxu0
      %v8373 = vadd.f32 %v8274, %v8372
      %v8374 = vpop.f32.mrf.mxu0
      %v8375 = vadd.f32 %v8276, %v8374
      %8376 = vmatmul.bf16.gmra.mxu0 %v7046
      %v8377 = vpop.f32.mrf.mxu0
      %v8378 = vadd.f32 %v8279, %v8377
      %v8379 = vpop.f32.mrf.mxu0
      %v8380 = vadd.f32 %v8281, %v8379
      %8381 = vdwg.mxu0
      %v8418 = vrot.slane %v8293, 2
      %v8419 = vrot.slane %v8293, 4
      %v8420 = vrot.slane %v8293, 6
      %v8421 = vrot.slane %v8295, 2
      %v8422 = vrot.slane %v8295, 4
      %v8423 = vrot.slane %v8295, 6
      %v8424 = vrot.slane %v8298, 2
      %v8425 = vrot.slane %v8298, 4
      %v8426 = vrot.slane %v8298, 6
      %v8427 = vrot.slane %v8300, 2
      %v8428 = vrot.slane %v8300, 4
      %v8429 = vrot.slane %v8300, 6
      %v8430 = vrot.slane %v8303, 2
      %v8431 = vrot.slane %v8303, 4
      %v8432 = vrot.slane %v8303, 6
      %v8433 = vrot.slane %v8305, 2
      %v8434 = vrot.slane %v8305, 4
      %v8435 = vrot.slane %v8305, 6
      %v8436 = vrot.slane %v8308, 2
      %v8437 = vrot.slane %v8308, 4
      %v8438 = vrot.slane %v8308, 6
      %v8439 = vrot.slane %v8310, 2
      %v8440 = vrot.slane %v8310, 4
      %v8441 = vrot.slane %v8310, 6
      %v8442 = vrot.slane %v8313, 2
      %v8443 = vrot.slane %v8313, 4
      %v8444 = vrot.slane %v8313, 6
      %v8445 = vrot.slane %v8315, 2
      %v8446 = vrot.slane %v8315, 4
      %v8447 = vrot.slane %v8315, 6
      %v8448 = vrot.slane %v8318, 2
      %v8449 = vrot.slane %v8318, 4
      %v8450 = vrot.slane %v8318, 6
      %v8451 = vrot.slane %v8320, 2
      %v8452 = vrot.slane %v8320, 4
      %v8453 = vrot.slane %v8320, 6
      %v8454 = vrot.slane %v8323, 2
      %v8455 = vrot.slane %v8323, 4
      %v8456 = vrot.slane %v8323, 6
      %v8457 = vrot.slane %v8325, 2
      %v8458 = vrot.slane %v8325, 4
      %v8459 = vrot.slane %v8325, 6
      %v8460 = vrot.slane %v8328, 2
      %v8461 = vrot.slane %v8328, 4
      %v8462 = vrot.slane %v8328, 6
      %v8463 = vrot.slane %v8330, 2
      %v8464 = vrot.slane %v8330, 4
      %v8465 = vrot.slane %v8330, 6
      %v8466 = vrot.slane %v8333, 2
      %v8467 = vrot.slane %v8333, 4
      %v8468 = vrot.slane %v8333, 6
      %v8469 = vrot.slane %v8335, 2
      %v8470 = vrot.slane %v8335, 4
      %v8471 = vrot.slane %v8335, 6
      %v8472 = vrot.slane %v8338, 2
      %v8473 = vrot.slane %v8338, 4
      %v8474 = vrot.slane %v8338, 6
      %v8475 = vrot.slane %v8340, 2
      %v8476 = vrot.slane %v8340, 4
      %v8477 = vrot.slane %v8340, 6
      %v8478 = vrot.slane %v8343, 2
      %v8479 = vrot.slane %v8343, 4
      %v8480 = vrot.slane %v8343, 6
      %v8481 = vrot.slane %v8345, 2
      %v8482 = vrot.slane %v8345, 4
      %v8483 = vrot.slane %v8345, 6
      %v8484 = vrot.slane %v8348, 2
      %v8485 = vrot.slane %v8348, 4
      %v8486 = vrot.slane %v8348, 6
      %v8487 = vrot.slane %v8350, 2
      %v8488 = vrot.slane %v8350, 4
      %v8489 = vrot.slane %v8350, 6
      %v8490 = vrot.slane %v8353, 2
      %v8491 = vrot.slane %v8353, 4
      %v8492 = vrot.slane %v8353, 6
      %v8493 = vrot.slane %v8355, 2
      %v8494 = vrot.slane %v8355, 4
      %v8495 = vrot.slane %v8355, 6
      %v8496 = vrot.slane %v8358, 2
      %v8497 = vrot.slane %v8358, 4
      %v8498 = vrot.slane %v8358, 6
      %v8499 = vrot.slane %v8360, 2
      %v8500 = vrot.slane %v8360, 4
      %v8501 = vrot.slane %v8360, 6
      %v8502 = vrot.slane %v8363, 2
      %v8503 = vrot.slane %v8363, 4
      %v8504 = vrot.slane %v8363, 6
      %v8505 = vrot.slane %v8365, 2
      %v8506 = vrot.slane %v8365, 4
      %v8507 = vrot.slane %v8365, 6
      %v8508 = vrot.slane %v8368, 2
      %v8509 = vrot.slane %v8368, 4
      %v8510 = vrot.slane %v8368, 6
      %v8511 = vrot.slane %v8370, 2
      %v8512 = vrot.slane %v8370, 4
      %v8513 = vrot.slane %v8370, 6
      %v8514 = vrot.slane %v8373, 2
      %v8515 = vrot.slane %v8373, 4
      %v8516 = vrot.slane %v8373, 6
      %v8517 = vrot.slane %v8375, 2
      %v8518 = vrot.slane %v8375, 4
      %v8519 = vrot.slane %v8375, 6
      %v8520 = vrot.slane %v8378, 2
      %v8521 = vrot.slane %v8378, 4
      %v8522 = vrot.slane %v8378, 6
      %v8523 = vrot.slane %v8380, 2
      %v8524 = vrot.slane %v8380, 4
      %v8525 = vrot.slane %v8380, 6
      %v8526 = vrot.slane %v8293, 7
      %v8527 = vrot.slane %v8526, 2
      %v8528 = vrot.slane %v8418, 7
      %v8529 = vsel %vm2832, %v8527, %v8528
      %v8530 = vrot.slane %v8528, 2
      %v8531 = vrot.slane %v8419, 7
      %v8532 = vsel %vm2832, %v8530, %v8531
      %v8533 = vrot.slane %v8531, 2
      %v8534 = vrot.slane %v8420, 7
      %v8535 = vsel %vm2832, %v8533, %v8534
      %v8536 = vrot.slane %v8534, 2
      %v8537 = vrot.slane %v8295, 7
      %v8538 = vsel %vm2832, %v8536, %v8537
      %v8539 = vrot.slane %v8537, 2
      %v8540 = vrot.slane %v8421, 7
      %v8541 = vsel %vm2832, %v8539, %v8540
      %v8542 = vrot.slane %v8540, 2
      %v8543 = vrot.slane %v8422, 7
      %v8544 = vsel %vm2832, %v8542, %v8543
      %v8545 = vrot.slane %v8543, 2
      %v8546 = vrot.slane %v8423, 7
      %v8547 = vsel %vm2832, %v8545, %v8546
      %v8548 = vrot.slane %v8546, 2
      %v8549 = vrot.slane %v8298, 7
      %v8550 = vsel %vm2832, %v8548, %v8549
      %v8551 = vrot.slane %v8424, 7
      %v8552 = vrot.slane %v8551, 2
      %v8553 = vrot.slane %v8425, 7
      %v8554 = vsel %vm2832, %v8552, %v8553
      %v8555 = vrot.slane %v8553, 2
      %v8556 = vrot.slane %v8426, 7
      %v8557 = vsel %vm2832, %v8555, %v8556
      %v8558 = vrot.slane %v8556, 2
      %v8559 = vrot.slane %v8300, 7
      %v8560 = vsel %vm2832, %v8558, %v8559
      %v8561 = vrot.slane %v8559, 2
      %v8562 = vrot.slane %v8427, 7
      %v8563 = vsel %vm2832, %v8561, %v8562
      %v8564 = vrot.slane %v8562, 2
      %v8565 = vrot.slane %v8428, 7
      %v8566 = vsel %vm2832, %v8564, %v8565
      %v8567 = vrot.slane %v8565, 2
      %v8568 = vrot.slane %v8429, 7
      %v8569 = vsel %vm2832, %v8567, %v8568
      %v8570 = vrot.slane %v8568, 2
      %v8571 = vrot.slane %v8303, 7
      %v8572 = vsel %vm2832, %v8570, %v8571
      %v8573 = vrot.slane %v8571, 2
      %v8574 = vrot.slane %v8430, 7
      %v8575 = vsel %vm2832, %v8573, %v8574
      %v8576 = vrot.slane %v8431, 7
      %v8577 = vrot.slane %v8576, 2
      %v8578 = vrot.slane %v8432, 7
      %v8579 = vsel %vm2832, %v8577, %v8578
      %v8580 = vrot.slane %v8578, 2
      %v8581 = vrot.slane %v8305, 7
      %v8582 = vsel %vm2832, %v8580, %v8581
      %v8583 = vrot.slane %v8581, 2
      %v8584 = vrot.slane %v8433, 7
      %v8585 = vsel %vm2832, %v8583, %v8584
      %v8586 = vrot.slane %v8584, 2
      %v8587 = vrot.slane %v8434, 7
      %v8588 = vsel %vm2832, %v8586, %v8587
      %v8589 = vrot.slane %v8587, 2
      %v8590 = vrot.slane %v8435, 7
      %v8591 = vsel %vm2832, %v8589, %v8590
      %v8592 = vrot.slane %v8590, 2
      %v8593 = vrot.slane %v8308, 7
      %v8594 = vsel %vm2832, %v8592, %v8593
      %v8595 = vrot.slane %v8593, 2
      %v8596 = vrot.slane %v8436, 7
      %v8597 = vsel %vm2832, %v8595, %v8596
      %v8598 = vrot.slane %v8596, 2
      %v8599 = vrot.slane %v8437, 7
      %v8600 = vsel %vm2832, %v8598, %v8599
      %v8601 = vrot.slane %v8438, 7
      %v8602 = vrot.slane %v8601, 2
      %v8603 = vrot.slane %v8310, 7
      %v8604 = vsel %vm2832, %v8602, %v8603
      %v8605 = vrot.slane %v8603, 2
      %v8606 = vrot.slane %v8439, 7
      %v8607 = vsel %vm2832, %v8605, %v8606
      %v8608 = vrot.slane %v8606, 2
      %v8609 = vrot.slane %v8440, 7
      %v8610 = vsel %vm2832, %v8608, %v8609
      %v8611 = vrot.slane %v8609, 2
      %v8612 = vrot.slane %v8441, 7
      %v8613 = vsel %vm2832, %v8611, %v8612
      %v8614 = vrot.slane %v8612, 2
      %v8615 = vrot.slane %v8313, 7
      %v8616 = vsel %vm2832, %v8614, %v8615
      %v8617 = vrot.slane %v8615, 2
      %v8618 = vrot.slane %v8442, 7
      %v8619 = vsel %vm2832, %v8617, %v8618
      %v8620 = vrot.slane %v8618, 2
      %v8621 = vrot.slane %v8443, 7
      %v8622 = vsel %vm2832, %v8620, %v8621
      %v8623 = vrot.slane %v8621, 2
      %v8624 = vrot.slane %v8444, 7
      %v8625 = vsel %vm2832, %v8623, %v8624
      %v8626 = vrot.slane %v8315, 7
      %v8627 = vrot.slane %v8626, 2
      %v8628 = vrot.slane %v8445, 7
      %v8629 = vsel %vm2832, %v8627, %v8628
      %v8630 = vrot.slane %v8628, 2
      %v8631 = vrot.slane %v8446, 7
      %v8632 = vsel %vm2832, %v8630, %v8631
      %v8633 = vrot.slane %v8631, 2
      %v8634 = vrot.slane %v8447, 7
      %v8635 = vsel %vm2832, %v8633, %v8634
      %v8636 = vrot.slane %v8634, 2
      %v8637 = vrot.slane %v8318, 7
      %v8638 = vsel %vm2832, %v8636, %v8637
      %v8639 = vrot.slane %v8637, 2
      %v8640 = vrot.slane %v8448, 7
      %v8641 = vsel %vm2832, %v8639, %v8640
      %v8642 = vrot.slane %v8640, 2
      %v8643 = vrot.slane %v8449, 7
      %v8644 = vsel %vm2832, %v8642, %v8643
      %v8645 = vrot.slane %v8643, 2
      %v8646 = vrot.slane %v8450, 7
      %v8647 = vsel %vm2832, %v8645, %v8646
      %v8648 = vrot.slane %v8646, 2
      %v8649 = vrot.slane %v8320, 7
      %v8650 = vsel %vm2832, %v8648, %v8649
      %v8651 = vrot.slane %v8451, 7
      %v8652 = vrot.slane %v8651, 2
      %v8653 = vrot.slane %v8452, 7
      %v8654 = vsel %vm2832, %v8652, %v8653
      %v8655 = vrot.slane %v8653, 2
      %v8656 = vrot.slane %v8453, 7
      %v8657 = vsel %vm2832, %v8655, %v8656
      %v8658 = vrot.slane %v8656, 2
      %v8659 = vrot.slane %v8323, 7
      %v8660 = vsel %vm2832, %v8658, %v8659
      %v8661 = vrot.slane %v8659, 2
      %v8662 = vrot.slane %v8454, 7
      %v8663 = vsel %vm2832, %v8661, %v8662
      %v8664 = vrot.slane %v8662, 2
      %v8665 = vrot.slane %v8455, 7
      %v8666 = vsel %vm2832, %v8664, %v8665
      %v8667 = vrot.slane %v8665, 2
      %v8668 = vrot.slane %v8456, 7
      %v8669 = vsel %vm2832, %v8667, %v8668
      %v8670 = vrot.slane %v8668, 2
      %v8671 = vrot.slane %v8325, 7
      %v8672 = vsel %vm2832, %v8670, %v8671
      %v8673 = vrot.slane %v8671, 2
      %v8674 = vrot.slane %v8457, 7
      %v8675 = vsel %vm2832, %v8673, %v8674
      %v8676 = vrot.slane %v8458, 7
      %v8677 = vrot.slane %v8676, 2
      %v8678 = vrot.slane %v8459, 7
      %v8679 = vsel %vm2832, %v8677, %v8678
      %v8680 = vrot.slane %v8678, 2
      %v8681 = vrot.slane %v8328, 7
      %v8682 = vsel %vm2832, %v8680, %v8681
      %v8683 = vrot.slane %v8681, 2
      %v8684 = vrot.slane %v8460, 7
      %v8685 = vsel %vm2832, %v8683, %v8684
      %v8686 = vrot.slane %v8684, 2
      %v8687 = vrot.slane %v8461, 7
      %v8688 = vsel %vm2832, %v8686, %v8687
      %v8689 = vrot.slane %v8687, 2
      %v8690 = vrot.slane %v8462, 7
      %v8691 = vsel %vm2832, %v8689, %v8690
      %v8692 = vrot.slane %v8690, 2
      %v8693 = vrot.slane %v8330, 7
      %v8694 = vsel %vm2832, %v8692, %v8693
      %v8695 = vrot.slane %v8693, 2
      %v8696 = vrot.slane %v8463, 7
      %v8697 = vsel %vm2832, %v8695, %v8696
      %v8698 = vrot.slane %v8696, 2
      %v8699 = vrot.slane %v8464, 7
      %v8700 = vsel %vm2832, %v8698, %v8699
      %v8701 = vrot.slane %v8465, 7
      %v8702 = vrot.slane %v8701, 2
      %v8703 = vrot.slane %v8333, 7
      %v8704 = vsel %vm2832, %v8702, %v8703
      %v8705 = vrot.slane %v8703, 2
      %v8706 = vrot.slane %v8466, 7
      %v8707 = vsel %vm2832, %v8705, %v8706
      %v8708 = vrot.slane %v8706, 2
      %v8709 = vrot.slane %v8467, 7
      %v8710 = vsel %vm2832, %v8708, %v8709
      %v8711 = vrot.slane %v8709, 2
      %v8712 = vrot.slane %v8468, 7
      %v8713 = vsel %vm2832, %v8711, %v8712
      %v8714 = vrot.slane %v8712, 2
      %v8715 = vrot.slane %v8335, 7
      %v8716 = vsel %vm2832, %v8714, %v8715
      %v8717 = vrot.slane %v8715, 2
      %v8718 = vrot.slane %v8469, 7
      %v8719 = vsel %vm2832, %v8717, %v8718
      %v8720 = vrot.slane %v8718, 2
      %v8721 = vrot.slane %v8470, 7
      %v8722 = vsel %vm2832, %v8720, %v8721
      %v8723 = vrot.slane %v8721, 2
      %v8724 = vrot.slane %v8471, 7
      %v8725 = vsel %vm2832, %v8723, %v8724
      %v8726 = vrot.slane %v8338, 7
      %v8727 = vrot.slane %v8726, 2
      %v8728 = vrot.slane %v8472, 7
      %v8729 = vsel %vm2832, %v8727, %v8728
      %v8730 = vrot.slane %v8728, 2
      %v8731 = vrot.slane %v8473, 7
      %v8732 = vsel %vm2832, %v8730, %v8731
      %v8733 = vrot.slane %v8731, 2
      %v8734 = vrot.slane %v8474, 7
      %v8735 = vsel %vm2832, %v8733, %v8734
      %v8736 = vrot.slane %v8734, 2
      %v8737 = vrot.slane %v8340, 7
      %v8738 = vsel %vm2832, %v8736, %v8737
      %v8739 = vrot.slane %v8737, 2
      %v8740 = vrot.slane %v8475, 7
      %v8741 = vsel %vm2832, %v8739, %v8740
      %v8742 = vrot.slane %v8740, 2
      %v8743 = vrot.slane %v8476, 7
      %v8744 = vsel %vm2832, %v8742, %v8743
      %v8745 = vrot.slane %v8743, 2
      %v8746 = vrot.slane %v8477, 7
      %v8747 = vsel %vm2832, %v8745, %v8746
      %v8748 = vrot.slane %v8746, 2
      %v8749 = vrot.slane %v8343, 7
      %v8750 = vsel %vm2832, %v8748, %v8749
      %v8751 = vrot.slane %v8478, 7
      %v8752 = vrot.slane %v8751, 2
      %v8753 = vrot.slane %v8479, 7
      %v8754 = vsel %vm2832, %v8752, %v8753
      %v8755 = vrot.slane %v8753, 2
      %v8756 = vrot.slane %v8480, 7
      %v8757 = vsel %vm2832, %v8755, %v8756
      %v8758 = vrot.slane %v8756, 2
      %v8759 = vrot.slane %v8345, 7
      %v8760 = vsel %vm2832, %v8758, %v8759
      %v8761 = vrot.slane %v8759, 2
      %v8762 = vrot.slane %v8481, 7
      %v8763 = vsel %vm2832, %v8761, %v8762
      %v8764 = vrot.slane %v8762, 2
      %v8765 = vrot.slane %v8482, 7
      %v8766 = vsel %vm2832, %v8764, %v8765
      %v8767 = vrot.slane %v8765, 2
      %v8768 = vrot.slane %v8483, 7
      %v8769 = vsel %vm2832, %v8767, %v8768
      %v8770 = vrot.slane %v8768, 2
      %v8771 = vrot.slane %v8348, 7
      %v8772 = vsel %vm2832, %v8770, %v8771
      %v8773 = vrot.slane %v8771, 2
      %v8774 = vrot.slane %v8484, 7
      %v8775 = vsel %vm2832, %v8773, %v8774
      %v8776 = vrot.slane %v8485, 7
      %v8777 = vrot.slane %v8776, 2
      %v8778 = vrot.slane %v8486, 7
      %v8779 = vsel %vm2832, %v8777, %v8778
      %v8780 = vrot.slane %v8778, 2
      %v8781 = vrot.slane %v8350, 7
      %v8782 = vsel %vm2832, %v8780, %v8781
      %v8783 = vrot.slane %v8781, 2
      %v8784 = vrot.slane %v8487, 7
      %v8785 = vsel %vm2832, %v8783, %v8784
      %v8786 = vrot.slane %v8784, 2
      %v8787 = vrot.slane %v8488, 7
      %v8788 = vsel %vm2832, %v8786, %v8787
      %v8789 = vrot.slane %v8787, 2
      %v8790 = vrot.slane %v8489, 7
      %v8791 = vsel %vm2832, %v8789, %v8790
      %v8792 = vrot.slane %v8790, 2
      %v8793 = vrot.slane %v8353, 7
      %v8794 = vsel %vm2832, %v8792, %v8793
      %v8795 = vrot.slane %v8793, 2
      %v8796 = vrot.slane %v8490, 7
      %v8797 = vsel %vm2832, %v8795, %v8796
      %v8798 = vrot.slane %v8796, 2
      %v8799 = vrot.slane %v8491, 7
      %v8800 = vsel %vm2832, %v8798, %v8799
      %v8801 = vrot.slane %v8492, 7
      %v8802 = vrot.slane %v8801, 2
      %v8803 = vrot.slane %v8355, 7
      %v8804 = vsel %vm2832, %v8802, %v8803
      %v8805 = vrot.slane %v8803, 2
      %v8806 = vrot.slane %v8493, 7
      %v8807 = vsel %vm2832, %v8805, %v8806
      %v8808 = vrot.slane %v8806, 2
      %v8809 = vrot.slane %v8494, 7
      %v8810 = vsel %vm2832, %v8808, %v8809
      %v8811 = vrot.slane %v8809, 2
      %v8812 = vrot.slane %v8495, 7
      %v8813 = vsel %vm2832, %v8811, %v8812
      %v8814 = vrot.slane %v8812, 2
      %v8815 = vrot.slane %v8358, 7
      %v8816 = vsel %vm2832, %v8814, %v8815
      %v8817 = vrot.slane %v8815, 2
      %v8818 = vrot.slane %v8496, 7
      %v8819 = vsel %vm2832, %v8817, %v8818
      %v8820 = vrot.slane %v8818, 2
      %v8821 = vrot.slane %v8497, 7
      %v8822 = vsel %vm2832, %v8820, %v8821
      %v8823 = vrot.slane %v8821, 2
      %v8824 = vrot.slane %v8498, 7
      %v8825 = vsel %vm2832, %v8823, %v8824
      %v8826 = vrot.slane %v8360, 7
      %v8827 = vrot.slane %v8826, 2
      %v8828 = vrot.slane %v8499, 7
      %v8829 = vsel %vm2832, %v8827, %v8828
      %v8830 = vrot.slane %v8828, 2
      %v8831 = vrot.slane %v8500, 7
      %v8832 = vsel %vm2832, %v8830, %v8831
      %v8833 = vrot.slane %v8831, 2
      %v8834 = vrot.slane %v8501, 7
      %v8835 = vsel %vm2832, %v8833, %v8834
      %v8836 = vrot.slane %v8834, 2
      %v8837 = vrot.slane %v8363, 7
      %v8838 = vsel %vm2832, %v8836, %v8837
      %v8839 = vrot.slane %v8837, 2
      %v8840 = vrot.slane %v8502, 7
      %v8841 = vsel %vm2832, %v8839, %v8840
      %v8842 = vrot.slane %v8840, 2
      %v8843 = vrot.slane %v8503, 7
      %v8844 = vsel %vm2832, %v8842, %v8843
      %v8845 = vrot.slane %v8843, 2
      %v8846 = vrot.slane %v8504, 7
      %v8847 = vsel %vm2832, %v8845, %v8846
      %v8848 = vrot.slane %v8846, 2
      %v8849 = vrot.slane %v8365, 7
      %v8850 = vsel %vm2832, %v8848, %v8849
      %v8851 = vrot.slane %v8505, 7
      %v8852 = vrot.slane %v8851, 2
      %v8853 = vrot.slane %v8506, 7
      %v8854 = vsel %vm2832, %v8852, %v8853
      %v8855 = vrot.slane %v8853, 2
      %v8856 = vrot.slane %v8507, 7
      %v8857 = vsel %vm2832, %v8855, %v8856
      %v8858 = vrot.slane %v8856, 2
      %v8859 = vrot.slane %v8368, 7
      %v8860 = vsel %vm2832, %v8858, %v8859
      %v8861 = vrot.slane %v8859, 2
      %v8862 = vrot.slane %v8508, 7
      %v8863 = vsel %vm2832, %v8861, %v8862
      %v8864 = vrot.slane %v8862, 2
      %v8865 = vrot.slane %v8509, 7
      %v8866 = vsel %vm2832, %v8864, %v8865
      %v8867 = vrot.slane %v8865, 2
      %v8868 = vrot.slane %v8510, 7
      %v8869 = vsel %vm2832, %v8867, %v8868
      %v8870 = vrot.slane %v8868, 2
      %v8871 = vrot.slane %v8370, 7
      %v8872 = vsel %vm2832, %v8870, %v8871
      %v8873 = vrot.slane %v8871, 2
      %v8874 = vrot.slane %v8511, 7
      %v8875 = vsel %vm2832, %v8873, %v8874
      %v8876 = vrot.slane %v8512, 7
      %v8877 = vrot.slane %v8876, 2
      %v8878 = vrot.slane %v8513, 7
      %v8879 = vsel %vm2832, %v8877, %v8878
      %v8880 = vrot.slane %v8878, 2
      %v8881 = vrot.slane %v8373, 7
      %v8882 = vsel %vm2832, %v8880, %v8881
      %v8883 = vrot.slane %v8881, 2
      %v8884 = vrot.slane %v8514, 7
      %v8885 = vsel %vm2832, %v8883, %v8884
      %v8886 = vrot.slane %v8884, 2
      %v8887 = vrot.slane %v8515, 7
      %v8888 = vsel %vm2832, %v8886, %v8887
      %v8889 = vrot.slane %v8887, 2
      %v8890 = vrot.slane %v8516, 7
      %v8891 = vsel %vm2832, %v8889, %v8890
      %v8892 = vrot.slane %v8890, 2
      %v8893 = vrot.slane %v8375, 7
      %v8894 = vsel %vm2832, %v8892, %v8893
      %v8895 = vrot.slane %v8893, 2
      %v8896 = vrot.slane %v8517, 7
      %v8897 = vsel %vm2832, %v8895, %v8896
      %v8898 = vrot.slane %v8896, 2
      %v8899 = vrot.slane %v8518, 7
      %v8900 = vsel %vm2832, %v8898, %v8899
      %v8901 = vrot.slane %v8519, 7
      %v8902 = vrot.slane %v8901, 2
      %v8903 = vrot.slane %v8378, 7
      %v8904 = vsel %vm2832, %v8902, %v8903
      %v8905 = vrot.slane %v8903, 2
      %v8906 = vrot.slane %v8520, 7
      %v8907 = vsel %vm2832, %v8905, %v8906
      %v8908 = vrot.slane %v8906, 2
      %v8909 = vrot.slane %v8521, 7
      %v8910 = vsel %vm2832, %v8908, %v8909
      %v8911 = vrot.slane %v8909, 2
      %v8912 = vrot.slane %v8522, 7
      %v8913 = vsel %vm2832, %v8911, %v8912
      %v8914 = vrot.slane %v8912, 2
      %v8915 = vrot.slane %v8380, 7
      %v8916 = vsel %vm2832, %v8914, %v8915
      %v8917 = vrot.slane %v8915, 2
      %v8918 = vrot.slane %v8523, 7
      %v8919 = vsel %vm2832, %v8917, %v8918
      %v8920 = vrot.slane %v8918, 2
      %v8921 = vrot.slane %v8524, 7
      %v8922 = vsel %vm2832, %v8920, %v8921
      %v8923 = vrot.slane %v8921, 2
      %v8924 = vrot.slane %v8525, 7
      %v8925 = vsel %vm2832, %v8923, %v8924
      %v9054 = vadd.f32 %v7764, %v8529
      %v9055 = vadd.f32 %v7765, %v8532
      %v9056 = vadd.f32 %v7766, %v8535
      %v9057 = vadd.f32 %v7767, %v8538
      %v9058 = vadd.f32 %v7768, %v8541
      %v9059 = vadd.f32 %v7769, %v8544
      %v9060 = vadd.f32 %v7770, %v8547
      %v9061 = vadd.f32 %v7771, %v8550
      %v9062 = vadd.f32 %v7772, %v8554
      %v9063 = vadd.f32 %v7773, %v8557
      %v9064 = vadd.f32 %v7774, %v8560
      %v9065 = vadd.f32 %v7775, %v8563
      %v9066 = vadd.f32 %v7776, %v8566
      %v9067 = vadd.f32 %v7777, %v8569
      %v9068 = vadd.f32 %v7778, %v8572
      %v9069 = vadd.f32 %v7779, %v8575
      %v9070 = vadd.f32 %v7780, %v8579
      %v9071 = vadd.f32 %v7781, %v8582
      %v9072 = vadd.f32 %v7782, %v8585
      %v9073 = vadd.f32 %v7783, %v8588
      %v9074 = vadd.f32 %v7784, %v8591
      %v9075 = vadd.f32 %v7785, %v8594
      %v9076 = vadd.f32 %v7786, %v8597
      %v9077 = vadd.f32 %v7787, %v8600
      %v9078 = vadd.f32 %v7788, %v8604
      %v9079 = vadd.f32 %v7789, %v8607
      %v9080 = vadd.f32 %v7790, %v8610
      %v9081 = vadd.f32 %v7791, %v8613
      %v9082 = vadd.f32 %v7792, %v8616
      %v9083 = vadd.f32 %v7793, %v8619
      %v9084 = vadd.f32 %v7794, %v8622
      %v9085 = vadd.f32 %v7795, %v8625
      %v9086 = vadd.f32 %v7796, %v8629
      %v9087 = vadd.f32 %v7797, %v8632
      %v9088 = vadd.f32 %v7798, %v8635
      %v9089 = vadd.f32 %v7799, %v8638
      %v9090 = vadd.f32 %v7800, %v8641
      %v9091 = vadd.f32 %v7801, %v8644
      %v9092 = vadd.f32 %v7802, %v8647
      %v9093 = vadd.f32 %v7803, %v8650
      %v9094 = vadd.f32 %v7804, %v8654
      %v9095 = vadd.f32 %v7805, %v8657
      %v9096 = vadd.f32 %v7806, %v8660
      %v9097 = vadd.f32 %v7807, %v8663
      %v9098 = vadd.f32 %v7808, %v8666
      %v9099 = vadd.f32 %v7809, %v8669
      %v9100 = vadd.f32 %v7810, %v8672
      %v9101 = vadd.f32 %v7811, %v8675
      %v9102 = vadd.f32 %v7812, %v8679
      %v9103 = vadd.f32 %v7813, %v8682
      %v9104 = vadd.f32 %v7814, %v8685
      %v9105 = vadd.f32 %v7815, %v8688
      %v9106 = vadd.f32 %v7816, %v8691
      %v9107 = vadd.f32 %v7817, %v8694
      %v9108 = vadd.f32 %v7818, %v8697
      %v9109 = vadd.f32 %v7819, %v8700
      %v9110 = vadd.f32 %v7820, %v8704
      %v9111 = vadd.f32 %v7821, %v8707
      %v9112 = vadd.f32 %v7822, %v8710
      %v9113 = vadd.f32 %v7823, %v8713
      %v9114 = vadd.f32 %v7824, %v8716
      %v9115 = vadd.f32 %v7825, %v8719
      %v9116 = vadd.f32 %v7826, %v8722
      %v9117 = vadd.f32 %v7827, %v8725
      %v9118 = vadd.f32 %v7828, %v8729
      %v9119 = vadd.f32 %v7829, %v8732
      %v9120 = vadd.f32 %v7830, %v8735
      %v9121 = vadd.f32 %v7831, %v8738
      %v9122 = vadd.f32 %v7832, %v8741
      %v9123 = vadd.f32 %v7833, %v8744
      %v9124 = vadd.f32 %v7834, %v8747
      %v9125 = vadd.f32 %v7835, %v8750
      %v9126 = vadd.f32 %v7836, %v8754
      %v9127 = vadd.f32 %v7837, %v8757
      %v9128 = vadd.f32 %v7838, %v8760
      %v9129 = vadd.f32 %v7839, %v8763
      %v9130 = vadd.f32 %v7840, %v8766
      %v9131 = vadd.f32 %v7841, %v8769
      %v9132 = vadd.f32 %v7842, %v8772
      %v9133 = vadd.f32 %v7843, %v8775
      %v9134 = vadd.f32 %v7844, %v8779
      %v9135 = vadd.f32 %v7845, %v8782
      %v9136 = vadd.f32 %v7846, %v8785
      %v9137 = vadd.f32 %v7847, %v8788
      %v9138 = vadd.f32 %v7848, %v8791
      %v9139 = vadd.f32 %v7849, %v8794
      %v9140 = vadd.f32 %v7850, %v8797
      %v9141 = vadd.f32 %v7851, %v8800
      %v9142 = vadd.f32 %v7852, %v8804
      %v9143 = vadd.f32 %v7853, %v8807
      %v9144 = vadd.f32 %v7854, %v8810
      %v9145 = vadd.f32 %v7855, %v8813
      %v9146 = vadd.f32 %v7856, %v8816
      %v9147 = vadd.f32 %v7857, %v8819
      %v9148 = vadd.f32 %v7858, %v8822
      %v9149 = vadd.f32 %v7859, %v8825
      %v9150 = vadd.f32 %v7860, %v8829
      %v9151 = vadd.f32 %v7861, %v8832
      %v9152 = vadd.f32 %v7862, %v8835
      %v9153 = vadd.f32 %v7863, %v8838
      %v9154 = vadd.f32 %v7864, %v8841
      %v9155 = vadd.f32 %v7865, %v8844
      %v9156 = vadd.f32 %v7866, %v8847
      %v9157 = vadd.f32 %v7867, %v8850
      %v9158 = vadd.f32 %v7868, %v8854
      %v9159 = vadd.f32 %v7869, %v8857
      %v9160 = vadd.f32 %v7870, %v8860
      %v9161 = vadd.f32 %v7871, %v8863
      %v9162 = vadd.f32 %v7872, %v8866
      %v9163 = vadd.f32 %v7873, %v8869
      %v9164 = vadd.f32 %v7874, %v8872
      %v9165 = vadd.f32 %v7875, %v8875
      %v9166 = vadd.f32 %v7876, %v8879
      %v9167 = vadd.f32 %v7877, %v8882
      %v9168 = vadd.f32 %v7878, %v8885
      %v9169 = vadd.f32 %v7879, %v8888
      %v9170 = vadd.f32 %v7880, %v8891
      %v9171 = vadd.f32 %v7881, %v8894
      %v9172 = vadd.f32 %v7882, %v8897
      %v9173 = vadd.f32 %v7883, %v8900
      %v9174 = vadd.f32 %v7884, %v8904
      %v9175 = vadd.f32 %v7885, %v8907
      %v9176 = vadd.f32 %v7886, %v8910
      %v9177 = vadd.f32 %v7887, %v8913
      %v9178 = vadd.f32 %v7888, %v8916
      %v9179 = vadd.f32 %v7889, %v8919
      %v9180 = vadd.f32 %v7890, %v8922
      %v9181 = vadd.f32 %v7891, %v8925
      %s9182 = scalar_lea.vmem %s2, 384
      %v9183 = vld [vmem:[%s9182] sm:$0xf]
      %v9184 = vld [vmem:[%s9182 + $0x4] sm:$0xf]
      %v9185 = vld [vmem:[%s9182 + $0x8] sm:$0xf]
      %v9186 = vld [vmem:[%s9182 + $0xc] sm:$0xf]
      %v9187 = vld [vmem:[%s9182 + $0x10] sm:$0xf]
      %v9188 = vld [vmem:[%s9182 + $0x14] sm:$0xf]
      %v9189 = vld [vmem:[%s9182 + $0x18] sm:$0xf]
      %v9190 = vld [vmem:[%s9182 + $0x1c] sm:$0xf]
      %v9191 = vld [vmem:[%s9182 + $0x20] sm:$0xf]
      %v9192 = vld [vmem:[%s9182 + $0x24] sm:$0xf]
      %v9193 = vld [vmem:[%s9182 + $0x28] sm:$0xf]
      %v9194 = vld [vmem:[%s9182 + $0x2c] sm:$0xf]
      %v9195 = vld [vmem:[%s9182 + $0x30] sm:$0xf]
      %v9196 = vld [vmem:[%s9182 + $0x34] sm:$0xf]
      %v9197 = vld [vmem:[%s9182 + $0x38] sm:$0xf]
      %v9198 = vld [vmem:[%s9182 + $0x3c] sm:$0xf]
      %v9199 = vld [vmem:[%s9182 + $0x40] sm:$0xf]
      %v9200 = vld [vmem:[%s9182 + $0x44] sm:$0xf]
      %v9201 = vld [vmem:[%s9182 + $0x48] sm:$0xf]
      %v9202 = vld [vmem:[%s9182 + $0x4c] sm:$0xf]
      %v9203 = vld [vmem:[%s9182 + $0x50] sm:$0xf]
      %v9204 = vld [vmem:[%s9182 + $0x54] sm:$0xf]
      %v9205 = vld [vmem:[%s9182 + $0x58] sm:$0xf]
      %v9206 = vld [vmem:[%s9182 + $0x5c] sm:$0xf]
      %v9207 = vld [vmem:[%s9182 + $0x60] sm:$0xf]
      %v9208 = vld [vmem:[%s9182 + $0x64] sm:$0xf]
      %v9209 = vld [vmem:[%s9182 + $0x68] sm:$0xf]
      %v9210 = vld [vmem:[%s9182 + $0x6c] sm:$0xf]
      %v9211 = vld [vmem:[%s9182 + $0x70] sm:$0xf]
      %v9212 = vld [vmem:[%s9182 + $0x74] sm:$0xf]
      %v9213 = vld [vmem:[%s9182 + $0x78] sm:$0xf]
      %v9214 = vld [vmem:[%s9182 + $0x7c] sm:$0xf]
      %v9215 = vld [vmem:[%s9182 + $0x80] sm:$0xf]
      %v9216 = vld [vmem:[%s9182 + $0x84] sm:$0xf]
      %v9217 = vld [vmem:[%s9182 + $0x88] sm:$0xf]
      %v9218 = vld [vmem:[%s9182 + $0x8c] sm:$0xf]
      %v9219 = vld [vmem:[%s9182 + $0x90] sm:$0xf]
      %v9220 = vld [vmem:[%s9182 + $0x94] sm:$0xf]
      %v9221 = vld [vmem:[%s9182 + $0x98] sm:$0xf]
      %v9222 = vld [vmem:[%s9182 + $0x9c] sm:$0xf]
      %v9223 = vld [vmem:[%s9182 + $0xa0] sm:$0xf]
      %v9224 = vld [vmem:[%s9182 + $0xa4] sm:$0xf]
      %v9225 = vld [vmem:[%s9182 + $0xa8] sm:$0xf]
      %v9226 = vld [vmem:[%s9182 + $0xac] sm:$0xf]
      %v9227 = vld [vmem:[%s9182 + $0xb0] sm:$0xf]
      %v9228 = vld [vmem:[%s9182 + $0xb4] sm:$0xf]
      %v9229 = vld [vmem:[%s9182 + $0xb8] sm:$0xf]
      %v9230 = vld [vmem:[%s9182 + $0xbc] sm:$0xf]
      %v9279 = vunpack.c.l.b16 %v9183
      %v9280 = vunpack.c.l.b16 %v9184
      %v9281 = vunpack.c.l.b16 %v9185
      %v9282 = vunpack.c.l.b16 %v9186
      %v9283 = vunpack.c.l.b16 %v9187
      %v9284 = vunpack.c.l.b16 %v9188
      %v9285 = vunpack.c.l.b16 %v9189
      %v9286 = vunpack.c.l.b16 %v9190
      %v9287 = vunpack.c.l.b16 %v9191
      %v9288 = vunpack.c.l.b16 %v9192
      %v9289 = vunpack.c.l.b16 %v9193
      %v9290 = vunpack.c.l.b16 %v9194
      %v9291 = vunpack.c.l.b16 %v9195
      %v9292 = vunpack.c.l.b16 %v9196
      %v9293 = vunpack.c.l.b16 %v9197
      %v9294 = vunpack.c.l.b16 %v9198
      %v9295 = vunpack.c.l.b16 %v9199
      %v9296 = vunpack.c.l.b16 %v9200
      %v9297 = vunpack.c.l.b16 %v9201
      %v9298 = vunpack.c.l.b16 %v9202
      %v9299 = vunpack.c.l.b16 %v9203
      %v9300 = vunpack.c.l.b16 %v9204
      %v9301 = vunpack.c.l.b16 %v9205
      %v9302 = vunpack.c.l.b16 %v9206
      %v9303 = vunpack.c.l.b16 %v9207
      %v9304 = vunpack.c.l.b16 %v9208
      %v9305 = vunpack.c.l.b16 %v9209
      %v9306 = vunpack.c.l.b16 %v9210
      %v9307 = vunpack.c.l.b16 %v9211
      %v9308 = vunpack.c.l.b16 %v9212
      %v9309 = vunpack.c.l.b16 %v9213
      %v9310 = vunpack.c.l.b16 %v9214
      %v9311 = vunpack.c.l.b16 %v9215
      %v9312 = vunpack.c.l.b16 %v9216
      %v9313 = vunpack.c.l.b16 %v9217
      %v9314 = vunpack.c.l.b16 %v9218
      %v9315 = vunpack.c.l.b16 %v9219
      %v9316 = vunpack.c.l.b16 %v9220
      %v9317 = vunpack.c.l.b16 %v9221
      %v9318 = vunpack.c.l.b16 %v9222
      %v9319 = vunpack.c.l.b16 %v9223
      %v9320 = vunpack.c.l.b16 %v9224
      %v9321 = vunpack.c.l.b16 %v9225
      %v9322 = vunpack.c.l.b16 %v9226
      %v9323 = vunpack.c.l.b16 %v9227
      %v9324 = vunpack.c.l.b16 %v9228
      %v9325 = vunpack.c.l.b16 %v9229
      %v9326 = vunpack.c.l.b16 %v9230
      %v9327 = vpack.c.b16 %v9280, %v9279
      %v9328 = vpack.c.b16 %v9282, %v9281
      %v9329 = vpack.c.b16 %v9284, %v9283
      %v9330 = vpack.c.b16 %v9286, %v9285
      %v9331 = vpack.c.b16 %v9288, %v9287
      %v9332 = vpack.c.b16 %v9290, %v9289
      %v9333 = vpack.c.b16 %v9292, %v9291
      %v9334 = vpack.c.b16 %v9294, %v9293
      %v9335 = vpack.c.b16 %v9296, %v9295
      %v9336 = vpack.c.b16 %v9298, %v9297
      %v9337 = vpack.c.b16 %v9300, %v9299
      %v9338 = vpack.c.b16 %v9302, %v9301
      %v9339 = vpack.c.b16 %v9304, %v9303
      %v9340 = vpack.c.b16 %v9306, %v9305
      %v9341 = vpack.c.b16 %v9308, %v9307
      %v9342 = vpack.c.b16 %v9310, %v9309
      %v9343 = vpack.c.b16 %v9312, %v9311
      %v9344 = vpack.c.b16 %v9314, %v9313
      %v9345 = vpack.c.b16 %v9316, %v9315
      %v9346 = vpack.c.b16 %v9318, %v9317
      %v9347 = vpack.c.b16 %v9320, %v9319
      %v9348 = vpack.c.b16 %v9322, %v9321
      %v9349 = vpack.c.b16 %v9324, %v9323
      %v9350 = vpack.c.b16 %v9326, %v9325
      %9375 = vmatpush.bf16.msra.mxu0 %v9334
      %9376 = vmatpush.bf16.msra.mxu0 %v9333
      %9377 = vmatpush.bf16.msra.mxu0 %v9332
      %9378 = vmatpush.bf16.msra.mxu0 %v9331
      %9379 = vmatpush.bf16.msra.mxu0 %v9330
      %9380 = vmatpush.bf16.msra.mxu0 %v9329
      %9381 = vmatpush.bf16.msra.mxu0 %v9328
      %9382 = vmatpush.bf16.msra.mxu0 %v9327
      %9383 = vmatmul.bf16.gmra.mxu0 %v6993
      %v9384 = vpop.f32.mrf.mxu0
      %v9385 = vadd.f32 0.0, %v9384
      %v9386 = vpop.f32.mrf.mxu0
      %v9387 = vadd.f32 0.0, %v9386
      %9388 = vmatmul.bf16.gmra.mxu0 %v6996
      %v9389 = vpop.f32.mrf.mxu0
      %v9390 = vadd.f32 0.0, %v9389
      %v9391 = vpop.f32.mrf.mxu0
      %v9392 = vadd.f32 0.0, %v9391
      %9393 = vmatmul.bf16.gmra.mxu0 %v6999
      %v9394 = vpop.f32.mrf.mxu0
      %v9395 = vadd.f32 0.0, %v9394
      %v9396 = vpop.f32.mrf.mxu0
      %v9397 = vadd.f32 0.0, %v9396
      %9398 = vmatmul.bf16.gmra.mxu0 %v7002
      %v9399 = vpop.f32.mrf.mxu0
      %v9400 = vadd.f32 0.0, %v9399
      %v9401 = vpop.f32.mrf.mxu0
      %v9402 = vadd.f32 0.0, %v9401
      %9403 = vmatmul.bf16.gmra.mxu0 %v7005
      %v9404 = vpop.f32.mrf.mxu0
      %v9405 = vadd.f32 0.0, %v9404
      %v9406 = vpop.f32.mrf.mxu0
      %v9407 = vadd.f32 0.0, %v9406
      %9408 = vmatmul.bf16.gmra.mxu0 %v7008
      %v9409 = vpop.f32.mrf.mxu0
      %v9410 = vadd.f32 0.0, %v9409
      %v9411 = vpop.f32.mrf.mxu0
      %v9412 = vadd.f32 0.0, %v9411
      %9413 = vmatmul.bf16.gmra.mxu0 %v7011
      %v9414 = vpop.f32.mrf.mxu0
      %v9415 = vadd.f32 0.0, %v9414
      %v9416 = vpop.f32.mrf.mxu0
      %v9417 = vadd.f32 0.0, %v9416
      %9418 = vmatmul.bf16.gmra.mxu0 %v7014
      %v9419 = vpop.f32.mrf.mxu0
      %v9420 = vadd.f32 0.0, %v9419
      %v9421 = vpop.f32.mrf.mxu0
      %v9422 = vadd.f32 0.0, %v9421
      %9423 = vmatmul.bf16.gmra.mxu0 %v7017
      %v9424 = vpop.f32.mrf.mxu0
      %v9425 = vadd.f32 0.0, %v9424
      %v9426 = vpop.f32.mrf.mxu0
      %v9427 = vadd.f32 0.0, %v9426
      %9428 = vmatmul.bf16.gmra.mxu0 %v7020
      %v9429 = vpop.f32.mrf.mxu0
      %v9430 = vadd.f32 0.0, %v9429
      %v9431 = vpop.f32.mrf.mxu0
      %v9432 = vadd.f32 0.0, %v9431
      %9433 = vmatmul.bf16.gmra.mxu0 %v7023
      %v9434 = vpop.f32.mrf.mxu0
      %v9435 = vadd.f32 0.0, %v9434
      %v9436 = vpop.f32.mrf.mxu0
      %v9437 = vadd.f32 0.0, %v9436
      %9438 = vmatmul.bf16.gmra.mxu0 %v7026
      %v9439 = vpop.f32.mrf.mxu0
      %v9440 = vadd.f32 0.0, %v9439
      %v9441 = vpop.f32.mrf.mxu0
      %v9442 = vadd.f32 0.0, %v9441
      %9443 = vmatmul.bf16.gmra.mxu0 %v7029
      %v9444 = vpop.f32.mrf.mxu0
      %v9445 = vadd.f32 0.0, %v9444
      %v9446 = vpop.f32.mrf.mxu0
      %v9447 = vadd.f32 0.0, %v9446
      %9448 = vmatmul.bf16.gmra.mxu0 %v7032
      %v9449 = vpop.f32.mrf.mxu0
      %v9450 = vadd.f32 0.0, %v9449
      %v9451 = vpop.f32.mrf.mxu0
      %v9452 = vadd.f32 0.0, %v9451
      %9453 = vmatmul.bf16.gmra.mxu0 %v7035
      %v9454 = vpop.f32.mrf.mxu0
      %v9455 = vadd.f32 0.0, %v9454
      %v9456 = vpop.f32.mrf.mxu0
      %v9457 = vadd.f32 0.0, %v9456
      %9458 = vmatmul.bf16.gmra.mxu0 %v7038
      %v9459 = vpop.f32.mrf.mxu0
      %v9460 = vadd.f32 0.0, %v9459
      %v9461 = vpop.f32.mrf.mxu0
      %v9462 = vadd.f32 0.0, %v9461
      %9463 = vmatmul.bf16.gmra.mxu0 %v7041
      %v9464 = vpop.f32.mrf.mxu0
      %v9465 = vadd.f32 0.0, %v9464
      %v9466 = vpop.f32.mrf.mxu0
      %v9467 = vadd.f32 0.0, %v9466
      %9468 = vmatmul.bf16.gmra.mxu0 %v7044
      %v9469 = vpop.f32.mrf.mxu0
      %v9470 = vadd.f32 0.0, %v9469
      %v9471 = vpop.f32.mrf.mxu0
      %v9472 = vadd.f32 0.0, %v9471
      %9473 = vdwg.mxu0
      %9474 = vmatpush.bf16.msra.mxu0 %v9342
      %9475 = vmatpush.bf16.msra.mxu0 %v9341
      %9476 = vmatpush.bf16.msra.mxu0 %v9340
      %9477 = vmatpush.bf16.msra.mxu0 %v9339
      %9478 = vmatpush.bf16.msra.mxu0 %v9338
      %9479 = vmatpush.bf16.msra.mxu0 %v9337
      %9480 = vmatpush.bf16.msra.mxu0 %v9336
      %9481 = vmatpush.bf16.msra.mxu0 %v9335
      %9482 = vmatmul.bf16.gmra.mxu0 %v6994
      %v9483 = vpop.f32.mrf.mxu0
      %v9484 = vadd.f32 %v9385, %v9483
      %v9485 = vpop.f32.mrf.mxu0
      %v9486 = vadd.f32 %v9387, %v9485
      %9487 = vmatmul.bf16.gmra.mxu0 %v6997
      %v9488 = vpop.f32.mrf.mxu0
      %v9489 = vadd.f32 %v9390, %v9488
      %v9490 = vpop.f32.mrf.mxu0
      %v9491 = vadd.f32 %v9392, %v9490
      %9492 = vmatmul.bf16.gmra.mxu0 %v7000
      %v9493 = vpop.f32.mrf.mxu0
      %v9494 = vadd.f32 %v9395, %v9493
      %v9495 = vpop.f32.mrf.mxu0
      %v9496 = vadd.f32 %v9397, %v9495
      %9497 = vmatmul.bf16.gmra.mxu0 %v7003
      %v9498 = vpop.f32.mrf.mxu0
      %v9499 = vadd.f32 %v9400, %v9498
      %v9500 = vpop.f32.mrf.mxu0
      %v9501 = vadd.f32 %v9402, %v9500
      %9502 = vmatmul.bf16.gmra.mxu0 %v7006
      %v9503 = vpop.f32.mrf.mxu0
      %v9504 = vadd.f32 %v9405, %v9503
      %v9505 = vpop.f32.mrf.mxu0
      %v9506 = vadd.f32 %v9407, %v9505
      %9507 = vmatmul.bf16.gmra.mxu0 %v7009
      %v9508 = vpop.f32.mrf.mxu0
      %v9509 = vadd.f32 %v9410, %v9508
      %v9510 = vpop.f32.mrf.mxu0
      %v9511 = vadd.f32 %v9412, %v9510
      %9512 = vmatmul.bf16.gmra.mxu0 %v7012
      %v9513 = vpop.f32.mrf.mxu0
      %v9514 = vadd.f32 %v9415, %v9513
      %v9515 = vpop.f32.mrf.mxu0
      %v9516 = vadd.f32 %v9417, %v9515
      %9517 = vmatmul.bf16.gmra.mxu0 %v7015
      %v9518 = vpop.f32.mrf.mxu0
      %v9519 = vadd.f32 %v9420, %v9518
      %v9520 = vpop.f32.mrf.mxu0
      %v9521 = vadd.f32 %v9422, %v9520
      %9522 = vmatmul.bf16.gmra.mxu0 %v7018
      %v9523 = vpop.f32.mrf.mxu0
      %v9524 = vadd.f32 %v9425, %v9523
      %v9525 = vpop.f32.mrf.mxu0
      %v9526 = vadd.f32 %v9427, %v9525
      %9527 = vmatmul.bf16.gmra.mxu0 %v7021
      %v9528 = vpop.f32.mrf.mxu0
      %v9529 = vadd.f32 %v9430, %v9528
      %v9530 = vpop.f32.mrf.mxu0
      %v9531 = vadd.f32 %v9432, %v9530
      %9532 = vmatmul.bf16.gmra.mxu0 %v7024
      %v9533 = vpop.f32.mrf.mxu0
      %v9534 = vadd.f32 %v9435, %v9533
      %v9535 = vpop.f32.mrf.mxu0
      %v9536 = vadd.f32 %v9437, %v9535
      %9537 = vmatmul.bf16.gmra.mxu0 %v7027
      %v9538 = vpop.f32.mrf.mxu0
      %v9539 = vadd.f32 %v9440, %v9538
      %v9540 = vpop.f32.mrf.mxu0
      %v9541 = vadd.f32 %v9442, %v9540
      %9542 = vmatmul.bf16.gmra.mxu0 %v7030
      %v9543 = vpop.f32.mrf.mxu0
      %v9544 = vadd.f32 %v9445, %v9543
      %v9545 = vpop.f32.mrf.mxu0
      %v9546 = vadd.f32 %v9447, %v9545
      %9547 = vmatmul.bf16.gmra.mxu0 %v7033
      %v9548 = vpop.f32.mrf.mxu0
      %v9549 = vadd.f32 %v9450, %v9548
      %v9550 = vpop.f32.mrf.mxu0
      %v9551 = vadd.f32 %v9452, %v9550
      %9552 = vmatmul.bf16.gmra.mxu0 %v7036
      %v9553 = vpop.f32.mrf.mxu0
      %v9554 = vadd.f32 %v9455, %v9553
      %v9555 = vpop.f32.mrf.mxu0
      %v9556 = vadd.f32 %v9457, %v9555
      %9557 = vmatmul.bf16.gmra.mxu0 %v7039
      %v9558 = vpop.f32.mrf.mxu0
      %v9559 = vadd.f32 %v9460, %v9558
      %v9560 = vpop.f32.mrf.mxu0
      %v9561 = vadd.f32 %v9462, %v9560
      %9562 = vmatmul.bf16.gmra.mxu0 %v7042
      %v9563 = vpop.f32.mrf.mxu0
      %v9564 = vadd.f32 %v9465, %v9563
      %v9565 = vpop.f32.mrf.mxu0
      %v9566 = vadd.f32 %v9467, %v9565
      %9567 = vmatmul.bf16.gmra.mxu0 %v7045
      %v9568 = vpop.f32.mrf.mxu0
      %v9569 = vadd.f32 %v9470, %v9568
      %v9570 = vpop.f32.mrf.mxu0
      %v9571 = vadd.f32 %v9472, %v9570
      %9572 = vdwg.mxu0
      %9573 = vmatpush.bf16.msra.mxu0 %v9350
      %9574 = vmatpush.bf16.msra.mxu0 %v9349
      %9575 = vmatpush.bf16.msra.mxu0 %v9348
      %9576 = vmatpush.bf16.msra.mxu0 %v9347
      %9577 = vmatpush.bf16.msra.mxu0 %v9346
      %9578 = vmatpush.bf16.msra.mxu0 %v9345
      %9579 = vmatpush.bf16.msra.mxu0 %v9344
      %9580 = vmatpush.bf16.msra.mxu0 %v9343
      %9581 = vmatmul.bf16.gmra.mxu0 %v6995
      %v9582 = vpop.f32.mrf.mxu0
      %v9583 = vadd.f32 %v9484, %v9582
      %v9584 = vpop.f32.mrf.mxu0
      %v9585 = vadd.f32 %v9486, %v9584
      %9586 = vmatmul.bf16.gmra.mxu0 %v6998
      %v9587 = vpop.f32.mrf.mxu0
      %v9588 = vadd.f32 %v9489, %v9587
      %v9589 = vpop.f32.mrf.mxu0
      %v9590 = vadd.f32 %v9491, %v9589
      %9591 = vmatmul.bf16.gmra.mxu0 %v7001
      %v9592 = vpop.f32.mrf.mxu0
      %v9593 = vadd.f32 %v9494, %v9592
      %v9594 = vpop.f32.mrf.mxu0
      %v9595 = vadd.f32 %v9496, %v9594
      %9596 = vmatmul.bf16.gmra.mxu0 %v7004
      %v9597 = vpop.f32.mrf.mxu0
      %v9598 = vadd.f32 %v9499, %v9597
      %v9599 = vpop.f32.mrf.mxu0
      %v9600 = vadd.f32 %v9501, %v9599
      %9601 = vmatmul.bf16.gmra.mxu0 %v7007
      %v9602 = vpop.f32.mrf.mxu0
      %v9603 = vadd.f32 %v9504, %v9602
      %v9604 = vpop.f32.mrf.mxu0
      %v9605 = vadd.f32 %v9506, %v9604
      %9606 = vmatmul.bf16.gmra.mxu0 %v7010
      %v9607 = vpop.f32.mrf.mxu0
      %v9608 = vadd.f32 %v9509, %v9607
      %v9609 = vpop.f32.mrf.mxu0
      %v9610 = vadd.f32 %v9511, %v9609
      %9611 = vmatmul.bf16.gmra.mxu0 %v7013
      %v9612 = vpop.f32.mrf.mxu0
      %v9613 = vadd.f32 %v9514, %v9612
      %v9614 = vpop.f32.mrf.mxu0
      %v9615 = vadd.f32 %v9516, %v9614
      %9616 = vmatmul.bf16.gmra.mxu0 %v7016
      %v9617 = vpop.f32.mrf.mxu0
      %v9618 = vadd.f32 %v9519, %v9617
      %v9619 = vpop.f32.mrf.mxu0
      %v9620 = vadd.f32 %v9521, %v9619
      %9621 = vmatmul.bf16.gmra.mxu0 %v7019
      %v9622 = vpop.f32.mrf.mxu0
      %v9623 = vadd.f32 %v9524, %v9622
      %v9624 = vpop.f32.mrf.mxu0
      %v9625 = vadd.f32 %v9526, %v9624
      %9626 = vmatmul.bf16.gmra.mxu0 %v7022
      %v9627 = vpop.f32.mrf.mxu0
      %v9628 = vadd.f32 %v9529, %v9627
      %v9629 = vpop.f32.mrf.mxu0
      %v9630 = vadd.f32 %v9531, %v9629
      %9631 = vmatmul.bf16.gmra.mxu0 %v7025
      %v9632 = vpop.f32.mrf.mxu0
      %v9633 = vadd.f32 %v9534, %v9632
      %v9634 = vpop.f32.mrf.mxu0
      %v9635 = vadd.f32 %v9536, %v9634
      %9636 = vmatmul.bf16.gmra.mxu0 %v7028
      %v9637 = vpop.f32.mrf.mxu0
      %v9638 = vadd.f32 %v9539, %v9637
      %v9639 = vpop.f32.mrf.mxu0
      %v9640 = vadd.f32 %v9541, %v9639
      %9641 = vmatmul.bf16.gmra.mxu0 %v7031
      %v9642 = vpop.f32.mrf.mxu0
      %v9643 = vadd.f32 %v9544, %v9642
      %v9644 = vpop.f32.mrf.mxu0
      %v9645 = vadd.f32 %v9546, %v9644
      %9646 = vmatmul.bf16.gmra.mxu0 %v7034
      %v9647 = vpop.f32.mrf.mxu0
      %v9648 = vadd.f32 %v9549, %v9647
      %v9649 = vpop.f32.mrf.mxu0
      %v9650 = vadd.f32 %v9551, %v9649
      %9651 = vmatmul.bf16.gmra.mxu0 %v7037
      %v9652 = vpop.f32.mrf.mxu0
      %v9653 = vadd.f32 %v9554, %v9652
      %v9654 = vpop.f32.mrf.mxu0
      %v9655 = vadd.f32 %v9556, %v9654
      %9656 = vmatmul.bf16.gmra.mxu0 %v7040
      %v9657 = vpop.f32.mrf.mxu0
      %v9658 = vadd.f32 %v9559, %v9657
      %v9659 = vpop.f32.mrf.mxu0
      %v9660 = vadd.f32 %v9561, %v9659
      %9661 = vmatmul.bf16.gmra.mxu0 %v7043
      %v9662 = vpop.f32.mrf.mxu0
      %v9663 = vadd.f32 %v9564, %v9662
      %v9664 = vpop.f32.mrf.mxu0
      %v9665 = vadd.f32 %v9566, %v9664
      %9666 = vmatmul.bf16.gmra.mxu0 %v7046
      %v9667 = vpop.f32.mrf.mxu0
      %v9668 = vadd.f32 %v9569, %v9667
      %v9669 = vpop.f32.mrf.mxu0
      %v9670 = vadd.f32 %v9571, %v9669
      %9671 = vdwg.mxu0
      %v9708 = vrot.slane %v9583, 2
      %v9709 = vrot.slane %v9583, 4
      %v9710 = vrot.slane %v9583, 6
      %v9711 = vrot.slane %v9585, 2
      %v9712 = vrot.slane %v9585, 4
      %v9713 = vrot.slane %v9585, 6
      %v9714 = vrot.slane %v9588, 4
      %v9715 = vrot.slane %v9588, 6
      %v9716 = vrot.slane %v9590, 2
      %v9717 = vrot.slane %v9590, 4
      %v9718 = vrot.slane %v9590, 6
      %v9719 = vrot.slane %v9593, 2
      %v9720 = vrot.slane %v9593, 6
      %v9721 = vrot.slane %v9595, 2
      %v9722 = vrot.slane %v9595, 4
      %v9723 = vrot.slane %v9595, 6
      %v9724 = vrot.slane %v9598, 2
      %v9725 = vrot.slane %v9598, 4
      %v9726 = vrot.slane %v9600, 2
      %v9727 = vrot.slane %v9600, 4
      %v9728 = vrot.slane %v9600, 6
      %v9729 = vrot.slane %v9603, 2
      %v9730 = vrot.slane %v9603, 4
      %v9731 = vrot.slane %v9603, 6
      %v9732 = vrot.slane %v9605, 2
      %v9733 = vrot.slane %v9605, 4
      %v9734 = vrot.slane %v9605, 6
      %v9735 = vrot.slane %v9608, 2
      %v9736 = vrot.slane %v9608, 4
      %v9737 = vrot.slane %v9608, 6
      %v9738 = vrot.slane %v9610, 4
      %v9739 = vrot.slane %v9610, 6
      %v9740 = vrot.slane %v9613, 2
      %v9741 = vrot.slane %v9613, 4
      %v9742 = vrot.slane %v9613, 6
      %v9743 = vrot.slane %v9615, 2
      %v9744 = vrot.slane %v9615, 6
      %v9745 = vrot.slane %v9618, 2
      %v9746 = vrot.slane %v9618, 4
      %v9747 = vrot.slane %v9618, 6
      %v9748 = vrot.slane %v9620, 2
      %v9749 = vrot.slane %v9620, 4
      %v9750 = vrot.slane %v9623, 2
      %v9751 = vrot.slane %v9623, 4
      %v9752 = vrot.slane %v9623, 6
      %v9753 = vrot.slane %v9625, 2
      %v9754 = vrot.slane %v9625, 4
      %v9755 = vrot.slane %v9625, 6
      %v9756 = vrot.slane %v9628, 2
      %v9757 = vrot.slane %v9628, 4
      %v9758 = vrot.slane %v9628, 6
      %v9759 = vrot.slane %v9630, 2
      %v9760 = vrot.slane %v9630, 4
      %v9761 = vrot.slane %v9630, 6
      %v9762 = vrot.slane %v9633, 4
      %v9763 = vrot.slane %v9633, 6
      %v9764 = vrot.slane %v9635, 2
      %v9765 = vrot.slane %v9635, 4
      %v9766 = vrot.slane %v9635, 6
      %v9767 = vrot.slane %v9638, 2
      %v9768 = vrot.slane %v9638, 6
      %v9769 = vrot.slane %v9640, 2
      %v9770 = vrot.slane %v9640, 4
      %v9771 = vrot.slane %v9640, 6
      %v9772 = vrot.slane %v9643, 2
      %v9773 = vrot.slane %v9643, 4
      %v9774 = vrot.slane %v9645, 2
      %v9775 = vrot.slane %v9645, 4
      %v9776 = vrot.slane %v9645, 6
      %v9777 = vrot.slane %v9648, 2
      %v9778 = vrot.slane %v9648, 4
      %v9779 = vrot.slane %v9648, 6
      %v9780 = vrot.slane %v9650, 2
      %v9781 = vrot.slane %v9650, 4
      %v9782 = vrot.slane %v9650, 6
      %v9783 = vrot.slane %v9653, 2
      %v9784 = vrot.slane %v9653, 4
      %v9785 = vrot.slane %v9653, 6
      %v9786 = vrot.slane %v9655, 4
      %v9787 = vrot.slane %v9655, 6
      %v9788 = vrot.slane %v9658, 2
      %v9789 = vrot.slane %v9658, 4
      %v9790 = vrot.slane %v9658, 6
      %v9791 = vrot.slane %v9660, 2
      %v9792 = vrot.slane %v9660, 6
      %v9793 = vrot.slane %v9663, 2
      %v9794 = vrot.slane %v9663, 4
      %v9795 = vrot.slane %v9663, 6
      %v9796 = vrot.slane %v9665, 2
      %v9797 = vrot.slane %v9665, 4
      %v9798 = vrot.slane %v9668, 2
      %v9799 = vrot.slane %v9668, 4
      %v9800 = vrot.slane %v9668, 6
      %v9801 = vrot.slane %v9670, 2
      %v9802 = vrot.slane %v9670, 4
      %v9803 = vrot.slane %v9670, 6
      %v9900 = vadd.f32 %v9054, %v9708
      %v9901 = vadd.f32 %v9055, %v9709
      %v9902 = vadd.f32 %v9056, %v9710
      %v9903 = vadd.f32 %v9057, %v9585
      %v9904 = vadd.f32 %v9058, %v9711
      %v9905 = vadd.f32 %v9059, %v9712
      %v9906 = vadd.f32 %v9060, %v9713
      %v9907 = vadd.f32 %v9061, %v9588
      %v9908 = vadd.f32 %v9062, %v9714
      %v9909 = vadd.f32 %v9063, %v9715
      %v9910 = vadd.f32 %v9064, %v9590
      %v9911 = vadd.f32 %v9065, %v9716
      %v9912 = vadd.f32 %v9066, %v9717
      %v9913 = vadd.f32 %v9067, %v9718
      %v9914 = vadd.f32 %v9068, %v9593
      %v9915 = vadd.f32 %v9069, %v9719
      %v9916 = vadd.f32 %v9070, %v9720
      %v9917 = vadd.f32 %v9071, %v9595
      %v9918 = vadd.f32 %v9072, %v9721
      %v9919 = vadd.f32 %v9073, %v9722
      %v9920 = vadd.f32 %v9074, %v9723
      %v9921 = vadd.f32 %v9075, %v9598
      %v9922 = vadd.f32 %v9076, %v9724
      %v9923 = vadd.f32 %v9077, %v9725
      %v9924 = vadd.f32 %v9078, %v9600
      %v9925 = vadd.f32 %v9079, %v9726
      %v9926 = vadd.f32 %v9080, %v9727
      %v9927 = vadd.f32 %v9081, %v9728
      %v9928 = vadd.f32 %v9082, %v9603
      %v9929 = vadd.f32 %v9083, %v9729
      %v9930 = vadd.f32 %v9084, %v9730
      %v9931 = vadd.f32 %v9085, %v9731
      %v9932 = vadd.f32 %v9086, %v9732
      %v9933 = vadd.f32 %v9087, %v9733
      %v9934 = vadd.f32 %v9088, %v9734
      %v9935 = vadd.f32 %v9089, %v9608
      %v9936 = vadd.f32 %v9090, %v9735
      %v9937 = vadd.f32 %v9091, %v9736
      %v9938 = vadd.f32 %v9092, %v9737
      %v9939 = vadd.f32 %v9093, %v9610
      %v9940 = vadd.f32 %v9094, %v9738
      %v9941 = vadd.f32 %v9095, %v9739
      %v9942 = vadd.f32 %v9096, %v9613
      %v9943 = vadd.f32 %v9097, %v9740
      %v9944 = vadd.f32 %v9098, %v9741
      %v9945 = vadd.f32 %v9099, %v9742
      %v9946 = vadd.f32 %v9100, %v9615
      %v9947 = vadd.f32 %v9101, %v9743
      %v9948 = vadd.f32 %v9102, %v9744
      %v9949 = vadd.f32 %v9103, %v9618
      %v9950 = vadd.f32 %v9104, %v9745
      %v9951 = vadd.f32 %v9105, %v9746
      %v9952 = vadd.f32 %v9106, %v9747
      %v9953 = vadd.f32 %v9107, %v9620
      %v9954 = vadd.f32 %v9108, %v9748
      %v9955 = vadd.f32 %v9109, %v9749
      %v9956 = vadd.f32 %v9110, %v9623
      %v9957 = vadd.f32 %v9111, %v9750
      %v9958 = vadd.f32 %v9112, %v9751
      %v9959 = vadd.f32 %v9113, %v9752
      %v9960 = vadd.f32 %v9114, %v9625
      %v9961 = vadd.f32 %v9115, %v9753
      %v9962 = vadd.f32 %v9116, %v9754
      %v9963 = vadd.f32 %v9117, %v9755
      %v9964 = vadd.f32 %v9118, %v9756
      %v9965 = vadd.f32 %v9119, %v9757
      %v9966 = vadd.f32 %v9120, %v9758
      %v9967 = vadd.f32 %v9121, %v9630
      %v9968 = vadd.f32 %v9122, %v9759
      %v9969 = vadd.f32 %v9123, %v9760
      %v9970 = vadd.f32 %v9124, %v9761
      %v9971 = vadd.f32 %v9125, %v9633
      %v9972 = vadd.f32 %v9126, %v9762
      %v9973 = vadd.f32 %v9127, %v9763
      %v9974 = vadd.f32 %v9128, %v9635
      %v9975 = vadd.f32 %v9129, %v9764
      %v9976 = vadd.f32 %v9130, %v9765
      %v9977 = vadd.f32 %v9131, %v9766
      %v9978 = vadd.f32 %v9132, %v9638
      %v9979 = vadd.f32 %v9133, %v9767
      %v9980 = vadd.f32 %v9134, %v9768
      %v9981 = vadd.f32 %v9135, %v9640
      %v9982 = vadd.f32 %v9136, %v9769
      %v9983 = vadd.f32 %v9137, %v9770
      %v9984 = vadd.f32 %v9138, %v9771
      %v9985 = vadd.f32 %v9139, %v9643
      %v9986 = vadd.f32 %v9140, %v9772
      %v9987 = vadd.f32 %v9141, %v9773
      %v9988 = vadd.f32 %v9142, %v9645
      %v9989 = vadd.f32 %v9143, %v9774
      %v9990 = vadd.f32 %v9144, %v9775
      %v9991 = vadd.f32 %v9145, %v9776
      %v9992 = vadd.f32 %v9146, %v9648
      %v9993 = vadd.f32 %v9147, %v9777
      %v9994 = vadd.f32 %v9148, %v9778
      %v9995 = vadd.f32 %v9149, %v9779
      %v9996 = vadd.f32 %v9150, %v9780
      %v9997 = vadd.f32 %v9151, %v9781
      %v9998 = vadd.f32 %v9152, %v9782
      %v9999 = vadd.f32 %v9153, %v9653
      %v10000 = vadd.f32 %v9154, %v9783
      %v10001 = vadd.f32 %v9155, %v9784
      %v10002 = vadd.f32 %v9156, %v9785
      %v10003 = vadd.f32 %v9157, %v9655
      %v10004 = vadd.f32 %v9158, %v9786
      %v10005 = vadd.f32 %v9159, %v9787
      %v10006 = vadd.f32 %v9160, %v9658
      %v10007 = vadd.f32 %v9161, %v9788
      %v10008 = vadd.f32 %v9162, %v9789
      %v10009 = vadd.f32 %v9163, %v9790
      %v10010 = vadd.f32 %v9164, %v9660
      %v10011 = vadd.f32 %v9165, %v9791
      %v10012 = vadd.f32 %v9166, %v9792
      %v10013 = vadd.f32 %v9167, %v9663
      %v10014 = vadd.f32 %v9168, %v9793
      %v10015 = vadd.f32 %v9169, %v9794
      %v10016 = vadd.f32 %v9170, %v9795
      %v10017 = vadd.f32 %v9171, %v9665
      %v10018 = vadd.f32 %v9172, %v9796
      %v10019 = vadd.f32 %v9173, %v9797
      %v10020 = vadd.f32 %v9174, %v9668
      %v10021 = vadd.f32 %v9175, %v9798
      %v10022 = vadd.f32 %v9176, %v9799
      %v10023 = vadd.f32 %v9177, %v9800
      %v10024 = vadd.f32 %v9178, %v9670
      %v10025 = vadd.f32 %v9179, %v9801
      %v10026 = vadd.f32 %v9180, %v9802
      %v10027 = vadd.f32 %v9181, %v9803
      %10156 = vst [vmem:[#allocation1] ss:$4 sm:$0xff] %v9900
      %s10157 = scalar_lea.vmem [#allocation1], 1
      %10158 = vst [vmem:[%s10157] ss:$4 sm:$0xff] %v9901
      %s10159 = scalar_lea.vmem [#allocation1], 2
      %10160 = vst [vmem:[%s10159] ss:$4 sm:$0xff] %v9902
      %s10161 = scalar_lea.vmem [#allocation1], 3
      %10162 = vst [vmem:[%s10161] ss:$4 sm:$0xff] %v9903
      %s10163 = scalar_lea.vmem [#allocation1], 32
      %10164 = vst [vmem:[%s10163] ss:$4 sm:$0xff] %v9904
      %s10165 = scalar_lea.vmem [#allocation1], 33
      %10166 = vst [vmem:[%s10165] ss:$4 sm:$0xff] %v9905
      %s10167 = scalar_lea.vmem [#allocation1], 34
      %10168 = vst [vmem:[%s10167] ss:$4 sm:$0xff] %v9906
      %s10169 = scalar_lea.vmem [#allocation1], 35
      %10170 = vst [vmem:[%s10169] ss:$4 sm:$0xff] %v9907
      %v10171 = vld.sshfl [vmem:[#allocation1] sm:$0xff pattern:$0x73625140]
      %v10172 = vld.sshfl [vmem:[#allocation1 + $0x20] sm:$0xff pattern:$0x73625140]
      %10173 = vst [vmem:[#allocation1] ss:$4 sm:$0xff] %v9908
      %10174 = vst [vmem:[%s10157] ss:$4 sm:$0xff] %v9909
      %10175 = vst [vmem:[%s10159] ss:$4 sm:$0xff] %v9910
      %10176 = vst [vmem:[%s10161] ss:$4 sm:$0xff] %v9911
      %10177 = vst [vmem:[%s10163] ss:$4 sm:$0xff] %v9912
      %10178 = vst [vmem:[%s10165] ss:$4 sm:$0xff] %v9913
      %10179 = vst [vmem:[%s10167] ss:$4 sm:$0xff] %v9914
      %10180 = vst [vmem:[%s10169] ss:$4 sm:$0xff] %v9915
      %v10181 = vld.sshfl [vmem:[#allocation1] sm:$0xff pattern:$0x73625140]
      %v10182 = vld.sshfl [vmem:[#allocation1 + $0x20] sm:$0xff pattern:$0x73625140]
      %10183 = vst [vmem:[#allocation1] ss:$4 sm:$0xff] %v9916
      %10184 = vst [vmem:[%s10157] ss:$4 sm:$0xff] %v9917
      %10185 = vst [vmem:[%s10159] ss:$4 sm:$0xff] %v9918
      %10186 = vst [vmem:[%s10161] ss:$4 sm:$0xff] %v9919
      %10187 = vst [vmem:[%s10163] ss:$4 sm:$0xff] %v9920
      %10188 = vst [vmem:[%s10165] ss:$4 sm:$0xff] %v9921
      %10189 = vst [vmem:[%s10167] ss:$4 sm:$0xff] %v9922
      %10190 = vst [vmem:[%s10169] ss:$4 sm:$0xff] %v9923
      %v10191 = vld.sshfl [vmem:[#allocation1] sm:$0xff pattern:$0x73625140]
      %v10192 = vld.sshfl [vmem:[#allocation1 + $0x20] sm:$0xff pattern:$0x73625140]
      %10193 = vst [vmem:[#allocation1] ss:$4 sm:$0xff] %v9924
      %10194 = vst [vmem:[%s10157] ss:$4 sm:$0xff] %v9925
      %10195 = vst [vmem:[%s10159] ss:$4 sm:$0xff] %v9926
      %10196 = vst [vmem:[%s10161] ss:$4 sm:$0xff] %v9927
      %10197 = vst [vmem:[%s10163] ss:$4 sm:$0xff] %v9928
      %10198 = vst [vmem:[%s10165] ss:$4 sm:$0xff] %v9929
      %10199 = vst [vmem:[%s10167] ss:$4 sm:$0xff] %v9930
      %10200 = vst [vmem:[%s10169] ss:$4 sm:$0xff] %v9931
      %v10201 = vld.sshfl [vmem:[#allocation1] sm:$0xff pattern:$0x73625140]
      %v10202 = vld.sshfl [vmem:[#allocation1 + $0x20] sm:$0xff pattern:$0x73625140]
      %10203 = vst [vmem:[#allocation1] ss:$4 sm:$0xff] %v9932
      %10204 = vst [vmem:[%s10157] ss:$4 sm:$0xff] %v9933
      %10205 = vst [vmem:[%s10159] ss:$4 sm:$0xff] %v9934
      %10206 = vst [vmem:[%s10161] ss:$4 sm:$0xff] %v9935
      %10207 = vst [vmem:[%s10163] ss:$4 sm:$0xff] %v9936
      %10208 = vst [vmem:[%s10165] ss:$4 sm:$0xff] %v9937
      %10209 = vst [vmem:[%s10167] ss:$4 sm:$0xff] %v9938
      %10210 = vst [vmem:[%s10169] ss:$4 sm:$0xff] %v9939
      %v10211 = vld.sshfl [vmem:[#allocation1] sm:$0xff pattern:$0x73625140]
      %v10212 = vld.sshfl [vmem:[#allocation1 + $0x20] sm:$0xff pattern:$0x73625140]
      %10213 = vst [vmem:[#allocation1] ss:$4 sm:$0xff] %v9940
      %10214 = vst [vmem:[%s10157] ss:$4 sm:$0xff] %v9941
      %10215 = vst [vmem:[%s10159] ss:$4 sm:$0xff] %v9942
      %10216 = vst [vmem:[%s10161] ss:$4 sm:$0xff] %v9943
      %10217 = vst [vmem:[%s10163] ss:$4 sm:$0xff] %v9944
      %10218 = vst [vmem:[%s10165] ss:$4 sm:$0xff] %v9945
      %10219 = vst [vmem:[%s10167] ss:$4 sm:$0xff] %v9946
      %10220 = vst [vmem:[%s10169] ss:$4 sm:$0xff] %v9947
      %v10221 = vld.sshfl [vmem:[#allocation1] sm:$0xff pattern:$0x73625140]
      %v10222 = vld.sshfl [vmem:[#allocation1 + $0x20] sm:$0xff pattern:$0x73625140]
      %10223 = vst [vmem:[#allocation1] ss:$4 sm:$0xff] %v9948
      %10224 = vst [vmem:[%s10157] ss:$4 sm:$0xff] %v9949
      %10225 = vst [vmem:[%s10159] ss:$4 sm:$0xff] %v9950
      %10226 = vst [vmem:[%s10161] ss:$4 sm:$0xff] %v9951
      %10227 = vst [vmem:[%s10163] ss:$4 sm:$0xff] %v9952
      %10228 = vst [vmem:[%s10165] ss:$4 sm:$0xff] %v9953
      %10229 = vst [vmem:[%s10167] ss:$4 sm:$0xff] %v9954
      %10230 = vst [vmem:[%s10169] ss:$4 sm:$0xff] %v9955
      %v10231 = vld.sshfl [vmem:[#allocation1] sm:$0xff pattern:$0x73625140]
      %v10232 = vld.sshfl [vmem:[#allocation1 + $0x20] sm:$0xff pattern:$0x73625140]
      %10233 = vst [vmem:[#allocation1] ss:$4 sm:$0xff] %v9956
      %10234 = vst [vmem:[%s10157] ss:$4 sm:$0xff] %v9957
      %10235 = vst [vmem:[%s10159] ss:$4 sm:$0xff] %v9958
      %10236 = vst [vmem:[%s10161] ss:$4 sm:$0xff] %v9959
      %10237 = vst [vmem:[%s10163] ss:$4 sm:$0xff] %v9960
      %10238 = vst [vmem:[%s10165] ss:$4 sm:$0xff] %v9961
      %10239 = vst [vmem:[%s10167] ss:$4 sm:$0xff] %v9962
      %10240 = vst [vmem:[%s10169] ss:$4 sm:$0xff] %v9963
      %v10241 = vld.sshfl [vmem:[#allocation1] sm:$0xff pattern:$0x73625140]
      %v10242 = vld.sshfl [vmem:[#allocation1 + $0x20] sm:$0xff pattern:$0x73625140]
      %10243 = vst [vmem:[#allocation1] ss:$4 sm:$0xff] %v9964
      %10244 = vst [vmem:[%s10157] ss:$4 sm:$0xff] %v9965
      %10245 = vst [vmem:[%s10159] ss:$4 sm:$0xff] %v9966
      %10246 = vst [vmem:[%s10161] ss:$4 sm:$0xff] %v9967
      %10247 = vst [vmem:[%s10163] ss:$4 sm:$0xff] %v9968
      %10248 = vst [vmem:[%s10165] ss:$4 sm:$0xff] %v9969
      %10249 = vst [vmem:[%s10167] ss:$4 sm:$0xff] %v9970
      %10250 = vst [vmem:[%s10169] ss:$4 sm:$0xff] %v9971
      %v10251 = vld.sshfl [vmem:[#allocation1] sm:$0xff pattern:$0x73625140]
      %v10252 = vld.sshfl [vmem:[#allocation1 + $0x20] sm:$0xff pattern:$0x73625140]
      %10253 = vst [vmem:[#allocation1] ss:$4 sm:$0xff] %v9972
      %10254 = vst [vmem:[%s10157] ss:$4 sm:$0xff] %v9973
      %10255 = vst [vmem:[%s10159] ss:$4 sm:$0xff] %v9974
      %10256 = vst [vmem:[%s10161] ss:$4 sm:$0xff] %v9975
      %10257 = vst [vmem:[%s10163] ss:$4 sm:$0xff] %v9976
      %10258 = vst [vmem:[%s10165] ss:$4 sm:$0xff] %v9977
      %10259 = vst [vmem:[%s10167] ss:$4 sm:$0xff] %v9978
      %10260 = vst [vmem:[%s10169] ss:$4 sm:$0xff] %v9979
      %v10261 = vld.sshfl [vmem:[#allocation1] sm:$0xff pattern:$0x73625140]
      %v10262 = vld.sshfl [vmem:[#allocation1 + $0x20] sm:$0xff pattern:$0x73625140]
      %10263 = vst [vmem:[#allocation1] ss:$4 sm:$0xff] %v9980
      %10264 = vst [vmem:[%s10157] ss:$4 sm:$0xff] %v9981
      %10265 = vst [vmem:[%s10159] ss:$4 sm:$0xff] %v9982
      %10266 = vst [vmem:[%s10161] ss:$4 sm:$0xff] %v9983
      %10267 = vst [vmem:[%s10163] ss:$4 sm:$0xff] %v9984
      %10268 = vst [vmem:[%s10165] ss:$4 sm:$0xff] %v9985
      %10269 = vst [vmem:[%s10167] ss:$4 sm:$0xff] %v9986
      %10270 = vst [vmem:[%s10169] ss:$4 sm:$0xff] %v9987
      %v10271 = vld.sshfl [vmem:[#allocation1] sm:$0xff pattern:$0x73625140]
      %v10272 = vld.sshfl [vmem:[#allocation1 + $0x20] sm:$0xff pattern:$0x73625140]
      %10273 = vst [vmem:[#allocation1] ss:$4 sm:$0xff] %v9988
      %10274 = vst [vmem:[%s10157] ss:$4 sm:$0xff] %v9989
      %10275 = vst [vmem:[%s10159] ss:$4 sm:$0xff] %v9990
      %10276 = vst [vmem:[%s10161] ss:$4 sm:$0xff] %v9991
      %10277 = vst [vmem:[%s10163] ss:$4 sm:$0xff] %v9992
      %10278 = vst [vmem:[%s10165] ss:$4 sm:$0xff] %v9993
      %10279 = vst [vmem:[%s10167] ss:$4 sm:$0xff] %v9994
      %10280 = vst [vmem:[%s10169] ss:$4 sm:$0xff] %v9995
      %v10281 = vld.sshfl [vmem:[#allocation1] sm:$0xff pattern:$0x73625140]
      %v10282 = vld.sshfl [vmem:[#allocation1 + $0x20] sm:$0xff pattern:$0x73625140]
      %10283 = vst [vmem:[#allocation1] ss:$4 sm:$0xff] %v9996
      %10284 = vst [vmem:[%s10157] ss:$4 sm:$0xff] %v9997
      %10285 = vst [vmem:[%s10159] ss:$4 sm:$0xff] %v9998
      %10286 = vst [vmem:[%s10161] ss:$4 sm:$0xff] %v9999
      %10287 = vst [vmem:[%s10163] ss:$4 sm:$0xff] %v10000
      %10288 = vst [vmem:[%s10165] ss:$4 sm:$0xff] %v10001
      %10289 = vst [vmem:[%s10167] ss:$4 sm:$0xff] %v10002
      %10290 = vst [vmem:[%s10169] ss:$4 sm:$0xff] %v10003
      %v10291 = vld.sshfl [vmem:[#allocation1] sm:$0xff pattern:$0x73625140]
      %v10292 = vld.sshfl [vmem:[#allocation1 + $0x20] sm:$0xff pattern:$0x73625140]
      %10293 = vst [vmem:[#allocation1] ss:$4 sm:$0xff] %v10004
      %10294 = vst [vmem:[%s10157] ss:$4 sm:$0xff] %v10005
      %10295 = vst [vmem:[%s10159] ss:$4 sm:$0xff] %v10006
      %10296 = vst [vmem:[%s10161] ss:$4 sm:$0xff] %v10007
      %10297 = vst [vmem:[%s10163] ss:$4 sm:$0xff] %v10008
      %10298 = vst [vmem:[%s10165] ss:$4 sm:$0xff] %v10009
      %10299 = vst [vmem:[%s10167] ss:$4 sm:$0xff] %v10010
      %10300 = vst [vmem:[%s10169] ss:$4 sm:$0xff] %v10011
      %v10301 = vld.sshfl [vmem:[#allocation1] sm:$0xff pattern:$0x73625140]
      %v10302 = vld.sshfl [vmem:[#allocation1 + $0x20] sm:$0xff pattern:$0x73625140]
      %10303 = vst [vmem:[#allocation1] ss:$4 sm:$0xff] %v10012
      %10304 = vst [vmem:[%s10157] ss:$4 sm:$0xff] %v10013
      %10305 = vst [vmem:[%s10159] ss:$4 sm:$0xff] %v10014
      %10306 = vst [vmem:[%s10161] ss:$4 sm:$0xff] %v10015
      %10307 = vst [vmem:[%s10163] ss:$4 sm:$0xff] %v10016
      %10308 = vst [vmem:[%s10165] ss:$4 sm:$0xff] %v10017
      %10309 = vst [vmem:[%s10167] ss:$4 sm:$0xff] %v10018
      %10310 = vst [vmem:[%s10169] ss:$4 sm:$0xff] %v10019
      %v10311 = vld.sshfl [vmem:[#allocation1] sm:$0xff pattern:$0x73625140]
      %v10312 = vld.sshfl [vmem:[#allocation1 + $0x20] sm:$0xff pattern:$0x73625140]
      %10313 = vst [vmem:[#allocation1] ss:$4 sm:$0xff] %v10020
      %10314 = vst [vmem:[%s10157] ss:$4 sm:$0xff] %v10021
      %10315 = vst [vmem:[%s10159] ss:$4 sm:$0xff] %v10022
      %10316 = vst [vmem:[%s10161] ss:$4 sm:$0xff] %v10023
      %10317 = vst [vmem:[%s10163] ss:$4 sm:$0xff] %v10024
      %10318 = vst [vmem:[%s10165] ss:$4 sm:$0xff] %v10025
      %10319 = vst [vmem:[%s10167] ss:$4 sm:$0xff] %v10026
      %10320 = vst [vmem:[%s10169] ss:$4 sm:$0xff] %v10027
      %v10321 = vld.sshfl [vmem:[#allocation1] sm:$0xff pattern:$0x73625140]
      %v10322 = vld.sshfl [vmem:[#allocation1 + $0x20] sm:$0xff pattern:$0x73625140]
      %v10355 = vadd.f32 %v10171, %v10172
      %v10356 = vadd.f32 %v10355, %v10181
      %v10357 = vadd.f32 %v10356, %v10182
      %v10358 = vadd.f32 %v10357, %v10191
      %v10359 = vadd.f32 %v10358, %v10192
      %v10360 = vadd.f32 %v10359, %v10201
      %v10361 = vadd.f32 %v10360, %v10202
      %v10362 = vadd.f32 %v10361, %v10211
      %v10363 = vadd.f32 %v10362, %v10212
      %v10364 = vadd.f32 %v10363, %v10221
      %v10365 = vadd.f32 %v10364, %v10222
      %v10366 = vadd.f32 %v10365, %v10231
      %v10367 = vadd.f32 %v10366, %v10232
      %v10368 = vadd.f32 %v10367, %v10241
      %v10369 = vadd.f32 %v10368, %v10242
      %v10370 = vadd.f32 %v10369, %v10251
      %v10371 = vadd.f32 %v10370, %v10252
      %v10372 = vadd.f32 %v10371, %v10261
      %v10373 = vadd.f32 %v10372, %v10262
      %v10374 = vadd.f32 %v10373, %v10271
      %v10375 = vadd.f32 %v10374, %v10272
      %v10376 = vadd.f32 %v10375, %v10281
      %v10377 = vadd.f32 %v10376, %v10282
      %v10378 = vadd.f32 %v10377, %v10291
      %v10379 = vadd.f32 %v10378, %v10292
      %v10380 = vadd.f32 %v10379, %v10301
      %v10381 = vadd.f32 %v10380, %v10302
      %v10382 = vadd.f32 %v10381, %v10311
      %v10383 = vadd.f32 %v10382, %v10312
      %v10384 = vadd.f32 %v10383, %v10321
      %v10385 = vadd.f32 %v10384, %v10322
      %v10386 = vrot.slane %v10385, 4
      %v10387 = vadd.f32 %v10385, %v10386
      %v10388 = vrot.slane %v10387, 2
      %v10389 = vadd.f32 %v10387, %v10388
      %v10390 = vrot.slane %v10389, 1
      %v10391 = vadd.f32 %v10389, %v10390
      %v10392 = vmul.f32 %v9900, %v9900
      %v10393 = vmul.f32 %v9901, %v9901
      %v10394 = vmul.f32 %v9902, %v9902
      %v10395 = vmul.f32 %v9903, %v9903
      %v10396 = vmul.f32 %v9904, %v9904
      %v10397 = vmul.f32 %v9905, %v9905
      %v10398 = vmul.f32 %v9906, %v9906
      %v10399 = vmul.f32 %v9907, %v9907
      %v10400 = vmul.f32 %v9908, %v9908
      %v10401 = vmul.f32 %v9909, %v9909
      %v10402 = vmul.f32 %v9910, %v9910
      %v10403 = vmul.f32 %v9911, %v9911
      %v10404 = vmul.f32 %v9912, %v9912
      %v10405 = vmul.f32 %v9913, %v9913
      %v10406 = vmul.f32 %v9914, %v9914
      %v10407 = vmul.f32 %v9915, %v9915
      %v10408 = vmul.f32 %v9916, %v9916
      %v10409 = vmul.f32 %v9917, %v9917
      %v10410 = vmul.f32 %v9918, %v9918
      %v10411 = vmul.f32 %v9919, %v9919
      %v10412 = vmul.f32 %v9920, %v9920
      %v10413 = vmul.f32 %v9921, %v9921
      %v10414 = vmul.f32 %v9922, %v9922
      %v10415 = vmul.f32 %v9923, %v9923
      %v10416 = vmul.f32 %v9924, %v9924
      %v10417 = vmul.f32 %v9925, %v9925
      %v10418 = vmul.f32 %v9926, %v9926
      %v10419 = vmul.f32 %v9927, %v9927
      %v10420 = vmul.f32 %v9928, %v9928
      %v10421 = vmul.f32 %v9929, %v9929
      %v10422 = vmul.f32 %v9930, %v9930
      %v10423 = vmul.f32 %v9931, %v9931
      %v10424 = vmul.f32 %v9932, %v9932
      %v10425 = vmul.f32 %v9933, %v9933
      %v10426 = vmul.f32 %v9934, %v9934
      %v10427 = vmul.f32 %v9935, %v9935
      %v10428 = vmul.f32 %v9936, %v9936
      %v10429 = vmul.f32 %v9937, %v9937
      %v10430 = vmul.f32 %v9938, %v9938
      %v10431 = vmul.f32 %v9939, %v9939
      %v10432 = vmul.f32 %v9940, %v9940
      %v10433 = vmul.f32 %v9941, %v9941
      %v10434 = vmul.f32 %v9942, %v9942
      %v10435 = vmul.f32 %v9943, %v9943
      %v10436 = vmul.f32 %v9944, %v9944
      %v10437 = vmul.f32 %v9945, %v9945
      %v10438 = vmul.f32 %v9946, %v9946
      %v10439 = vmul.f32 %v9947, %v9947
      %v10440 = vmul.f32 %v9948, %v9948
      %v10441 = vmul.f32 %v9949, %v9949
      %v10442 = vmul.f32 %v9950, %v9950
      %v10443 = vmul.f32 %v9951, %v9951
      %v10444 = vmul.f32 %v9952, %v9952
      %v10445 = vmul.f32 %v9953, %v9953
      %v10446 = vmul.f32 %v9954, %v9954
      %v10447 = vmul.f32 %v9955, %v9955
      %v10448 = vmul.f32 %v9956, %v9956
      %v10449 = vmul.f32 %v9957, %v9957
      %v10450 = vmul.f32 %v9958, %v9958
      %v10451 = vmul.f32 %v9959, %v9959
      %v10452 = vmul.f32 %v9960, %v9960
      %v10453 = vmul.f32 %v9961, %v9961
      %v10454 = vmul.f32 %v9962, %v9962
      %v10455 = vmul.f32 %v9963, %v9963
      %v10456 = vmul.f32 %v9964, %v9964
      %v10457 = vmul.f32 %v9965, %v9965
      %v10458 = vmul.f32 %v9966, %v9966
      %v10459 = vmul.f32 %v9967, %v9967
      %v10460 = vmul.f32 %v9968, %v9968
      %v10461 = vmul.f32 %v9969, %v9969
      %v10462 = vmul.f32 %v9970, %v9970
      %v10463 = vmul.f32 %v9971, %v9971
      %v10464 = vmul.f32 %v9972, %v9972
      %v10465 = vmul.f32 %v9973, %v9973
      %v10466 = vmul.f32 %v9974, %v9974
      %v10467 = vmul.f32 %v9975, %v9975
      %v10468 = vmul.f32 %v9976, %v9976
      %v10469 = vmul.f32 %v9977, %v9977
      %v10470 = vmul.f32 %v9978, %v9978
      %v10471 = vmul.f32 %v9979, %v9979
      %v10472 = vmul.f32 %v9980, %v9980
      %v10473 = vmul.f32 %v9981, %v9981
      %v10474 = vmul.f32 %v9982, %v9982
      %v10475 = vmul.f32 %v9983, %v9983
      %v10476 = vmul.f32 %v9984, %v9984
      %v10477 = vmul.f32 %v9985, %v9985
      %v10478 = vmul.f32 %v9986, %v9986
      %v10479 = vmul.f32 %v9987, %v9987
      %v10480 = vmul.f32 %v9988, %v9988
      %v10481 = vmul.f32 %v9989, %v9989
      %v10482 = vmul.f32 %v9990, %v9990
      %v10483 = vmul.f32 %v9991, %v9991
      %v10484 = vmul.f32 %v9992, %v9992
      %v10485 = vmul.f32 %v9993, %v9993
      %v10486 = vmul.f32 %v9994, %v9994
      %v10487 = vmul.f32 %v9995, %v9995
      %v10488 = vmul.f32 %v9996, %v9996
      %v10489 = vmul.f32 %v9997, %v9997
      %v10490 = vmul.f32 %v9998, %v9998
      %v10491 = vmul.f32 %v9999, %v9999
      %v10492 = vmul.f32 %v10000, %v10000
      %v10493 = vmul.f32 %v10001, %v10001
      %v10494 = vmul.f32 %v10002, %v10002
      %v10495 = vmul.f32 %v10003, %v10003
      %v10496 = vmul.f32 %v10004, %v10004
      %v10497 = vmul.f32 %v10005, %v10005
      %v10498 = vmul.f32 %v10006, %v10006
      %v10499 = vmul.f32 %v10007, %v10007
      %v10500 = vmul.f32 %v10008, %v10008
      %v10501 = vmul.f32 %v10009, %v10009
      %v10502 = vmul.f32 %v10010, %v10010
      %v10503 = vmul.f32 %v10011, %v10011
      %v10504 = vmul.f32 %v10012, %v10012
      %v10505 = vmul.f32 %v10013, %v10013
      %v10506 = vmul.f32 %v10014, %v10014
      %v10507 = vmul.f32 %v10015, %v10015
      %v10508 = vmul.f32 %v10016, %v10016
      %v10509 = vmul.f32 %v10017, %v10017
      %v10510 = vmul.f32 %v10018, %v10018
      %v10511 = vmul.f32 %v10019, %v10019
      %v10512 = vmul.f32 %v10020, %v10020
      %v10513 = vmul.f32 %v10021, %v10021
      %v10514 = vmul.f32 %v10022, %v10022
      %v10515 = vmul.f32 %v10023, %v10023
      %v10516 = vmul.f32 %v10024, %v10024
      %v10517 = vmul.f32 %v10025, %v10025
      %v10518 = vmul.f32 %v10026, %v10026
      %v10519 = vmul.f32 %v10027, %v10027
      %10648 = vst [vmem:[#allocation1] ss:$4 sm:$0xff] %v10392
      %s10649 = scalar_lea.vmem [#allocation1], 1
      %10650 = vst [vmem:[%s10649] ss:$4 sm:$0xff] %v10393
      %s10651 = scalar_lea.vmem [#allocation1], 2
      %10652 = vst [vmem:[%s10651] ss:$4 sm:$0xff] %v10394
      %s10653 = scalar_lea.vmem [#allocation1], 3
      %10654 = vst [vmem:[%s10653] ss:$4 sm:$0xff] %v10395
      %s10655 = scalar_lea.vmem [#allocation1], 32
      %10656 = vst [vmem:[%s10655] ss:$4 sm:$0xff] %v10396
      %s10657 = scalar_lea.vmem [#allocation1], 33
      %10658 = vst [vmem:[%s10657] ss:$4 sm:$0xff] %v10397
      %s10659 = scalar_lea.vmem [#allocation1], 34
      %10660 = vst [vmem:[%s10659] ss:$4 sm:$0xff] %v10398
      %s10661 = scalar_lea.vmem [#allocation1], 35
      %10662 = vst [vmem:[%s10661] ss:$4 sm:$0xff] %v10399
      %v10663 = vld.sshfl [vmem:[#allocation1] sm:$0xff pattern:$0x73625140]
      %v10664 = vld.sshfl [vmem:[#allocation1 + $0x20] sm:$0xff pattern:$0x73625140]
      %10665 = vst [vmem:[#allocation1] ss:$4 sm:$0xff] %v10400
      %10666 = vst [vmem:[%s10649] ss:$4 sm:$0xff] %v10401
      %10667 = vst [vmem:[%s10651] ss:$4 sm:$0xff] %v10402
      %10668 = vst [vmem:[%s10653] ss:$4 sm:$0xff] %v10403
      %10669 = vst [vmem:[%s10655] ss:$4 sm:$0xff] %v10404
      %10670 = vst [vmem:[%s10657] ss:$4 sm:$0xff] %v10405
      %10671 = vst [vmem:[%s10659] ss:$4 sm:$0xff] %v10406
      %10672 = vst [vmem:[%s10661] ss:$4 sm:$0xff] %v10407
      %v10673 = vld.sshfl [vmem:[#allocation1] sm:$0xff pattern:$0x73625140]
      %v10674 = vld.sshfl [vmem:[#allocation1 + $0x20] sm:$0xff pattern:$0x73625140]
      %10675 = vst [vmem:[#allocation1] ss:$4 sm:$0xff] %v10408
      %10676 = vst [vmem:[%s10649] ss:$4 sm:$0xff] %v10409
      %10677 = vst [vmem:[%s10651] ss:$4 sm:$0xff] %v10410
      %10678 = vst [vmem:[%s10653] ss:$4 sm:$0xff] %v10411
      %10679 = vst [vmem:[%s10655] ss:$4 sm:$0xff] %v10412
      %10680 = vst [vmem:[%s10657] ss:$4 sm:$0xff] %v10413
      %10681 = vst [vmem:[%s10659] ss:$4 sm:$0xff] %v10414
      %10682 = vst [vmem:[%s10661] ss:$4 sm:$0xff] %v10415
      %v10683 = vld.sshfl [vmem:[#allocation1] sm:$0xff pattern:$0x73625140]
      %v10684 = vld.sshfl [vmem:[#allocation1 + $0x20] sm:$0xff pattern:$0x73625140]
      %10685 = vst [vmem:[#allocation1] ss:$4 sm:$0xff] %v10416
      %10686 = vst [vmem:[%s10649] ss:$4 sm:$0xff] %v10417
      %10687 = vst [vmem:[%s10651] ss:$4 sm:$0xff] %v10418
      %10688 = vst [vmem:[%s10653] ss:$4 sm:$0xff] %v10419
      %10689 = vst [vmem:[%s10655] ss:$4 sm:$0xff] %v10420
      %10690 = vst [vmem:[%s10657] ss:$4 sm:$0xff] %v10421
      %10691 = vst [vmem:[%s10659] ss:$4 sm:$0xff] %v10422
      %10692 = vst [vmem:[%s10661] ss:$4 sm:$0xff] %v10423
      %v10693 = vld.sshfl [vmem:[#allocation1] sm:$0xff pattern:$0x73625140]
      %v10694 = vld.sshfl [vmem:[#allocation1 + $0x20] sm:$0xff pattern:$0x73625140]
      %10695 = vst [vmem:[#allocation1] ss:$4 sm:$0xff] %v10424
      %10696 = vst [vmem:[%s10649] ss:$4 sm:$0xff] %v10425
      %10697 = vst [vmem:[%s10651] ss:$4 sm:$0xff] %v10426
      %10698 = vst [vmem:[%s10653] ss:$4 sm:$0xff] %v10427
      %10699 = vst [vmem:[%s10655] ss:$4 sm:$0xff] %v10428
      %10700 = vst [vmem:[%s10657] ss:$4 sm:$0xff] %v10429
      %10701 = vst [vmem:[%s10659] ss:$4 sm:$0xff] %v10430
      %10702 = vst [vmem:[%s10661] ss:$4 sm:$0xff] %v10431
      %v10703 = vld.sshfl [vmem:[#allocation1] sm:$0xff pattern:$0x73625140]
      %v10704 = vld.sshfl [vmem:[#allocation1 + $0x20] sm:$0xff pattern:$0x73625140]
      %10705 = vst [vmem:[#allocation1] ss:$4 sm:$0xff] %v10432
      %10706 = vst [vmem:[%s10649] ss:$4 sm:$0xff] %v10433
      %10707 = vst [vmem:[%s10651] ss:$4 sm:$0xff] %v10434
      %10708 = vst [vmem:[%s10653] ss:$4 sm:$0xff] %v10435
      %10709 = vst [vmem:[%s10655] ss:$4 sm:$0xff] %v10436
      %10710 = vst [vmem:[%s10657] ss:$4 sm:$0xff] %v10437
      %10711 = vst [vmem:[%s10659] ss:$4 sm:$0xff] %v10438
      %10712 = vst [vmem:[%s10661] ss:$4 sm:$0xff] %v10439
      %v10713 = vld.sshfl [vmem:[#allocation1] sm:$0xff pattern:$0x73625140]
      %v10714 = vld.sshfl [vmem:[#allocation1 + $0x20] sm:$0xff pattern:$0x73625140]
      %10715 = vst [vmem:[#allocation1] ss:$4 sm:$0xff] %v10440
      %10716 = vst [vmem:[%s10649] ss:$4 sm:$0xff] %v10441
      %10717 = vst [vmem:[%s10651] ss:$4 sm:$0xff] %v10442
      %10718 = vst [vmem:[%s10653] ss:$4 sm:$0xff] %v10443
      %10719 = vst [vmem:[%s10655] ss:$4 sm:$0xff] %v10444
      %10720 = vst [vmem:[%s10657] ss:$4 sm:$0xff] %v10445
      %10721 = vst [vmem:[%s10659] ss:$4 sm:$0xff] %v10446
      %10722 = vst [vmem:[%s10661] ss:$4 sm:$0xff] %v10447
      %v10723 = vld.sshfl [vmem:[#allocation1] sm:$0xff pattern:$0x73625140]
      %v10724 = vld.sshfl [vmem:[#allocation1 + $0x20] sm:$0xff pattern:$0x73625140]
      %10725 = vst [vmem:[#allocation1] ss:$4 sm:$0xff] %v10448
      %10726 = vst [vmem:[%s10649] ss:$4 sm:$0xff] %v10449
      %10727 = vst [vmem:[%s10651] ss:$4 sm:$0xff] %v10450
      %10728 = vst [vmem:[%s10653] ss:$4 sm:$0xff] %v10451
      %10729 = vst [vmem:[%s10655] ss:$4 sm:$0xff] %v10452
      %10730 = vst [vmem:[%s10657] ss:$4 sm:$0xff] %v10453
      %10731 = vst [vmem:[%s10659] ss:$4 sm:$0xff] %v10454
      %10732 = vst [vmem:[%s10661] ss:$4 sm:$0xff] %v10455
      %v10733 = vld.sshfl [vmem:[#allocation1] sm:$0xff pattern:$0x73625140]
      %v10734 = vld.sshfl [vmem:[#allocation1 + $0x20] sm:$0xff pattern:$0x73625140]
      %10735 = vst [vmem:[#allocation1] ss:$4 sm:$0xff] %v10456
      %10736 = vst [vmem:[%s10649] ss:$4 sm:$0xff] %v10457
      %10737 = vst [vmem:[%s10651] ss:$4 sm:$0xff] %v10458
      %10738 = vst [vmem:[%s10653] ss:$4 sm:$0xff] %v10459
      %10739 = vst [vmem:[%s10655] ss:$4 sm:$0xff] %v10460
      %10740 = vst [vmem:[%s10657] ss:$4 sm:$0xff] %v10461
      %10741 = vst [vmem:[%s10659] ss:$4 sm:$0xff] %v10462
      %10742 = vst [vmem:[%s10661] ss:$4 sm:$0xff] %v10463
      %v10743 = vld.sshfl [vmem:[#allocation1] sm:$0xff pattern:$0x73625140]
      %v10744 = vld.sshfl [vmem:[#allocation1 + $0x20] sm:$0xff pattern:$0x73625140]
      %10745 = vst [vmem:[#allocation1] ss:$4 sm:$0xff] %v10464
      %10746 = vst [vmem:[%s10649] ss:$4 sm:$0xff] %v10465
      %10747 = vst [vmem:[%s10651] ss:$4 sm:$0xff] %v10466
      %10748 = vst [vmem:[%s10653] ss:$4 sm:$0xff] %v10467
      %10749 = vst [vmem:[%s10655] ss:$4 sm:$0xff] %v10468
      %10750 = vst [vmem:[%s10657] ss:$4 sm:$0xff] %v10469
      %10751 = vst [vmem:[%s10659] ss:$4 sm:$0xff] %v10470
      %10752 = vst [vmem:[%s10661] ss:$4 sm:$0xff] %v10471
      %v10753 = vld.sshfl [vmem:[#allocation1] sm:$0xff pattern:$0x73625140]
      %v10754 = vld.sshfl [vmem:[#allocation1 + $0x20] sm:$0xff pattern:$0x73625140]
      %10755 = vst [vmem:[#allocation1] ss:$4 sm:$0xff] %v10472
      %10756 = vst [vmem:[%s10649] ss:$4 sm:$0xff] %v10473
      %10757 = vst [vmem:[%s10651] ss:$4 sm:$0xff] %v10474
      %10758 = vst [vmem:[%s10653] ss:$4 sm:$0xff] %v10475
      %10759 = vst [vmem:[%s10655] ss:$4 sm:$0xff] %v10476
      %10760 = vst [vmem:[%s10657] ss:$4 sm:$0xff] %v10477
      %10761 = vst [vmem:[%s10659] ss:$4 sm:$0xff] %v10478
      %10762 = vst [vmem:[%s10661] ss:$4 sm:$0xff] %v10479
      %v10763 = vld.sshfl [vmem:[#allocation1] sm:$0xff pattern:$0x73625140]
      %v10764 = vld.sshfl [vmem:[#allocation1 + $0x20] sm:$0xff pattern:$0x73625140]
      %10765 = vst [vmem:[#allocation1] ss:$4 sm:$0xff] %v10480
      %10766 = vst [vmem:[%s10649] ss:$4 sm:$0xff] %v10481
      %10767 = vst [vmem:[%s10651] ss:$4 sm:$0xff] %v10482
      %10768 = vst [vmem:[%s10653] ss:$4 sm:$0xff] %v10483
      %10769 = vst [vmem:[%s10655] ss:$4 sm:$0xff] %v10484
      %10770 = vst [vmem:[%s10657] ss:$4 sm:$0xff] %v10485
      %10771 = vst [vmem:[%s10659] ss:$4 sm:$0xff] %v10486
      %10772 = vst [vmem:[%s10661] ss:$4 sm:$0xff] %v10487
      %v10773 = vld.sshfl [vmem:[#allocation1] sm:$0xff pattern:$0x73625140]
      %v10774 = vld.sshfl [vmem:[#allocation1 + $0x20] sm:$0xff pattern:$0x73625140]
      %10775 = vst [vmem:[#allocation1] ss:$4 sm:$0xff] %v10488
      %10776 = vst [vmem:[%s10649] ss:$4 sm:$0xff] %v10489
      %10777 = vst [vmem:[%s10651] ss:$4 sm:$0xff] %v10490
      %10778 = vst [vmem:[%s10653] ss:$4 sm:$0xff] %v10491
      %10779 = vst [vmem:[%s10655] ss:$4 sm:$0xff] %v10492
      %10780 = vst [vmem:[%s10657] ss:$4 sm:$0xff] %v10493
      %10781 = vst [vmem:[%s10659] ss:$4 sm:$0xff] %v10494
      %10782 = vst [vmem:[%s10661] ss:$4 sm:$0xff] %v10495
      %v10783 = vld.sshfl [vmem:[#allocation1] sm:$0xff pattern:$0x73625140]
      %v10784 = vld.sshfl [vmem:[#allocation1 + $0x20] sm:$0xff pattern:$0x73625140]
      %10785 = vst [vmem:[#allocation1] ss:$4 sm:$0xff] %v10496
      %10786 = vst [vmem:[%s10649] ss:$4 sm:$0xff] %v10497
      %10787 = vst [vmem:[%s10651] ss:$4 sm:$0xff] %v10498
      %10788 = vst [vmem:[%s10653] ss:$4 sm:$0xff] %v10499
      %10789 = vst [vmem:[%s10655] ss:$4 sm:$0xff] %v10500
      %10790 = vst [vmem:[%s10657] ss:$4 sm:$0xff] %v10501
      %10791 = vst [vmem:[%s10659] ss:$4 sm:$0xff] %v10502
      %10792 = vst [vmem:[%s10661] ss:$4 sm:$0xff] %v10503
      %v10793 = vld.sshfl [vmem:[#allocation1] sm:$0xff pattern:$0x73625140]
      %v10794 = vld.sshfl [vmem:[#allocation1 + $0x20] sm:$0xff pattern:$0x73625140]
      %10795 = vst [vmem:[#allocation1] ss:$4 sm:$0xff] %v10504
      %10796 = vst [vmem:[%s10649] ss:$4 sm:$0xff] %v10505
      %10797 = vst [vmem:[%s10651] ss:$4 sm:$0xff] %v10506
      %10798 = vst [vmem:[%s10653] ss:$4 sm:$0xff] %v10507
      %10799 = vst [vmem:[%s10655] ss:$4 sm:$0xff] %v10508
      %10800 = vst [vmem:[%s10657] ss:$4 sm:$0xff] %v10509
      %10801 = vst [vmem:[%s10659] ss:$4 sm:$0xff] %v10510
      %10802 = vst [vmem:[%s10661] ss:$4 sm:$0xff] %v10511
      %v10803 = vld.sshfl [vmem:[#allocation1] sm:$0xff pattern:$0x73625140]
      %v10804 = vld.sshfl [vmem:[#allocation1 + $0x20] sm:$0xff pattern:$0x73625140]
      %10805 = vst [vmem:[#allocation1] ss:$4 sm:$0xff] %v10512
      %10806 = vst [vmem:[%s10649] ss:$4 sm:$0xff] %v10513
      %10807 = vst [vmem:[%s10651] ss:$4 sm:$0xff] %v10514
      %10808 = vst [vmem:[%s10653] ss:$4 sm:$0xff] %v10515
      %10809 = vst [vmem:[%s10655] ss:$4 sm:$0xff] %v10516
      %10810 = vst [vmem:[%s10657] ss:$4 sm:$0xff] %v10517
      %10811 = vst [vmem:[%s10659] ss:$4 sm:$0xff] %v10518
      %10812 = vst [vmem:[%s10661] ss:$4 sm:$0xff] %v10519
      %v10813 = vld.sshfl [vmem:[#allocation1] sm:$0xff pattern:$0x73625140]
      %v10814 = vld.sshfl [vmem:[#allocation1 + $0x20] sm:$0xff pattern:$0x73625140]
      %v10847 = vadd.f32 %v10663, %v10664
      %v10848 = vadd.f32 %v10847, %v10673
      %v10849 = vadd.f32 %v10848, %v10674
      %v10850 = vadd.f32 %v10849, %v10683
      %v10851 = vadd.f32 %v10850, %v10684
      %v10852 = vadd.f32 %v10851, %v10693
      %v10853 = vadd.f32 %v10852, %v10694
      %v10854 = vadd.f32 %v10853, %v10703
      %v10855 = vadd.f32 %v10854, %v10704
      %v10856 = vadd.f32 %v10855, %v10713
      %v10857 = vadd.f32 %v10856, %v10714
      %v10858 = vadd.f32 %v10857, %v10723
      %v10859 = vadd.f32 %v10858, %v10724
      %v10860 = vadd.f32 %v10859, %v10733
      %v10861 = vadd.f32 %v10860, %v10734
      %v10862 = vadd.f32 %v10861, %v10743
      %v10863 = vadd.f32 %v10862, %v10744
      %v10864 = vadd.f32 %v10863, %v10753
      %v10865 = vadd.f32 %v10864, %v10754
      %v10866 = vadd.f32 %v10865, %v10763
      %v10867 = vadd.f32 %v10866, %v10764
      %v10868 = vadd.f32 %v10867, %v10773
      %v10869 = vadd.f32 %v10868, %v10774
      %v10870 = vadd.f32 %v10869, %v10783
      %v10871 = vadd.f32 %v10870, %v10784
      %v10872 = vadd.f32 %v10871, %v10793
      %v10873 = vadd.f32 %v10872, %v10794
      %v10874 = vadd.f32 %v10873, %v10803
      %v10875 = vadd.f32 %v10874, %v10804
      %v10876 = vadd.f32 %v10875, %v10813
      %v10877 = vadd.f32 %v10876, %v10814
      %v10878 = vrot.slane %v10877, 4
      %v10879 = vadd.f32 %v10877, %v10878
      %v10880 = vrot.slane %v10879, 2
      %v10881 = vadd.f32 %v10879, %v10880
      %v10882 = vrot.slane %v10881, 1
      %v10883 = vadd.f32 %v10881, %v10882
      %v10884 = vmul.f32 %v10391, 0.00390625
      %v10885 = vmul.f32 %v10883, 0.00390625
      %v10886 = vmul.f32 %v10884, %v10884
      %v10887 = vsub.f32 %v10885, %v10886
      %v10888 = vmax.f32 %v10887, 0.0
      %v10890 = vrot.slane %v10884, 2
      %v10891 = vrot.slane %v10884, 4
      %v10892 = vrot.slane %v10884, 6
      %v10896 = vsub.f32 %v9900, %v10884
      %v10897 = vsub.f32 %v9901, %v10890
      %v10898 = vsub.f32 %v9902, %v10891
      %v10899 = vsub.f32 %v9903, %v10892
      %v10900 = vsub.f32 %v9904, %v10884
      %v10901 = vsub.f32 %v9905, %v10890
      %v10902 = vsub.f32 %v9906, %v10891
      %v10903 = vsub.f32 %v9907, %v10892
      %v10904 = vsub.f32 %v9908, %v10884
      %v10905 = vsub.f32 %v9909, %v10890
      %v10906 = vsub.f32 %v9910, %v10891
      %v10907 = vsub.f32 %v9911, %v10892
      %v10908 = vsub.f32 %v9912, %v10884
      %v10909 = vsub.f32 %v9913, %v10890
      %v10910 = vsub.f32 %v9914, %v10891
      %v10911 = vsub.f32 %v9915, %v10892
      %v10912 = vsub.f32 %v9916, %v10884
      %v10913 = vsub.f32 %v9917, %v10890
      %v10914 = vsub.f32 %v9918, %v10891
      %v10915 = vsub.f32 %v9919, %v10892
      %v10916 = vsub.f32 %v9920, %v10884
      %v10917 = vsub.f32 %v9921, %v10890
      %v10918 = vsub.f32 %v9922, %v10891
      %v10919 = vsub.f32 %v9923, %v10892
      %v10920 = vsub.f32 %v9924, %v10884
      %v10921 = vsub.f32 %v9925, %v10890
      %v10922 = vsub.f32 %v9926, %v10891
      %v10923 = vsub.f32 %v9927, %v10892
      %v10924 = vsub.f32 %v9928, %v10884
      %v10925 = vsub.f32 %v9929, %v10890
      %v10926 = vsub.f32 %v9930, %v10891
      %v10927 = vsub.f32 %v9931, %v10892
      %v10928 = vsub.f32 %v9932, %v10884
      %v10929 = vsub.f32 %v9933, %v10890
      %v10930 = vsub.f32 %v9934, %v10891
      %v10931 = vsub.f32 %v9935, %v10892
      %v10932 = vsub.f32 %v9936, %v10884
      %v10933 = vsub.f32 %v9937, %v10890
      %v10934 = vsub.f32 %v9938, %v10891
      %v10935 = vsub.f32 %v9939, %v10892
      %v10936 = vsub.f32 %v9940, %v10884
      %v10937 = vsub.f32 %v9941, %v10890
      %v10938 = vsub.f32 %v9942, %v10891
      %v10939 = vsub.f32 %v9943, %v10892
      %v10940 = vsub.f32 %v9944, %v10884
      %v10941 = vsub.f32 %v9945, %v10890
      %v10942 = vsub.f32 %v9946, %v10891
      %v10943 = vsub.f32 %v9947, %v10892
      %v10944 = vsub.f32 %v9948, %v10884
      %v10945 = vsub.f32 %v9949, %v10890
      %v10946 = vsub.f32 %v9950, %v10891
      %v10947 = vsub.f32 %v9951, %v10892
      %v10948 = vsub.f32 %v9952, %v10884
      %v10949 = vsub.f32 %v9953, %v10890
      %v10950 = vsub.f32 %v9954, %v10891
      %v10951 = vsub.f32 %v9955, %v10892
      %v10952 = vsub.f32 %v9956, %v10884
      %v10953 = vsub.f32 %v9957, %v10890
      %v10954 = vsub.f32 %v9958, %v10891
      %v10955 = vsub.f32 %v9959, %v10892
      %v10956 = vsub.f32 %v9960, %v10884
      %v10957 = vsub.f32 %v9961, %v10890
      %v10958 = vsub.f32 %v9962, %v10891
      %v10959 = vsub.f32 %v9963, %v10892
      %v10960 = vsub.f32 %v9964, %v10884
      %v10961 = vsub.f32 %v9965, %v10890
      %v10962 = vsub.f32 %v9966, %v10891
      %v10963 = vsub.f32 %v9967, %v10892
      %v10964 = vsub.f32 %v9968, %v10884
      %v10965 = vsub.f32 %v9969, %v10890
      %v10966 = vsub.f32 %v9970, %v10891
      %v10967 = vsub.f32 %v9971, %v10892
      %v10968 = vsub.f32 %v9972, %v10884
      %v10969 = vsub.f32 %v9973, %v10890
      %v10970 = vsub.f32 %v9974, %v10891
      %v10971 = vsub.f32 %v9975, %v10892
      %v10972 = vsub.f32 %v9976, %v10884
      %v10973 = vsub.f32 %v9977, %v10890
      %v10974 = vsub.f32 %v9978, %v10891
      %v10975 = vsub.f32 %v9979, %v10892
      %v10976 = vsub.f32 %v9980, %v10884
      %v10977 = vsub.f32 %v9981, %v10890
      %v10978 = vsub.f32 %v9982, %v10891
      %v10979 = vsub.f32 %v9983, %v10892
      %v10980 = vsub.f32 %v9984, %v10884
      %v10981 = vsub.f32 %v9985, %v10890
      %v10982 = vsub.f32 %v9986, %v10891
      %v10983 = vsub.f32 %v9987, %v10892
      %v10984 = vsub.f32 %v9988, %v10884
      %v10985 = vsub.f32 %v9989, %v10890
      %v10986 = vsub.f32 %v9990, %v10891
      %v10987 = vsub.f32 %v9991, %v10892
      %v10988 = vsub.f32 %v9992, %v10884
      %v10989 = vsub.f32 %v9993, %v10890
      %v10990 = vsub.f32 %v9994, %v10891
      %v10991 = vsub.f32 %v9995, %v10892
      %v10992 = vsub.f32 %v9996, %v10884
      %v10993 = vsub.f32 %v9997, %v10890
      %v10994 = vsub.f32 %v9998, %v10891
      %v10995 = vsub.f32 %v9999, %v10892
      %v10996 = vsub.f32 %v10000, %v10884
      %v10997 = vsub.f32 %v10001, %v10890
      %v10998 = vsub.f32 %v10002, %v10891
      %v10999 = vsub.f32 %v10003, %v10892
      %v11000 = vsub.f32 %v10004, %v10884
      %v11001 = vsub.f32 %v10005, %v10890
      %v11002 = vsub.f32 %v10006, %v10891
      %v11003 = vsub.f32 %v10007, %v10892
      %v11004 = vsub.f32 %v10008, %v10884
      %v11005 = vsub.f32 %v10009, %v10890
      %v11006 = vsub.f32 %v10010, %v10891
      %v11007 = vsub.f32 %v10011, %v10892
      %v11008 = vsub.f32 %v10012, %v10884
      %v11009 = vsub.f32 %v10013, %v10890
      %v11010 = vsub.f32 %v10014, %v10891
      %v11011 = vsub.f32 %v10015, %v10892
      %v11012 = vsub.f32 %v10016, %v10884
      %v11013 = vsub.f32 %v10017, %v10890
      %v11014 = vsub.f32 %v10018, %v10891
      %v11015 = vsub.f32 %v10019, %v10892
      %v11016 = vsub.f32 %v10020, %v10884
      %v11017 = vsub.f32 %v10021, %v10890
      %v11018 = vsub.f32 %v10022, %v10891
      %v11019 = vsub.f32 %v10023, %v10892
      %v11020 = vsub.f32 %v10024, %v10884
      %v11021 = vsub.f32 %v10025, %v10890
      %v11022 = vsub.f32 %v10026, %v10891
      %v11023 = vsub.f32 %v10027, %v10892
      %v11024 = vadd.f32 %v10888, 1e-05
      %v11025 = vrsqrt.pop %v11024
      %v11026 = vmul.f32 %v11025, %v11024
      %v11027 = vmul.f32 %v11026, %v11025
      %v11028 = vmul.f32 0.5, %v11027
      %v11029 = vsub.f32 1.5, %v11028
      %v11030 = vmul.f32 %v11025, %v11029
      %vm11031 = vweird.f32 %v11024
      %vm11032 = vweird.f32 %v11025
      %vm11033 = vmor %vm11031, %vm11032
      %v11034 = vsel %vm11033, %v11025, %v11030
      %v11036 = vrot.slane %v11034, 2
      %v11037 = vrot.slane %v11034, 4
      %v11038 = vrot.slane %v11034, 6
      %v11042 = vmul.f32 %v10896, %v11034
      %v11043 = vmul.f32 %v10897, %v11036
      %v11044 = vmul.f32 %v10898, %v11037
      %v11045 = vmul.f32 %v10899, %v11038
      %v11046 = vmul.f32 %v10900, %v11034
      %v11047 = vmul.f32 %v10901, %v11036
      %v11048 = vmul.f32 %v10902, %v11037
      %v11049 = vmul.f32 %v10903, %v11038
      %v11050 = vmul.f32 %v10904, %v11034
      %v11051 = vmul.f32 %v10905, %v11036
      %v11052 = vmul.f32 %v10906, %v11037
      %v11053 = vmul.f32 %v10907, %v11038
      %v11054 = vmul.f32 %v10908, %v11034
      %v11055 = vmul.f32 %v10909, %v11036
      %v11056 = vmul.f32 %v10910, %v11037
      %v11057 = vmul.f32 %v10911, %v11038
      %v11058 = vmul.f32 %v10912, %v11034
      %v11059 = vmul.f32 %v10913, %v11036
      %v11060 = vmul.f32 %v10914, %v11037
      %v11061 = vmul.f32 %v10915, %v11038
      %v11062 = vmul.f32 %v10916, %v11034
      %v11063 = vmul.f32 %v10917, %v11036
      %v11064 = vmul.f32 %v10918, %v11037
      %v11065 = vmul.f32 %v10919, %v11038
      %v11066 = vmul.f32 %v10920, %v11034
      %v11067 = vmul.f32 %v10921, %v11036
      %v11068 = vmul.f32 %v10922, %v11037
      %v11069 = vmul.f32 %v10923, %v11038
      %v11070 = vmul.f32 %v10924, %v11034
      %v11071 = vmul.f32 %v10925, %v11036
      %v11072 = vmul.f32 %v10926, %v11037
      %v11073 = vmul.f32 %v10927, %v11038
      %v11074 = vmul.f32 %v10928, %v11034
      %v11075 = vmul.f32 %v10929, %v11036
      %v11076 = vmul.f32 %v10930, %v11037
      %v11077 = vmul.f32 %v10931, %v11038
      %v11078 = vmul.f32 %v10932, %v11034
      %v11079 = vmul.f32 %v10933, %v11036
      %v11080 = vmul.f32 %v10934, %v11037
      %v11081 = vmul.f32 %v10935, %v11038
      %v11082 = vmul.f32 %v10936, %v11034
      %v11083 = vmul.f32 %v10937, %v11036
      %v11084 = vmul.f32 %v10938, %v11037
      %v11085 = vmul.f32 %v10939, %v11038
      %v11086 = vmul.f32 %v10940, %v11034
      %v11087 = vmul.f32 %v10941, %v11036
      %v11088 = vmul.f32 %v10942, %v11037
      %v11089 = vmul.f32 %v10943, %v11038
      %v11090 = vmul.f32 %v10944, %v11034
      %v11091 = vmul.f32 %v10945, %v11036
      %v11092 = vmul.f32 %v10946, %v11037
      %v11093 = vmul.f32 %v10947, %v11038
      %v11094 = vmul.f32 %v10948, %v11034
      %v11095 = vmul.f32 %v10949, %v11036
      %v11096 = vmul.f32 %v10950, %v11037
      %v11097 = vmul.f32 %v10951, %v11038
      %v11098 = vmul.f32 %v10952, %v11034
      %v11099 = vmul.f32 %v10953, %v11036
      %v11100 = vmul.f32 %v10954, %v11037
      %v11101 = vmul.f32 %v10955, %v11038
      %v11102 = vmul.f32 %v10956, %v11034
      %v11103 = vmul.f32 %v10957, %v11036
      %v11104 = vmul.f32 %v10958, %v11037
      %v11105 = vmul.f32 %v10959, %v11038
      %v11106 = vmul.f32 %v10960, %v11034
      %v11107 = vmul.f32 %v10961, %v11036
      %v11108 = vmul.f32 %v10962, %v11037
      %v11109 = vmul.f32 %v10963, %v11038
      %v11110 = vmul.f32 %v10964, %v11034
      %v11111 = vmul.f32 %v10965, %v11036
      %v11112 = vmul.f32 %v10966, %v11037
      %v11113 = vmul.f32 %v10967, %v11038
      %v11114 = vmul.f32 %v10968, %v11034
      %v11115 = vmul.f32 %v10969, %v11036
      %v11116 = vmul.f32 %v10970, %v11037
      %v11117 = vmul.f32 %v10971, %v11038
      %v11118 = vmul.f32 %v10972, %v11034
      %v11119 = vmul.f32 %v10973, %v11036
      %v11120 = vmul.f32 %v10974, %v11037
      %v11121 = vmul.f32 %v10975, %v11038
      %v11122 = vmul.f32 %v10976, %v11034
      %v11123 = vmul.f32 %v10977, %v11036
      %v11124 = vmul.f32 %v10978, %v11037
      %v11125 = vmul.f32 %v10979, %v11038
      %v11126 = vmul.f32 %v10980, %v11034
      %v11127 = vmul.f32 %v10981, %v11036
      %v11128 = vmul.f32 %v10982, %v11037
      %v11129 = vmul.f32 %v10983, %v11038
      %v11130 = vmul.f32 %v10984, %v11034
      %v11131 = vmul.f32 %v10985, %v11036
      %v11132 = vmul.f32 %v10986, %v11037
      %v11133 = vmul.f32 %v10987, %v11038
      %v11134 = vmul.f32 %v10988, %v11034
      %v11135 = vmul.f32 %v10989, %v11036
      %v11136 = vmul.f32 %v10990, %v11037
      %v11137 = vmul.f32 %v10991, %v11038
      %v11138 = vmul.f32 %v10992, %v11034
      %v11139 = vmul.f32 %v10993, %v11036
      %v11140 = vmul.f32 %v10994, %v11037
      %v11141 = vmul.f32 %v10995, %v11038
      %v11142 = vmul.f32 %v10996, %v11034
      %v11143 = vmul.f32 %v10997, %v11036
      %v11144 = vmul.f32 %v10998, %v11037
      %v11145 = vmul.f32 %v10999, %v11038
      %v11146 = vmul.f32 %v11000, %v11034
      %v11147 = vmul.f32 %v11001, %v11036
      %v11148 = vmul.f32 %v11002, %v11037
      %v11149 = vmul.f32 %v11003, %v11038
      %v11150 = vmul.f32 %v11004, %v11034
      %v11151 = vmul.f32 %v11005, %v11036
      %v11152 = vmul.f32 %v11006, %v11037
      %v11153 = vmul.f32 %v11007, %v11038
      %v11154 = vmul.f32 %v11008, %v11034
      %v11155 = vmul.f32 %v11009, %v11036
      %v11156 = vmul.f32 %v11010, %v11037
      %v11157 = vmul.f32 %v11011, %v11038
      %v11158 = vmul.f32 %v11012, %v11034
      %v11159 = vmul.f32 %v11013, %v11036
      %v11160 = vmul.f32 %v11014, %v11037
      %v11161 = vmul.f32 %v11015, %v11038
      %v11162 = vmul.f32 %v11016, %v11034
      %v11163 = vmul.f32 %v11017, %v11036
      %v11164 = vmul.f32 %v11018, %v11037
      %v11165 = vmul.f32 %v11019, %v11038
      %v11166 = vmul.f32 %v11020, %v11034
      %v11167 = vmul.f32 %v11021, %v11036
      %v11168 = vmul.f32 %v11022, %v11037
      %v11169 = vmul.f32 %v11023, %v11038
      %11298 = vst [vmem:[#allocation1] ss:$4 sm:$0xff] %v11042
      %s11299 = scalar_lea.vmem [#allocation1], 1
      %11300 = vst [vmem:[%s11299] ss:$4 sm:$0xff] %v11043
      %s11301 = scalar_lea.vmem [#allocation1], 2
      %11302 = vst [vmem:[%s11301] ss:$4 sm:$0xff] %v11044
      %s11303 = scalar_lea.vmem [#allocation1], 3
      %11304 = vst [vmem:[%s11303] ss:$4 sm:$0xff] %v11045
      %s11305 = scalar_lea.vmem [#allocation1], 32
      %11306 = vst [vmem:[%s11305] ss:$4 sm:$0xff] %v11046
      %s11307 = scalar_lea.vmem [#allocation1], 33
      %11308 = vst [vmem:[%s11307] ss:$4 sm:$0xff] %v11047
      %s11309 = scalar_lea.vmem [#allocation1], 34
      %11310 = vst [vmem:[%s11309] ss:$4 sm:$0xff] %v11048
      %s11311 = scalar_lea.vmem [#allocation1], 35
      %11312 = vst [vmem:[%s11311] ss:$4 sm:$0xff] %v11049
      %v11313 = vld.sshfl [vmem:[#allocation1] sm:$0xff pattern:$0x73625140]
      %v11314 = vld.sshfl [vmem:[#allocation1 + $0x20] sm:$0xff pattern:$0x73625140]
      %11315 = vst [vmem:[#allocation1] ss:$4 sm:$0xff] %v11050
      %11316 = vst [vmem:[%s11299] ss:$4 sm:$0xff] %v11051
      %11317 = vst [vmem:[%s11301] ss:$4 sm:$0xff] %v11052
      %11318 = vst [vmem:[%s11303] ss:$4 sm:$0xff] %v11053
      %11319 = vst [vmem:[%s11305] ss:$4 sm:$0xff] %v11054
      %11320 = vst [vmem:[%s11307] ss:$4 sm:$0xff] %v11055
      %11321 = vst [vmem:[%s11309] ss:$4 sm:$0xff] %v11056
      %11322 = vst [vmem:[%s11311] ss:$4 sm:$0xff] %v11057
      %v11323 = vld.sshfl [vmem:[#allocation1] sm:$0xff pattern:$0x73625140]
      %v11324 = vld.sshfl [vmem:[#allocation1 + $0x20] sm:$0xff pattern:$0x73625140]
      %11325 = vst [vmem:[#allocation1] ss:$4 sm:$0xff] %v11058
      %11326 = vst [vmem:[%s11299] ss:$4 sm:$0xff] %v11059
      %11327 = vst [vmem:[%s11301] ss:$4 sm:$0xff] %v11060
      %11328 = vst [vmem:[%s11303] ss:$4 sm:$0xff] %v11061
      %11329 = vst [vmem:[%s11305] ss:$4 sm:$0xff] %v11062
      %11330 = vst [vmem:[%s11307] ss:$4 sm:$0xff] %v11063
      %11331 = vst [vmem:[%s11309] ss:$4 sm:$0xff] %v11064
      %11332 = vst [vmem:[%s11311] ss:$4 sm:$0xff] %v11065
      %v11333 = vld.sshfl [vmem:[#allocation1] sm:$0xff pattern:$0x73625140]
      %v11334 = vld.sshfl [vmem:[#allocation1 + $0x20] sm:$0xff pattern:$0x73625140]
      %11335 = vst [vmem:[#allocation1] ss:$4 sm:$0xff] %v11066
      %11336 = vst [vmem:[%s11299] ss:$4 sm:$0xff] %v11067
      %11337 = vst [vmem:[%s11301] ss:$4 sm:$0xff] %v11068
      %11338 = vst [vmem:[%s11303] ss:$4 sm:$0xff] %v11069
      %11339 = vst [vmem:[%s11305] ss:$4 sm:$0xff] %v11070
      %11340 = vst [vmem:[%s11307] ss:$4 sm:$0xff] %v11071
      %11341 = vst [vmem:[%s11309] ss:$4 sm:$0xff] %v11072
      %11342 = vst [vmem:[%s11311] ss:$4 sm:$0xff] %v11073
      %v11343 = vld.sshfl [vmem:[#allocation1] sm:$0xff pattern:$0x73625140]
      %v11344 = vld.sshfl [vmem:[#allocation1 + $0x20] sm:$0xff pattern:$0x73625140]
      %11345 = vst [vmem:[#allocation1] ss:$4 sm:$0xff] %v11074
      %11346 = vst [vmem:[%s11299] ss:$4 sm:$0xff] %v11075
      %11347 = vst [vmem:[%s11301] ss:$4 sm:$0xff] %v11076
      %11348 = vst [vmem:[%s11303] ss:$4 sm:$0xff] %v11077
      %11349 = vst [vmem:[%s11305] ss:$4 sm:$0xff] %v11078
      %11350 = vst [vmem:[%s11307] ss:$4 sm:$0xff] %v11079
      %11351 = vst [vmem:[%s11309] ss:$4 sm:$0xff] %v11080
      %11352 = vst [vmem:[%s11311] ss:$4 sm:$0xff] %v11081
      %v11353 = vld.sshfl [vmem:[#allocation1] sm:$0xff pattern:$0x73625140]
      %v11354 = vld.sshfl [vmem:[#allocation1 + $0x20] sm:$0xff pattern:$0x73625140]
      %11355 = vst [vmem:[#allocation1] ss:$4 sm:$0xff] %v11082
      %11356 = vst [vmem:[%s11299] ss:$4 sm:$0xff] %v11083
      %11357 = vst [vmem:[%s11301] ss:$4 sm:$0xff] %v11084
      %11358 = vst [vmem:[%s11303] ss:$4 sm:$0xff] %v11085
      %11359 = vst [vmem:[%s11305] ss:$4 sm:$0xff] %v11086
      %11360 = vst [vmem:[%s11307] ss:$4 sm:$0xff] %v11087
      %11361 = vst [vmem:[%s11309] ss:$4 sm:$0xff] %v11088
      %11362 = vst [vmem:[%s11311] ss:$4 sm:$0xff] %v11089
      %v11363 = vld.sshfl [vmem:[#allocation1] sm:$0xff pattern:$0x73625140]
      %v11364 = vld.sshfl [vmem:[#allocation1 + $0x20] sm:$0xff pattern:$0x73625140]
      %11365 = vst [vmem:[#allocation1] ss:$4 sm:$0xff] %v11090
      %11366 = vst [vmem:[%s11299] ss:$4 sm:$0xff] %v11091
      %11367 = vst [vmem:[%s11301] ss:$4 sm:$0xff] %v11092
      %11368 = vst [vmem:[%s11303] ss:$4 sm:$0xff] %v11093
      %11369 = vst [vmem:[%s11305] ss:$4 sm:$0xff] %v11094
      %11370 = vst [vmem:[%s11307] ss:$4 sm:$0xff] %v11095
      %11371 = vst [vmem:[%s11309] ss:$4 sm:$0xff] %v11096
      %11372 = vst [vmem:[%s11311] ss:$4 sm:$0xff] %v11097
      %v11373 = vld.sshfl [vmem:[#allocation1] sm:$0xff pattern:$0x73625140]
      %v11374 = vld.sshfl [vmem:[#allocation1 + $0x20] sm:$0xff pattern:$0x73625140]
      %11375 = vst [vmem:[#allocation1] ss:$4 sm:$0xff] %v11098
      %11376 = vst [vmem:[%s11299] ss:$4 sm:$0xff] %v11099
      %11377 = vst [vmem:[%s11301] ss:$4 sm:$0xff] %v11100
      %11378 = vst [vmem:[%s11303] ss:$4 sm:$0xff] %v11101
      %11379 = vst [vmem:[%s11305] ss:$4 sm:$0xff] %v11102
      %11380 = vst [vmem:[%s11307] ss:$4 sm:$0xff] %v11103
      %11381 = vst [vmem:[%s11309] ss:$4 sm:$0xff] %v11104
      %11382 = vst [vmem:[%s11311] ss:$4 sm:$0xff] %v11105
      %v11383 = vld.sshfl [vmem:[#allocation1] sm:$0xff pattern:$0x73625140]
      %v11384 = vld.sshfl [vmem:[#allocation1 + $0x20] sm:$0xff pattern:$0x73625140]
      %11385 = vst [vmem:[#allocation1] ss:$4 sm:$0xff] %v11106
      %11386 = vst [vmem:[%s11299] ss:$4 sm:$0xff] %v11107
      %11387 = vst [vmem:[%s11301] ss:$4 sm:$0xff] %v11108
      %11388 = vst [vmem:[%s11303] ss:$4 sm:$0xff] %v11109
      %11389 = vst [vmem:[%s11305] ss:$4 sm:$0xff] %v11110
      %11390 = vst [vmem:[%s11307] ss:$4 sm:$0xff] %v11111
      %11391 = vst [vmem:[%s11309] ss:$4 sm:$0xff] %v11112
      %11392 = vst [vmem:[%s11311] ss:$4 sm:$0xff] %v11113
      %v11393 = vld.sshfl [vmem:[#allocation1] sm:$0xff pattern:$0x73625140]
      %v11394 = vld.sshfl [vmem:[#allocation1 + $0x20] sm:$0xff pattern:$0x73625140]
      %11395 = vst [vmem:[#allocation1] ss:$4 sm:$0xff] %v11114
      %11396 = vst [vmem:[%s11299] ss:$4 sm:$0xff] %v11115
      %11397 = vst [vmem:[%s11301] ss:$4 sm:$0xff] %v11116
      %11398 = vst [vmem:[%s11303] ss:$4 sm:$0xff] %v11117
      %11399 = vst [vmem:[%s11305] ss:$4 sm:$0xff] %v11118
      %11400 = vst [vmem:[%s11307] ss:$4 sm:$0xff] %v11119
      %11401 = vst [vmem:[%s11309] ss:$4 sm:$0xff] %v11120
      %11402 = vst [vmem:[%s11311] ss:$4 sm:$0xff] %v11121
      %v11403 = vld.sshfl [vmem:[#allocation1] sm:$0xff pattern:$0x73625140]
      %v11404 = vld.sshfl [vmem:[#allocation1 + $0x20] sm:$0xff pattern:$0x73625140]
      %11405 = vst [vmem:[#allocation1] ss:$4 sm:$0xff] %v11122
      %11406 = vst [vmem:[%s11299] ss:$4 sm:$0xff] %v11123
      %11407 = vst [vmem:[%s11301] ss:$4 sm:$0xff] %v11124
      %11408 = vst [vmem:[%s11303] ss:$4 sm:$0xff] %v11125
      %11409 = vst [vmem:[%s11305] ss:$4 sm:$0xff] %v11126
      %11410 = vst [vmem:[%s11307] ss:$4 sm:$0xff] %v11127
      %11411 = vst [vmem:[%s11309] ss:$4 sm:$0xff] %v11128
      %11412 = vst [vmem:[%s11311] ss:$4 sm:$0xff] %v11129
      %v11413 = vld.sshfl [vmem:[#allocation1] sm:$0xff pattern:$0x73625140]
      %v11414 = vld.sshfl [vmem:[#allocation1 + $0x20] sm:$0xff pattern:$0x73625140]
      %11415 = vst [vmem:[#allocation1] ss:$4 sm:$0xff] %v11130
      %11416 = vst [vmem:[%s11299] ss:$4 sm:$0xff] %v11131
      %11417 = vst [vmem:[%s11301] ss:$4 sm:$0xff] %v11132
      %11418 = vst [vmem:[%s11303] ss:$4 sm:$0xff] %v11133
      %11419 = vst [vmem:[%s11305] ss:$4 sm:$0xff] %v11134
      %11420 = vst [vmem:[%s11307] ss:$4 sm:$0xff] %v11135
      %11421 = vst [vmem:[%s11309] ss:$4 sm:$0xff] %v11136
      %11422 = vst [vmem:[%s11311] ss:$4 sm:$0xff] %v11137
      %v11423 = vld.sshfl [vmem:[#allocation1] sm:$0xff pattern:$0x73625140]
      %v11424 = vld.sshfl [vmem:[#allocation1 + $0x20] sm:$0xff pattern:$0x73625140]
      %11425 = vst [vmem:[#allocation1] ss:$4 sm:$0xff] %v11138
      %11426 = vst [vmem:[%s11299] ss:$4 sm:$0xff] %v11139
      %11427 = vst [vmem:[%s11301] ss:$4 sm:$0xff] %v11140
      %11428 = vst [vmem:[%s11303] ss:$4 sm:$0xff] %v11141
      %11429 = vst [vmem:[%s11305] ss:$4 sm:$0xff] %v11142
      %11430 = vst [vmem:[%s11307] ss:$4 sm:$0xff] %v11143
      %11431 = vst [vmem:[%s11309] ss:$4 sm:$0xff] %v11144
      %11432 = vst [vmem:[%s11311] ss:$4 sm:$0xff] %v11145
      %v11433 = vld.sshfl [vmem:[#allocation1] sm:$0xff pattern:$0x73625140]
      %v11434 = vld.sshfl [vmem:[#allocation1 + $0x20] sm:$0xff pattern:$0x73625140]
      %11435 = vst [vmem:[#allocation1] ss:$4 sm:$0xff] %v11146
      %11436 = vst [vmem:[%s11299] ss:$4 sm:$0xff] %v11147
      %11437 = vst [vmem:[%s11301] ss:$4 sm:$0xff] %v11148
      %11438 = vst [vmem:[%s11303] ss:$4 sm:$0xff] %v11149
      %11439 = vst [vmem:[%s11305] ss:$4 sm:$0xff] %v11150
      %11440 = vst [vmem:[%s11307] ss:$4 sm:$0xff] %v11151
      %11441 = vst [vmem:[%s11309] ss:$4 sm:$0xff] %v11152
      %11442 = vst [vmem:[%s11311] ss:$4 sm:$0xff] %v11153
      %v11443 = vld.sshfl [vmem:[#allocation1] sm:$0xff pattern:$0x73625140]
      %v11444 = vld.sshfl [vmem:[#allocation1 + $0x20] sm:$0xff pattern:$0x73625140]
      %11445 = vst [vmem:[#allocation1] ss:$4 sm:$0xff] %v11154
      %11446 = vst [vmem:[%s11299] ss:$4 sm:$0xff] %v11155
      %11447 = vst [vmem:[%s11301] ss:$4 sm:$0xff] %v11156
      %11448 = vst [vmem:[%s11303] ss:$4 sm:$0xff] %v11157
      %11449 = vst [vmem:[%s11305] ss:$4 sm:$0xff] %v11158
      %11450 = vst [vmem:[%s11307] ss:$4 sm:$0xff] %v11159
      %11451 = vst [vmem:[%s11309] ss:$4 sm:$0xff] %v11160
      %11452 = vst [vmem:[%s11311] ss:$4 sm:$0xff] %v11161
      %v11453 = vld.sshfl [vmem:[#allocation1] sm:$0xff pattern:$0x73625140]
      %v11454 = vld.sshfl [vmem:[#allocation1 + $0x20] sm:$0xff pattern:$0x73625140]
      %11455 = vst [vmem:[#allocation1] ss:$4 sm:$0xff] %v11162
      %11456 = vst [vmem:[%s11299] ss:$4 sm:$0xff] %v11163
      %11457 = vst [vmem:[%s11301] ss:$4 sm:$0xff] %v11164
      %11458 = vst [vmem:[%s11303] ss:$4 sm:$0xff] %v11165
      %11459 = vst [vmem:[%s11305] ss:$4 sm:$0xff] %v11166
      %11460 = vst [vmem:[%s11307] ss:$4 sm:$0xff] %v11167
      %11461 = vst [vmem:[%s11309] ss:$4 sm:$0xff] %v11168
      %11462 = vst [vmem:[%s11311] ss:$4 sm:$0xff] %v11169
      %v11463 = vld.sshfl [vmem:[#allocation1] sm:$0xff pattern:$0x73625140]
      %v11464 = vld.sshfl [vmem:[#allocation1 + $0x20] sm:$0xff pattern:$0x73625140]
      %v11497 = vadd.f32 %v171, %v11313
      %v11498 = vadd.f32 %v172, %v11314
      %v11499 = vadd.f32 %v173, %v11323
      %v11500 = vadd.f32 %v174, %v11324
      %v11501 = vadd.f32 %v175, %v11333
      %v11502 = vadd.f32 %v176, %v11334
      %v11503 = vadd.f32 %v177, %v11343
      %v11504 = vadd.f32 %v178, %v11344
      %v11505 = vadd.f32 %v179, %v11353
      %v11506 = vadd.f32 %v180, %v11354
      %v11507 = vadd.f32 %v181, %v11363
      %v11508 = vadd.f32 %v182, %v11364
      %v11509 = vadd.f32 %v183, %v11373
      %v11510 = vadd.f32 %v184, %v11374
      %v11511 = vadd.f32 %v185, %v11383
      %v11512 = vadd.f32 %v186, %v11384
      %v11513 = vadd.f32 %v187, %v11393
      %v11514 = vadd.f32 %v188, %v11394
      %v11515 = vadd.f32 %v189, %v11403
      %v11516 = vadd.f32 %v190, %v11404
      %v11517 = vadd.f32 %v191, %v11413
      %v11518 = vadd.f32 %v192, %v11414
      %v11519 = vadd.f32 %v193, %v11423
      %v11520 = vadd.f32 %v194, %v11424
      %v11521 = vadd.f32 %v195, %v11433
      %v11522 = vadd.f32 %v196, %v11434
      %v11523 = vadd.f32 %v197, %v11443
      %v11524 = vadd.f32 %v198, %v11444
      %v11525 = vadd.f32 %v199, %v11453
      %v11526 = vadd.f32 %v200, %v11454
      %v11527 = vadd.f32 %v201, %v11463
      %v11528 = vadd.f32 %v202, %v11464
      %11529 = vst [vmem:[%s170] sm:$0xff] %v11497
      %11530 = vst [vmem:[%s170 + $0x8] sm:$0xff] %v11498
      %11531 = vst [vmem:[%s170 + $0x10] sm:$0xff] %v11499
      %11532 = vst [vmem:[%s170 + $0x18] sm:$0xff] %v11500
      %11533 = vst [vmem:[%s170 + $0x20] sm:$0xff] %v11501
      %11534 = vst [vmem:[%s170 + $0x28] sm:$0xff] %v11502
      %11535 = vst [vmem:[%s170 + $0x30] sm:$0xff] %v11503
      %11536 = vst [vmem:[%s170 + $0x38] sm:$0xff] %v11504
      %11537 = vst [vmem:[%s170 + $0x40] sm:$0xff] %v11505
      %11538 = vst [vmem:[%s170 + $0x48] sm:$0xff] %v11506
      %11539 = vst [vmem:[%s170 + $0x50] sm:$0xff] %v11507
      %11540 = vst [vmem:[%s170 + $0x58] sm:$0xff] %v11508
      %11541 = vst [vmem:[%s170 + $0x60] sm:$0xff] %v11509
      %11542 = vst [vmem:[%s170 + $0x68] sm:$0xff] %v11510
      %11543 = vst [vmem:[%s170 + $0x70] sm:$0xff] %v11511
      %11544 = vst [vmem:[%s170 + $0x78] sm:$0xff] %v11512
      %11545 = vst [vmem:[%s170 + $0x80] sm:$0xff] %v11513
      %11546 = vst [vmem:[%s170 + $0x88] sm:$0xff] %v11514
      %11547 = vst [vmem:[%s170 + $0x90] sm:$0xff] %v11515
      %11548 = vst [vmem:[%s170 + $0x98] sm:$0xff] %v11516
      %11549 = vst [vmem:[%s170 + $0xa0] sm:$0xff] %v11517
      %11550 = vst [vmem:[%s170 + $0xa8] sm:$0xff] %v11518
      %11551 = vst [vmem:[%s170 + $0xb0] sm:$0xff] %v11519
      %11552 = vst [vmem:[%s170 + $0xb8] sm:$0xff] %v11520
      %11553 = vst [vmem:[%s170 + $0xc0] sm:$0xff] %v11521
      %11554 = vst [vmem:[%s170 + $0xc8] sm:$0xff] %v11522
      %11555 = vst [vmem:[%s170 + $0xd0] sm:$0xff] %v11523
      %11556 = vst [vmem:[%s170 + $0xd8] sm:$0xff] %v11524
      %11557 = vst [vmem:[%s170 + $0xe0] sm:$0xff] %v11525
      %11558 = vst [vmem:[%s170 + $0xe8] sm:$0xff] %v11526
      %11559 = vst [vmem:[%s170 + $0xf0] sm:$0xff] %v11527
      %11560 = vst [vmem:[%s170 + $0xf8] sm:$0xff] %v11528
      %p11561 = scmp.lt.s32.totalorder %s14, 1
      %s11562 = scalar_select %p11561, %s14, 1
      %s11563 = smul.addr %s11562, 32
      %s11564 = smul.addr %s11563, 8
      %s11565 = scalar_lea.vmem %s3, %s11564
      // Predicated region
      $region33: #{resnet_block_forward.1} parent=31 // pred_check
        %p11566 = pneg %p100
      $region34: #{resnet_block_forward.1} parent=31 // pred_check_branch
        %11568 = sbr.rel (%p11566) target = $region36
      $region35: #{resnet_block_forward.1} parent=31 // pred_region
        _
      $region36: #{resnet_block_forward.1} parent=31 // pred_fallthru
        _
    $region32: #{resnet_block_forward.1} parent=5 // pred_fallthru
      _
    %p11569 = scmp.le.s32.totalorder 2, %s9
    // Predicated region
    $region37: #{resnet_block_forward.1} parent=5 // pred_check
      %p11570 = pneg %p11569
    $region38: #{resnet_block_forward.1} parent=5 // pred_check_branch
      %11572 = sbr.rel (%p11570) target = $region40
    $region39: #{resnet_block_forward.1} parent=5 // pred_region
      %s11573 = ssub.s32 %s9, 2
      // Predicated region
      $region41: #{resnet_block_forward.1} parent=39 // pred_check
        %p11574 = pneg %p106
      $region42: #{resnet_block_forward.1} parent=39 // pred_check_branch
        %11576 = sbr.rel (%p11574) target = $region44
      $region43: #{resnet_block_forward.1} parent=39 // pred_region
        %p11577 = scmp.lt.s32.totalorder %s15, 1
        %s11578 = scalar_select %p11577, %s15, 1
        %s11579 = smul.addr %s11578, 32
        %s11580 = smul.addr %s11579, 8
        %s11581 = scalar_lea.vmem %s3, %s11580
      $region44: #{resnet_block_forward.1} parent=39 // pred_fallthru
        _
    $region40: #{resnet_block_forward.1} parent=5 // pred_fallthru
      _
  $region6: #{resnet_block_forward.1} parent=0 // loop_footer
    %s13 = sadd.s32 1, %s9
  $region7: #{resnet_block_forward.1} parent=0 // loop_footer_branch
    %8 = sbr.rel target = $region3
  $region8: #{resnet_block_forward.1} parent=0 // loop_exit
    _

</llo_original>
